<compile_context>
chip_gen: v5e
topology: v5e:2x2
jax: 0.10.0
libtpu: 0.0.40
codegen_flags: <defaults>
</compile_context>

<pallas_src>
import jax
import jax.numpy as jnp
import numpy as np
from jax.experimental import pallas as pl
from jax.experimental.pallas import tpu as pltpu

LANES = 128


# ------------------------------ fused kernel ------------------------------- #

def _net_kernel(cols1_ref, w1_ref, b1_ref, w2_ref, b2_ref,
                wf1_ref, bf1_ref, wf2_ref, bf2_ref, wf3_ref, bf3_ref,
                out_ref, c1s, hm1, p1s, c2s, p2s):
    """One image per grid step; all activations stay VMEM-resident.

    Row layouts (lane dim = 128 zero-padded channels / features):
      cols1 : (784, 128)  conv1 im2col rows for this image, row = h*28 + w
      c1s   : (784, 128)  relu(conv1), bf16
      hm1   : (392, 128)  pool1 h-direction max, f32, row = ho*28 + w
      p1s   : (208, 128)  pooled1, bf16, rows 0..195 = ho*14 + wo, 196..207 = 0
      c2s   : (140, 128)  relu(conv2) on full-width rows (w'=0..13), f32
      p2s   : (32, 128)   pooled2, bf16, rows 0..24 = h*5 + w
    """
    f32 = jnp.float32
    bf16 = jnp.bfloat16

    # ---- conv1: one lane-dense matmul + bias + relu (bf16 MXU, f32 acc) ----
    y1 = jnp.dot(cols1_ref[...], w1_ref[...], preferred_element_type=f32)
    y1 = jnp.maximum(y1 + b1_ref[...], 0.0)
    c1s[...] = y1.astype(bf16)

    # ---- pool1 (28x28 -> 14x14), two vectorized passes ---------------------
    # Pass A: max over row (h) pairs; contiguous 28-row loads/stores.
    for ho in range(14):
        a = c1s[pl.ds((2 * ho) * 28, 28), :]
        b = c1s[pl.ds((2 * ho + 1) * 28, 28), :]
        hm1[pl.ds(ho * 28, 28), :] = jnp.maximum(a, b).astype(f32)
    # Pass B: max over column (w) pairs, one whole-buffer strided op.
    p1s[pl.ds(0, 196), :] = jnp.maximum(
        hm1[pl.ds(0, 196, 2), :], hm1[pl.ds(1, 196, 2), :]).astype(bf16)
    # Zero pad tail.  Invariant: conv2's shifted tap windows read up to row
    # 199, but every product from rows >= 196 lands in junk output rows
    # (w' = 10..13) that pool2 never reads.  Zeroing keeps it robust anyway.
    p1s[pl.ds(196, 12), :] = jnp.zeros((12, LANES), dtype=bf16)

    # ---- conv2: 25 shifted-window tap matmuls over pooled1 -----------------
    # Output rows keep the *input* width (14): rows with w'=10..13 are junk
    # and never read back by pool2, so shifted windows never need cropping.
    # Consecutive dots into a single f32 accumulator (v7x MRB-friendly).
    acc = jnp.zeros((140, LANES), f32)
    for t in range(25):
        di, dj = t // 5, t % 5
        lhs = p1s[pl.ds(di * 14 + dj, 140), :]
        acc = acc + jnp.dot(lhs, w2_ref[pl.ds(t * LANES, LANES), :],
                            preferred_element_type=f32)
    c2s[...] = jnp.maximum(acc + b2_ref[...], 0.0)

    # ---- pool2 (10x10 -> 5x5) ----------------------------------------------
    for ho in range(5):
        r0 = (2 * ho) * 14
        r1 = r0 + 14
        m = jnp.maximum(
            jnp.maximum(c2s[pl.ds(r0, 5, 2), :], c2s[pl.ds(r0 + 1, 5, 2), :]),
            jnp.maximum(c2s[pl.ds(r1, 5, 2), :], c2s[pl.ds(r1 + 1, 5, 2), :]))
        p2s[pl.ds(ho * 5, 5), :] = m.astype(bf16)

    # ---- fc1: torch-flatten (c,h,w) order folded into 25 weight blocks -----
    h = jnp.zeros((1, LANES), f32)
    for pos in range(25):                      # pos = h*5 + w
        row = p2s[pl.ds(pos, 1), :]            # (1, 128) activations at pos
        h = h + jnp.dot(row, wf1_ref[pl.ds(pos * LANES, LANES), :],
                        preferred_element_type=f32)
    h = jnp.maximum(h + bf1_ref[...], 0.0)

    # ---- fc2 / fc3 (f32 LHS; these matmuls are tiny) ------------------------
    h = jnp.dot(h, wf2_ref[...].astype(f32), preferred_element_type=f32)
    h = jnp.maximum(h + bf2_ref[...], 0.0)
    h = jnp.dot(h, wf3_ref[...].astype(f32), preferred_element_type=f32)
    h = h + bf3_ref[...]                       # no relu on fc3
    # Lane-dense, full-width (8,128) store; wrapper keeps row 0, lanes 0..9.
    out_ref[0, :, :] = jnp.broadcast_to(h, (8, LANES))


# ------------------------------ wrapper / prep ------------------------------ #

def prepare_params(p):
    """One-time repack of torch-layout params into lane-dense (128-padded),
    bf16, kernel-friendly blocks. Run once, outside the jitted forward."""
    bf16, f32 = jnp.bfloat16, jnp.float32

    def pad2(a, rows, cols):
        return jnp.pad(a, ((0, rows - a.shape[0]), (0, cols - a.shape[1])))

    def padb(b):
        return jnp.pad(b, (0, LANES - b.shape[0])).reshape(1, LANES).astype(f32)

    # conv1: (6,3,5,5) -> rows K=(kh,kw,cin)=75, cols N=6, padded to 128x128.
    w1 = jnp.transpose(p["conv1_w"], (2, 3, 1, 0)).reshape(75, 6)
    w1 = pad2(w1, LANES, LANES).astype(bf16)
    # conv2: 25 per-tap (cin 6->128, cout 16->128) blocks stacked along rows.
    w2 = jnp.transpose(p["conv2_w"], (2, 3, 1, 0)).reshape(25, 6, 16)
    w2 = jnp.pad(w2, ((0, 0), (0, LANES - 6), (0, LANES - 16)))
    w2 = w2.reshape(25 * LANES, LANES).astype(bf16)
    # fc1: block[pos][c, n] = fc1_w[n, c*25 + pos]  (folds torch.flatten order)
    wf1 = p["fc1_w"].T.reshape(16, 25, 120).transpose(1, 0, 2)
    wf1 = jnp.pad(wf1, ((0, 0), (0, LANES - 16), (0, LANES - 120)))
    wf1 = wf1.reshape(25 * LANES, LANES).astype(bf16)
    wf2 = pad2(p["fc2_w"].T, LANES, LANES).astype(bf16)   # (120,84) -> 128x128
    wf3 = pad2(p["fc3_w"].T, LANES, LANES).astype(bf16)   # (84,10)  -> 128x128
    return {
        "w1": w1, "b1": padb(p["conv1_b"]),
        "w2": w2, "b2": padb(p["conv2_b"]),
        "wf1": wf1, "bf1": padb(p["fc1_b"]),
        "wf2": wf2, "bf2": padb(p["fc2_b"]),
        "wf3": wf3, "bf3": padb(p["fc3_b"]),
    }


def net_forward(x, prep):
    """x: (B, 3, 32, 32) f32 NCHW (as in PyTorch). Returns (B, 10) logits."""
    B = x.shape[0]
    # conv1 im2col (tiny XLA prolog, kept on purpose: turns conv1 into one
    # dense (784,128)@(128,128) matmul per image).  Cast to bf16 FIRST so the
    # expansion is materialized at half the bytes.
    x_nhwc = jnp.transpose(x, (0, 2, 3, 1)).astype(jnp.bfloat16)
    cols = jnp.stack([x_nhwc[:, i:i + 28, j:j + 28, :]
                      for i in range(5) for j in range(5)], axis=3)
    cols = cols.reshape(B * 28 * 28, 75)
    cols = jnp.pad(cols, ((0, 0), (0, LANES - 75)))

    def const(shape):
        # Constant index_map: fetched once, VMEM-resident across the grid.
        return pl.BlockSpec(shape, lambda b: (0,) * len(shape))

    out = pl.pallas_call(
        _net_kernel,
        out_shape=jax.ShapeDtypeStruct((B, 8, LANES), jnp.float32),
        grid_spec=pltpu.PrefetchScalarGridSpec(
            num_scalar_prefetch=0,
            grid=(B,),                                   # one image per step
            in_specs=[
                pl.BlockSpec((784, LANES), lambda b: (b, 0)),   # cols1
                const((LANES, LANES)),                          # w1
                const((1, LANES)),                              # b1
                const((25 * LANES, LANES)),                     # w2 tap blocks
                const((1, LANES)),                              # b2
                const((25 * LANES, LANES)),                     # wf1 pos blocks
                const((1, LANES)),                              # bf1
                const((LANES, LANES)),                          # wf2
                const((1, LANES)),                              # bf2
                const((LANES, LANES)),                          # wf3
                const((1, LANES)),                              # bf3
            ],
            out_specs=pl.BlockSpec((1, 8, LANES), lambda b: (b, 0, 0)),
            scratch_shapes=[
                pltpu.VMEM((784, LANES), jnp.bfloat16),   # c1s
                pltpu.VMEM((392, LANES), jnp.float32),    # hm1 (pool1 pass A)
                pltpu.VMEM((208, LANES), jnp.bfloat16),   # p1s
                pltpu.VMEM((140, LANES), jnp.float32),    # c2s
                pltpu.VMEM((32, LANES), jnp.bfloat16),    # p2s
            ]),
        compiler_params=pltpu.CompilerParams(
            dimension_semantics=("parallel",),            # megacore on v7x
            vmem_limit_bytes=32 * 1024 * 1024),
    )(cols, prep["w1"], prep["b1"], prep["w2"], prep["b2"],
      prep["wf1"], prep["bf1"], prep["wf2"], prep["bf2"],
      prep["wf3"], prep["bf3"])
    return out[:, 0, :10]


# ------------------------------ reference / init ---------------------------- #

def init_params(key):
    def u(k, shape, fan_in):
        bound = 1.0 / np.sqrt(fan_in)
        return jax.random.uniform(k, shape, jnp.float32, -bound, bound)
    ks = jax.random.split(key, 10)
    return {
        "conv1_w": u(ks[0], (6, 3, 5, 5), 3 * 25),
        "conv1_b": u(ks[1], (6,), 3 * 25),
        "conv2_w": u(ks[2], (16, 6, 5, 5), 6 * 25),
        "conv2_b": u(ks[3], (16,), 6 * 25),
        "fc1_w": u(ks[4], (120, 400), 400),
        "fc1_b": u(ks[5], (120,), 400),
        "fc2_w": u(ks[6], (84, 120), 120),
        "fc2_b": u(ks[7], (84,), 120),
        "fc3_w": u(ks[8], (10, 84), 84),
        "fc3_b": u(ks[9], (10,), 84),
    }


def ref_forward(x, p):
    """Pure-JAX f32 reference of the PyTorch forward (correctness check)."""
    dn = ("NCHW", "OIHW", "NCHW")

    def pool(z):
        B, C, H, W = z.shape
        return z.reshape(B, C, H // 2, 2, W // 2, 2).max(axis=(3, 5))

    y = jax.lax.conv_general_dilated(x, p["conv1_w"], (1, 1), "VALID",
                                     dimension_numbers=dn)
    y = jnp.maximum(y + p["conv1_b"][None, :, None, None], 0.0)
    y = pool(y)
    y = jax.lax.conv_general_dilated(y, p["conv2_w"], (1, 1), "VALID",
                                     dimension_numbers=dn)
    y = jnp.maximum(y + p["conv2_b"][None, :, None, None], 0.0)
    y = pool(y)
    y = y.reshape(y.shape[0], -1)
    y = jnp.maximum(y @ p["fc1_w"].T + p["fc1_b"], 0.0)
    y = jnp.maximum(y @ p["fc2_w"].T + p["fc2_b"], 0.0)
    return y @ p["fc3_w"].T + p["fc3_b"]


if __name__ == "__main__":
    key = jax.random.PRNGKey(0)
    pkey, xkey = jax.random.split(key)
    params = init_params(pkey)
    prep = prepare_params(params)      # one-time lane-dense/bf16 repack
    # CIFAR-shaped input (fc1 requires 32x32 spatial); batch = 2.
    x = jax.random.normal(xkey, (2, 3, 32, 32), jnp.float32)

    out = jax.jit(net_forward)(x, prep)
    out = jax.block_until_ready(out)

    ref = ref_forward(x, params)
    # bf16 MXU inputs (f32 accumulation) vs. the f32 reference -> 5e-2 tol.
    np.testing.assert_allclose(np.asarray(out), np.asarray(ref),
                               rtol=5e-2, atol=5e-2)
    assert out.shape == (2, 10) and out.dtype == jnp.float32
    print("KERNEL_OK")
</pallas_src>

<mosaic_0001>
module attributes {stable_mosaic.version = 11 : i64} {
  func.func @_net_kernel(%arg0: i32, %arg1: memref<784x128xbf16, #tpu.memory_space<vmem>>, %arg2: memref<128x128xbf16, #tpu.memory_space<vmem>>, %arg3: memref<1x128xf32, #tpu.memory_space<vmem>>, %arg4: memref<3200x128xbf16, #tpu.memory_space<vmem>>, %arg5: memref<1x128xf32, #tpu.memory_space<vmem>>, %arg6: memref<3200x128xbf16, #tpu.memory_space<vmem>>, %arg7: memref<1x128xf32, #tpu.memory_space<vmem>>, %arg8: memref<128x128xbf16, #tpu.memory_space<vmem>>, %arg9: memref<1x128xf32, #tpu.memory_space<vmem>>, %arg10: memref<128x128xbf16, #tpu.memory_space<vmem>>, %arg11: memref<1x128xf32, #tpu.memory_space<vmem>>, %arg12: memref<1x8x128xf32, #tpu.memory_space<vmem>>, %arg13: memref<784x128xbf16, #tpu.memory_space<vmem>>, %arg14: memref<392x128xf32, #tpu.memory_space<vmem>>, %arg15: memref<208x128xbf16, #tpu.memory_space<vmem>>, %arg16: memref<140x128xf32, #tpu.memory_space<vmem>>, %arg17: memref<32x128xbf16, #tpu.memory_space<vmem>>) attributes {dimension_semantics = [#tpu.dimension_semantics<parallel>], iteration_bounds = array<i64: 2>, scalar_prefetch = 0 : i64, scratch_operands = 5 : i64, tpu.core_type = #tpu.core_type<tc>, window_params = [{transform_indices = @transform_0, window_bounds = array<i64: 784, 128>}, {pipeline_mode = #tpu.pipeline_mode<synchronous>, transform_indices = @transform_1, window_bounds = array<i64: 128, 128>}, {pipeline_mode = #tpu.pipeline_mode<synchronous>, transform_indices = @transform_2, window_bounds = array<i64: 1, 128>}, {pipeline_mode = #tpu.pipeline_mode<synchronous>, transform_indices = @transform_3, window_bounds = array<i64: 3200, 128>}, {pipeline_mode = #tpu.pipeline_mode<synchronous>, transform_indices = @transform_4, window_bounds = array<i64: 1, 128>}, {pipeline_mode = #tpu.pipeline_mode<synchronous>, transform_indices = @transform_5, window_bounds = array<i64: 3200, 128>}, {pipeline_mode = #tpu.pipeline_mode<synchronous>, transform_indices = @transform_6, window_bounds = array<i64: 1, 128>}, {pipeline_mode = #tpu.pipeline_mode<synchronous>, transform_indices = @transform_7, window_bounds = array<i64: 128, 128>}, {pipeline_mode = #tpu.pipeline_mode<synchronous>, transform_indices = @transform_8, window_bounds = array<i64: 1, 128>}, {pipeline_mode = #tpu.pipeline_mode<synchronous>, transform_indices = @transform_9, window_bounds = array<i64: 128, 128>}, {pipeline_mode = #tpu.pipeline_mode<synchronous>, transform_indices = @transform_10, window_bounds = array<i64: 1, 128>}, {transform_indices = @transform_11, window_bounds = array<i64: 1, 8, 128>}]} {
    %c0 = arith.constant 0 : index
    %c0_0 = arith.constant 0 : index
    %0 = vector.load %arg1[%c0, %c0_0] : memref<784x128xbf16, #tpu.memory_space<vmem>>, vector<784x128xbf16>
    %c0_1 = arith.constant 0 : index
    %c0_2 = arith.constant 0 : index
    %1 = vector.load %arg2[%c0_1, %c0_2] : memref<128x128xbf16, #tpu.memory_space<vmem>>, vector<128x128xbf16>
    %cst = arith.constant dense<0.000000e+00> : vector<784x128xf32>
    %2 = tpu.matmul %0, %1, %cst {dimension_numbers = #tpu.dot_dimension_numbers<[1], [0], [0], [1], [0, 0, 1, 1], [], []>} : vector<784x128xbf16>, vector<128x128xbf16>, vector<784x128xf32> -> vector<784x128xf32>
    %c0_3 = arith.constant 0 : index
    %c0_4 = arith.constant 0 : index
    %3 = vector.load %arg3[%c0_3, %c0_4] : memref<1x128xf32, #tpu.memory_space<vmem>>, vector<1x128xf32>
    %4 = vector.broadcast %3 : vector<1x128xf32> to vector<784x128xf32>
    %5 = arith.addf %2, %4 : vector<784x128xf32>
    %cst_5 = arith.constant 0.000000e+00 : f32
    %6 = vector.broadcast %cst_5 : f32 to vector<784x128xf32>
    %7 = arith.maximumf %5, %6 : vector<784x128xf32>
    %8 = arith.truncf %7 : vector<784x128xf32> to vector<784x128xbf16>
    %c0_6 = arith.constant 0 : index
    %c0_7 = arith.constant 0 : index
    %9 = vector.load %arg13[%c0_6, %c0_7] : memref<784x128xbf16, #tpu.memory_space<vmem>>, vector<784x128xbf16>
    tpu.vector_store %arg13[%c0_6, %c0_7], %8 {strides = array<i32>} : memref<784x128xbf16, #tpu.memory_space<vmem>>, vector<784x128xbf16>,
    %c0_8 = arith.constant 0 : index
    %c0_9 = arith.constant 0 : index
    %10 = vector.load %arg13[%c0_8, %c0_9] : memref<784x128xbf16, #tpu.memory_space<vmem>>, vector<28x128xbf16>
    %c28 = arith.constant 28 : index
    %c0_10 = arith.constant 0 : index
    %11 = vector.load %arg13[%c28, %c0_10] : memref<784x128xbf16, #tpu.memory_space<vmem>>, vector<28x128xbf16>
    %12 = arith.maximumf %10, %11 : vector<28x128xbf16>
    %13 = arith.extf %12 : vector<28x128xbf16> to vector<28x128xf32>
    %c0_11 = arith.constant 0 : index
    %c0_12 = arith.constant 0 : index
    %14 = vector.load %arg14[%c0_11, %c0_12] : memref<392x128xf32, #tpu.memory_space<vmem>>, vector<28x128xf32>
    tpu.vector_store %arg14[%c0_11, %c0_12], %13 {strides = array<i32>} : memref<392x128xf32, #tpu.memory_space<vmem>>, vector<28x128xf32>,
    %c56 = arith.constant 56 : index
    %c0_13 = arith.constant 0 : index
    %15 = vector.load %arg13[%c56, %c0_13] : memref<784x128xbf16, #tpu.memory_space<vmem>>, vector<28x128xbf16>
    %c84 = arith.constant 84 : index
    %c0_14 = arith.constant 0 : index
    %16 = vector.load %arg13[%c84, %c0_14] : memref<784x128xbf16, #tpu.memory_space<vmem>>, vector<28x128xbf16>
    %17 = arith.maximumf %15, %16 : vector<28x128xbf16>
    %18 = arith.extf %17 : vector<28x128xbf16> to vector<28x128xf32>
    %c28_15 = arith.constant 28 : index
    %c0_16 = arith.constant 0 : index
    %19 = vector.load %arg14[%c28_15, %c0_16] : memref<392x128xf32, #tpu.memory_space<vmem>>, vector<28x128xf32>
    tpu.vector_store %arg14[%c28_15, %c0_16], %18 {strides = array<i32>} : memref<392x128xf32, #tpu.memory_space<vmem>>, vector<28x128xf32>,
    %c112 = arith.constant 112 : index
    %c0_17 = arith.constant 0 : index
    %20 = vector.load %arg13[%c112, %c0_17] : memref<784x128xbf16, #tpu.memory_space<vmem>>, vector<28x128xbf16>
    %c140 = arith.constant 140 : index
    %c0_18 = arith.constant 0 : index
    %21 = vector.load %arg13[%c140, %c0_18] : memref<784x128xbf16, #tpu.memory_space<vmem>>, vector<28x128xbf16>
    %22 = arith.maximumf %20, %21 : vector<28x128xbf16>
    %23 = arith.extf %22 : vector<28x128xbf16> to vector<28x128xf32>
    %c56_19 = arith.constant 56 : index
    %c0_20 = arith.constant 0 : index
    %24 = vector.load %arg14[%c56_19, %c0_20] : memref<392x128xf32, #tpu.memory_space<vmem>>, vector<28x128xf32>
    tpu.vector_store %arg14[%c56_19, %c0_20], %23 {strides = array<i32>} : memref<392x128xf32, #tpu.memory_space<vmem>>, vector<28x128xf32>,
    %c168 = arith.constant 168 : index
    %c0_21 = arith.constant 0 : index
    %25 = vector.load %arg13[%c168, %c0_21] : memref<784x128xbf16, #tpu.memory_space<vmem>>, vector<28x128xbf16>
    %c196 = arith.constant 196 : index
    %c0_22 = arith.constant 0 : index
    %26 = vector.load %arg13[%c196, %c0_22] : memref<784x128xbf16, #tpu.memory_space<vmem>>, vector<28x128xbf16>
    %27 = arith.maximumf %25, %26 : vector<28x128xbf16>
    %28 = arith.extf %27 : vector<28x128xbf16> to vector<28x128xf32>
    %c84_23 = arith.constant 84 : index
    %c0_24 = arith.constant 0 : index
    %29 = vector.load %arg14[%c84_23, %c0_24] : memref<392x128xf32, #tpu.memory_space<vmem>>, vector<28x128xf32>
    tpu.vector_store %arg14[%c84_23, %c0_24], %28 {strides = array<i32>} : memref<392x128xf32, #tpu.memory_space<vmem>>, vector<28x128xf32>,
    %c224 = arith.constant 224 : index
    %c0_25 = arith.constant 0 : index
    %30 = vector.load %arg13[%c224, %c0_25] : memref<784x128xbf16, #tpu.memory_space<vmem>>, vector<28x128xbf16>
    %c252 = arith.constant 252 : index
    %c0_26 = arith.constant 0 : index
    %31 = vector.load %arg13[%c252, %c0_26] : memref<784x128xbf16, #tpu.memory_space<vmem>>, vector<28x128xbf16>
    %32 = arith.maximumf %30, %31 : vector<28x128xbf16>
    %33 = arith.extf %32 : vector<28x128xbf16> to vector<28x128xf32>
    %c112_27 = arith.constant 112 : index
    %c0_28 = arith.constant 0 : index
    %34 = vector.load %arg14[%c112_27, %c0_28] : memref<392x128xf32, #tpu.memory_space<vmem>>, vector<28x128xf32>
    tpu.vector_store %arg14[%c112_27, %c0_28], %33 {strides = array<i32>} : memref<392x128xf32, #tpu.memory_space<vmem>>, vector<28x128xf32>,
    %c280 = arith.constant 280 : index
    %c0_29 = arith.constant 0 : index
    %35 = vector.load %arg13[%c280, %c0_29] : memref<784x128xbf16, #tpu.memory_space<vmem>>, vector<28x128xbf16>
    %c308 = arith.constant 308 : index
    %c0_30 = arith.constant 0 : index
    %36 = vector.load %arg13[%c308, %c0_30] : memref<784x128xbf16, #tpu.memory_space<vmem>>, vector<28x128xbf16>
    %37 = arith.maximumf %35, %36 : vector<28x128xbf16>
    %38 = arith.extf %37 : vector<28x128xbf16> to vector<28x128xf32>
    %c140_31 = arith.constant 140 : index
    %c0_32 = arith.constant 0 : index
    %39 = vector.load %arg14[%c140_31, %c0_32] : memref<392x128xf32, #tpu.memory_space<vmem>>, vector<28x128xf32>
    tpu.vector_store %arg14[%c140_31, %c0_32], %38 {strides = array<i32>} : memref<392x128xf32, #tpu.memory_space<vmem>>, vector<28x128xf32>,
    %c336 = arith.constant 336 : index
    %c0_33 = arith.constant 0 : index
    %40 = vector.load %arg13[%c336, %c0_33] : memref<784x128xbf16, #tpu.memory_space<vmem>>, vector<28x128xbf16>
    %c364 = arith.constant 364 : index
    %c0_34 = arith.constant 0 : index
    %41 = vector.load %arg13[%c364, %c0_34] : memref<784x128xbf16, #tpu.memory_space<vmem>>, vector<28x128xbf16>
    %42 = arith.maximumf %40, %41 : vector<28x128xbf16>
    %43 = arith.extf %42 : vector<28x128xbf16> to vector<28x128xf32>
    %c168_35 = arith.constant 168 : index
    %c0_36 = arith.constant 0 : index
    %44 = vector.load %arg14[%c168_35, %c0_36] : memref<392x128xf32, #tpu.memory_space<vmem>>, vector<28x128xf32>
    tpu.vector_store %arg14[%c168_35, %c0_36], %43 {strides = array<i32>} : memref<392x128xf32, #tpu.memory_space<vmem>>, vector<28x128xf32>,
    %c392 = arith.constant 392 : index
    %c0_37 = arith.constant 0 : index
    %45 = vector.load %arg13[%c392, %c0_37] : memref<784x128xbf16, #tpu.memory_space<vmem>>, vector<28x128xbf16>
    %c420 = arith.constant 420 : index
    %c0_38 = arith.constant 0 : index
    %46 = vector.load %arg13[%c420, %c0_38] : memref<784x128xbf16, #tpu.memory_space<vmem>>, vector<28x128xbf16>
    %47 = arith.maximumf %45, %46 : vector<28x128xbf16>
    %48 = arith.extf %47 : vector<28x128xbf16> to vector<28x128xf32>
    %c196_39 = arith.constant 196 : index
    %c0_40 = arith.constant 0 : index
    %49 = vector.load %arg14[%c196_39, %c0_40] : memref<392x128xf32, #tpu.memory_space<vmem>>, vector<28x128xf32>
    tpu.vector_store %arg14[%c196_39, %c0_40], %48 {strides = array<i32>} : memref<392x128xf32, #tpu.memory_space<vmem>>, vector<28x128xf32>,
    %c448 = arith.constant 448 : index
    %c0_41 = arith.constant 0 : index
    %50 = vector.load %arg13[%c448, %c0_41] : memref<784x128xbf16, #tpu.memory_space<vmem>>, vector<28x128xbf16>
    %c476 = arith.constant 476 : index
    %c0_42 = arith.constant 0 : index
    %51 = vector.load %arg13[%c476, %c0_42] : memref<784x128xbf16, #tpu.memory_space<vmem>>, vector<28x128xbf16>
    %52 = arith.maximumf %50, %51 : vector<28x128xbf16>
    %53 = arith.extf %52 : vector<28x128xbf16> to vector<28x128xf32>
    %c224_43 = arith.constant 224 : index
    %c0_44 = arith.constant 0 : index
    %54 = vector.load %arg14[%c224_43, %c0_44] : memref<392x128xf32, #tpu.memory_space<vmem>>, vector<28x128xf32>
    tpu.vector_store %arg14[%c224_43, %c0_44], %53 {strides = array<i32>} : memref<392x128xf32, #tpu.memory_space<vmem>>, vector<28x128xf32>,
    %c504 = arith.constant 504 : index
    %c0_45 = arith.constant 0 : index
    %55 = vector.load %arg13[%c504, %c0_45] : memref<784x128xbf16, #tpu.memory_space<vmem>>, vector<28x128xbf16>
    %c532 = arith.constant 532 : index
    %c0_46 = arith.constant 0 : index
    %56 = vector.load %arg13[%c532, %c0_46] : memref<784x128xbf16, #tpu.memory_space<vmem>>, vector<28x128xbf16>
    %57 = arith.maximumf %55, %56 : vector<28x128xbf16>
    %58 = arith.extf %57 : vector<28x128xbf16> to vector<28x128xf32>
    %c252_47 = arith.constant 252 : index
    %c0_48 = arith.constant 0 : index
    %59 = vector.load %arg14[%c252_47, %c0_48] : memref<392x128xf32, #tpu.memory_space<vmem>>, vector<28x128xf32>
    tpu.vector_store %arg14[%c252_47, %c0_48], %58 {strides = array<i32>} : memref<392x128xf32, #tpu.memory_space<vmem>>, vector<28x128xf32>,
    %c560 = arith.constant 560 : index
    %c0_49 = arith.constant 0 : index
    %60 = vector.load %arg13[%c560, %c0_49] : memref<784x128xbf16, #tpu.memory_space<vmem>>, vector<28x128xbf16>
    %c588 = arith.constant 588 : index
    %c0_50 = arith.constant 0 : index
    %61 = vector.load %arg13[%c588, %c0_50] : memref<784x128xbf16, #tpu.memory_space<vmem>>, vector<28x128xbf16>
    %62 = arith.maximumf %60, %61 : vector<28x128xbf16>
    %63 = arith.extf %62 : vector<28x128xbf16> to vector<28x128xf32>
    %c280_51 = arith.constant 280 : index
    %c0_52 = arith.constant 0 : index
    %64 = vector.load %arg14[%c280_51, %c0_52] : memref<392x128xf32, #tpu.memory_space<vmem>>, vector<28x128xf32>
    tpu.vector_store %arg14[%c280_51, %c0_52], %63 {strides = array<i32>} : memref<392x128xf32, #tpu.memory_space<vmem>>, vector<28x128xf32>,
    %c616 = arith.constant 616 : index
    %c0_53 = arith.constant 0 : index
    %65 = vector.load %arg13[%c616, %c0_53] : memref<784x128xbf16, #tpu.memory_space<vmem>>, vector<28x128xbf16>
    %c644 = arith.constant 644 : index
    %c0_54 = arith.constant 0 : index
    %66 = vector.load %arg13[%c644, %c0_54] : memref<784x128xbf16, #tpu.memory_space<vmem>>, vector<28x128xbf16>
    %67 = arith.maximumf %65, %66 : vector<28x128xbf16>
    %68 = arith.extf %67 : vector<28x128xbf16> to vector<28x128xf32>
    %c308_55 = arith.constant 308 : index
    %c0_56 = arith.constant 0 : index
    %69 = vector.load %arg14[%c308_55, %c0_56] : memref<392x128xf32, #tpu.memory_space<vmem>>, vector<28x128xf32>
    tpu.vector_store %arg14[%c308_55, %c0_56], %68 {strides = array<i32>} : memref<392x128xf32, #tpu.memory_space<vmem>>, vector<28x128xf32>,
    %c672 = arith.constant 672 : index
    %c0_57 = arith.constant 0 : index
    %70 = vector.load %arg13[%c672, %c0_57] : memref<784x128xbf16, #tpu.memory_space<vmem>>, vector<28x128xbf16>
    %c700 = arith.constant 700 : index
    %c0_58 = arith.constant 0 : index
    %71 = vector.load %arg13[%c700, %c0_58] : memref<784x128xbf16, #tpu.memory_space<vmem>>, vector<28x128xbf16>
    %72 = arith.maximumf %70, %71 : vector<28x128xbf16>
    %73 = arith.extf %72 : vector<28x128xbf16> to vector<28x128xf32>
    %c336_59 = arith.constant 336 : index
    %c0_60 = arith.constant 0 : index
    %74 = vector.load %arg14[%c336_59, %c0_60] : memref<392x128xf32, #tpu.memory_space<vmem>>, vector<28x128xf32>
    tpu.vector_store %arg14[%c336_59, %c0_60], %73 {strides = array<i32>} : memref<392x128xf32, #tpu.memory_space<vmem>>, vector<28x128xf32>,
    %c728 = arith.constant 728 : index
    %c0_61 = arith.constant 0 : index
    %75 = vector.load %arg13[%c728, %c0_61] : memref<784x128xbf16, #tpu.memory_space<vmem>>, vector<28x128xbf16>
    %c756 = arith.constant 756 : index
    %c0_62 = arith.constant 0 : index
    %76 = vector.load %arg13[%c756, %c0_62] : memref<784x128xbf16, #tpu.memory_space<vmem>>, vector<28x128xbf16>
    %77 = arith.maximumf %75, %76 : vector<28x128xbf16>
    %78 = arith.extf %77 : vector<28x128xbf16> to vector<28x128xf32>
    %c364_63 = arith.constant 364 : index
    %c0_64 = arith.constant 0 : index
    %79 = vector.load %arg14[%c364_63, %c0_64] : memref<392x128xf32, #tpu.memory_space<vmem>>, vector<28x128xf32>
    tpu.vector_store %arg14[%c364_63, %c0_64], %78 {strides = array<i32>} : memref<392x128xf32, #tpu.memory_space<vmem>>, vector<28x128xf32>,
    %c0_65 = arith.constant 0 : index
    %c0_66 = arith.constant 0 : index
    %80 = tpu.strided_load %arg14[%c0_65, %c0_66] {strides = array<i32: 2, 1>} : memref<392x128xf32, #tpu.memory_space<vmem>>, vector<196x128xf32>
    %c1 = arith.constant 1 : index
    %c0_67 = arith.constant 0 : index
    %81 = tpu.strided_load %arg14[%c1, %c0_67] {strides = array<i32: 2, 1>} : memref<392x128xf32, #tpu.memory_space<vmem>>, vector<196x128xf32>
    %82 = arith.maximumf %80, %81 : vector<196x128xf32>
    %83 = arith.truncf %82 : vector<196x128xf32> to vector<196x128xbf16>
    %c0_68 = arith.constant 0 : index
    %c0_69 = arith.constant 0 : index
    %84 = vector.load %arg15[%c0_68, %c0_69] : memref<208x128xbf16, #tpu.memory_space<vmem>>, vector<196x128xbf16>
    tpu.vector_store %arg15[%c0_68, %c0_69], %83 {strides = array<i32>} : memref<208x128xbf16, #tpu.memory_space<vmem>>, vector<196x128xbf16>,
    %cst_70 = arith.constant 0.000000e+00 : bf16
    %85 = vector.broadcast %cst_70 : bf16 to vector<12x128xbf16>
    %c196_71 = arith.constant 196 : index
    %c0_72 = arith.constant 0 : index
    %86 = vector.load %arg15[%c196_71, %c0_72] : memref<208x128xbf16, #tpu.memory_space<vmem>>, vector<12x128xbf16>
    tpu.vector_store %arg15[%c196_71, %c0_72], %85 {strides = array<i32>} : memref<208x128xbf16, #tpu.memory_space<vmem>>, vector<12x128xbf16>,
    %cst_73 = arith.constant 0.000000e+00 : f32
    %87 = vector.broadcast %cst_73 : f32 to vector<140x128xf32>
    %c0_74 = arith.constant 0 : index
    %c0_75 = arith.constant 0 : index
    %88 = vector.load %arg15[%c0_74, %c0_75] : memref<208x128xbf16, #tpu.memory_space<vmem>>, vector<140x128xbf16>
    %c0_76 = arith.constant 0 : index
    %c0_77 = arith.constant 0 : index
    %89 = vector.load %arg4[%c0_76, %c0_77] : memref<3200x128xbf16, #tpu.memory_space<vmem>>, vector<128x128xbf16>
    %cst_78 = arith.constant dense<0.000000e+00> : vector<140x128xf32>
    %90 = tpu.matmul %88, %89, %cst_78 {dimension_numbers = #tpu.dot_dimension_numbers<[1], [0], [0], [1], [0, 0, 1, 1], [], []>} : vector<140x128xbf16>, vector<128x128xbf16>, vector<140x128xf32> -> vector<140x128xf32>
    %91 = arith.addf %87, %90 : vector<140x128xf32>
    %c1_79 = arith.constant 1 : index
    %c0_80 = arith.constant 0 : index
    %92 = vector.load %arg15[%c1_79, %c0_80] : memref<208x128xbf16, #tpu.memory_space<vmem>>, vector<140x128xbf16>
    %c128 = arith.constant 128 : index
    %c0_81 = arith.constant 0 : index
    %93 = vector.load %arg4[%c128, %c0_81] : memref<3200x128xbf16, #tpu.memory_space<vmem>>, vector<128x128xbf16>
    %cst_82 = arith.constant dense<0.000000e+00> : vector<140x128xf32>
    %94 = tpu.matmul %92, %93, %cst_82 {dimension_numbers = #tpu.dot_dimension_numbers<[1], [0], [0], [1], [0, 0, 1, 1], [], []>} : vector<140x128xbf16>, vector<128x128xbf16>, vector<140x128xf32> -> vector<140x128xf32>
    %95 = arith.addf %91, %94 : vector<140x128xf32>
    %c2 = arith.constant 2 : index
    %c0_83 = arith.constant 0 : index
    %96 = vector.load %arg15[%c2, %c0_83] : memref<208x128xbf16, #tpu.memory_space<vmem>>, vector<140x128xbf16>
    %c256 = arith.constant 256 : index
    %c0_84 = arith.constant 0 : index
    %97 = vector.load %arg4[%c256, %c0_84] : memref<3200x128xbf16, #tpu.memory_space<vmem>>, vector<128x128xbf16>
    %cst_85 = arith.constant dense<0.000000e+00> : vector<140x128xf32>
    %98 = tpu.matmul %96, %97, %cst_85 {dimension_numbers = #tpu.dot_dimension_numbers<[1], [0], [0], [1], [0, 0, 1, 1], [], []>} : vector<140x128xbf16>, vector<128x128xbf16>, vector<140x128xf32> -> vector<140x128xf32>
    %99 = arith.addf %95, %98 : vector<140x128xf32>
    %c3 = arith.constant 3 : index
    %c0_86 = arith.constant 0 : index
    %100 = vector.load %arg15[%c3, %c0_86] : memref<208x128xbf16, #tpu.memory_space<vmem>>, vector<140x128xbf16>
    %c384 = arith.constant 384 : index
    %c0_87 = arith.constant 0 : index
    %101 = vector.load %arg4[%c384, %c0_87] : memref<3200x128xbf16, #tpu.memory_space<vmem>>, vector<128x128xbf16>
    %cst_88 = arith.constant dense<0.000000e+00> : vector<140x128xf32>
    %102 = tpu.matmul %100, %101, %cst_88 {dimension_numbers = #tpu.dot_dimension_numbers<[1], [0], [0], [1], [0, 0, 1, 1], [], []>} : vector<140x128xbf16>, vector<128x128xbf16>, vector<140x128xf32> -> vector<140x128xf32>
    %103 = arith.addf %99, %102 : vector<140x128xf32>
    %c4 = arith.constant 4 : index
    %c0_89 = arith.constant 0 : index
    %104 = vector.load %arg15[%c4, %c0_89] : memref<208x128xbf16, #tpu.memory_space<vmem>>, vector<140x128xbf16>
    %c512 = arith.constant 512 : index
    %c0_90 = arith.constant 0 : index
    %105 = vector.load %arg4[%c512, %c0_90] : memref<3200x128xbf16, #tpu.memory_space<vmem>>, vector<128x128xbf16>
    %cst_91 = arith.constant dense<0.000000e+00> : vector<140x128xf32>
    %106 = tpu.matmul %104, %105, %cst_91 {dimension_numbers = #tpu.dot_dimension_numbers<[1], [0], [0], [1], [0, 0, 1, 1], [], []>} : vector<140x128xbf16>, vector<128x128xbf16>, vector<140x128xf32> -> vector<140x128xf32>
    %107 = arith.addf %103, %106 : vector<140x128xf32>
    %c14 = arith.constant 14 : index
    %c0_92 = arith.constant 0 : index
    %108 = vector.load %arg15[%c14, %c0_92] : memref<208x128xbf16, #tpu.memory_space<vmem>>, vector<140x128xbf16>
    %c640 = arith.constant 640 : index
    %c0_93 = arith.constant 0 : index
    %109 = vector.load %arg4[%c640, %c0_93] : memref<3200x128xbf16, #tpu.memory_space<vmem>>, vector<128x128xbf16>
    %cst_94 = arith.constant dense<0.000000e+00> : vector<140x128xf32>
    %110 = tpu.matmul %108, %109, %cst_94 {dimension_numbers = #tpu.dot_dimension_numbers<[1], [0], [0], [1], [0, 0, 1, 1], [], []>} : vector<140x128xbf16>, vector<128x128xbf16>, vector<140x128xf32> -> vector<140x128xf32>
    %111 = arith.addf %107, %110 : vector<140x128xf32>
    %c15 = arith.constant 15 : index
    %c0_95 = arith.constant 0 : index
    %112 = vector.load %arg15[%c15, %c0_95] : memref<208x128xbf16, #tpu.memory_space<vmem>>, vector<140x128xbf16>
    %c768 = arith.constant 768 : index
    %c0_96 = arith.constant 0 : index
    %113 = vector.load %arg4[%c768, %c0_96] : memref<3200x128xbf16, #tpu.memory_space<vmem>>, vector<128x128xbf16>
    %cst_97 = arith.constant dense<0.000000e+00> : vector<140x128xf32>
    %114 = tpu.matmul %112, %113, %cst_97 {dimension_numbers = #tpu.dot_dimension_numbers<[1], [0], [0], [1], [0, 0, 1, 1], [], []>} : vector<140x128xbf16>, vector<128x128xbf16>, vector<140x128xf32> -> vector<140x128xf32>
    %115 = arith.addf %111, %114 : vector<140x128xf32>
    %c16 = arith.constant 16 : index
    %c0_98 = arith.constant 0 : index
    %116 = vector.load %arg15[%c16, %c0_98] : memref<208x128xbf16, #tpu.memory_space<vmem>>, vector<140x128xbf16>
    %c896 = arith.constant 896 : index
    %c0_99 = arith.constant 0 : index
    %117 = vector.load %arg4[%c896, %c0_99] : memref<3200x128xbf16, #tpu.memory_space<vmem>>, vector<128x128xbf16>
    %cst_100 = arith.constant dense<0.000000e+00> : vector<140x128xf32>
    %118 = tpu.matmul %116, %117, %cst_100 {dimension_numbers = #tpu.dot_dimension_numbers<[1], [0], [0], [1], [0, 0, 1, 1], [], []>} : vector<140x128xbf16>, vector<128x128xbf16>, vector<140x128xf32> -> vector<140x128xf32>
    %119 = arith.addf %115, %118 : vector<140x128xf32>
    %c17 = arith.constant 17 : index
    %c0_101 = arith.constant 0 : index
    %120 = vector.load %arg15[%c17, %c0_101] : memref<208x128xbf16, #tpu.memory_space<vmem>>, vector<140x128xbf16>
    %c1024 = arith.constant 1024 : index
    %c0_102 = arith.constant 0 : index
    %121 = vector.load %arg4[%c1024, %c0_102] : memref<3200x128xbf16, #tpu.memory_space<vmem>>, vector<128x128xbf16>
    %cst_103 = arith.constant dense<0.000000e+00> : vector<140x128xf32>
    %122 = tpu.matmul %120, %121, %cst_103 {dimension_numbers = #tpu.dot_dimension_numbers<[1], [0], [0], [1], [0, 0, 1, 1], [], []>} : vector<140x128xbf16>, vector<128x128xbf16>, vector<140x128xf32> -> vector<140x128xf32>
    %123 = arith.addf %119, %122 : vector<140x128xf32>
    %c18 = arith.constant 18 : index
    %c0_104 = arith.constant 0 : index
    %124 = vector.load %arg15[%c18, %c0_104] : memref<208x128xbf16, #tpu.memory_space<vmem>>, vector<140x128xbf16>
    %c1152 = arith.constant 1152 : index
    %c0_105 = arith.constant 0 : index
    %125 = vector.load %arg4[%c1152, %c0_105] : memref<3200x128xbf16, #tpu.memory_space<vmem>>, vector<128x128xbf16>
    %cst_106 = arith.constant dense<0.000000e+00> : vector<140x128xf32>
    %126 = tpu.matmul %124, %125, %cst_106 {dimension_numbers = #tpu.dot_dimension_numbers<[1], [0], [0], [1], [0, 0, 1, 1], [], []>} : vector<140x128xbf16>, vector<128x128xbf16>, vector<140x128xf32> -> vector<140x128xf32>
    %127 = arith.addf %123, %126 : vector<140x128xf32>
    %c28_107 = arith.constant 28 : index
    %c0_108 = arith.constant 0 : index
    %128 = vector.load %arg15[%c28_107, %c0_108] : memref<208x128xbf16, #tpu.memory_space<vmem>>, vector<140x128xbf16>
    %c1280 = arith.constant 1280 : index
    %c0_109 = arith.constant 0 : index
    %129 = vector.load %arg4[%c1280, %c0_109] : memref<3200x128xbf16, #tpu.memory_space<vmem>>, vector<128x128xbf16>
    %cst_110 = arith.constant dense<0.000000e+00> : vector<140x128xf32>
    %130 = tpu.matmul %128, %129, %cst_110 {dimension_numbers = #tpu.dot_dimension_numbers<[1], [0], [0], [1], [0, 0, 1, 1], [], []>} : vector<140x128xbf16>, vector<128x128xbf16>, vector<140x128xf32> -> vector<140x128xf32>
    %131 = arith.addf %127, %130 : vector<140x128xf32>
    %c29 = arith.constant 29 : index
    %c0_111 = arith.constant 0 : index
    %132 = vector.load %arg15[%c29, %c0_111] : memref<208x128xbf16, #tpu.memory_space<vmem>>, vector<140x128xbf16>
    %c1408 = arith.constant 1408 : index
    %c0_112 = arith.constant 0 : index
    %133 = vector.load %arg4[%c1408, %c0_112] : memref<3200x128xbf16, #tpu.memory_space<vmem>>, vector<128x128xbf16>
    %cst_113 = arith.constant dense<0.000000e+00> : vector<140x128xf32>
    %134 = tpu.matmul %132, %133, %cst_113 {dimension_numbers = #tpu.dot_dimension_numbers<[1], [0], [0], [1], [0, 0, 1, 1], [], []>} : vector<140x128xbf16>, vector<128x128xbf16>, vector<140x128xf32> -> vector<140x128xf32>
    %135 = arith.addf %131, %134 : vector<140x128xf32>
    %c30 = arith.constant 30 : index
    %c0_114 = arith.constant 0 : index
    %136 = vector.load %arg15[%c30, %c0_114] : memref<208x128xbf16, #tpu.memory_space<vmem>>, vector<140x128xbf16>
    %c1536 = arith.constant 1536 : index
    %c0_115 = arith.constant 0 : index
    %137 = vector.load %arg4[%c1536, %c0_115] : memref<3200x128xbf16, #tpu.memory_space<vmem>>, vector<128x128xbf16>
    %cst_116 = arith.constant dense<0.000000e+00> : vector<140x128xf32>
    %138 = tpu.matmul %136, %137, %cst_116 {dimension_numbers = #tpu.dot_dimension_numbers<[1], [0], [0], [1], [0, 0, 1, 1], [], []>} : vector<140x128xbf16>, vector<128x128xbf16>, vector<140x128xf32> -> vector<140x128xf32>
    %139 = arith.addf %135, %138 : vector<140x128xf32>
    %c31 = arith.constant 31 : index
    %c0_117 = arith.constant 0 : index
    %140 = vector.load %arg15[%c31, %c0_117] : memref<208x128xbf16, #tpu.memory_space<vmem>>, vector<140x128xbf16>
    %c1664 = arith.constant 1664 : index
    %c0_118 = arith.constant 0 : index
    %141 = vector.load %arg4[%c1664, %c0_118] : memref<3200x128xbf16, #tpu.memory_space<vmem>>, vector<128x128xbf16>
    %cst_119 = arith.constant dense<0.000000e+00> : vector<140x128xf32>
    %142 = tpu.matmul %140, %141, %cst_119 {dimension_numbers = #tpu.dot_dimension_numbers<[1], [0], [0], [1], [0, 0, 1, 1], [], []>} : vector<140x128xbf16>, vector<128x128xbf16>, vector<140x128xf32> -> vector<140x128xf32>
    %143 = arith.addf %139, %142 : vector<140x128xf32>
    %c32 = arith.constant 32 : index
    %c0_120 = arith.constant 0 : index
    %144 = vector.load %arg15[%c32, %c0_120] : memref<208x128xbf16, #tpu.memory_space<vmem>>, vector<140x128xbf16>
    %c1792 = arith.constant 1792 : index
    %c0_121 = arith.constant 0 : index
    %145 = vector.load %arg4[%c1792, %c0_121] : memref<3200x128xbf16, #tpu.memory_space<vmem>>, vector<128x128xbf16>
    %cst_122 = arith.constant dense<0.000000e+00> : vector<140x128xf32>
    %146 = tpu.matmul %144, %145, %cst_122 {dimension_numbers = #tpu.dot_dimension_numbers<[1], [0], [0], [1], [0, 0, 1, 1], [], []>} : vector<140x128xbf16>, vector<128x128xbf16>, vector<140x128xf32> -> vector<140x128xf32>
    %147 = arith.addf %143, %146 : vector<140x128xf32>
    %c42 = arith.constant 42 : index
    %c0_123 = arith.constant 0 : index
    %148 = vector.load %arg15[%c42, %c0_123] : memref<208x128xbf16, #tpu.memory_space<vmem>>, vector<140x128xbf16>
    %c1920 = arith.constant 1920 : index
    %c0_124 = arith.constant 0 : index
    %149 = vector.load %arg4[%c1920, %c0_124] : memref<3200x128xbf16, #tpu.memory_space<vmem>>, vector<128x128xbf16>
    %cst_125 = arith.constant dense<0.000000e+00> : vector<140x128xf32>
    %150 = tpu.matmul %148, %149, %cst_125 {dimension_numbers = #tpu.dot_dimension_numbers<[1], [0], [0], [1], [0, 0, 1, 1], [], []>} : vector<140x128xbf16>, vector<128x128xbf16>, vector<140x128xf32> -> vector<140x128xf32>
    %151 = arith.addf %147, %150 : vector<140x128xf32>
    %c43 = arith.constant 43 : index
    %c0_126 = arith.constant 0 : index
    %152 = vector.load %arg15[%c43, %c0_126] : memref<208x128xbf16, #tpu.memory_space<vmem>>, vector<140x128xbf16>
    %c2048 = arith.constant 2048 : index
    %c0_127 = arith.constant 0 : index
    %153 = vector.load %arg4[%c2048, %c0_127] : memref<3200x128xbf16, #tpu.memory_space<vmem>>, vector<128x128xbf16>
    %cst_128 = arith.constant dense<0.000000e+00> : vector<140x128xf32>
    %154 = tpu.matmul %152, %153, %cst_128 {dimension_numbers = #tpu.dot_dimension_numbers<[1], [0], [0], [1], [0, 0, 1, 1], [], []>} : vector<140x128xbf16>, vector<128x128xbf16>, vector<140x128xf32> -> vector<140x128xf32>
    %155 = arith.addf %151, %154 : vector<140x128xf32>
    %c44 = arith.constant 44 : index
    %c0_129 = arith.constant 0 : index
    %156 = vector.load %arg15[%c44, %c0_129] : memref<208x128xbf16, #tpu.memory_space<vmem>>, vector<140x128xbf16>
    %c2176 = arith.constant 2176 : index
    %c0_130 = arith.constant 0 : index
    %157 = vector.load %arg4[%c2176, %c0_130] : memref<3200x128xbf16, #tpu.memory_space<vmem>>, vector<128x128xbf16>
    %cst_131 = arith.constant dense<0.000000e+00> : vector<140x128xf32>
    %158 = tpu.matmul %156, %157, %cst_131 {dimension_numbers = #tpu.dot_dimension_numbers<[1], [0], [0], [1], [0, 0, 1, 1], [], []>} : vector<140x128xbf16>, vector<128x128xbf16>, vector<140x128xf32> -> vector<140x128xf32>
    %159 = arith.addf %155, %158 : vector<140x128xf32>
    %c45 = arith.constant 45 : index
    %c0_132 = arith.constant 0 : index
    %160 = vector.load %arg15[%c45, %c0_132] : memref<208x128xbf16, #tpu.memory_space<vmem>>, vector<140x128xbf16>
    %c2304 = arith.constant 2304 : index
    %c0_133 = arith.constant 0 : index
    %161 = vector.load %arg4[%c2304, %c0_133] : memref<3200x128xbf16, #tpu.memory_space<vmem>>, vector<128x128xbf16>
    %cst_134 = arith.constant dense<0.000000e+00> : vector<140x128xf32>
    %162 = tpu.matmul %160, %161, %cst_134 {dimension_numbers = #tpu.dot_dimension_numbers<[1], [0], [0], [1], [0, 0, 1, 1], [], []>} : vector<140x128xbf16>, vector<128x128xbf16>, vector<140x128xf32> -> vector<140x128xf32>
    %163 = arith.addf %159, %162 : vector<140x128xf32>
    %c46 = arith.constant 46 : index
    %c0_135 = arith.constant 0 : index
    %164 = vector.load %arg15[%c46, %c0_135] : memref<208x128xbf16, #tpu.memory_space<vmem>>, vector<140x128xbf16>
    %c2432 = arith.constant 2432 : index
    %c0_136 = arith.constant 0 : index
    %165 = vector.load %arg4[%c2432, %c0_136] : memref<3200x128xbf16, #tpu.memory_space<vmem>>, vector<128x128xbf16>
    %cst_137 = arith.constant dense<0.000000e+00> : vector<140x128xf32>
    %166 = tpu.matmul %164, %165, %cst_137 {dimension_numbers = #tpu.dot_dimension_numbers<[1], [0], [0], [1], [0, 0, 1, 1], [], []>} : vector<140x128xbf16>, vector<128x128xbf16>, vector<140x128xf32> -> vector<140x128xf32>
    %167 = arith.addf %163, %166 : vector<140x128xf32>
    %c56_138 = arith.constant 56 : index
    %c0_139 = arith.constant 0 : index
    %168 = vector.load %arg15[%c56_138, %c0_139] : memref<208x128xbf16, #tpu.memory_space<vmem>>, vector<140x128xbf16>
    %c2560 = arith.constant 2560 : index
    %c0_140 = arith.constant 0 : index
    %169 = vector.load %arg4[%c2560, %c0_140] : memref<3200x128xbf16, #tpu.memory_space<vmem>>, vector<128x128xbf16>
    %cst_141 = arith.constant dense<0.000000e+00> : vector<140x128xf32>
    %170 = tpu.matmul %168, %169, %cst_141 {dimension_numbers = #tpu.dot_dimension_numbers<[1], [0], [0], [1], [0, 0, 1, 1], [], []>} : vector<140x128xbf16>, vector<128x128xbf16>, vector<140x128xf32> -> vector<140x128xf32>
    %171 = arith.addf %167, %170 : vector<140x128xf32>
    %c57 = arith.constant 57 : index
    %c0_142 = arith.constant 0 : index
    %172 = vector.load %arg15[%c57, %c0_142] : memref<208x128xbf16, #tpu.memory_space<vmem>>, vector<140x128xbf16>
    %c2688 = arith.constant 2688 : index
    %c0_143 = arith.constant 0 : index
    %173 = vector.load %arg4[%c2688, %c0_143] : memref<3200x128xbf16, #tpu.memory_space<vmem>>, vector<128x128xbf16>
    %cst_144 = arith.constant dense<0.000000e+00> : vector<140x128xf32>
    %174 = tpu.matmul %172, %173, %cst_144 {dimension_numbers = #tpu.dot_dimension_numbers<[1], [0], [0], [1], [0, 0, 1, 1], [], []>} : vector<140x128xbf16>, vector<128x128xbf16>, vector<140x128xf32> -> vector<140x128xf32>
    %175 = arith.addf %171, %174 : vector<140x128xf32>
    %c58 = arith.constant 58 : index
    %c0_145 = arith.constant 0 : index
    %176 = vector.load %arg15[%c58, %c0_145] : memref<208x128xbf16, #tpu.memory_space<vmem>>, vector<140x128xbf16>
    %c2816 = arith.constant 2816 : index
    %c0_146 = arith.constant 0 : index
    %177 = vector.load %arg4[%c2816, %c0_146] : memref<3200x128xbf16, #tpu.memory_space<vmem>>, vector<128x128xbf16>
    %cst_147 = arith.constant dense<0.000000e+00> : vector<140x128xf32>
    %178 = tpu.matmul %176, %177, %cst_147 {dimension_numbers = #tpu.dot_dimension_numbers<[1], [0], [0], [1], [0, 0, 1, 1], [], []>} : vector<140x128xbf16>, vector<128x128xbf16>, vector<140x128xf32> -> vector<140x128xf32>
    %179 = arith.addf %175, %178 : vector<140x128xf32>
    %c59 = arith.constant 59 : index
    %c0_148 = arith.constant 0 : index
    %180 = vector.load %arg15[%c59, %c0_148] : memref<208x128xbf16, #tpu.memory_space<vmem>>, vector<140x128xbf16>
    %c2944 = arith.constant 2944 : index
    %c0_149 = arith.constant 0 : index
    %181 = vector.load %arg4[%c2944, %c0_149] : memref<3200x128xbf16, #tpu.memory_space<vmem>>, vector<128x128xbf16>
    %cst_150 = arith.constant dense<0.000000e+00> : vector<140x128xf32>
    %182 = tpu.matmul %180, %181, %cst_150 {dimension_numbers = #tpu.dot_dimension_numbers<[1], [0], [0], [1], [0, 0, 1, 1], [], []>} : vector<140x128xbf16>, vector<128x128xbf16>, vector<140x128xf32> -> vector<140x128xf32>
    %183 = arith.addf %179, %182 : vector<140x128xf32>
    %c60 = arith.constant 60 : index
    %c0_151 = arith.constant 0 : index
    %184 = vector.load %arg15[%c60, %c0_151] : memref<208x128xbf16, #tpu.memory_space<vmem>>, vector<140x128xbf16>
    %c3072 = arith.constant 3072 : index
    %c0_152 = arith.constant 0 : index
    %185 = vector.load %arg4[%c3072, %c0_152] : memref<3200x128xbf16, #tpu.memory_space<vmem>>, vector<128x128xbf16>
    %cst_153 = arith.constant dense<0.000000e+00> : vector<140x128xf32>
    %186 = tpu.matmul %184, %185, %cst_153 {dimension_numbers = #tpu.dot_dimension_numbers<[1], [0], [0], [1], [0, 0, 1, 1], [], []>} : vector<140x128xbf16>, vector<128x128xbf16>, vector<140x128xf32> -> vector<140x128xf32>
    %187 = arith.addf %183, %186 : vector<140x128xf32>
    %c0_154 = arith.constant 0 : index
    %c0_155 = arith.constant 0 : index
    %188 = vector.load %arg5[%c0_154, %c0_155] : memref<1x128xf32, #tpu.memory_space<vmem>>, vector<1x128xf32>
    %189 = vector.broadcast %188 : vector<1x128xf32> to vector<140x128xf32>
    %190 = arith.addf %187, %189 : vector<140x128xf32>
    %cst_156 = arith.constant 0.000000e+00 : f32
    %191 = vector.broadcast %cst_156 : f32 to vector<140x128xf32>
    %192 = arith.maximumf %190, %191 : vector<140x128xf32>
    %c0_157 = arith.constant 0 : index
    %c0_158 = arith.constant 0 : index
    %193 = vector.load %arg16[%c0_157, %c0_158] : memref<140x128xf32, #tpu.memory_space<vmem>>, vector<140x128xf32>
    tpu.vector_store %arg16[%c0_157, %c0_158], %192 {strides = array<i32>} : memref<140x128xf32, #tpu.memory_space<vmem>>, vector<140x128xf32>,
    %c0_159 = arith.constant 0 : index
    %c0_160 = arith.constant 0 : index
    %194 = tpu.strided_load %arg16[%c0_159, %c0_160] {strides = array<i32: 2, 1>} : memref<140x128xf32, #tpu.memory_space<vmem>>, vector<5x128xf32>
    %c1_161 = arith.constant 1 : index
    %c0_162 = arith.constant 0 : index
    %195 = tpu.strided_load %arg16[%c1_161, %c0_162] {strides = array<i32: 2, 1>} : memref<140x128xf32, #tpu.memory_space<vmem>>, vector<5x128xf32>
    %196 = arith.maximumf %194, %195 : vector<5x128xf32>
    %c14_163 = arith.constant 14 : index
    %c0_164 = arith.constant 0 : index
    %197 = tpu.strided_load %arg16[%c14_163, %c0_164] {strides = array<i32: 2, 1>} : memref<140x128xf32, #tpu.memory_space<vmem>>, vector<5x128xf32>
    %c15_165 = arith.constant 15 : index
    %c0_166 = arith.constant 0 : index
    %198 = tpu.strided_load %arg16[%c15_165, %c0_166] {strides = array<i32: 2, 1>} : memref<140x128xf32, #tpu.memory_space<vmem>>, vector<5x128xf32>
    %199 = arith.maximumf %197, %198 : vector<5x128xf32>
    %200 = arith.maximumf %196, %199 : vector<5x128xf32>
    %201 = arith.truncf %200 : vector<5x128xf32> to vector<5x128xbf16>
    %c0_167 = arith.constant 0 : index
    %c0_168 = arith.constant 0 : index
    %202 = vector.load %arg17[%c0_167, %c0_168] : memref<32x128xbf16, #tpu.memory_space<vmem>>, vector<5x128xbf16>
    tpu.vector_store %arg17[%c0_167, %c0_168], %201 {strides = array<i32>} : memref<32x128xbf16, #tpu.memory_space<vmem>>, vector<5x128xbf16>,
    %c28_169 = arith.constant 28 : index
    %c0_170 = arith.constant 0 : index
    %203 = tpu.strided_load %arg16[%c28_169, %c0_170] {strides = array<i32: 2, 1>} : memref<140x128xf32, #tpu.memory_space<vmem>>, vector<5x128xf32>
    %c29_171 = arith.constant 29 : index
    %c0_172 = arith.constant 0 : index
    %204 = tpu.strided_load %arg16[%c29_171, %c0_172] {strides = array<i32: 2, 1>} : memref<140x128xf32, #tpu.memory_space<vmem>>, vector<5x128xf32>
    %205 = arith.maximumf %203, %204 : vector<5x128xf32>
    %c42_173 = arith.constant 42 : index
    %c0_174 = arith.constant 0 : index
    %206 = tpu.strided_load %arg16[%c42_173, %c0_174] {strides = array<i32: 2, 1>} : memref<140x128xf32, #tpu.memory_space<vmem>>, vector<5x128xf32>
    %c43_175 = arith.constant 43 : index
    %c0_176 = arith.constant 0 : index
    %207 = tpu.strided_load %arg16[%c43_175, %c0_176] {strides = array<i32: 2, 1>} : memref<140x128xf32, #tpu.memory_space<vmem>>, vector<5x128xf32>
    %208 = arith.maximumf %206, %207 : vector<5x128xf32>
    %209 = arith.maximumf %205, %208 : vector<5x128xf32>
    %210 = arith.truncf %209 : vector<5x128xf32> to vector<5x128xbf16>
    %c5 = arith.constant 5 : index
    %c0_177 = arith.constant 0 : index
    %211 = vector.load %arg17[%c5, %c0_177] : memref<32x128xbf16, #tpu.memory_space<vmem>>, vector<5x128xbf16>
    tpu.vector_store %arg17[%c5, %c0_177], %210 {strides = array<i32>} : memref<32x128xbf16, #tpu.memory_space<vmem>>, vector<5x128xbf16>,
    %c56_178 = arith.constant 56 : index
    %c0_179 = arith.constant 0 : index
    %212 = tpu.strided_load %arg16[%c56_178, %c0_179] {strides = array<i32: 2, 1>} : memref<140x128xf32, #tpu.memory_space<vmem>>, vector<5x128xf32>
    %c57_180 = arith.constant 57 : index
    %c0_181 = arith.constant 0 : index
    %213 = tpu.strided_load %arg16[%c57_180, %c0_181] {strides = array<i32: 2, 1>} : memref<140x128xf32, #tpu.memory_space<vmem>>, vector<5x128xf32>
    %214 = arith.maximumf %212, %213 : vector<5x128xf32>
    %c70 = arith.constant 70 : index
    %c0_182 = arith.constant 0 : index
    %215 = tpu.strided_load %arg16[%c70, %c0_182] {strides = array<i32: 2, 1>} : memref<140x128xf32, #tpu.memory_space<vmem>>, vector<5x128xf32>
    %c71 = arith.constant 71 : index
    %c0_183 = arith.constant 0 : index
    %216 = tpu.strided_load %arg16[%c71, %c0_183] {strides = array<i32: 2, 1>} : memref<140x128xf32, #tpu.memory_space<vmem>>, vector<5x128xf32>
    %217 = arith.maximumf %215, %216 : vector<5x128xf32>
    %218 = arith.maximumf %214, %217 : vector<5x128xf32>
    %219 = arith.truncf %218 : vector<5x128xf32> to vector<5x128xbf16>
    %c10 = arith.constant 10 : index
    %c0_184 = arith.constant 0 : index
    %220 = vector.load %arg17[%c10, %c0_184] : memref<32x128xbf16, #tpu.memory_space<vmem>>, vector<5x128xbf16>
    tpu.vector_store %arg17[%c10, %c0_184], %219 {strides = array<i32>} : memref<32x128xbf16, #tpu.memory_space<vmem>>, vector<5x128xbf16>,
    %c84_185 = arith.constant 84 : index
    %c0_186 = arith.constant 0 : index
    %221 = tpu.strided_load %arg16[%c84_185, %c0_186] {strides = array<i32: 2, 1>} : memref<140x128xf32, #tpu.memory_space<vmem>>, vector<5x128xf32>
    %c85 = arith.constant 85 : index
    %c0_187 = arith.constant 0 : index
    %222 = tpu.strided_load %arg16[%c85, %c0_187] {strides = array<i32: 2, 1>} : memref<140x128xf32, #tpu.memory_space<vmem>>, vector<5x128xf32>
    %223 = arith.maximumf %221, %222 : vector<5x128xf32>
    %c98 = arith.constant 98 : index
    %c0_188 = arith.constant 0 : index
    %224 = tpu.strided_load %arg16[%c98, %c0_188] {strides = array<i32: 2, 1>} : memref<140x128xf32, #tpu.memory_space<vmem>>, vector<5x128xf32>
    %c99 = arith.constant 99 : index
    %c0_189 = arith.constant 0 : index
    %225 = tpu.strided_load %arg16[%c99, %c0_189] {strides = array<i32: 2, 1>} : memref<140x128xf32, #tpu.memory_space<vmem>>, vector<5x128xf32>
    %226 = arith.maximumf %224, %225 : vector<5x128xf32>
    %227 = arith.maximumf %223, %226 : vector<5x128xf32>
    %228 = arith.truncf %227 : vector<5x128xf32> to vector<5x128xbf16>
    %c15_190 = arith.constant 15 : index
    %c0_191 = arith.constant 0 : index
    %229 = vector.load %arg17[%c15_190, %c0_191] : memref<32x128xbf16, #tpu.memory_space<vmem>>, vector<5x128xbf16>
    tpu.vector_store %arg17[%c15_190, %c0_191], %228 {strides = array<i32>} : memref<32x128xbf16, #tpu.memory_space<vmem>>, vector<5x128xbf16>,
    %c112_192 = arith.constant 112 : index
    %c0_193 = arith.constant 0 : index
    %230 = tpu.strided_load %arg16[%c112_192, %c0_193] {strides = array<i32: 2, 1>} : memref<140x128xf32, #tpu.memory_space<vmem>>, vector<5x128xf32>
    %c113 = arith.constant 113 : index
    %c0_194 = arith.constant 0 : index
    %231 = tpu.strided_load %arg16[%c113, %c0_194] {strides = array<i32: 2, 1>} : memref<140x128xf32, #tpu.memory_space<vmem>>, vector<5x128xf32>
    %232 = arith.maximumf %230, %231 : vector<5x128xf32>
    %c126 = arith.constant 126 : index
    %c0_195 = arith.constant 0 : index
    %233 = tpu.strided_load %arg16[%c126, %c0_195] {strides = array<i32: 2, 1>} : memref<140x128xf32, #tpu.memory_space<vmem>>, vector<5x128xf32>
    %c127 = arith.constant 127 : index
    %c0_196 = arith.constant 0 : index
    %234 = tpu.strided_load %arg16[%c127, %c0_196] {strides = array<i32: 2, 1>} : memref<140x128xf32, #tpu.memory_space<vmem>>, vector<5x128xf32>
    %235 = arith.maximumf %233, %234 : vector<5x128xf32>
    %236 = arith.maximumf %232, %235 : vector<5x128xf32>
    %237 = arith.truncf %236 : vector<5x128xf32> to vector<5x128xbf16>
    %c20 = arith.constant 20 : index
    %c0_197 = arith.constant 0 : index
    %238 = vector.load %arg17[%c20, %c0_197] : memref<32x128xbf16, #tpu.memory_space<vmem>>, vector<5x128xbf16>
    tpu.vector_store %arg17[%c20, %c0_197], %237 {strides = array<i32>} : memref<32x128xbf16, #tpu.memory_space<vmem>>, vector<5x128xbf16>,
    %cst_198 = arith.constant 0.000000e+00 : f32
    %239 = vector.broadcast %cst_198 : f32 to vector<1x128xf32>
    %c0_199 = arith.constant 0 : index
    %c0_200 = arith.constant 0 : index
    %240 = vector.load %arg17[%c0_199, %c0_200] : memref<32x128xbf16, #tpu.memory_space<vmem>>, vector<1x128xbf16>
    %c0_201 = arith.constant 0 : index
    %c0_202 = arith.constant 0 : index
    %241 = vector.load %arg6[%c0_201, %c0_202] : memref<3200x128xbf16, #tpu.memory_space<vmem>>, vector<128x128xbf16>
    %cst_203 = arith.constant dense<0.000000e+00> : vector<1x128xf32>
    %242 = tpu.matmul %240, %241, %cst_203 {dimension_numbers = #tpu.dot_dimension_numbers<[1], [0], [0], [1], [0, 0, 1, 1], [], []>} : vector<1x128xbf16>, vector<128x128xbf16>, vector<1x128xf32> -> vector<1x128xf32>
    %243 = arith.addf %239, %242 : vector<1x128xf32>
    %c1_204 = arith.constant 1 : index
    %c0_205 = arith.constant 0 : index
    %244 = vector.load %arg17[%c1_204, %c0_205] : memref<32x128xbf16, #tpu.memory_space<vmem>>, vector<1x128xbf16>
    %c128_206 = arith.constant 128 : index
    %c0_207 = arith.constant 0 : index
    %245 = vector.load %arg6[%c128_206, %c0_207] : memref<3200x128xbf16, #tpu.memory_space<vmem>>, vector<128x128xbf16>
    %cst_208 = arith.constant dense<0.000000e+00> : vector<1x128xf32>
    %246 = tpu.matmul %244, %245, %cst_208 {dimension_numbers = #tpu.dot_dimension_numbers<[1], [0], [0], [1], [0, 0, 1, 1], [], []>} : vector<1x128xbf16>, vector<128x128xbf16>, vector<1x128xf32> -> vector<1x128xf32>
    %247 = arith.addf %243, %246 : vector<1x128xf32>
    %c2_209 = arith.constant 2 : index
    %c0_210 = arith.constant 0 : index
    %248 = vector.load %arg17[%c2_209, %c0_210] : memref<32x128xbf16, #tpu.memory_space<vmem>>, vector<1x128xbf16>
    %c256_211 = arith.constant 256 : index
    %c0_212 = arith.constant 0 : index
    %249 = vector.load %arg6[%c256_211, %c0_212] : memref<3200x128xbf16, #tpu.memory_space<vmem>>, vector<128x128xbf16>
    %cst_213 = arith.constant dense<0.000000e+00> : vector<1x128xf32>
    %250 = tpu.matmul %248, %249, %cst_213 {dimension_numbers = #tpu.dot_dimension_numbers<[1], [0], [0], [1], [0, 0, 1, 1], [], []>} : vector<1x128xbf16>, vector<128x128xbf16>, vector<1x128xf32> -> vector<1x128xf32>
    %251 = arith.addf %247, %250 : vector<1x128xf32>
    %c3_214 = arith.constant 3 : index
    %c0_215 = arith.constant 0 : index
    %252 = vector.load %arg17[%c3_214, %c0_215] : memref<32x128xbf16, #tpu.memory_space<vmem>>, vector<1x128xbf16>
    %c384_216 = arith.constant 384 : index
    %c0_217 = arith.constant 0 : index
    %253 = vector.load %arg6[%c384_216, %c0_217] : memref<3200x128xbf16, #tpu.memory_space<vmem>>, vector<128x128xbf16>
    %cst_218 = arith.constant dense<0.000000e+00> : vector<1x128xf32>
    %254 = tpu.matmul %252, %253, %cst_218 {dimension_numbers = #tpu.dot_dimension_numbers<[1], [0], [0], [1], [0, 0, 1, 1], [], []>} : vector<1x128xbf16>, vector<128x128xbf16>, vector<1x128xf32> -> vector<1x128xf32>
    %255 = arith.addf %251, %254 : vector<1x128xf32>
    %c4_219 = arith.constant 4 : index
    %c0_220 = arith.constant 0 : index
    %256 = vector.load %arg17[%c4_219, %c0_220] : memref<32x128xbf16, #tpu.memory_space<vmem>>, vector<1x128xbf16>
    %c512_221 = arith.constant 512 : index
    %c0_222 = arith.constant 0 : index
    %257 = vector.load %arg6[%c512_221, %c0_222] : memref<3200x128xbf16, #tpu.memory_space<vmem>>, vector<128x128xbf16>
    %cst_223 = arith.constant dense<0.000000e+00> : vector<1x128xf32>
    %258 = tpu.matmul %256, %257, %cst_223 {dimension_numbers = #tpu.dot_dimension_numbers<[1], [0], [0], [1], [0, 0, 1, 1], [], []>} : vector<1x128xbf16>, vector<128x128xbf16>, vector<1x128xf32> -> vector<1x128xf32>
    %259 = arith.addf %255, %258 : vector<1x128xf32>
    %c5_224 = arith.constant 5 : index
    %c0_225 = arith.constant 0 : index
    %260 = vector.load %arg17[%c5_224, %c0_225] : memref<32x128xbf16, #tpu.memory_space<vmem>>, vector<1x128xbf16>
    %c640_226 = arith.constant 640 : index
    %c0_227 = arith.constant 0 : index
    %261 = vector.load %arg6[%c640_226, %c0_227] : memref<3200x128xbf16, #tpu.memory_space<vmem>>, vector<128x128xbf16>
    %cst_228 = arith.constant dense<0.000000e+00> : vector<1x128xf32>
    %262 = tpu.matmul %260, %261, %cst_228 {dimension_numbers = #tpu.dot_dimension_numbers<[1], [0], [0], [1], [0, 0, 1, 1], [], []>} : vector<1x128xbf16>, vector<128x128xbf16>, vector<1x128xf32> -> vector<1x128xf32>
    %263 = arith.addf %259, %262 : vector<1x128xf32>
    %c6 = arith.constant 6 : index
    %c0_229 = arith.constant 0 : index
    %264 = vector.load %arg17[%c6, %c0_229] : memref<32x128xbf16, #tpu.memory_space<vmem>>, vector<1x128xbf16>
    %c768_230 = arith.constant 768 : index
    %c0_231 = arith.constant 0 : index
    %265 = vector.load %arg6[%c768_230, %c0_231] : memref<3200x128xbf16, #tpu.memory_space<vmem>>, vector<128x128xbf16>
    %cst_232 = arith.constant dense<0.000000e+00> : vector<1x128xf32>
    %266 = tpu.matmul %264, %265, %cst_232 {dimension_numbers = #tpu.dot_dimension_numbers<[1], [0], [0], [1], [0, 0, 1, 1], [], []>} : vector<1x128xbf16>, vector<128x128xbf16>, vector<1x128xf32> -> vector<1x128xf32>
    %267 = arith.addf %263, %266 : vector<1x128xf32>
    %c7 = arith.constant 7 : index
    %c0_233 = arith.constant 0 : index
    %268 = vector.load %arg17[%c7, %c0_233] : memref<32x128xbf16, #tpu.memory_space<vmem>>, vector<1x128xbf16>
    %c896_234 = arith.constant 896 : index
    %c0_235 = arith.constant 0 : index
    %269 = vector.load %arg6[%c896_234, %c0_235] : memref<3200x128xbf16, #tpu.memory_space<vmem>>, vector<128x128xbf16>
    %cst_236 = arith.constant dense<0.000000e+00> : vector<1x128xf32>
    %270 = tpu.matmul %268, %269, %cst_236 {dimension_numbers = #tpu.dot_dimension_numbers<[1], [0], [0], [1], [0, 0, 1, 1], [], []>} : vector<1x128xbf16>, vector<128x128xbf16>, vector<1x128xf32> -> vector<1x128xf32>
    %271 = arith.addf %267, %270 : vector<1x128xf32>
    %c8 = arith.constant 8 : index
    %c0_237 = arith.constant 0 : index
    %272 = vector.load %arg17[%c8, %c0_237] : memref<32x128xbf16, #tpu.memory_space<vmem>>, vector<1x128xbf16>
    %c1024_238 = arith.constant 1024 : index
    %c0_239 = arith.constant 0 : index
    %273 = vector.load %arg6[%c1024_238, %c0_239] : memref<3200x128xbf16, #tpu.memory_space<vmem>>, vector<128x128xbf16>
    %cst_240 = arith.constant dense<0.000000e+00> : vector<1x128xf32>
    %274 = tpu.matmul %272, %273, %cst_240 {dimension_numbers = #tpu.dot_dimension_numbers<[1], [0], [0], [1], [0, 0, 1, 1], [], []>} : vector<1x128xbf16>, vector<128x128xbf16>, vector<1x128xf32> -> vector<1x128xf32>
    %275 = arith.addf %271, %274 : vector<1x128xf32>
    %c9 = arith.constant 9 : index
    %c0_241 = arith.constant 0 : index
    %276 = vector.load %arg17[%c9, %c0_241] : memref<32x128xbf16, #tpu.memory_space<vmem>>, vector<1x128xbf16>
    %c1152_242 = arith.constant 1152 : index
    %c0_243 = arith.constant 0 : index
    %277 = vector.load %arg6[%c1152_242, %c0_243] : memref<3200x128xbf16, #tpu.memory_space<vmem>>, vector<128x128xbf16>
    %cst_244 = arith.constant dense<0.000000e+00> : vector<1x128xf32>
    %278 = tpu.matmul %276, %277, %cst_244 {dimension_numbers = #tpu.dot_dimension_numbers<[1], [0], [0], [1], [0, 0, 1, 1], [], []>} : vector<1x128xbf16>, vector<128x128xbf16>, vector<1x128xf32> -> vector<1x128xf32>
    %279 = arith.addf %275, %278 : vector<1x128xf32>
    %c10_245 = arith.constant 10 : index
    %c0_246 = arith.constant 0 : index
    %280 = vector.load %arg17[%c10_245, %c0_246] : memref<32x128xbf16, #tpu.memory_space<vmem>>, vector<1x128xbf16>
    %c1280_247 = arith.constant 1280 : index
    %c0_248 = arith.constant 0 : index
    %281 = vector.load %arg6[%c1280_247, %c0_248] : memref<3200x128xbf16, #tpu.memory_space<vmem>>, vector<128x128xbf16>
    %cst_249 = arith.constant dense<0.000000e+00> : vector<1x128xf32>
    %282 = tpu.matmul %280, %281, %cst_249 {dimension_numbers = #tpu.dot_dimension_numbers<[1], [0], [0], [1], [0, 0, 1, 1], [], []>} : vector<1x128xbf16>, vector<128x128xbf16>, vector<1x128xf32> -> vector<1x128xf32>
    %283 = arith.addf %279, %282 : vector<1x128xf32>
    %c11 = arith.constant 11 : index
    %c0_250 = arith.constant 0 : index
    %284 = vector.load %arg17[%c11, %c0_250] : memref<32x128xbf16, #tpu.memory_space<vmem>>, vector<1x128xbf16>
    %c1408_251 = arith.constant 1408 : index
    %c0_252 = arith.constant 0 : index
    %285 = vector.load %arg6[%c1408_251, %c0_252] : memref<3200x128xbf16, #tpu.memory_space<vmem>>, vector<128x128xbf16>
    %cst_253 = arith.constant dense<0.000000e+00> : vector<1x128xf32>
    %286 = tpu.matmul %284, %285, %cst_253 {dimension_numbers = #tpu.dot_dimension_numbers<[1], [0], [0], [1], [0, 0, 1, 1], [], []>} : vector<1x128xbf16>, vector<128x128xbf16>, vector<1x128xf32> -> vector<1x128xf32>
    %287 = arith.addf %283, %286 : vector<1x128xf32>
    %c12 = arith.constant 12 : index
    %c0_254 = arith.constant 0 : index
    %288 = vector.load %arg17[%c12, %c0_254] : memref<32x128xbf16, #tpu.memory_space<vmem>>, vector<1x128xbf16>
    %c1536_255 = arith.constant 1536 : index
    %c0_256 = arith.constant 0 : index
    %289 = vector.load %arg6[%c1536_255, %c0_256] : memref<3200x128xbf16, #tpu.memory_space<vmem>>, vector<128x128xbf16>
    %cst_257 = arith.constant dense<0.000000e+00> : vector<1x128xf32>
    %290 = tpu.matmul %288, %289, %cst_257 {dimension_numbers = #tpu.dot_dimension_numbers<[1], [0], [0], [1], [0, 0, 1, 1], [], []>} : vector<1x128xbf16>, vector<128x128xbf16>, vector<1x128xf32> -> vector<1x128xf32>
    %291 = arith.addf %287, %290 : vector<1x128xf32>
    %c13 = arith.constant 13 : index
    %c0_258 = arith.constant 0 : index
    %292 = vector.load %arg17[%c13, %c0_258] : memref<32x128xbf16, #tpu.memory_space<vmem>>, vector<1x128xbf16>
    %c1664_259 = arith.constant 1664 : index
    %c0_260 = arith.constant 0 : index
    %293 = vector.load %arg6[%c1664_259, %c0_260] : memref<3200x128xbf16, #tpu.memory_space<vmem>>, vector<128x128xbf16>
    %cst_261 = arith.constant dense<0.000000e+00> : vector<1x128xf32>
    %294 = tpu.matmul %292, %293, %cst_261 {dimension_numbers = #tpu.dot_dimension_numbers<[1], [0], [0], [1], [0, 0, 1, 1], [], []>} : vector<1x128xbf16>, vector<128x128xbf16>, vector<1x128xf32> -> vector<1x128xf32>
    %295 = arith.addf %291, %294 : vector<1x128xf32>
    %c14_262 = arith.constant 14 : index
    %c0_263 = arith.constant 0 : index
    %296 = vector.load %arg17[%c14_262, %c0_263] : memref<32x128xbf16, #tpu.memory_space<vmem>>, vector<1x128xbf16>
    %c1792_264 = arith.constant 1792 : index
    %c0_265 = arith.constant 0 : index
    %297 = vector.load %arg6[%c1792_264, %c0_265] : memref<3200x128xbf16, #tpu.memory_space<vmem>>, vector<128x128xbf16>
    %cst_266 = arith.constant dense<0.000000e+00> : vector<1x128xf32>
    %298 = tpu.matmul %296, %297, %cst_266 {dimension_numbers = #tpu.dot_dimension_numbers<[1], [0], [0], [1], [0, 0, 1, 1], [], []>} : vector<1x128xbf16>, vector<128x128xbf16>, vector<1x128xf32> -> vector<1x128xf32>
    %299 = arith.addf %295, %298 : vector<1x128xf32>
    %c15_267 = arith.constant 15 : index
    %c0_268 = arith.constant 0 : index
    %300 = vector.load %arg17[%c15_267, %c0_268] : memref<32x128xbf16, #tpu.memory_space<vmem>>, vector<1x128xbf16>
    %c1920_269 = arith.constant 1920 : index
    %c0_270 = arith.constant 0 : index
    %301 = vector.load %arg6[%c1920_269, %c0_270] : memref<3200x128xbf16, #tpu.memory_space<vmem>>, vector<128x128xbf16>
    %cst_271 = arith.constant dense<0.000000e+00> : vector<1x128xf32>
    %302 = tpu.matmul %300, %301, %cst_271 {dimension_numbers = #tpu.dot_dimension_numbers<[1], [0], [0], [1], [0, 0, 1, 1], [], []>} : vector<1x128xbf16>, vector<128x128xbf16>, vector<1x128xf32> -> vector<1x128xf32>
    %303 = arith.addf %299, %302 : vector<1x128xf32>
    %c16_272 = arith.constant 16 : index
    %c0_273 = arith.constant 0 : index
    %304 = vector.load %arg17[%c16_272, %c0_273] : memref<32x128xbf16, #tpu.memory_space<vmem>>, vector<1x128xbf16>
    %c2048_274 = arith.constant 2048 : index
    %c0_275 = arith.constant 0 : index
    %305 = vector.load %arg6[%c2048_274, %c0_275] : memref<3200x128xbf16, #tpu.memory_space<vmem>>, vector<128x128xbf16>
    %cst_276 = arith.constant dense<0.000000e+00> : vector<1x128xf32>
    %306 = tpu.matmul %304, %305, %cst_276 {dimension_numbers = #tpu.dot_dimension_numbers<[1], [0], [0], [1], [0, 0, 1, 1], [], []>} : vector<1x128xbf16>, vector<128x128xbf16>, vector<1x128xf32> -> vector<1x128xf32>
    %307 = arith.addf %303, %306 : vector<1x128xf32>
    %c17_277 = arith.constant 17 : index
    %c0_278 = arith.constant 0 : index
    %308 = vector.load %arg17[%c17_277, %c0_278] : memref<32x128xbf16, #tpu.memory_space<vmem>>, vector<1x128xbf16>
    %c2176_279 = arith.constant 2176 : index
    %c0_280 = arith.constant 0 : index
    %309 = vector.load %arg6[%c2176_279, %c0_280] : memref<3200x128xbf16, #tpu.memory_space<vmem>>, vector<128x128xbf16>
    %cst_281 = arith.constant dense<0.000000e+00> : vector<1x128xf32>
    %310 = tpu.matmul %308, %309, %cst_281 {dimension_numbers = #tpu.dot_dimension_numbers<[1], [0], [0], [1], [0, 0, 1, 1], [], []>} : vector<1x128xbf16>, vector<128x128xbf16>, vector<1x128xf32> -> vector<1x128xf32>
    %311 = arith.addf %307, %310 : vector<1x128xf32>
    %c18_282 = arith.constant 18 : index
    %c0_283 = arith.constant 0 : index
    %312 = vector.load %arg17[%c18_282, %c0_283] : memref<32x128xbf16, #tpu.memory_space<vmem>>, vector<1x128xbf16>
    %c2304_284 = arith.constant 2304 : index
    %c0_285 = arith.constant 0 : index
    %313 = vector.load %arg6[%c2304_284, %c0_285] : memref<3200x128xbf16, #tpu.memory_space<vmem>>, vector<128x128xbf16>
    %cst_286 = arith.constant dense<0.000000e+00> : vector<1x128xf32>
    %314 = tpu.matmul %312, %313, %cst_286 {dimension_numbers = #tpu.dot_dimension_numbers<[1], [0], [0], [1], [0, 0, 1, 1], [], []>} : vector<1x128xbf16>, vector<128x128xbf16>, vector<1x128xf32> -> vector<1x128xf32>
    %315 = arith.addf %311, %314 : vector<1x128xf32>
    %c19 = arith.constant 19 : index
    %c0_287 = arith.constant 0 : index
    %316 = vector.load %arg17[%c19, %c0_287] : memref<32x128xbf16, #tpu.memory_space<vmem>>, vector<1x128xbf16>
    %c2432_288 = arith.constant 2432 : index
    %c0_289 = arith.constant 0 : index
    %317 = vector.load %arg6[%c2432_288, %c0_289] : memref<3200x128xbf16, #tpu.memory_space<vmem>>, vector<128x128xbf16>
    %cst_290 = arith.constant dense<0.000000e+00> : vector<1x128xf32>
    %318 = tpu.matmul %316, %317, %cst_290 {dimension_numbers = #tpu.dot_dimension_numbers<[1], [0], [0], [1], [0, 0, 1, 1], [], []>} : vector<1x128xbf16>, vector<128x128xbf16>, vector<1x128xf32> -> vector<1x128xf32>
    %319 = arith.addf %315, %318 : vector<1x128xf32>
    %c20_291 = arith.constant 20 : index
    %c0_292 = arith.constant 0 : index
    %320 = vector.load %arg17[%c20_291, %c0_292] : memref<32x128xbf16, #tpu.memory_space<vmem>>, vector<1x128xbf16>
    %c2560_293 = arith.constant 2560 : index
    %c0_294 = arith.constant 0 : index
    %321 = vector.load %arg6[%c2560_293, %c0_294] : memref<3200x128xbf16, #tpu.memory_space<vmem>>, vector<128x128xbf16>
    %cst_295 = arith.constant dense<0.000000e+00> : vector<1x128xf32>
    %322 = tpu.matmul %320, %321, %cst_295 {dimension_numbers = #tpu.dot_dimension_numbers<[1], [0], [0], [1], [0, 0, 1, 1], [], []>} : vector<1x128xbf16>, vector<128x128xbf16>, vector<1x128xf32> -> vector<1x128xf32>
    %323 = arith.addf %319, %322 : vector<1x128xf32>
    %c21 = arith.constant 21 : index
    %c0_296 = arith.constant 0 : index
    %324 = vector.load %arg17[%c21, %c0_296] : memref<32x128xbf16, #tpu.memory_space<vmem>>, vector<1x128xbf16>
    %c2688_297 = arith.constant 2688 : index
    %c0_298 = arith.constant 0 : index
    %325 = vector.load %arg6[%c2688_297, %c0_298] : memref<3200x128xbf16, #tpu.memory_space<vmem>>, vector<128x128xbf16>
    %cst_299 = arith.constant dense<0.000000e+00> : vector<1x128xf32>
    %326 = tpu.matmul %324, %325, %cst_299 {dimension_numbers = #tpu.dot_dimension_numbers<[1], [0], [0], [1], [0, 0, 1, 1], [], []>} : vector<1x128xbf16>, vector<128x128xbf16>, vector<1x128xf32> -> vector<1x128xf32>
    %327 = arith.addf %323, %326 : vector<1x128xf32>
    %c22 = arith.constant 22 : index
    %c0_300 = arith.constant 0 : index
    %328 = vector.load %arg17[%c22, %c0_300] : memref<32x128xbf16, #tpu.memory_space<vmem>>, vector<1x128xbf16>
    %c2816_301 = arith.constant 2816 : index
    %c0_302 = arith.constant 0 : index
    %329 = vector.load %arg6[%c2816_301, %c0_302] : memref<3200x128xbf16, #tpu.memory_space<vmem>>, vector<128x128xbf16>
    %cst_303 = arith.constant dense<0.000000e+00> : vector<1x128xf32>
    %330 = tpu.matmul %328, %329, %cst_303 {dimension_numbers = #tpu.dot_dimension_numbers<[1], [0], [0], [1], [0, 0, 1, 1], [], []>} : vector<1x128xbf16>, vector<128x128xbf16>, vector<1x128xf32> -> vector<1x128xf32>
    %331 = arith.addf %327, %330 : vector<1x128xf32>
    %c23 = arith.constant 23 : index
    %c0_304 = arith.constant 0 : index
    %332 = vector.load %arg17[%c23, %c0_304] : memref<32x128xbf16, #tpu.memory_space<vmem>>, vector<1x128xbf16>
    %c2944_305 = arith.constant 2944 : index
    %c0_306 = arith.constant 0 : index
    %333 = vector.load %arg6[%c2944_305, %c0_306] : memref<3200x128xbf16, #tpu.memory_space<vmem>>, vector<128x128xbf16>
    %cst_307 = arith.constant dense<0.000000e+00> : vector<1x128xf32>
    %334 = tpu.matmul %332, %333, %cst_307 {dimension_numbers = #tpu.dot_dimension_numbers<[1], [0], [0], [1], [0, 0, 1, 1], [], []>} : vector<1x128xbf16>, vector<128x128xbf16>, vector<1x128xf32> -> vector<1x128xf32>
    %335 = arith.addf %331, %334 : vector<1x128xf32>
    %c24 = arith.constant 24 : index
    %c0_308 = arith.constant 0 : index
    %336 = vector.load %arg17[%c24, %c0_308] : memref<32x128xbf16, #tpu.memory_space<vmem>>, vector<1x128xbf16>
    %c3072_309 = arith.constant 3072 : index
    %c0_310 = arith.constant 0 : index
    %337 = vector.load %arg6[%c3072_309, %c0_310] : memref<3200x128xbf16, #tpu.memory_space<vmem>>, vector<128x128xbf16>
    %cst_311 = arith.constant dense<0.000000e+00> : vector<1x128xf32>
    %338 = tpu.matmul %336, %337, %cst_311 {dimension_numbers = #tpu.dot_dimension_numbers<[1], [0], [0], [1], [0, 0, 1, 1], [], []>} : vector<1x128xbf16>, vector<128x128xbf16>, vector<1x128xf32> -> vector<1x128xf32>
    %339 = arith.addf %335, %338 : vector<1x128xf32>
    %c0_312 = arith.constant 0 : index
    %c0_313 = arith.constant 0 : index
    %340 = vector.load %arg7[%c0_312, %c0_313] : memref<1x128xf32, #tpu.memory_space<vmem>>, vector<1x128xf32>
    %341 = arith.addf %339, %340 : vector<1x128xf32>
    %cst_314 = arith.constant 0.000000e+00 : f32
    %342 = vector.broadcast %cst_314 : f32 to vector<1x128xf32>
    %343 = arith.maximumf %341, %342 : vector<1x128xf32>
    %c0_315 = arith.constant 0 : index
    %c0_316 = arith.constant 0 : index
    %344 = vector.load %arg8[%c0_315, %c0_316] : memref<128x128xbf16, #tpu.memory_space<vmem>>, vector<128x128xbf16>
    %345 = arith.extf %344 : vector<128x128xbf16> to vector<128x128xf32>
    %cst_317 = arith.constant dense<0.000000e+00> : vector<1x128xf32>
    %346 = tpu.matmul %343, %345, %cst_317 {dimension_numbers = #tpu.dot_dimension_numbers<[1], [0], [0], [1], [0, 0, 1, 1], [], []>} : vector<1x128xf32>, vector<128x128xf32>, vector<1x128xf32> -> vector<1x128xf32>
    %c0_318 = arith.constant 0 : index
    %c0_319 = arith.constant 0 : index
    %347 = vector.load %arg9[%c0_318, %c0_319] : memref<1x128xf32, #tpu.memory_space<vmem>>, vector<1x128xf32>
    %348 = arith.addf %346, %347 : vector<1x128xf32>
    %cst_320 = arith.constant 0.000000e+00 : f32
    %349 = vector.broadcast %cst_320 : f32 to vector<1x128xf32>
    %350 = arith.maximumf %348, %349 : vector<1x128xf32>
    %c0_321 = arith.constant 0 : index
    %c0_322 = arith.constant 0 : index
    %351 = vector.load %arg10[%c0_321, %c0_322] : memref<128x128xbf16, #tpu.memory_space<vmem>>, vector<128x128xbf16>
    %352 = arith.extf %351 : vector<128x128xbf16> to vector<128x128xf32>
    %cst_323 = arith.constant dense<0.000000e+00> : vector<1x128xf32>
    %353 = tpu.matmul %350, %352, %cst_323 {dimension_numbers = #tpu.dot_dimension_numbers<[1], [0], [0], [1], [0, 0, 1, 1], [], []>} : vector<1x128xf32>, vector<128x128xf32>, vector<1x128xf32> -> vector<1x128xf32>
    %c0_324 = arith.constant 0 : index
    %c0_325 = arith.constant 0 : index
    %354 = vector.load %arg11[%c0_324, %c0_325] : memref<1x128xf32, #tpu.memory_space<vmem>>, vector<1x128xf32>
    %355 = arith.addf %353, %354 : vector<1x128xf32>
    %356 = vector.shape_cast %355 : vector<1x128xf32> to vector<1x128xf32>
    %357 = vector.broadcast %356 : vector<1x128xf32> to vector<8x128xf32>
    %c0_326 = arith.constant 0 : index
    %c0_327 = arith.constant 0 : index
    %c0_328 = arith.constant 0 : index
    %358 = vector.load %arg12[%c0_326, %c0_327, %c0_328] : memref<1x8x128xf32, #tpu.memory_space<vmem>>, vector<1x8x128xf32>
    %359 = vector.shape_cast %358 : vector<1x8x128xf32> to vector<8x128xf32>
    %360 = vector.shape_cast %357 : vector<8x128xf32> to vector<1x8x128xf32>
    tpu.vector_store %arg12[%c0_326, %c0_327, %c0_328], %360 {strides = array<i32>} : memref<1x8x128xf32, #tpu.memory_space<vmem>>, vector<1x8x128xf32>,
    return
  }
  func.func @transform_0(%arg0: i32) -> (i32, i32) {
    %c0_i32 = arith.constant 0 : i32
    %c0_i32_0 = arith.constant 0 : i32
    return %arg0, %c0_i32 : i32, i32
  }
  func.func @transform_1(%arg0: i32) -> (i32, i32) {
    %c0_i32 = arith.constant 0 : i32
    %c0_i32_0 = arith.constant 0 : i32
    %c0_i32_1 = arith.constant 0 : i32
    return %c0_i32, %c0_i32_0 : i32, i32
  }
  func.func @transform_2(%arg0: i32) -> (i32, i32) {
    %c0_i32 = arith.constant 0 : i32
    %c0_i32_0 = arith.constant 0 : i32
    %c0_i32_1 = arith.constant 0 : i32
    return %c0_i32, %c0_i32_0 : i32, i32
  }
  func.func @transform_3(%arg0: i32) -> (i32, i32) {
    %c0_i32 = arith.constant 0 : i32
    %c0_i32_0 = arith.constant 0 : i32
    %c0_i32_1 = arith.constant 0 : i32
    return %c0_i32, %c0_i32_0 : i32, i32
  }
  func.func @transform_4(%arg0: i32) -> (i32, i32) {
    %c0_i32 = arith.constant 0 : i32
    %c0_i32_0 = arith.constant 0 : i32
    %c0_i32_1 = arith.constant 0 : i32
    return %c0_i32, %c0_i32_0 : i32, i32
  }
  func.func @transform_5(%arg0: i32) -> (i32, i32) {
    %c0_i32 = arith.constant 0 : i32
    %c0_i32_0 = arith.constant 0 : i32
    %c0_i32_1 = arith.constant 0 : i32
    return %c0_i32, %c0_i32_0 : i32, i32
  }
  func.func @transform_6(%arg0: i32) -> (i32, i32) {
    %c0_i32 = arith.constant 0 : i32
    %c0_i32_0 = arith.constant 0 : i32
    %c0_i32_1 = arith.constant 0 : i32
    return %c0_i32, %c0_i32_0 : i32, i32
  }
  func.func @transform_7(%arg0: i32) -> (i32, i32) {
    %c0_i32 = arith.constant 0 : i32
    %c0_i32_0 = arith.constant 0 : i32
    %c0_i32_1 = arith.constant 0 : i32
    return %c0_i32, %c0_i32_0 : i32, i32
  }
  func.func @transform_8(%arg0: i32) -> (i32, i32) {
    %c0_i32 = arith.constant 0 : i32
    %c0_i32_0 = arith.constant 0 : i32
    %c0_i32_1 = arith.constant 0 : i32
    return %c0_i32, %c0_i32_0 : i32, i32
  }
  func.func @transform_9(%arg0: i32) -> (i32, i32) {
    %c0_i32 = arith.constant 0 : i32
    %c0_i32_0 = arith.constant 0 : i32
    %c0_i32_1 = arith.constant 0 : i32
    return %c0_i32, %c0_i32_0 : i32, i32
  }
  func.func @transform_10(%arg0: i32) -> (i32, i32) {
    %c0_i32 = arith.constant 0 : i32
    %c0_i32_0 = arith.constant 0 : i32
    %c0_i32_1 = arith.constant 0 : i32
    return %c0_i32, %c0_i32_0 : i32, i32
  }
  func.func @transform_11(%arg0: i32) -> (i32, i32, i32) {
    %c0_i32 = arith.constant 0 : i32
    %c0_i32_0 = arith.constant 0 : i32
    %c0_i32_1 = arith.constant 0 : i32
    return %arg0, %c0_i32, %c0_i32_0 : i32, i32, i32
  }
}

</mosaic_0001>

<llo_original>
// kernel: net_forward.1
$region0: #{net_forward.1}
  #allocation0 [shape = 'u32[]', space=smem, size = 0x4, offset = 0x4, fixed_abs, tag = 'smem constant byte address 0x4 - core index']
  #allocation1 [shape = 'u32[72,128]{1,0:T(1,128)}', space=vmem, size = 0x9000, scoped, tag = 'internal scratch']
  #allocation2 [shape = 'bf16[784,128]{1,0:T(8,128)(2,1)}', space=vmem, size = 0x31000, scoped, tag = 'scratch operand']
  #allocation3 [shape = 'f32[392,128]{1,0:T(8,128)}', space=vmem, size = 0x31000, scoped, tag = 'scratch operand']
  #allocation4 [shape = 'bf16[208,128]{1,0:T(8,128)(2,1)}', space=vmem, size = 0xd000, scoped, tag = 'scratch operand']
  #allocation5 [shape = 'f32[140,128]{1,0:T(8,128)}', space=vmem, size = 0x12000, scoped, tag = 'scratch operand']
  #allocation6 [shape = 'bf16[32,128]{1,0:T(8,128)(2,1)}', space=vmem, size = 0x2000, scoped, tag = 'scratch operand']
  %s0 = inlined_call_operand.vmem [shape: bf16[1568,128], index: 0, kind: input, shape index: {}]
  %s1 = inlined_call_operand.vmem [shape: bf16[128,128], index: 1, kind: input, shape index: {}]
  %s2 = inlined_call_operand.vmem [shape: f32[1,128], index: 2, kind: input, shape index: {}]
  %s3 = inlined_call_operand.vmem [shape: bf16[3200,128], index: 3, kind: input, shape index: {}]
  %s4 = inlined_call_operand.vmem [shape: f32[1,128], index: 4, kind: input, shape index: {}]
  %s5 = inlined_call_operand.vmem [shape: bf16[3200,128], index: 5, kind: input, shape index: {}]
  %s6 = inlined_call_operand.vmem [shape: f32[1,128], index: 6, kind: input, shape index: {}]
  %s7 = inlined_call_operand.vmem [shape: bf16[128,128], index: 7, kind: input, shape index: {}]
  %s8 = inlined_call_operand.vmem [shape: f32[1,128], index: 8, kind: input, shape index: {}]
  %s9 = inlined_call_operand.vmem [shape: bf16[128,128], index: 9, kind: input, shape index: {}]
  %s10 = inlined_call_operand.vmem [shape: f32[1,128], index: 10, kind: input, shape index: {}]
  %s11 = inlined_call_operand.vmem [shape: f32[2,8,128], index: 11, kind: output, shape index: {}]
  %s12 = sld [smem:[#allocation0]]
  $region77: #{net_forward.1} parent=0
    _
  %s14 = ssub.s32 1, %s12
  %s15 = scalar_select 0, %s14, %s12
  loop: start=0, step=1, limit=4
  $region2: #{net_forward.1} parent=0 // loop_pre_header
    _
  $region3: #{net_forward.1} parent=0 // loop_header
    %s17 = sphi 0, %s21
    %p18 = scmp.ge.s32.totalorder %s17, 4
    %s27 = sphi 0, %s29
    %s30 = sphi 0, %s27
    %s31 = sphi 0, %s30
    %s47 = sphi 0, %s31
    %s51 = sphi 0, %s51
    %s53 = sphi 0, %s51
    %s54 = sphi 0, %s53
    %s68 = sphi 0, %s54
    %s72 = sphi 0, %s72
    %s74 = sphi 0, %s72
    %s75 = sphi 0, %s74
    %s89 = sphi 0, %s75
    %s93 = sphi 0, %s93
    %s95 = sphi 0, %s93
    %s96 = sphi 0, %s95
    %s110 = sphi 0, %s96
    %s114 = sphi 0, %s114
    %s116 = sphi 0, %s114
    %s117 = sphi 0, %s116
    %s131 = sphi 0, %s117
    %s135 = sphi 0, %s135
    %s137 = sphi 0, %s135
    %s138 = sphi 0, %s137
    %s152 = sphi 0, %s138
    %s156 = sphi 0, %s156
    %s158 = sphi 0, %s156
    %s159 = sphi 0, %s158
    %s173 = sphi 0, %s159
    %s177 = sphi 0, %s177
    %s179 = sphi 0, %s177
    %s180 = sphi 0, %s179
    %s194 = sphi 0, %s180
    %s198 = sphi 0, %s198
    %s200 = sphi 0, %s198
    %s201 = sphi 0, %s200
    %s215 = sphi 0, %s201
    %s219 = sphi 0, %s219
    %s221 = sphi 0, %s219
    %s222 = sphi 0, %s221
    %s236 = sphi 0, %s222
    %s240 = sphi 0, %s240
    %s242 = sphi 0, %s240
    %s243 = sphi 0, %s242
    %s257 = sphi 0, %s243
    %s263 = sphi 0, %s265
    %s266 = sphi 0, %s263
    %s267 = sphi 0, %s266
    %s283 = sphi 0, %s267
  $region4: #{net_forward.1} parent=0 // loop_header_branch
    %20 = sbr.rel (%p18) target = $region8
  $region5: #{net_forward.1} parent=0 // loop_body
    %s22 = ssub.s32 %s17, 1
    %s23 = ssub.s32 %s17, 2
    %s24 = sadd.s32 %s17, 1
    %s25 = ssub.s32 %s17, %s24
    %p26 = scmp.eq.s32.totalorder %s25, 0
    %s28 = sadd.s32 %s27, 1
    %s29 = scalar_select %p26, %s27, %s28
    %p32 = pneg %p26
    %p33 = scmp.eq.s32.totalorder %s17, 1
    %p34 = por %p32, %p33
    %p35 = scmp.ne.s32.totalorder %s27, %s30
    %p36 = scmp.eq.s32.totalorder %s17, 0
    %p37 = por %p35, %p36
    %p38 = scmp.ne.s32.totalorder %s27, %s30
    %p39 = scmp.eq.s32.totalorder %s22, 1
    %p40 = por %p38, %p39
    %p41 = scmp.ne.s32.totalorder %s30, %s31
    %p42 = scmp.eq.s32.totalorder %s22, 0
    %p43 = por %p41, %p42
    %p44 = scmp.ne.s32.totalorder %s30, %s31
    %p45 = scmp.eq.s32.totalorder %s23, 1
    %p46 = por %p44, %p45
    %p48 = scmp.ne.s32.totalorder %s31, %s47
    %p49 = scmp.eq.s32.totalorder %s23, 0
    %p50 = por %p48, %p49
    %s52 = sadd.s32 %s51, 1
    %p55 = scmp.eq.s32.totalorder %s17, 1
    %p56 = scmp.ne.s32.totalorder %s51, %s53
    %p57 = scmp.eq.s32.totalorder %s17, 0
    %p58 = por %p56, %p57
    %p59 = scmp.ne.s32.totalorder %s51, %s53
    %p60 = scmp.eq.s32.totalorder %s22, 1
    %p61 = por %p59, %p60
    %p62 = scmp.ne.s32.totalorder %s53, %s54
    %p63 = scmp.eq.s32.totalorder %s22, 0
    %p64 = por %p62, %p63
    %p65 = scmp.ne.s32.totalorder %s53, %s54
    %p66 = scmp.eq.s32.totalorder %s23, 1
    %p67 = por %p65, %p66
    %p69 = scmp.ne.s32.totalorder %s54, %s68
    %p70 = scmp.eq.s32.totalorder %s23, 0
    %p71 = por %p69, %p70
    %s73 = sadd.s32 %s72, 1
    %p76 = scmp.eq.s32.totalorder %s17, 1
    %p77 = scmp.ne.s32.totalorder %s72, %s74
    %p78 = scmp.eq.s32.totalorder %s17, 0
    %p79 = por %p77, %p78
    %p80 = scmp.ne.s32.totalorder %s72, %s74
    %p81 = scmp.eq.s32.totalorder %s22, 1
    %p82 = por %p80, %p81
    %p83 = scmp.ne.s32.totalorder %s74, %s75
    %p84 = scmp.eq.s32.totalorder %s22, 0
    %p85 = por %p83, %p84
    %p86 = scmp.ne.s32.totalorder %s74, %s75
    %p87 = scmp.eq.s32.totalorder %s23, 1
    %p88 = por %p86, %p87
    %p90 = scmp.ne.s32.totalorder %s75, %s89
    %p91 = scmp.eq.s32.totalorder %s23, 0
    %p92 = por %p90, %p91
    %s94 = sadd.s32 %s93, 1
    %p97 = scmp.eq.s32.totalorder %s17, 1
    %p98 = scmp.ne.s32.totalorder %s93, %s95
    %p99 = scmp.eq.s32.totalorder %s17, 0
    %p100 = por %p98, %p99
    %p101 = scmp.ne.s32.totalorder %s93, %s95
    %p102 = scmp.eq.s32.totalorder %s22, 1
    %p103 = por %p101, %p102
    %p104 = scmp.ne.s32.totalorder %s95, %s96
    %p105 = scmp.eq.s32.totalorder %s22, 0
    %p106 = por %p104, %p105
    %p107 = scmp.ne.s32.totalorder %s95, %s96
    %p108 = scmp.eq.s32.totalorder %s23, 1
    %p109 = por %p107, %p108
    %p111 = scmp.ne.s32.totalorder %s96, %s110
    %p112 = scmp.eq.s32.totalorder %s23, 0
    %p113 = por %p111, %p112
    %s115 = sadd.s32 %s114, 1
    %p118 = scmp.eq.s32.totalorder %s17, 1
    %p119 = scmp.ne.s32.totalorder %s114, %s116
    %p120 = scmp.eq.s32.totalorder %s17, 0
    %p121 = por %p119, %p120
    %p122 = scmp.ne.s32.totalorder %s114, %s116
    %p123 = scmp.eq.s32.totalorder %s22, 1
    %p124 = por %p122, %p123
    %p125 = scmp.ne.s32.totalorder %s116, %s117
    %p126 = scmp.eq.s32.totalorder %s22, 0
    %p127 = por %p125, %p126
    %p128 = scmp.ne.s32.totalorder %s116, %s117
    %p129 = scmp.eq.s32.totalorder %s23, 1
    %p130 = por %p128, %p129
    %p132 = scmp.ne.s32.totalorder %s117, %s131
    %p133 = scmp.eq.s32.totalorder %s23, 0
    %p134 = por %p132, %p133
    %s136 = sadd.s32 %s135, 1
    %p139 = scmp.eq.s32.totalorder %s17, 1
    %p140 = scmp.ne.s32.totalorder %s135, %s137
    %p141 = scmp.eq.s32.totalorder %s17, 0
    %p142 = por %p140, %p141
    %p143 = scmp.ne.s32.totalorder %s135, %s137
    %p144 = scmp.eq.s32.totalorder %s22, 1
    %p145 = por %p143, %p144
    %p146 = scmp.ne.s32.totalorder %s137, %s138
    %p147 = scmp.eq.s32.totalorder %s22, 0
    %p148 = por %p146, %p147
    %p149 = scmp.ne.s32.totalorder %s137, %s138
    %p150 = scmp.eq.s32.totalorder %s23, 1
    %p151 = por %p149, %p150
    %p153 = scmp.ne.s32.totalorder %s138, %s152
    %p154 = scmp.eq.s32.totalorder %s23, 0
    %p155 = por %p153, %p154
    %s157 = sadd.s32 %s156, 1
    %p160 = scmp.eq.s32.totalorder %s17, 1
    %p161 = scmp.ne.s32.totalorder %s156, %s158
    %p162 = scmp.eq.s32.totalorder %s17, 0
    %p163 = por %p161, %p162
    %p164 = scmp.ne.s32.totalorder %s156, %s158
    %p165 = scmp.eq.s32.totalorder %s22, 1
    %p166 = por %p164, %p165
    %p167 = scmp.ne.s32.totalorder %s158, %s159
    %p168 = scmp.eq.s32.totalorder %s22, 0
    %p169 = por %p167, %p168
    %p170 = scmp.ne.s32.totalorder %s158, %s159
    %p171 = scmp.eq.s32.totalorder %s23, 1
    %p172 = por %p170, %p171
    %p174 = scmp.ne.s32.totalorder %s159, %s173
    %p175 = scmp.eq.s32.totalorder %s23, 0
    %p176 = por %p174, %p175
    %s178 = sadd.s32 %s177, 1
    %p181 = scmp.eq.s32.totalorder %s17, 1
    %p182 = scmp.ne.s32.totalorder %s177, %s179
    %p183 = scmp.eq.s32.totalorder %s17, 0
    %p184 = por %p182, %p183
    %p185 = scmp.ne.s32.totalorder %s177, %s179
    %p186 = scmp.eq.s32.totalorder %s22, 1
    %p187 = por %p185, %p186
    %p188 = scmp.ne.s32.totalorder %s179, %s180
    %p189 = scmp.eq.s32.totalorder %s22, 0
    %p190 = por %p188, %p189
    %p191 = scmp.ne.s32.totalorder %s179, %s180
    %p192 = scmp.eq.s32.totalorder %s23, 1
    %p193 = por %p191, %p192
    %p195 = scmp.ne.s32.totalorder %s180, %s194
    %p196 = scmp.eq.s32.totalorder %s23, 0
    %p197 = por %p195, %p196
    %s199 = sadd.s32 %s198, 1
    %p202 = scmp.eq.s32.totalorder %s17, 1
    %p203 = scmp.ne.s32.totalorder %s198, %s200
    %p204 = scmp.eq.s32.totalorder %s17, 0
    %p205 = por %p203, %p204
    %p206 = scmp.ne.s32.totalorder %s198, %s200
    %p207 = scmp.eq.s32.totalorder %s22, 1
    %p208 = por %p206, %p207
    %p209 = scmp.ne.s32.totalorder %s200, %s201
    %p210 = scmp.eq.s32.totalorder %s22, 0
    %p211 = por %p209, %p210
    %p212 = scmp.ne.s32.totalorder %s200, %s201
    %p213 = scmp.eq.s32.totalorder %s23, 1
    %p214 = por %p212, %p213
    %p216 = scmp.ne.s32.totalorder %s201, %s215
    %p217 = scmp.eq.s32.totalorder %s23, 0
    %p218 = por %p216, %p217
    %s220 = sadd.s32 %s219, 1
    %p223 = scmp.eq.s32.totalorder %s17, 1
    %p224 = scmp.ne.s32.totalorder %s219, %s221
    %p225 = scmp.eq.s32.totalorder %s17, 0
    %p226 = por %p224, %p225
    %p227 = scmp.ne.s32.totalorder %s219, %s221
    %p228 = scmp.eq.s32.totalorder %s22, 1
    %p229 = por %p227, %p228
    %p230 = scmp.ne.s32.totalorder %s221, %s222
    %p231 = scmp.eq.s32.totalorder %s22, 0
    %p232 = por %p230, %p231
    %p233 = scmp.ne.s32.totalorder %s221, %s222
    %p234 = scmp.eq.s32.totalorder %s23, 1
    %p235 = por %p233, %p234
    %p237 = scmp.ne.s32.totalorder %s222, %s236
    %p238 = scmp.eq.s32.totalorder %s23, 0
    %p239 = por %p237, %p238
    %s241 = sadd.s32 %s240, 1
    %p244 = scmp.eq.s32.totalorder %s17, 1
    %p245 = scmp.ne.s32.totalorder %s240, %s242
    %p246 = scmp.eq.s32.totalorder %s17, 0
    %p247 = por %p245, %p246
    %p248 = scmp.ne.s32.totalorder %s240, %s242
    %p249 = scmp.eq.s32.totalorder %s22, 1
    %p250 = por %p248, %p249
    %p251 = scmp.ne.s32.totalorder %s242, %s243
    %p252 = scmp.eq.s32.totalorder %s22, 0
    %p253 = por %p251, %p252
    %p254 = scmp.ne.s32.totalorder %s242, %s243
    %p255 = scmp.eq.s32.totalorder %s23, 1
    %p256 = por %p254, %p255
    %p258 = scmp.ne.s32.totalorder %s243, %s257
    %p259 = scmp.eq.s32.totalorder %s23, 0
    %p260 = por %p258, %p259
    %s261 = ssub.s32 %s17, %s24
    %p262 = scmp.eq.s32.totalorder %s261, 0
    %s264 = sadd.s32 %s263, 1
    %s265 = scalar_select %p262, %s263, %s264
    %p268 = pneg %p262
    %p269 = scmp.eq.s32.totalorder %s17, 1
    %p270 = por %p268, %p269
    %p271 = scmp.ne.s32.totalorder %s263, %s266
    %p272 = scmp.eq.s32.totalorder %s17, 0
    %p273 = por %p271, %p272
    %p274 = scmp.ne.s32.totalorder %s263, %s266
    %p275 = scmp.eq.s32.totalorder %s22, 1
    %p276 = por %p274, %p275
    %p277 = scmp.ne.s32.totalorder %s266, %s267
    %p278 = scmp.eq.s32.totalorder %s22, 0
    %p279 = por %p277, %p278
    %p280 = scmp.ne.s32.totalorder %s266, %s267
    %p281 = scmp.eq.s32.totalorder %s23, 1
    %p282 = por %p280, %p281
    %p284 = scmp.ne.s32.totalorder %s267, %s283
    %p285 = scmp.eq.s32.totalorder %s23, 0
    %p286 = por %p284, %p285
    %p287 = scmp.le.s32.totalorder 1, %s17
    %p288 = scmp.lt.s32.totalorder %s17, 3
    %p289 = pnand %p287, %p288
    %p290 = pneg %p289
    // Predicated region
    $region9: #{net_forward.1} parent=5 // pred_check
      _
    $region10: #{net_forward.1} parent=5 // pred_check_branch
      %292 = sbr.rel (%p289) target = $region12
    $region11: #{net_forward.1} parent=5 // pred_region
      %s293 = ssub.s32 %s17, 1
      // Predicated region
      $region13: #{net_forward.1} parent=11 // pred_check
        %p294 = pneg %p64
      $region14: #{net_forward.1} parent=11 // pred_check_branch
        %296 = sbr.rel (%p294) target = $region16
      $region15: #{net_forward.1} parent=11 // pred_region
        _
      $region16: #{net_forward.1} parent=11 // pred_fallthru
        _
      // Predicated region
      $region17: #{net_forward.1} parent=11 // pred_check
        %p297 = pneg %p85
      $region18: #{net_forward.1} parent=11 // pred_check_branch
        %299 = sbr.rel (%p297) target = $region20
      $region19: #{net_forward.1} parent=11 // pred_region
        _
      $region20: #{net_forward.1} parent=11 // pred_fallthru
        _
      // Predicated region
      $region21: #{net_forward.1} parent=11 // pred_check
        %p300 = pneg %p106
      $region22: #{net_forward.1} parent=11 // pred_check_branch
        %302 = sbr.rel (%p300) target = $region24
      $region23: #{net_forward.1} parent=11 // pred_region
        _
      $region24: #{net_forward.1} parent=11 // pred_fallthru
        _
      // Predicated region
      $region25: #{net_forward.1} parent=11 // pred_check
        %p303 = pneg %p127
      $region26: #{net_forward.1} parent=11 // pred_check_branch
        %305 = sbr.rel (%p303) target = $region28
      $region27: #{net_forward.1} parent=11 // pred_region
        _
      $region28: #{net_forward.1} parent=11 // pred_fallthru
        _
      // Predicated region
      $region29: #{net_forward.1} parent=11 // pred_check
        %p306 = pneg %p148
      $region30: #{net_forward.1} parent=11 // pred_check_branch
        %308 = sbr.rel (%p306) target = $region32
      $region31: #{net_forward.1} parent=11 // pred_region
        _
      $region32: #{net_forward.1} parent=11 // pred_fallthru
        _
      // Predicated region
      $region33: #{net_forward.1} parent=11 // pred_check
        %p309 = pneg %p169
      $region34: #{net_forward.1} parent=11 // pred_check_branch
        %311 = sbr.rel (%p309) target = $region36
      $region35: #{net_forward.1} parent=11 // pred_region
        _
      $region36: #{net_forward.1} parent=11 // pred_fallthru
        _
      // Predicated region
      $region37: #{net_forward.1} parent=11 // pred_check
        %p312 = pneg %p190
      $region38: #{net_forward.1} parent=11 // pred_check_branch
        %314 = sbr.rel (%p312) target = $region40
      $region39: #{net_forward.1} parent=11 // pred_region
        _
      $region40: #{net_forward.1} parent=11 // pred_fallthru
        _
      // Predicated region
      $region41: #{net_forward.1} parent=11 // pred_check
        %p315 = pneg %p211
      $region42: #{net_forward.1} parent=11 // pred_check_branch
        %317 = sbr.rel (%p315) target = $region44
      $region43: #{net_forward.1} parent=11 // pred_region
        _
      $region44: #{net_forward.1} parent=11 // pred_fallthru
        _
      // Predicated region
      $region45: #{net_forward.1} parent=11 // pred_check
        %p318 = pneg %p232
      $region46: #{net_forward.1} parent=11 // pred_check_branch
        %320 = sbr.rel (%p318) target = $region48
      $region47: #{net_forward.1} parent=11 // pred_region
        _
      $region48: #{net_forward.1} parent=11 // pred_fallthru
        _
      // Predicated region
      $region49: #{net_forward.1} parent=11 // pred_check
        %p321 = pneg %p253
      $region50: #{net_forward.1} parent=11 // pred_check_branch
        %323 = sbr.rel (%p321) target = $region52
      $region51: #{net_forward.1} parent=11 // pred_region
        _
      $region52: #{net_forward.1} parent=11 // pred_fallthru
        _
    $region12: #{net_forward.1} parent=5 // pred_fallthru
      _
    %p324 = scmp.lt.s32.totalorder %s17, 2
    // Predicated region
    $region53: #{net_forward.1} parent=5 // pred_check
      %p325 = pneg %p324
    $region54: #{net_forward.1} parent=5 // pred_check_branch
      %327 = sbr.rel (%p325) target = $region56
    $region55: #{net_forward.1} parent=5 // pred_region
      // Predicated region
      $region57: #{net_forward.1} parent=55 // pred_check
        %p328 = pneg %p37
      $region58: #{net_forward.1} parent=55 // pred_check_branch
        %330 = sbr.rel (%p328) target = $region60
      $region59: #{net_forward.1} parent=55 // pred_region
        %s331 = smul.u32 98, %s17
        %p332 = scmp.lt.s32.totalorder %s331, 195
        %s333 = scalar_select %p332, %s331, 195
        %s334 = smul.addr %s333, 4
        %s335 = scalar_lea.vmem %s0, %s334
        %s336 = smul.u32 98, %s17
      $region60: #{net_forward.1} parent=55 // pred_fallthru
        _
    $region56: #{net_forward.1} parent=5 // pred_fallthru
      _
    %p337 = scmp.le.s32.totalorder 1, %s17
    %p338 = scmp.lt.s32.totalorder %s17, 3
    %p339 = pnand %p337, %p338
    %p340 = pneg %p339
    // Predicated region
    $region61: #{net_forward.1} parent=5 // pred_check
      _
    $region62: #{net_forward.1} parent=5 // pred_check_branch
      %342 = sbr.rel (%p339) target = $region64
    $region63: #{net_forward.1} parent=5 // pred_region
      %s343 = ssub.s32 %s17, 1
      %s344 = smul.u32 98, %s22
      %p345 = scmp.lt.s32.totalorder %s344, 195
      %s346 = scalar_select %p345, %s344, 195
      %s347 = smul.addr %s346, 4
      %s348 = scalar_lea.vmem %s0, %s347
      %p349 = pneg %p43
      %p350 = pneg %p40
      %p351 = pneg %p64
      %p352 = pneg %p61
      %p353 = pneg %p85
      %p354 = pneg %p82
      %p355 = pneg %p106
      %p356 = pneg %p103
      %p357 = pneg %p127
      %p358 = pneg %p124
      %p359 = pneg %p148
      %p360 = pneg %p145
      %p361 = pneg %p169
      %p362 = pneg %p166
      %p363 = pneg %p190
      %p364 = pneg %p187
      %p365 = pneg %p211
      %p366 = pneg %p208
      %p367 = pneg %p232
      %p368 = pneg %p229
      %p369 = pneg %p253
      %p370 = pneg %p250
      %p371 = pneg %p279
      %p372 = pneg %p276
      %p373 = scmp.lt.s32.totalorder %s22, 1
      %s374 = scalar_select %p373, %s22, 1
      %s375 = smul.addr %s374, 8
      %s376 = scalar_lea.vmem %s11, %s375
      %s377 = smul.u32 98, %s22
      %p378 = scmp.lt.s32.totalorder %s377, 195
      %s379 = scalar_select %p378, %s377, 195
      %s380 = smul.addr %s379, 4
      %s381 = scalar_lea.vmem %s0, %s380
      %s382 = smul.u32 98, %s22
      %p383 = scmp.lt.s32.totalorder %s22, 1
      %s384 = scalar_select %p383, %s22, 1
      %s385 = smul.addr %s384, 8
      %s386 = scalar_lea.vmem %s11, %s385
      %v388 = vld [vmem:[%s381] sm:$0xf]
      %v389 = vld [vmem:[%s381 + $0x4] sm:$0xf]
      %v390 = vld [vmem:[%s381 + $0x8] sm:$0xf]
      %v391 = vld [vmem:[%s381 + $0xc] sm:$0xf]
      %v392 = vld [vmem:[%s381 + $0x10] sm:$0xf]
      %v393 = vld [vmem:[%s381 + $0x14] sm:$0xf]
      %v394 = vld [vmem:[%s381 + $0x18] sm:$0xf]
      %v395 = vld [vmem:[%s381 + $0x1c] sm:$0xf]
      %v396 = vld [vmem:[%s381 + $0x20] sm:$0xf]
      %v397 = vld [vmem:[%s381 + $0x24] sm:$0xf]
      %v398 = vld [vmem:[%s381 + $0x28] sm:$0xf]
      %v399 = vld [vmem:[%s381 + $0x2c] sm:$0xf]
      %v400 = vld [vmem:[%s381 + $0x30] sm:$0xf]
      %v401 = vld [vmem:[%s381 + $0x34] sm:$0xf]
      %v402 = vld [vmem:[%s381 + $0x38] sm:$0xf]
      %v403 = vld [vmem:[%s381 + $0x3c] sm:$0xf]
      %v404 = vld [vmem:[%s381 + $0x40] sm:$0xf]
      %v405 = vld [vmem:[%s381 + $0x44] sm:$0xf]
      %v406 = vld [vmem:[%s381 + $0x48] sm:$0xf]
      %v407 = vld [vmem:[%s381 + $0x4c] sm:$0xf]
      %v408 = vld [vmem:[%s381 + $0x50] sm:$0xf]
      %v409 = vld [vmem:[%s381 + $0x54] sm:$0xf]
      %v410 = vld [vmem:[%s381 + $0x58] sm:$0xf]
      %v411 = vld [vmem:[%s381 + $0x5c] sm:$0xf]
      %v412 = vld [vmem:[%s381 + $0x60] sm:$0xf]
      %v413 = vld [vmem:[%s381 + $0x64] sm:$0xf]
      %v414 = vld [vmem:[%s381 + $0x68] sm:$0xf]
      %v415 = vld [vmem:[%s381 + $0x6c] sm:$0xf]
      %v416 = vld [vmem:[%s381 + $0x70] sm:$0xf]
      %v417 = vld [vmem:[%s381 + $0x74] sm:$0xf]
      %v418 = vld [vmem:[%s381 + $0x78] sm:$0xf]
      %v419 = vld [vmem:[%s381 + $0x7c] sm:$0xf]
      %v420 = vld [vmem:[%s381 + $0x80] sm:$0xf]
      %v421 = vld [vmem:[%s381 + $0x84] sm:$0xf]
      %v422 = vld [vmem:[%s381 + $0x88] sm:$0xf]
      %v423 = vld [vmem:[%s381 + $0x8c] sm:$0xf]
      %v424 = vld [vmem:[%s381 + $0x90] sm:$0xf]
      %v425 = vld [vmem:[%s381 + $0x94] sm:$0xf]
      %v426 = vld [vmem:[%s381 + $0x98] sm:$0xf]
      %v427 = vld [vmem:[%s381 + $0x9c] sm:$0xf]
      %v428 = vld [vmem:[%s381 + $0xa0] sm:$0xf]
      %v429 = vld [vmem:[%s381 + $0xa4] sm:$0xf]
      %v430 = vld [vmem:[%s381 + $0xa8] sm:$0xf]
      %v431 = vld [vmem:[%s381 + $0xac] sm:$0xf]
      %v432 = vld [vmem:[%s381 + $0xb0] sm:$0xf]
      %v433 = vld [vmem:[%s381 + $0xb4] sm:$0xf]
      %v434 = vld [vmem:[%s381 + $0xb8] sm:$0xf]
      %v435 = vld [vmem:[%s381 + $0xbc] sm:$0xf]
      %v436 = vld [vmem:[%s381 + $0xc0] sm:$0xf]
      %v437 = vld [vmem:[%s381 + $0xc4] sm:$0xf]
      %v438 = vld [vmem:[%s381 + $0xc8] sm:$0xf]
      %v439 = vld [vmem:[%s381 + $0xcc] sm:$0xf]
      %v440 = vld [vmem:[%s381 + $0xd0] sm:$0xf]
      %v441 = vld [vmem:[%s381 + $0xd4] sm:$0xf]
      %v442 = vld [vmem:[%s381 + $0xd8] sm:$0xf]
      %v443 = vld [vmem:[%s381 + $0xdc] sm:$0xf]
      %v444 = vld [vmem:[%s381 + $0xe0] sm:$0xf]
      %v445 = vld [vmem:[%s381 + $0xe4] sm:$0xf]
      %v446 = vld [vmem:[%s381 + $0xe8] sm:$0xf]
      %v447 = vld [vmem:[%s381 + $0xec] sm:$0xf]
      %v448 = vld [vmem:[%s381 + $0xf0] sm:$0xf]
      %v449 = vld [vmem:[%s381 + $0xf4] sm:$0xf]
      %v450 = vld [vmem:[%s381 + $0xf8] sm:$0xf]
      %v451 = vld [vmem:[%s381 + $0xfc] sm:$0xf]
      %v452 = vld [vmem:[%s381 + $0x100] sm:$0xf]
      %v453 = vld [vmem:[%s381 + $0x104] sm:$0xf]
      %v454 = vld [vmem:[%s381 + $0x108] sm:$0xf]
      %v455 = vld [vmem:[%s381 + $0x10c] sm:$0xf]
      %v456 = vld [vmem:[%s381 + $0x110] sm:$0xf]
      %v457 = vld [vmem:[%s381 + $0x114] sm:$0xf]
      %v458 = vld [vmem:[%s381 + $0x118] sm:$0xf]
      %v459 = vld [vmem:[%s381 + $0x11c] sm:$0xf]
      %v460 = vld [vmem:[%s381 + $0x120] sm:$0xf]
      %v461 = vld [vmem:[%s381 + $0x124] sm:$0xf]
      %v462 = vld [vmem:[%s381 + $0x128] sm:$0xf]
      %v463 = vld [vmem:[%s381 + $0x12c] sm:$0xf]
      %v464 = vld [vmem:[%s381 + $0x130] sm:$0xf]
      %v465 = vld [vmem:[%s381 + $0x134] sm:$0xf]
      %v466 = vld [vmem:[%s381 + $0x138] sm:$0xf]
      %v467 = vld [vmem:[%s381 + $0x13c] sm:$0xf]
      %v468 = vld [vmem:[%s381 + $0x140] sm:$0xf]
      %v469 = vld [vmem:[%s381 + $0x144] sm:$0xf]
      %v470 = vld [vmem:[%s381 + $0x148] sm:$0xf]
      %v471 = vld [vmem:[%s381 + $0x14c] sm:$0xf]
      %v472 = vld [vmem:[%s381 + $0x150] sm:$0xf]
      %v473 = vld [vmem:[%s381 + $0x154] sm:$0xf]
      %v474 = vld [vmem:[%s381 + $0x158] sm:$0xf]
      %v475 = vld [vmem:[%s381 + $0x15c] sm:$0xf]
      %v476 = vld [vmem:[%s381 + $0x160] sm:$0xf]
      %v477 = vld [vmem:[%s381 + $0x164] sm:$0xf]
      %v478 = vld [vmem:[%s381 + $0x168] sm:$0xf]
      %v479 = vld [vmem:[%s381 + $0x16c] sm:$0xf]
      %v480 = vld [vmem:[%s381 + $0x170] sm:$0xf]
      %v481 = vld [vmem:[%s381 + $0x174] sm:$0xf]
      %v482 = vld [vmem:[%s381 + $0x178] sm:$0xf]
      %v483 = vld [vmem:[%s381 + $0x17c] sm:$0xf]
      %v484 = vld [vmem:[%s381 + $0x180] sm:$0xf]
      %v485 = vld [vmem:[%s381 + $0x184] sm:$0xf]
      %v486 = vld [vmem:[%s1] sm:$0xf]
      %v487 = vld [vmem:[%s1 + $0x4] sm:$0xf]
      %v488 = vld [vmem:[%s1 + $0x8] sm:$0xf]
      %v489 = vld [vmem:[%s1 + $0xc] sm:$0xf]
      %v490 = vld [vmem:[%s1 + $0x10] sm:$0xf]
      %v491 = vld [vmem:[%s1 + $0x14] sm:$0xf]
      %v492 = vld [vmem:[%s1 + $0x18] sm:$0xf]
      %v493 = vld [vmem:[%s1 + $0x1c] sm:$0xf]
      %v494 = vld [vmem:[%s1 + $0x20] sm:$0xf]
      %v495 = vld [vmem:[%s1 + $0x24] sm:$0xf]
      %v496 = vld [vmem:[%s1 + $0x28] sm:$0xf]
      %v497 = vld [vmem:[%s1 + $0x2c] sm:$0xf]
      %v498 = vld [vmem:[%s1 + $0x30] sm:$0xf]
      %v499 = vld [vmem:[%s1 + $0x34] sm:$0xf]
      %v500 = vld [vmem:[%s1 + $0x38] sm:$0xf]
      %v501 = vld [vmem:[%s1 + $0x3c] sm:$0xf]
      %v502 = vld [vmem:[%s2] sm:$0x1]
      %v504 = vperm.slane %v502, 0
      %v604 = vunpack.c.l.b16 %v388
      %v605 = vunpack.c.l.b16 %v389
      %v606 = vunpack.c.l.b16 %v390
      %v607 = vunpack.c.l.b16 %v391
      %v608 = vunpack.c.l.b16 %v392
      %v609 = vunpack.c.l.b16 %v393
      %v610 = vunpack.c.l.b16 %v394
      %v611 = vunpack.c.l.b16 %v395
      %v612 = vunpack.c.l.b16 %v396
      %v613 = vunpack.c.l.b16 %v397
      %v614 = vunpack.c.l.b16 %v398
      %v615 = vunpack.c.l.b16 %v399
      %v616 = vunpack.c.l.b16 %v400
      %v617 = vunpack.c.l.b16 %v401
      %v618 = vunpack.c.l.b16 %v402
      %v619 = vunpack.c.l.b16 %v403
      %v620 = vunpack.c.l.b16 %v404
      %v621 = vunpack.c.l.b16 %v405
      %v622 = vunpack.c.l.b16 %v406
      %v623 = vunpack.c.l.b16 %v407
      %v624 = vunpack.c.l.b16 %v408
      %v625 = vunpack.c.l.b16 %v409
      %v626 = vunpack.c.l.b16 %v410
      %v627 = vunpack.c.l.b16 %v411
      %v628 = vunpack.c.l.b16 %v412
      %v629 = vunpack.c.l.b16 %v413
      %v630 = vunpack.c.l.b16 %v414
      %v631 = vunpack.c.l.b16 %v415
      %v632 = vunpack.c.l.b16 %v416
      %v633 = vunpack.c.l.b16 %v417
      %v634 = vunpack.c.l.b16 %v418
      %v635 = vunpack.c.l.b16 %v419
      %v636 = vunpack.c.l.b16 %v420
      %v637 = vunpack.c.l.b16 %v421
      %v638 = vunpack.c.l.b16 %v422
      %v639 = vunpack.c.l.b16 %v423
      %v640 = vunpack.c.l.b16 %v424
      %v641 = vunpack.c.l.b16 %v425
      %v642 = vunpack.c.l.b16 %v426
      %v643 = vunpack.c.l.b16 %v427
      %v644 = vunpack.c.l.b16 %v428
      %v645 = vunpack.c.l.b16 %v429
      %v646 = vunpack.c.l.b16 %v430
      %v647 = vunpack.c.l.b16 %v431
      %v648 = vunpack.c.l.b16 %v432
      %v649 = vunpack.c.l.b16 %v433
      %v650 = vunpack.c.l.b16 %v434
      %v651 = vunpack.c.l.b16 %v435
      %v652 = vunpack.c.l.b16 %v436
      %v653 = vunpack.c.l.b16 %v437
      %v654 = vunpack.c.l.b16 %v438
      %v655 = vunpack.c.l.b16 %v439
      %v656 = vunpack.c.l.b16 %v440
      %v657 = vunpack.c.l.b16 %v441
      %v658 = vunpack.c.l.b16 %v442
      %v659 = vunpack.c.l.b16 %v443
      %v660 = vunpack.c.l.b16 %v444
      %v661 = vunpack.c.l.b16 %v445
      %v662 = vunpack.c.l.b16 %v446
      %v663 = vunpack.c.l.b16 %v447
      %v664 = vunpack.c.l.b16 %v448
      %v665 = vunpack.c.l.b16 %v449
      %v666 = vunpack.c.l.b16 %v450
      %v667 = vunpack.c.l.b16 %v451
      %v668 = vunpack.c.l.b16 %v452
      %v669 = vunpack.c.l.b16 %v453
      %v670 = vunpack.c.l.b16 %v454
      %v671 = vunpack.c.l.b16 %v455
      %v672 = vunpack.c.l.b16 %v456
      %v673 = vunpack.c.l.b16 %v457
      %v674 = vunpack.c.l.b16 %v458
      %v675 = vunpack.c.l.b16 %v459
      %v676 = vunpack.c.l.b16 %v460
      %v677 = vunpack.c.l.b16 %v461
      %v678 = vunpack.c.l.b16 %v462
      %v679 = vunpack.c.l.b16 %v463
      %v680 = vunpack.c.l.b16 %v464
      %v681 = vunpack.c.l.b16 %v465
      %v682 = vunpack.c.l.b16 %v466
      %v683 = vunpack.c.l.b16 %v467
      %v684 = vunpack.c.l.b16 %v468
      %v685 = vunpack.c.l.b16 %v469
      %v686 = vunpack.c.l.b16 %v470
      %v687 = vunpack.c.l.b16 %v471
      %v688 = vunpack.c.l.b16 %v472
      %v689 = vunpack.c.l.b16 %v473
      %v690 = vunpack.c.l.b16 %v474
      %v691 = vunpack.c.l.b16 %v475
      %v692 = vunpack.c.l.b16 %v476
      %v693 = vunpack.c.l.b16 %v477
      %v694 = vunpack.c.l.b16 %v478
      %v695 = vunpack.c.l.b16 %v479
      %v696 = vunpack.c.l.b16 %v480
      %v697 = vunpack.c.l.b16 %v481
      %v698 = vunpack.c.l.b16 %v482
      %v699 = vunpack.c.l.b16 %v483
      %v700 = vunpack.c.l.b16 %v484
      %v701 = vunpack.c.l.b16 %v485
      %v702 = vpack.c.b16 %v605, %v604
      %v703 = vpack.c.b16 %v607, %v606
      %v704 = vpack.c.b16 %v609, %v608
      %v705 = vpack.c.b16 %v611, %v610
      %v706 = vpack.c.b16 %v613, %v612
      %v707 = vpack.c.b16 %v615, %v614
      %v708 = vpack.c.b16 %v617, %v616
      %v709 = vpack.c.b16 %v619, %v618
      %v710 = vpack.c.b16 %v621, %v620
      %v711 = vpack.c.b16 %v623, %v622
      %v712 = vpack.c.b16 %v625, %v624
      %v713 = vpack.c.b16 %v627, %v626
      %v714 = vpack.c.b16 %v629, %v628
      %v715 = vpack.c.b16 %v631, %v630
      %v716 = vpack.c.b16 %v633, %v632
      %v717 = vpack.c.b16 %v635, %v634
      %v718 = vpack.c.b16 %v637, %v636
      %v719 = vpack.c.b16 %v639, %v638
      %v720 = vpack.c.b16 %v641, %v640
      %v721 = vpack.c.b16 %v643, %v642
      %v722 = vpack.c.b16 %v645, %v644
      %v723 = vpack.c.b16 %v647, %v646
      %v724 = vpack.c.b16 %v649, %v648
      %v725 = vpack.c.b16 %v651, %v650
      %v726 = vpack.c.b16 %v653, %v652
      %v727 = vpack.c.b16 %v655, %v654
      %v728 = vpack.c.b16 %v657, %v656
      %v729 = vpack.c.b16 %v659, %v658
      %v730 = vpack.c.b16 %v661, %v660
      %v731 = vpack.c.b16 %v663, %v662
      %v732 = vpack.c.b16 %v665, %v664
      %v733 = vpack.c.b16 %v667, %v666
      %v734 = vpack.c.b16 %v669, %v668
      %v735 = vpack.c.b16 %v671, %v670
      %v736 = vpack.c.b16 %v673, %v672
      %v737 = vpack.c.b16 %v675, %v674
      %v738 = vpack.c.b16 %v677, %v676
      %v739 = vpack.c.b16 %v679, %v678
      %v740 = vpack.c.b16 %v681, %v680
      %v741 = vpack.c.b16 %v683, %v682
      %v742 = vpack.c.b16 %v685, %v684
      %v743 = vpack.c.b16 %v687, %v686
      %v744 = vpack.c.b16 %v689, %v688
      %v745 = vpack.c.b16 %v691, %v690
      %v746 = vpack.c.b16 %v693, %v692
      %v747 = vpack.c.b16 %v695, %v694
      %v748 = vpack.c.b16 %v697, %v696
      %v749 = vpack.c.b16 %v699, %v698
      %v750 = vpack.c.b16 %v701, %v700
      %v816 = vunpack.c.l.b16 %v486
      %v817 = vunpack.c.l.b16 %v487
      %v818 = vunpack.c.l.b16 %v488
      %v819 = vunpack.c.l.b16 %v489
      %v820 = vunpack.c.l.b16 %v490
      %v821 = vunpack.c.l.b16 %v491
      %v822 = vunpack.c.l.b16 %v492
      %v823 = vunpack.c.l.b16 %v493
      %v824 = vunpack.c.l.b16 %v494
      %v825 = vunpack.c.l.b16 %v495
      %v826 = vunpack.c.l.b16 %v496
      %v827 = vunpack.c.l.b16 %v497
      %v828 = vunpack.c.l.b16 %v498
      %v829 = vunpack.c.l.b16 %v499
      %v830 = vunpack.c.l.b16 %v500
      %v831 = vunpack.c.l.b16 %v501
      %v832 = vpack.c.b16 %v817, %v816
      %v833 = vpack.c.b16 %v819, %v818
      %v834 = vpack.c.b16 %v821, %v820
      %v835 = vpack.c.b16 %v823, %v822
      %v836 = vpack.c.b16 %v825, %v824
      %v837 = vpack.c.b16 %v827, %v826
      %v838 = vpack.c.b16 %v829, %v828
      %v839 = vpack.c.b16 %v831, %v830
      %848 = vmatpush.bf16.msra.mxu0 %v839
      %849 = vmatpush.bf16.msra.mxu0 %v838
      %850 = vmatpush.bf16.msra.mxu0 %v837
      %851 = vmatpush.bf16.msra.mxu0 %v836
      %852 = vmatpush.bf16.msra.mxu0 %v835
      %853 = vmatpush.bf16.msra.mxu0 %v834
      %854 = vmatpush.bf16.msra.mxu0 %v833
      %855 = vmatpush.bf16.msra.mxu0 %v832
      %856 = vmatmul.bf16.gmra.mxu0 %v702
      %v857 = vpop.f32.mrf.mxu0
      %v858 = vadd.f32 %v504, %v857
      %v859 = vpop.f32.mrf.mxu0
      %v860 = vadd.f32 %v504, %v859
      %861 = vmatmul.bf16.gmra.mxu0 %v703
      %v862 = vpop.f32.mrf.mxu0
      %v863 = vadd.f32 %v504, %v862
      %v864 = vpop.f32.mrf.mxu0
      %v865 = vadd.f32 %v504, %v864
      %866 = vmatmul.bf16.gmra.mxu0 %v704
      %v867 = vpop.f32.mrf.mxu0
      %v868 = vadd.f32 %v504, %v867
      %v869 = vpop.f32.mrf.mxu0
      %v870 = vadd.f32 %v504, %v869
      %871 = vmatmul.bf16.gmra.mxu0 %v705
      %v872 = vpop.f32.mrf.mxu0
      %v873 = vadd.f32 %v504, %v872
      %v874 = vpop.f32.mrf.mxu0
      %v875 = vadd.f32 %v504, %v874
      %876 = vmatmul.bf16.gmra.mxu0 %v706
      %v877 = vpop.f32.mrf.mxu0
      %v878 = vadd.f32 %v504, %v877
      %v879 = vpop.f32.mrf.mxu0
      %v880 = vadd.f32 %v504, %v879
      %881 = vmatmul.bf16.gmra.mxu0 %v707
      %v882 = vpop.f32.mrf.mxu0
      %v883 = vadd.f32 %v504, %v882
      %v884 = vpop.f32.mrf.mxu0
      %v885 = vadd.f32 %v504, %v884
      %886 = vmatmul.bf16.gmra.mxu0 %v708
      %v887 = vpop.f32.mrf.mxu0
      %v888 = vadd.f32 %v504, %v887
      %v889 = vpop.f32.mrf.mxu0
      %v890 = vadd.f32 %v504, %v889
      %891 = vmatmul.bf16.gmra.mxu0 %v709
      %v892 = vpop.f32.mrf.mxu0
      %v893 = vadd.f32 %v504, %v892
      %v894 = vpop.f32.mrf.mxu0
      %v895 = vadd.f32 %v504, %v894
      %896 = vmatmul.bf16.gmra.mxu0 %v710
      %v897 = vpop.f32.mrf.mxu0
      %v898 = vadd.f32 %v504, %v897
      %v899 = vpop.f32.mrf.mxu0
      %v900 = vadd.f32 %v504, %v899
      %901 = vmatmul.bf16.gmra.mxu0 %v711
      %v902 = vpop.f32.mrf.mxu0
      %v903 = vadd.f32 %v504, %v902
      %v904 = vpop.f32.mrf.mxu0
      %v905 = vadd.f32 %v504, %v904
      %906 = vmatmul.bf16.gmra.mxu0 %v712
      %v907 = vpop.f32.mrf.mxu0
      %v908 = vadd.f32 %v504, %v907
      %v909 = vpop.f32.mrf.mxu0
      %v910 = vadd.f32 %v504, %v909
      %911 = vmatmul.bf16.gmra.mxu0 %v713
      %v912 = vpop.f32.mrf.mxu0
      %v913 = vadd.f32 %v504, %v912
      %v914 = vpop.f32.mrf.mxu0
      %v915 = vadd.f32 %v504, %v914
      %916 = vmatmul.bf16.gmra.mxu0 %v714
      %v917 = vpop.f32.mrf.mxu0
      %v918 = vadd.f32 %v504, %v917
      %v919 = vpop.f32.mrf.mxu0
      %v920 = vadd.f32 %v504, %v919
      %921 = vmatmul.bf16.gmra.mxu0 %v715
      %v922 = vpop.f32.mrf.mxu0
      %v923 = vadd.f32 %v504, %v922
      %v924 = vpop.f32.mrf.mxu0
      %v925 = vadd.f32 %v504, %v924
      %926 = vmatmul.bf16.gmra.mxu0 %v716
      %v927 = vpop.f32.mrf.mxu0
      %v928 = vadd.f32 %v504, %v927
      %v929 = vpop.f32.mrf.mxu0
      %v930 = vadd.f32 %v504, %v929
      %931 = vmatmul.bf16.gmra.mxu0 %v717
      %v932 = vpop.f32.mrf.mxu0
      %v933 = vadd.f32 %v504, %v932
      %v934 = vpop.f32.mrf.mxu0
      %v935 = vadd.f32 %v504, %v934
      %936 = vmatmul.bf16.gmra.mxu0 %v718
      %v937 = vpop.f32.mrf.mxu0
      %v938 = vadd.f32 %v504, %v937
      %v939 = vpop.f32.mrf.mxu0
      %v940 = vadd.f32 %v504, %v939
      %941 = vmatmul.bf16.gmra.mxu0 %v719
      %v942 = vpop.f32.mrf.mxu0
      %v943 = vadd.f32 %v504, %v942
      %v944 = vpop.f32.mrf.mxu0
      %v945 = vadd.f32 %v504, %v944
      %946 = vmatmul.bf16.gmra.mxu0 %v720
      %v947 = vpop.f32.mrf.mxu0
      %v948 = vadd.f32 %v504, %v947
      %v949 = vpop.f32.mrf.mxu0
      %v950 = vadd.f32 %v504, %v949
      %951 = vmatmul.bf16.gmra.mxu0 %v721
      %v952 = vpop.f32.mrf.mxu0
      %v953 = vadd.f32 %v504, %v952
      %v954 = vpop.f32.mrf.mxu0
      %v955 = vadd.f32 %v504, %v954
      %956 = vmatmul.bf16.gmra.mxu0 %v722
      %v957 = vpop.f32.mrf.mxu0
      %v958 = vadd.f32 %v504, %v957
      %v959 = vpop.f32.mrf.mxu0
      %v960 = vadd.f32 %v504, %v959
      %961 = vmatmul.bf16.gmra.mxu0 %v723
      %v962 = vpop.f32.mrf.mxu0
      %v963 = vadd.f32 %v504, %v962
      %v964 = vpop.f32.mrf.mxu0
      %v965 = vadd.f32 %v504, %v964
      %966 = vmatmul.bf16.gmra.mxu0 %v724
      %v967 = vpop.f32.mrf.mxu0
      %v968 = vadd.f32 %v504, %v967
      %v969 = vpop.f32.mrf.mxu0
      %v970 = vadd.f32 %v504, %v969
      %971 = vmatmul.bf16.gmra.mxu0 %v725
      %v972 = vpop.f32.mrf.mxu0
      %v973 = vadd.f32 %v504, %v972
      %v974 = vpop.f32.mrf.mxu0
      %v975 = vadd.f32 %v504, %v974
      %976 = vmatmul.bf16.gmra.mxu0 %v726
      %v977 = vpop.f32.mrf.mxu0
      %v978 = vadd.f32 %v504, %v977
      %v979 = vpop.f32.mrf.mxu0
      %v980 = vadd.f32 %v504, %v979
      %981 = vmatmul.bf16.gmra.mxu0 %v727
      %v982 = vpop.f32.mrf.mxu0
      %v983 = vadd.f32 %v504, %v982
      %v984 = vpop.f32.mrf.mxu0
      %v985 = vadd.f32 %v504, %v984
      %986 = vmatmul.bf16.gmra.mxu0 %v728
      %v987 = vpop.f32.mrf.mxu0
      %v988 = vadd.f32 %v504, %v987
      %v989 = vpop.f32.mrf.mxu0
      %v990 = vadd.f32 %v504, %v989
      %991 = vmatmul.bf16.gmra.mxu0 %v729
      %v992 = vpop.f32.mrf.mxu0
      %v993 = vadd.f32 %v504, %v992
      %v994 = vpop.f32.mrf.mxu0
      %v995 = vadd.f32 %v504, %v994
      %996 = vmatmul.bf16.gmra.mxu0 %v730
      %v997 = vpop.f32.mrf.mxu0
      %v998 = vadd.f32 %v504, %v997
      %v999 = vpop.f32.mrf.mxu0
      %v1000 = vadd.f32 %v504, %v999
      %1001 = vmatmul.bf16.gmra.mxu0 %v731
      %v1002 = vpop.f32.mrf.mxu0
      %v1003 = vadd.f32 %v504, %v1002
      %v1004 = vpop.f32.mrf.mxu0
      %v1005 = vadd.f32 %v504, %v1004
      %1006 = vmatmul.bf16.gmra.mxu0 %v732
      %v1007 = vpop.f32.mrf.mxu0
      %v1008 = vadd.f32 %v504, %v1007
      %v1009 = vpop.f32.mrf.mxu0
      %v1010 = vadd.f32 %v504, %v1009
      %1011 = vmatmul.bf16.gmra.mxu0 %v733
      %v1012 = vpop.f32.mrf.mxu0
      %v1013 = vadd.f32 %v504, %v1012
      %v1014 = vpop.f32.mrf.mxu0
      %v1015 = vadd.f32 %v504, %v1014
      %1016 = vmatmul.bf16.gmra.mxu0 %v734
      %v1017 = vpop.f32.mrf.mxu0
      %v1018 = vadd.f32 %v504, %v1017
      %v1019 = vpop.f32.mrf.mxu0
      %v1020 = vadd.f32 %v504, %v1019
      %1021 = vmatmul.bf16.gmra.mxu0 %v735
      %v1022 = vpop.f32.mrf.mxu0
      %v1023 = vadd.f32 %v504, %v1022
      %v1024 = vpop.f32.mrf.mxu0
      %v1025 = vadd.f32 %v504, %v1024
      %1026 = vmatmul.bf16.gmra.mxu0 %v736
      %v1027 = vpop.f32.mrf.mxu0
      %v1028 = vadd.f32 %v504, %v1027
      %v1029 = vpop.f32.mrf.mxu0
      %v1030 = vadd.f32 %v504, %v1029
      %1031 = vmatmul.bf16.gmra.mxu0 %v737
      %v1032 = vpop.f32.mrf.mxu0
      %v1033 = vadd.f32 %v504, %v1032
      %v1034 = vpop.f32.mrf.mxu0
      %v1035 = vadd.f32 %v504, %v1034
      %1036 = vmatmul.bf16.gmra.mxu0 %v738
      %v1037 = vpop.f32.mrf.mxu0
      %v1038 = vadd.f32 %v504, %v1037
      %v1039 = vpop.f32.mrf.mxu0
      %v1040 = vadd.f32 %v504, %v1039
      %1041 = vmatmul.bf16.gmra.mxu0 %v739
      %v1042 = vpop.f32.mrf.mxu0
      %v1043 = vadd.f32 %v504, %v1042
      %v1044 = vpop.f32.mrf.mxu0
      %v1045 = vadd.f32 %v504, %v1044
      %1046 = vmatmul.bf16.gmra.mxu0 %v740
      %v1047 = vpop.f32.mrf.mxu0
      %v1048 = vadd.f32 %v504, %v1047
      %v1049 = vpop.f32.mrf.mxu0
      %v1050 = vadd.f32 %v504, %v1049
      %1051 = vmatmul.bf16.gmra.mxu0 %v741
      %v1052 = vpop.f32.mrf.mxu0
      %v1053 = vadd.f32 %v504, %v1052
      %v1054 = vpop.f32.mrf.mxu0
      %v1055 = vadd.f32 %v504, %v1054
      %1056 = vmatmul.bf16.gmra.mxu0 %v742
      %v1057 = vpop.f32.mrf.mxu0
      %v1058 = vadd.f32 %v504, %v1057
      %v1059 = vpop.f32.mrf.mxu0
      %v1060 = vadd.f32 %v504, %v1059
      %1061 = vmatmul.bf16.gmra.mxu0 %v743
      %v1062 = vpop.f32.mrf.mxu0
      %v1063 = vadd.f32 %v504, %v1062
      %v1064 = vpop.f32.mrf.mxu0
      %v1065 = vadd.f32 %v504, %v1064
      %1066 = vmatmul.bf16.gmra.mxu0 %v744
      %v1067 = vpop.f32.mrf.mxu0
      %v1068 = vadd.f32 %v504, %v1067
      %v1069 = vpop.f32.mrf.mxu0
      %v1070 = vadd.f32 %v504, %v1069
      %1071 = vmatmul.bf16.gmra.mxu0 %v745
      %v1072 = vpop.f32.mrf.mxu0
      %v1073 = vadd.f32 %v504, %v1072
      %v1074 = vpop.f32.mrf.mxu0
      %v1075 = vadd.f32 %v504, %v1074
      %1076 = vmatmul.bf16.gmra.mxu0 %v746
      %v1077 = vpop.f32.mrf.mxu0
      %v1078 = vadd.f32 %v504, %v1077
      %v1079 = vpop.f32.mrf.mxu0
      %v1080 = vadd.f32 %v504, %v1079
      %1081 = vmatmul.bf16.gmra.mxu0 %v747
      %v1082 = vpop.f32.mrf.mxu0
      %v1083 = vadd.f32 %v504, %v1082
      %v1084 = vpop.f32.mrf.mxu0
      %v1085 = vadd.f32 %v504, %v1084
      %1086 = vmatmul.bf16.gmra.mxu0 %v748
      %v1087 = vpop.f32.mrf.mxu0
      %v1088 = vadd.f32 %v504, %v1087
      %v1089 = vpop.f32.mrf.mxu0
      %v1090 = vadd.f32 %v504, %v1089
      %1091 = vmatmul.bf16.gmra.mxu0 %v749
      %v1092 = vpop.f32.mrf.mxu0
      %v1093 = vadd.f32 %v504, %v1092
      %v1094 = vpop.f32.mrf.mxu0
      %v1095 = vadd.f32 %v504, %v1094
      %1096 = vmatmul.bf16.gmra.mxu0 %v750
      %v1097 = vpop.f32.mrf.mxu0
      %v1098 = vadd.f32 %v504, %v1097
      %v1099 = vpop.f32.mrf.mxu0
      %v1100 = vadd.f32 %v504, %v1099
      %1101 = vdwg.mxu0
      %v1102 = vmax.f32 %v858, 0.0
      %v1103 = vmax.f32 %v860, 0.0
      %v1104 = vmax.f32 %v863, 0.0
      %v1105 = vmax.f32 %v865, 0.0
      %v1106 = vmax.f32 %v868, 0.0
      %v1107 = vmax.f32 %v870, 0.0
      %v1108 = vmax.f32 %v873, 0.0
      %v1109 = vmax.f32 %v875, 0.0
      %v1110 = vmax.f32 %v878, 0.0
      %v1111 = vmax.f32 %v880, 0.0
      %v1112 = vmax.f32 %v883, 0.0
      %v1113 = vmax.f32 %v885, 0.0
      %v1114 = vmax.f32 %v888, 0.0
      %v1115 = vmax.f32 %v890, 0.0
      %v1116 = vmax.f32 %v893, 0.0
      %v1117 = vmax.f32 %v895, 0.0
      %v1118 = vmax.f32 %v898, 0.0
      %v1119 = vmax.f32 %v900, 0.0
      %v1120 = vmax.f32 %v903, 0.0
      %v1121 = vmax.f32 %v905, 0.0
      %v1122 = vmax.f32 %v908, 0.0
      %v1123 = vmax.f32 %v910, 0.0
      %v1124 = vmax.f32 %v913, 0.0
      %v1125 = vmax.f32 %v915, 0.0
      %v1126 = vmax.f32 %v918, 0.0
      %v1127 = vmax.f32 %v920, 0.0
      %v1128 = vmax.f32 %v923, 0.0
      %v1129 = vmax.f32 %v925, 0.0
      %v1130 = vmax.f32 %v928, 0.0
      %v1131 = vmax.f32 %v930, 0.0
      %v1132 = vmax.f32 %v933, 0.0
      %v1133 = vmax.f32 %v935, 0.0
      %v1134 = vmax.f32 %v938, 0.0
      %v1135 = vmax.f32 %v940, 0.0
      %v1136 = vmax.f32 %v943, 0.0
      %v1137 = vmax.f32 %v945, 0.0
      %v1138 = vmax.f32 %v948, 0.0
      %v1139 = vmax.f32 %v950, 0.0
      %v1140 = vmax.f32 %v953, 0.0
      %v1141 = vmax.f32 %v955, 0.0
      %v1142 = vmax.f32 %v958, 0.0
      %v1143 = vmax.f32 %v960, 0.0
      %v1144 = vmax.f32 %v963, 0.0
      %v1145 = vmax.f32 %v965, 0.0
      %v1146 = vmax.f32 %v968, 0.0
      %v1147 = vmax.f32 %v970, 0.0
      %v1148 = vmax.f32 %v973, 0.0
      %v1149 = vmax.f32 %v975, 0.0
      %v1150 = vmax.f32 %v978, 0.0
      %v1151 = vmax.f32 %v980, 0.0
      %v1152 = vmax.f32 %v983, 0.0
      %v1153 = vmax.f32 %v985, 0.0
      %v1154 = vmax.f32 %v988, 0.0
      %v1155 = vmax.f32 %v990, 0.0
      %v1156 = vmax.f32 %v993, 0.0
      %v1157 = vmax.f32 %v995, 0.0
      %v1158 = vmax.f32 %v998, 0.0
      %v1159 = vmax.f32 %v1000, 0.0
      %v1160 = vmax.f32 %v1003, 0.0
      %v1161 = vmax.f32 %v1005, 0.0
      %v1162 = vmax.f32 %v1008, 0.0
      %v1163 = vmax.f32 %v1010, 0.0
      %v1164 = vmax.f32 %v1013, 0.0
      %v1165 = vmax.f32 %v1015, 0.0
      %v1166 = vmax.f32 %v1018, 0.0
      %v1167 = vmax.f32 %v1020, 0.0
      %v1168 = vmax.f32 %v1023, 0.0
      %v1169 = vmax.f32 %v1025, 0.0
      %v1170 = vmax.f32 %v1028, 0.0
      %v1171 = vmax.f32 %v1030, 0.0
      %v1172 = vmax.f32 %v1033, 0.0
      %v1173 = vmax.f32 %v1035, 0.0
      %v1174 = vmax.f32 %v1038, 0.0
      %v1175 = vmax.f32 %v1040, 0.0
      %v1176 = vmax.f32 %v1043, 0.0
      %v1177 = vmax.f32 %v1045, 0.0
      %v1178 = vmax.f32 %v1048, 0.0
      %v1179 = vmax.f32 %v1050, 0.0
      %v1180 = vmax.f32 %v1053, 0.0
      %v1181 = vmax.f32 %v1055, 0.0
      %v1182 = vmax.f32 %v1058, 0.0
      %v1183 = vmax.f32 %v1060, 0.0
      %v1184 = vmax.f32 %v1063, 0.0
      %v1185 = vmax.f32 %v1065, 0.0
      %v1186 = vmax.f32 %v1068, 0.0
      %v1187 = vmax.f32 %v1070, 0.0
      %v1188 = vmax.f32 %v1073, 0.0
      %v1189 = vmax.f32 %v1075, 0.0
      %v1190 = vmax.f32 %v1078, 0.0
      %v1191 = vmax.f32 %v1080, 0.0
      %v1192 = vmax.f32 %v1083, 0.0
      %v1193 = vmax.f32 %v1085, 0.0
      %v1194 = vmax.f32 %v1088, 0.0
      %v1195 = vmax.f32 %v1090, 0.0
      %v1196 = vmax.f32 %v1093, 0.0
      %v1197 = vmax.f32 %v1095, 0.0
      %v1198 = vmax.f32 %v1098, 0.0
      %v1199 = vmax.f32 %v1100, 0.0
      %v1200 = vpack.c.bf16 %v1102, %v1102
      %v1201 = vpack.c.bf16 %v1103, %v1103
      %v1202 = vpack.c.bf16 %v1104, %v1104
      %v1203 = vpack.c.bf16 %v1105, %v1105
      %v1204 = vpack.c.bf16 %v1106, %v1106
      %v1205 = vpack.c.bf16 %v1107, %v1107
      %v1206 = vpack.c.bf16 %v1108, %v1108
      %v1207 = vpack.c.bf16 %v1109, %v1109
      %v1208 = vpack.c.bf16 %v1110, %v1110
      %v1209 = vpack.c.bf16 %v1111, %v1111
      %v1210 = vpack.c.bf16 %v1112, %v1112
      %v1211 = vpack.c.bf16 %v1113, %v1113
      %v1212 = vpack.c.bf16 %v1114, %v1114
      %v1213 = vpack.c.bf16 %v1115, %v1115
      %v1214 = vpack.c.bf16 %v1116, %v1116
      %v1215 = vpack.c.bf16 %v1117, %v1117
      %v1216 = vpack.c.bf16 %v1118, %v1118
      %v1217 = vpack.c.bf16 %v1119, %v1119
      %v1218 = vpack.c.bf16 %v1120, %v1120
      %v1219 = vpack.c.bf16 %v1121, %v1121
      %v1220 = vpack.c.bf16 %v1122, %v1122
      %v1221 = vpack.c.bf16 %v1123, %v1123
      %v1222 = vpack.c.bf16 %v1124, %v1124
      %v1223 = vpack.c.bf16 %v1125, %v1125
      %v1224 = vpack.c.bf16 %v1126, %v1126
      %v1225 = vpack.c.bf16 %v1127, %v1127
      %v1226 = vpack.c.bf16 %v1128, %v1128
      %v1227 = vpack.c.bf16 %v1129, %v1129
      %v1228 = vpack.c.bf16 %v1130, %v1130
      %v1229 = vpack.c.bf16 %v1131, %v1131
      %v1230 = vpack.c.bf16 %v1132, %v1132
      %v1231 = vpack.c.bf16 %v1133, %v1133
      %v1232 = vpack.c.bf16 %v1134, %v1134
      %v1233 = vpack.c.bf16 %v1135, %v1135
      %v1234 = vpack.c.bf16 %v1136, %v1136
      %v1235 = vpack.c.bf16 %v1137, %v1137
      %v1236 = vpack.c.bf16 %v1138, %v1138
      %v1237 = vpack.c.bf16 %v1139, %v1139
      %v1238 = vpack.c.bf16 %v1140, %v1140
      %v1239 = vpack.c.bf16 %v1141, %v1141
      %v1240 = vpack.c.bf16 %v1142, %v1142
      %v1241 = vpack.c.bf16 %v1143, %v1143
      %v1242 = vpack.c.bf16 %v1144, %v1144
      %v1243 = vpack.c.bf16 %v1145, %v1145
      %v1244 = vpack.c.bf16 %v1146, %v1146
      %v1245 = vpack.c.bf16 %v1147, %v1147
      %v1246 = vpack.c.bf16 %v1148, %v1148
      %v1247 = vpack.c.bf16 %v1149, %v1149
      %v1248 = vpack.c.bf16 %v1150, %v1150
      %v1249 = vpack.c.bf16 %v1151, %v1151
      %v1250 = vpack.c.bf16 %v1152, %v1152
      %v1251 = vpack.c.bf16 %v1153, %v1153
      %v1252 = vpack.c.bf16 %v1154, %v1154
      %v1253 = vpack.c.bf16 %v1155, %v1155
      %v1254 = vpack.c.bf16 %v1156, %v1156
      %v1255 = vpack.c.bf16 %v1157, %v1157
      %v1256 = vpack.c.bf16 %v1158, %v1158
      %v1257 = vpack.c.bf16 %v1159, %v1159
      %v1258 = vpack.c.bf16 %v1160, %v1160
      %v1259 = vpack.c.bf16 %v1161, %v1161
      %v1260 = vpack.c.bf16 %v1162, %v1162
      %v1261 = vpack.c.bf16 %v1163, %v1163
      %v1262 = vpack.c.bf16 %v1164, %v1164
      %v1263 = vpack.c.bf16 %v1165, %v1165
      %v1264 = vpack.c.bf16 %v1166, %v1166
      %v1265 = vpack.c.bf16 %v1167, %v1167
      %v1266 = vpack.c.bf16 %v1168, %v1168
      %v1267 = vpack.c.bf16 %v1169, %v1169
      %v1268 = vpack.c.bf16 %v1170, %v1170
      %v1269 = vpack.c.bf16 %v1171, %v1171
      %v1270 = vpack.c.bf16 %v1172, %v1172
      %v1271 = vpack.c.bf16 %v1173, %v1173
      %v1272 = vpack.c.bf16 %v1174, %v1174
      %v1273 = vpack.c.bf16 %v1175, %v1175
      %v1274 = vpack.c.bf16 %v1176, %v1176
      %v1275 = vpack.c.bf16 %v1177, %v1177
      %v1276 = vpack.c.bf16 %v1178, %v1178
      %v1277 = vpack.c.bf16 %v1179, %v1179
      %v1278 = vpack.c.bf16 %v1180, %v1180
      %v1279 = vpack.c.bf16 %v1181, %v1181
      %v1280 = vpack.c.bf16 %v1182, %v1182
      %v1281 = vpack.c.bf16 %v1183, %v1183
      %v1282 = vpack.c.bf16 %v1184, %v1184
      %v1283 = vpack.c.bf16 %v1185, %v1185
      %v1284 = vpack.c.bf16 %v1186, %v1186
      %v1285 = vpack.c.bf16 %v1187, %v1187
      %v1286 = vpack.c.bf16 %v1188, %v1188
      %v1287 = vpack.c.bf16 %v1189, %v1189
      %v1288 = vpack.c.bf16 %v1190, %v1190
      %v1289 = vpack.c.bf16 %v1191, %v1191
      %v1290 = vpack.c.bf16 %v1192, %v1192
      %v1291 = vpack.c.bf16 %v1193, %v1193
      %v1292 = vpack.c.bf16 %v1194, %v1194
      %v1293 = vpack.c.bf16 %v1195, %v1195
      %v1294 = vpack.c.bf16 %v1196, %v1196
      %v1295 = vpack.c.bf16 %v1197, %v1197
      %v1296 = vpack.c.bf16 %v1198, %v1198
      %v1297 = vpack.c.bf16 %v1199, %v1199
      %1298 = vst [vmem:[#allocation2] sm:$0xf] %v1200
      %1299 = vst [vmem:[#allocation2 + $0x4] sm:$0xf] %v1201
      %1300 = vst [vmem:[#allocation2 + $0x8] sm:$0xf] %v1202
      %1301 = vst [vmem:[#allocation2 + $0xc] sm:$0xf] %v1203
      %1302 = vst [vmem:[#allocation2 + $0x10] sm:$0xf] %v1204
      %1303 = vst [vmem:[#allocation2 + $0x14] sm:$0xf] %v1205
      %1304 = vst [vmem:[#allocation2 + $0x18] sm:$0xf] %v1206
      %1305 = vst [vmem:[#allocation2 + $0x1c] sm:$0xf] %v1207
      %1306 = vst [vmem:[#allocation2 + $0x20] sm:$0xf] %v1208
      %1307 = vst [vmem:[#allocation2 + $0x24] sm:$0xf] %v1209
      %1308 = vst [vmem:[#allocation2 + $0x28] sm:$0xf] %v1210
      %1309 = vst [vmem:[#allocation2 + $0x2c] sm:$0xf] %v1211
      %1310 = vst [vmem:[#allocation2 + $0x30] sm:$0xf] %v1212
      %1311 = vst [vmem:[#allocation2 + $0x34] sm:$0xf] %v1213
      %1312 = vst [vmem:[#allocation2 + $0x38] sm:$0xf] %v1214
      %1313 = vst [vmem:[#allocation2 + $0x3c] sm:$0xf] %v1215
      %1314 = vst [vmem:[#allocation2 + $0x40] sm:$0xf] %v1216
      %1315 = vst [vmem:[#allocation2 + $0x44] sm:$0xf] %v1217
      %1316 = vst [vmem:[#allocation2 + $0x48] sm:$0xf] %v1218
      %1317 = vst [vmem:[#allocation2 + $0x4c] sm:$0xf] %v1219
      %1318 = vst [vmem:[#allocation2 + $0x50] sm:$0xf] %v1220
      %1319 = vst [vmem:[#allocation2 + $0x54] sm:$0xf] %v1221
      %1320 = vst [vmem:[#allocation2 + $0x58] sm:$0xf] %v1222
      %1321 = vst [vmem:[#allocation2 + $0x5c] sm:$0xf] %v1223
      %1322 = vst [vmem:[#allocation2 + $0x60] sm:$0xf] %v1224
      %1323 = vst [vmem:[#allocation2 + $0x64] sm:$0xf] %v1225
      %1324 = vst [vmem:[#allocation2 + $0x68] sm:$0xf] %v1226
      %1325 = vst [vmem:[#allocation2 + $0x6c] sm:$0xf] %v1227
      %1326 = vst [vmem:[#allocation2 + $0x70] sm:$0xf] %v1228
      %1327 = vst [vmem:[#allocation2 + $0x74] sm:$0xf] %v1229
      %1328 = vst [vmem:[#allocation2 + $0x78] sm:$0xf] %v1230
      %1329 = vst [vmem:[#allocation2 + $0x7c] sm:$0xf] %v1231
      %1330 = vst [vmem:[#allocation2 + $0x80] sm:$0xf] %v1232
      %1331 = vst [vmem:[#allocation2 + $0x84] sm:$0xf] %v1233
      %1332 = vst [vmem:[#allocation2 + $0x88] sm:$0xf] %v1234
      %1333 = vst [vmem:[#allocation2 + $0x8c] sm:$0xf] %v1235
      %1334 = vst [vmem:[#allocation2 + $0x90] sm:$0xf] %v1236
      %1335 = vst [vmem:[#allocation2 + $0x94] sm:$0xf] %v1237
      %1336 = vst [vmem:[#allocation2 + $0x98] sm:$0xf] %v1238
      %1337 = vst [vmem:[#allocation2 + $0x9c] sm:$0xf] %v1239
      %1338 = vst [vmem:[#allocation2 + $0xa0] sm:$0xf] %v1240
      %1339 = vst [vmem:[#allocation2 + $0xa4] sm:$0xf] %v1241
      %1340 = vst [vmem:[#allocation2 + $0xa8] sm:$0xf] %v1242
      %1341 = vst [vmem:[#allocation2 + $0xac] sm:$0xf] %v1243
      %1342 = vst [vmem:[#allocation2 + $0xb0] sm:$0xf] %v1244
      %1343 = vst [vmem:[#allocation2 + $0xb4] sm:$0xf] %v1245
      %1344 = vst [vmem:[#allocation2 + $0xb8] sm:$0xf] %v1246
      %1345 = vst [vmem:[#allocation2 + $0xbc] sm:$0xf] %v1247
      %1346 = vst [vmem:[#allocation2 + $0xc0] sm:$0xf] %v1248
      %1347 = vst [vmem:[#allocation2 + $0xc4] sm:$0xf] %v1249
      %1348 = vst [vmem:[#allocation2 + $0xc8] sm:$0xf] %v1250
      %1349 = vst [vmem:[#allocation2 + $0xcc] sm:$0xf] %v1251
      %1350 = vst [vmem:[#allocation2 + $0xd0] sm:$0xf] %v1252
      %1351 = vst [vmem:[#allocation2 + $0xd4] sm:$0xf] %v1253
      %1352 = vst [vmem:[#allocation2 + $0xd8] sm:$0xf] %v1254
      %1353 = vst [vmem:[#allocation2 + $0xdc] sm:$0xf] %v1255
      %1354 = vst [vmem:[#allocation2 + $0xe0] sm:$0xf] %v1256
      %1355 = vst [vmem:[#allocation2 + $0xe4] sm:$0xf] %v1257
      %1356 = vst [vmem:[#allocation2 + $0xe8] sm:$0xf] %v1258
      %1357 = vst [vmem:[#allocation2 + $0xec] sm:$0xf] %v1259
      %1358 = vst [vmem:[#allocation2 + $0xf0] sm:$0xf] %v1260
      %1359 = vst [vmem:[#allocation2 + $0xf4] sm:$0xf] %v1261
      %1360 = vst [vmem:[#allocation2 + $0xf8] sm:$0xf] %v1262
      %1361 = vst [vmem:[#allocation2 + $0xfc] sm:$0xf] %v1263
      %1362 = vst [vmem:[#allocation2 + $0x100] sm:$0xf] %v1264
      %1363 = vst [vmem:[#allocation2 + $0x104] sm:$0xf] %v1265
      %1364 = vst [vmem:[#allocation2 + $0x108] sm:$0xf] %v1266
      %1365 = vst [vmem:[#allocation2 + $0x10c] sm:$0xf] %v1267
      %1366 = vst [vmem:[#allocation2 + $0x110] sm:$0xf] %v1268
      %1367 = vst [vmem:[#allocation2 + $0x114] sm:$0xf] %v1269
      %1368 = vst [vmem:[#allocation2 + $0x118] sm:$0xf] %v1270
      %1369 = vst [vmem:[#allocation2 + $0x11c] sm:$0xf] %v1271
      %1370 = vst [vmem:[#allocation2 + $0x120] sm:$0xf] %v1272
      %1371 = vst [vmem:[#allocation2 + $0x124] sm:$0xf] %v1273
      %1372 = vst [vmem:[#allocation2 + $0x128] sm:$0xf] %v1274
      %1373 = vst [vmem:[#allocation2 + $0x12c] sm:$0xf] %v1275
      %1374 = vst [vmem:[#allocation2 + $0x130] sm:$0xf] %v1276
      %1375 = vst [vmem:[#allocation2 + $0x134] sm:$0xf] %v1277
      %1376 = vst [vmem:[#allocation2 + $0x138] sm:$0xf] %v1278
      %1377 = vst [vmem:[#allocation2 + $0x13c] sm:$0xf] %v1279
      %1378 = vst [vmem:[#allocation2 + $0x140] sm:$0xf] %v1280
      %1379 = vst [vmem:[#allocation2 + $0x144] sm:$0xf] %v1281
      %1380 = vst [vmem:[#allocation2 + $0x148] sm:$0xf] %v1282
      %1381 = vst [vmem:[#allocation2 + $0x14c] sm:$0xf] %v1283
      %1382 = vst [vmem:[#allocation2 + $0x150] sm:$0xf] %v1284
      %1383 = vst [vmem:[#allocation2 + $0x154] sm:$0xf] %v1285
      %1384 = vst [vmem:[#allocation2 + $0x158] sm:$0xf] %v1286
      %1385 = vst [vmem:[#allocation2 + $0x15c] sm:$0xf] %v1287
      %1386 = vst [vmem:[#allocation2 + $0x160] sm:$0xf] %v1288
      %1387 = vst [vmem:[#allocation2 + $0x164] sm:$0xf] %v1289
      %1388 = vst [vmem:[#allocation2 + $0x168] sm:$0xf] %v1290
      %1389 = vst [vmem:[#allocation2 + $0x16c] sm:$0xf] %v1291
      %1390 = vst [vmem:[#allocation2 + $0x170] sm:$0xf] %v1292
      %1391 = vst [vmem:[#allocation2 + $0x174] sm:$0xf] %v1293
      %1392 = vst [vmem:[#allocation2 + $0x178] sm:$0xf] %v1294
      %1393 = vst [vmem:[#allocation2 + $0x17c] sm:$0xf] %v1295
      %1394 = vst [vmem:[#allocation2 + $0x180] sm:$0xf] %v1296
      %1395 = vst [vmem:[#allocation2 + $0x184] sm:$0xf] %v1297
      %v1396 = vld [vmem:[#allocation2] sm:$0xf]
      %v1397 = vld [vmem:[#allocation2 + $0x4] sm:$0xf]
      %v1398 = vld [vmem:[#allocation2 + $0x8] sm:$0xf]
      %v1399 = vld [vmem:[#allocation2 + $0xc] sm:$0x3]
      %v1400 = vld [vmem:[#allocation2 + $0xc] sm:$0xc]
      %v1401 = vld [vmem:[#allocation2 + $0x10] sm:$0xf]
      %v1402 = vld [vmem:[#allocation2 + $0x14] sm:$0xf]
      %v1403 = vld [vmem:[#allocation2 + $0x18] sm:$0xf]
      %v1404 = vunpack.c.l.bf16 %v1396
      %v1405 = vunpack.c.l.bf16 %v1397
      %v1406 = vunpack.c.l.bf16 %v1398
      %v1407 = vunpack.c.l.bf16 %v1399
      %v1408 = vunpack.c.l.bf16 %v1400
      %v1409 = vunpack.c.l.bf16 %v1401
      %v1410 = vunpack.c.l.bf16 %v1402
      %v1411 = vunpack.c.l.bf16 %v1403
      %vm1416 = vcmask 1043456
      %v1417 = vrot.slane %v1408, 4
      %v1418 = vrot.slane %v1409, 4
      %v1419 = vsel %vm1416, %v1417, %v1418
      %v1420 = vrot.slane %v1410, 4
      %v1421 = vsel %vm1416, %v1418, %v1420
      %v1422 = vrot.slane %v1411, 4
      %v1423 = vsel %vm1416, %v1420, %v1422
      %v1428 = vmax.f32 %v1404, %v1419
      %v1429 = vmax.f32 %v1405, %v1421
      %v1430 = vmax.f32 %v1406, %v1423
      %v1431 = vmax.f32 %v1407, %v1422
      %v1432 = vpack.c.bf16 %v1428, %v1428
      %v1433 = vpack.c.bf16 %v1429, %v1429
      %v1434 = vpack.c.bf16 %v1430, %v1430
      %v1435 = vpack.c.bf16 %v1431, %v1431
      %v1436 = vunpack.c.l.bf16 %v1432
      %v1437 = vunpack.c.l.bf16 %v1433
      %v1438 = vunpack.c.l.bf16 %v1434
      %v1439 = vunpack.c.l.bf16 %v1435
      %1440 = vst [vmem:[#allocation3] sm:$0xff] %v1436
      %1441 = vst [vmem:[#allocation3 + $0x8] sm:$0xff] %v1437
      %1442 = vst [vmem:[#allocation3 + $0x10] sm:$0xff] %v1438
      %1443 = vst [vmem:[#allocation3 + $0x18] sm:$0xf] %v1439
      %v1444 = vld [vmem:[#allocation2 + $0x1c] sm:$0xf]
      %v1445 = vld [vmem:[#allocation2 + $0x20] sm:$0xf]
      %v1446 = vld [vmem:[#allocation2 + $0x24] sm:$0xf]
      %v1447 = vld [vmem:[#allocation2 + $0x28] sm:$0x3]
      %v1448 = vld [vmem:[#allocation2 + $0x28] sm:$0xc]
      %v1449 = vld [vmem:[#allocation2 + $0x2c] sm:$0xf]
      %v1450 = vld [vmem:[#allocation2 + $0x30] sm:$0xf]
      %v1451 = vld [vmem:[#allocation2 + $0x34] sm:$0xf]
      %v1452 = vunpack.c.l.bf16 %v1444
      %v1453 = vunpack.c.l.bf16 %v1445
      %v1454 = vunpack.c.l.bf16 %v1446
      %v1455 = vunpack.c.l.bf16 %v1447
      %v1456 = vunpack.c.l.bf16 %v1448
      %v1457 = vunpack.c.l.bf16 %v1449
      %v1458 = vunpack.c.l.bf16 %v1450
      %v1459 = vunpack.c.l.bf16 %v1451
      %v1464 = vrot.slane %v1456, 4
      %v1465 = vrot.slane %v1457, 4
      %v1466 = vsel %vm1416, %v1464, %v1465
      %v1467 = vrot.slane %v1458, 4
      %v1468 = vsel %vm1416, %v1465, %v1467
      %v1469 = vrot.slane %v1459, 4
      %v1470 = vsel %vm1416, %v1467, %v1469
      %v1475 = vmax.f32 %v1452, %v1466
      %v1476 = vmax.f32 %v1453, %v1468
      %v1477 = vmax.f32 %v1454, %v1470
      %v1478 = vmax.f32 %v1455, %v1469
      %v1479 = vpack.c.bf16 %v1475, %v1475
      %v1480 = vpack.c.bf16 %v1476, %v1476
      %v1481 = vpack.c.bf16 %v1477, %v1477
      %v1482 = vpack.c.bf16 %v1478, %v1478
      %v1483 = vunpack.c.l.bf16 %v1479
      %v1484 = vunpack.c.l.bf16 %v1480
      %v1485 = vunpack.c.l.bf16 %v1481
      %v1486 = vunpack.c.l.bf16 %v1482
      %1487 = vst [vmem:[#allocation3 + $0x1c] sm:$0xff] %v1483
      %1488 = vst [vmem:[#allocation3 + $0x24] sm:$0xff] %v1484
      %1489 = vst [vmem:[#allocation3 + $0x2c] sm:$0xff] %v1485
      %1490 = vst [vmem:[#allocation3 + $0x34] sm:$0xf] %v1486
      %v1491 = vld [vmem:[#allocation2 + $0x38] sm:$0xf]
      %v1492 = vld [vmem:[#allocation2 + $0x3c] sm:$0xf]
      %v1493 = vld [vmem:[#allocation2 + $0x40] sm:$0xf]
      %v1494 = vld [vmem:[#allocation2 + $0x44] sm:$0x3]
      %v1495 = vld [vmem:[#allocation2 + $0x44] sm:$0xc]
      %v1496 = vld [vmem:[#allocation2 + $0x48] sm:$0xf]
      %v1497 = vld [vmem:[#allocation2 + $0x4c] sm:$0xf]
      %v1498 = vld [vmem:[#allocation2 + $0x50] sm:$0xf]
      %v1499 = vunpack.c.l.bf16 %v1491
      %v1500 = vunpack.c.l.bf16 %v1492
      %v1501 = vunpack.c.l.bf16 %v1493
      %v1502 = vunpack.c.l.bf16 %v1494
      %v1503 = vunpack.c.l.bf16 %v1495
      %v1504 = vunpack.c.l.bf16 %v1496
      %v1505 = vunpack.c.l.bf16 %v1497
      %v1506 = vunpack.c.l.bf16 %v1498
      %v1511 = vrot.slane %v1503, 4
      %v1512 = vrot.slane %v1504, 4
      %v1513 = vsel %vm1416, %v1511, %v1512
      %v1514 = vrot.slane %v1505, 4
      %v1515 = vsel %vm1416, %v1512, %v1514
      %v1516 = vrot.slane %v1506, 4
      %v1517 = vsel %vm1416, %v1514, %v1516
      %v1522 = vmax.f32 %v1499, %v1513
      %v1523 = vmax.f32 %v1500, %v1515
      %v1524 = vmax.f32 %v1501, %v1517
      %v1525 = vmax.f32 %v1502, %v1516
      %v1526 = vpack.c.bf16 %v1522, %v1522
      %v1527 = vpack.c.bf16 %v1523, %v1523
      %v1528 = vpack.c.bf16 %v1524, %v1524
      %v1529 = vpack.c.bf16 %v1525, %v1525
      %v1530 = vunpack.c.l.bf16 %v1526
      %v1531 = vunpack.c.l.bf16 %v1527
      %v1532 = vunpack.c.l.bf16 %v1528
      %v1533 = vunpack.c.l.bf16 %v1529
      %1534 = vst [vmem:[#allocation3 + $0x38] sm:$0xff] %v1530
      %1535 = vst [vmem:[#allocation3 + $0x40] sm:$0xff] %v1531
      %1536 = vst [vmem:[#allocation3 + $0x48] sm:$0xff] %v1532
      %1537 = vst [vmem:[#allocation3 + $0x50] sm:$0xf] %v1533
      %v1538 = vld [vmem:[#allocation2 + $0x54] sm:$0xf]
      %v1539 = vld [vmem:[#allocation2 + $0x58] sm:$0xf]
      %v1540 = vld [vmem:[#allocation2 + $0x5c] sm:$0xf]
      %v1541 = vld [vmem:[#allocation2 + $0x60] sm:$0x3]
      %v1542 = vld [vmem:[#allocation2 + $0x60] sm:$0xc]
      %v1543 = vld [vmem:[#allocation2 + $0x64] sm:$0xf]
      %v1544 = vld [vmem:[#allocation2 + $0x68] sm:$0xf]
      %v1545 = vld [vmem:[#allocation2 + $0x6c] sm:$0xf]
      %v1546 = vunpack.c.l.bf16 %v1538
      %v1547 = vunpack.c.l.bf16 %v1539
      %v1548 = vunpack.c.l.bf16 %v1540
      %v1549 = vunpack.c.l.bf16 %v1541
      %v1550 = vunpack.c.l.bf16 %v1542
      %v1551 = vunpack.c.l.bf16 %v1543
      %v1552 = vunpack.c.l.bf16 %v1544
      %v1553 = vunpack.c.l.bf16 %v1545
      %v1558 = vrot.slane %v1550, 4
      %v1559 = vrot.slane %v1551, 4
      %v1560 = vsel %vm1416, %v1558, %v1559
      %v1561 = vrot.slane %v1552, 4
      %v1562 = vsel %vm1416, %v1559, %v1561
      %v1563 = vrot.slane %v1553, 4
      %v1564 = vsel %vm1416, %v1561, %v1563
      %v1569 = vmax.f32 %v1546, %v1560
      %v1570 = vmax.f32 %v1547, %v1562
      %v1571 = vmax.f32 %v1548, %v1564
      %v1572 = vmax.f32 %v1549, %v1563
      %v1573 = vpack.c.bf16 %v1569, %v1569
      %v1574 = vpack.c.bf16 %v1570, %v1570
      %v1575 = vpack.c.bf16 %v1571, %v1571
      %v1576 = vpack.c.bf16 %v1572, %v1572
      %v1577 = vunpack.c.l.bf16 %v1573
      %v1578 = vunpack.c.l.bf16 %v1574
      %v1579 = vunpack.c.l.bf16 %v1575
      %v1580 = vunpack.c.l.bf16 %v1576
      %1581 = vst [vmem:[#allocation3 + $0x54] sm:$0xff] %v1577
      %1582 = vst [vmem:[#allocation3 + $0x5c] sm:$0xff] %v1578
      %1583 = vst [vmem:[#allocation3 + $0x64] sm:$0xff] %v1579
      %1584 = vst [vmem:[#allocation3 + $0x6c] sm:$0xf] %v1580
      %v1585 = vld [vmem:[#allocation2 + $0x70] sm:$0xf]
      %v1586 = vld [vmem:[#allocation2 + $0x74] sm:$0xf]
      %v1587 = vld [vmem:[#allocation2 + $0x78] sm:$0xf]
      %v1588 = vld [vmem:[#allocation2 + $0x7c] sm:$0x3]
      %v1589 = vld [vmem:[#allocation2 + $0x7c] sm:$0xc]
      %v1590 = vld [vmem:[#allocation2 + $0x80] sm:$0xf]
      %v1591 = vld [vmem:[#allocation2 + $0x84] sm:$0xf]
      %v1592 = vld [vmem:[#allocation2 + $0x88] sm:$0xf]
      %v1593 = vunpack.c.l.bf16 %v1585
      %v1594 = vunpack.c.l.bf16 %v1586
      %v1595 = vunpack.c.l.bf16 %v1587
      %v1596 = vunpack.c.l.bf16 %v1588
      %v1597 = vunpack.c.l.bf16 %v1589
      %v1598 = vunpack.c.l.bf16 %v1590
      %v1599 = vunpack.c.l.bf16 %v1591
      %v1600 = vunpack.c.l.bf16 %v1592
      %v1605 = vrot.slane %v1597, 4
      %v1606 = vrot.slane %v1598, 4
      %v1607 = vsel %vm1416, %v1605, %v1606
      %v1608 = vrot.slane %v1599, 4
      %v1609 = vsel %vm1416, %v1606, %v1608
      %v1610 = vrot.slane %v1600, 4
      %v1611 = vsel %vm1416, %v1608, %v1610
      %v1616 = vmax.f32 %v1593, %v1607
      %v1617 = vmax.f32 %v1594, %v1609
      %v1618 = vmax.f32 %v1595, %v1611
      %v1619 = vmax.f32 %v1596, %v1610
      %v1620 = vpack.c.bf16 %v1616, %v1616
      %v1621 = vpack.c.bf16 %v1617, %v1617
      %v1622 = vpack.c.bf16 %v1618, %v1618
      %v1623 = vpack.c.bf16 %v1619, %v1619
      %v1624 = vunpack.c.l.bf16 %v1620
      %v1625 = vunpack.c.l.bf16 %v1621
      %v1626 = vunpack.c.l.bf16 %v1622
      %v1627 = vunpack.c.l.bf16 %v1623
      %1628 = vst [vmem:[#allocation3 + $0x70] sm:$0xff] %v1624
      %1629 = vst [vmem:[#allocation3 + $0x78] sm:$0xff] %v1625
      %1630 = vst [vmem:[#allocation3 + $0x80] sm:$0xff] %v1626
      %1631 = vst [vmem:[#allocation3 + $0x88] sm:$0xf] %v1627
      %v1632 = vld [vmem:[#allocation2 + $0x8c] sm:$0xf]
      %v1633 = vld [vmem:[#allocation2 + $0x90] sm:$0xf]
      %v1634 = vld [vmem:[#allocation2 + $0x94] sm:$0xf]
      %v1635 = vld [vmem:[#allocation2 + $0x98] sm:$0x3]
      %v1636 = vld [vmem:[#allocation2 + $0x98] sm:$0xc]
      %v1637 = vld [vmem:[#allocation2 + $0x9c] sm:$0xf]
      %v1638 = vld [vmem:[#allocation2 + $0xa0] sm:$0xf]
      %v1639 = vld [vmem:[#allocation2 + $0xa4] sm:$0xf]
      %v1640 = vunpack.c.l.bf16 %v1632
      %v1641 = vunpack.c.l.bf16 %v1633
      %v1642 = vunpack.c.l.bf16 %v1634
      %v1643 = vunpack.c.l.bf16 %v1635
      %v1644 = vunpack.c.l.bf16 %v1636
      %v1645 = vunpack.c.l.bf16 %v1637
      %v1646 = vunpack.c.l.bf16 %v1638
      %v1647 = vunpack.c.l.bf16 %v1639
      %v1652 = vrot.slane %v1644, 4
      %v1653 = vrot.slane %v1645, 4
      %v1654 = vsel %vm1416, %v1652, %v1653
      %v1655 = vrot.slane %v1646, 4
      %v1656 = vsel %vm1416, %v1653, %v1655
      %v1657 = vrot.slane %v1647, 4
      %v1658 = vsel %vm1416, %v1655, %v1657
      %v1663 = vmax.f32 %v1640, %v1654
      %v1664 = vmax.f32 %v1641, %v1656
      %v1665 = vmax.f32 %v1642, %v1658
      %v1666 = vmax.f32 %v1643, %v1657
      %v1667 = vpack.c.bf16 %v1663, %v1663
      %v1668 = vpack.c.bf16 %v1664, %v1664
      %v1669 = vpack.c.bf16 %v1665, %v1665
      %v1670 = vpack.c.bf16 %v1666, %v1666
      %v1671 = vunpack.c.l.bf16 %v1667
      %v1672 = vunpack.c.l.bf16 %v1668
      %v1673 = vunpack.c.l.bf16 %v1669
      %v1674 = vunpack.c.l.bf16 %v1670
      %1675 = vst [vmem:[#allocation3 + $0x8c] sm:$0xff] %v1671
      %1676 = vst [vmem:[#allocation3 + $0x94] sm:$0xff] %v1672
      %1677 = vst [vmem:[#allocation3 + $0x9c] sm:$0xff] %v1673
      %1678 = vst [vmem:[#allocation3 + $0xa4] sm:$0xf] %v1674
      %v1679 = vld [vmem:[#allocation2 + $0xa8] sm:$0xf]
      %v1680 = vld [vmem:[#allocation2 + $0xac] sm:$0xf]
      %v1681 = vld [vmem:[#allocation2 + $0xb0] sm:$0xf]
      %v1682 = vld [vmem:[#allocation2 + $0xb4] sm:$0x3]
      %v1683 = vld [vmem:[#allocation2 + $0xb4] sm:$0xc]
      %v1684 = vld [vmem:[#allocation2 + $0xb8] sm:$0xf]
      %v1685 = vld [vmem:[#allocation2 + $0xbc] sm:$0xf]
      %v1686 = vld [vmem:[#allocation2 + $0xc0] sm:$0xf]
      %v1687 = vunpack.c.l.bf16 %v1679
      %v1688 = vunpack.c.l.bf16 %v1680
      %v1689 = vunpack.c.l.bf16 %v1681
      %v1690 = vunpack.c.l.bf16 %v1682
      %v1691 = vunpack.c.l.bf16 %v1683
      %v1692 = vunpack.c.l.bf16 %v1684
      %v1693 = vunpack.c.l.bf16 %v1685
      %v1694 = vunpack.c.l.bf16 %v1686
      %v1699 = vrot.slane %v1691, 4
      %v1700 = vrot.slane %v1692, 4
      %v1701 = vsel %vm1416, %v1699, %v1700
      %v1702 = vrot.slane %v1693, 4
      %v1703 = vsel %vm1416, %v1700, %v1702
      %v1704 = vrot.slane %v1694, 4
      %v1705 = vsel %vm1416, %v1702, %v1704
      %v1710 = vmax.f32 %v1687, %v1701
      %v1711 = vmax.f32 %v1688, %v1703
      %v1712 = vmax.f32 %v1689, %v1705
      %v1713 = vmax.f32 %v1690, %v1704
      %v1714 = vpack.c.bf16 %v1710, %v1710
      %v1715 = vpack.c.bf16 %v1711, %v1711
      %v1716 = vpack.c.bf16 %v1712, %v1712
      %v1717 = vpack.c.bf16 %v1713, %v1713
      %v1718 = vunpack.c.l.bf16 %v1714
      %v1719 = vunpack.c.l.bf16 %v1715
      %v1720 = vunpack.c.l.bf16 %v1716
      %v1721 = vunpack.c.l.bf16 %v1717
      %1722 = vst [vmem:[#allocation3 + $0xa8] sm:$0xff] %v1718
      %1723 = vst [vmem:[#allocation3 + $0xb0] sm:$0xff] %v1719
      %1724 = vst [vmem:[#allocation3 + $0xb8] sm:$0xff] %v1720
      %1725 = vst [vmem:[#allocation3 + $0xc0] sm:$0xf] %v1721
      %v1726 = vld [vmem:[#allocation2 + $0xc4] sm:$0xf]
      %v1727 = vld [vmem:[#allocation2 + $0xc8] sm:$0xf]
      %v1728 = vld [vmem:[#allocation2 + $0xcc] sm:$0xf]
      %v1729 = vld [vmem:[#allocation2 + $0xd0] sm:$0x3]
      %v1730 = vld [vmem:[#allocation2 + $0xd0] sm:$0xc]
      %v1731 = vld [vmem:[#allocation2 + $0xd4] sm:$0xf]
      %v1732 = vld [vmem:[#allocation2 + $0xd8] sm:$0xf]
      %v1733 = vld [vmem:[#allocation2 + $0xdc] sm:$0xf]
      %v1734 = vunpack.c.l.bf16 %v1726
      %v1735 = vunpack.c.l.bf16 %v1727
      %v1736 = vunpack.c.l.bf16 %v1728
      %v1737 = vunpack.c.l.bf16 %v1729
      %v1738 = vunpack.c.l.bf16 %v1730
      %v1739 = vunpack.c.l.bf16 %v1731
      %v1740 = vunpack.c.l.bf16 %v1732
      %v1741 = vunpack.c.l.bf16 %v1733
      %v1746 = vrot.slane %v1738, 4
      %v1747 = vrot.slane %v1739, 4
      %v1748 = vsel %vm1416, %v1746, %v1747
      %v1749 = vrot.slane %v1740, 4
      %v1750 = vsel %vm1416, %v1747, %v1749
      %v1751 = vrot.slane %v1741, 4
      %v1752 = vsel %vm1416, %v1749, %v1751
      %v1757 = vmax.f32 %v1734, %v1748
      %v1758 = vmax.f32 %v1735, %v1750
      %v1759 = vmax.f32 %v1736, %v1752
      %v1760 = vmax.f32 %v1737, %v1751
      %v1761 = vpack.c.bf16 %v1757, %v1757
      %v1762 = vpack.c.bf16 %v1758, %v1758
      %v1763 = vpack.c.bf16 %v1759, %v1759
      %v1764 = vpack.c.bf16 %v1760, %v1760
      %v1765 = vunpack.c.l.bf16 %v1761
      %v1766 = vunpack.c.l.bf16 %v1762
      %v1767 = vunpack.c.l.bf16 %v1763
      %v1768 = vunpack.c.l.bf16 %v1764
      %1769 = vst [vmem:[#allocation3 + $0xc4] sm:$0xff] %v1765
      %1770 = vst [vmem:[#allocation3 + $0xcc] sm:$0xff] %v1766
      %1771 = vst [vmem:[#allocation3 + $0xd4] sm:$0xff] %v1767
      %1772 = vst [vmem:[#allocation3 + $0xdc] sm:$0xf] %v1768
      %v1773 = vld [vmem:[#allocation2 + $0xe0] sm:$0xf]
      %v1774 = vld [vmem:[#allocation2 + $0xe4] sm:$0xf]
      %v1775 = vld [vmem:[#allocation2 + $0xe8] sm:$0xf]
      %v1776 = vld [vmem:[#allocation2 + $0xec] sm:$0x3]
      %v1777 = vld [vmem:[#allocation2 + $0xec] sm:$0xc]
      %v1778 = vld [vmem:[#allocation2 + $0xf0] sm:$0xf]
      %v1779 = vld [vmem:[#allocation2 + $0xf4] sm:$0xf]
      %v1780 = vld [vmem:[#allocation2 + $0xf8] sm:$0xf]
      %v1781 = vunpack.c.l.bf16 %v1773
      %v1782 = vunpack.c.l.bf16 %v1774
      %v1783 = vunpack.c.l.bf16 %v1775
      %v1784 = vunpack.c.l.bf16 %v1776
      %v1785 = vunpack.c.l.bf16 %v1777
      %v1786 = vunpack.c.l.bf16 %v1778
      %v1787 = vunpack.c.l.bf16 %v1779
      %v1788 = vunpack.c.l.bf16 %v1780
      %v1793 = vrot.slane %v1785, 4
      %v1794 = vrot.slane %v1786, 4
      %v1795 = vsel %vm1416, %v1793, %v1794
      %v1796 = vrot.slane %v1787, 4
      %v1797 = vsel %vm1416, %v1794, %v1796
      %v1798 = vrot.slane %v1788, 4
      %v1799 = vsel %vm1416, %v1796, %v1798
      %v1804 = vmax.f32 %v1781, %v1795
      %v1805 = vmax.f32 %v1782, %v1797
      %v1806 = vmax.f32 %v1783, %v1799
      %v1807 = vmax.f32 %v1784, %v1798
      %v1808 = vpack.c.bf16 %v1804, %v1804
      %v1809 = vpack.c.bf16 %v1805, %v1805
      %v1810 = vpack.c.bf16 %v1806, %v1806
      %v1811 = vpack.c.bf16 %v1807, %v1807
      %v1812 = vunpack.c.l.bf16 %v1808
      %v1813 = vunpack.c.l.bf16 %v1809
      %v1814 = vunpack.c.l.bf16 %v1810
      %v1815 = vunpack.c.l.bf16 %v1811
      %1816 = vst [vmem:[#allocation3 + $0xe0] sm:$0xff] %v1812
      %1817 = vst [vmem:[#allocation3 + $0xe8] sm:$0xff] %v1813
      %1818 = vst [vmem:[#allocation3 + $0xf0] sm:$0xff] %v1814
      %1819 = vst [vmem:[#allocation3 + $0xf8] sm:$0xf] %v1815
      %v1820 = vld [vmem:[#allocation2 + $0xfc] sm:$0xf]
      %v1821 = vld [vmem:[#allocation2 + $0x100] sm:$0xf]
      %v1822 = vld [vmem:[#allocation2 + $0x104] sm:$0xf]
      %v1823 = vld [vmem:[#allocation2 + $0x108] sm:$0x3]
      %v1824 = vld [vmem:[#allocation2 + $0x108] sm:$0xc]
      %v1825 = vld [vmem:[#allocation2 + $0x10c] sm:$0xf]
      %v1826 = vld [vmem:[#allocation2 + $0x110] sm:$0xf]
      %v1827 = vld [vmem:[#allocation2 + $0x114] sm:$0xf]
      %v1828 = vunpack.c.l.bf16 %v1820
      %v1829 = vunpack.c.l.bf16 %v1821
      %v1830 = vunpack.c.l.bf16 %v1822
      %v1831 = vunpack.c.l.bf16 %v1823
      %v1832 = vunpack.c.l.bf16 %v1824
      %v1833 = vunpack.c.l.bf16 %v1825
      %v1834 = vunpack.c.l.bf16 %v1826
      %v1835 = vunpack.c.l.bf16 %v1827
      %v1840 = vrot.slane %v1832, 4
      %v1841 = vrot.slane %v1833, 4
      %v1842 = vsel %vm1416, %v1840, %v1841
      %v1843 = vrot.slane %v1834, 4
      %v1844 = vsel %vm1416, %v1841, %v1843
      %v1845 = vrot.slane %v1835, 4
      %v1846 = vsel %vm1416, %v1843, %v1845
      %v1851 = vmax.f32 %v1828, %v1842
      %v1852 = vmax.f32 %v1829, %v1844
      %v1853 = vmax.f32 %v1830, %v1846
      %v1854 = vmax.f32 %v1831, %v1845
      %v1855 = vpack.c.bf16 %v1851, %v1851
      %v1856 = vpack.c.bf16 %v1852, %v1852
      %v1857 = vpack.c.bf16 %v1853, %v1853
      %v1858 = vpack.c.bf16 %v1854, %v1854
      %v1859 = vunpack.c.l.bf16 %v1855
      %v1860 = vunpack.c.l.bf16 %v1856
      %v1861 = vunpack.c.l.bf16 %v1857
      %v1862 = vunpack.c.l.bf16 %v1858
      %1863 = vst [vmem:[#allocation3 + $0xfc] sm:$0xff] %v1859
      %1864 = vst [vmem:[#allocation3 + $0x104] sm:$0xff] %v1860
      %1865 = vst [vmem:[#allocation3 + $0x10c] sm:$0xff] %v1861
      %1866 = vst [vmem:[#allocation3 + $0x114] sm:$0xf] %v1862
      %v1867 = vld [vmem:[#allocation2 + $0x118] sm:$0xf]
      %v1868 = vld [vmem:[#allocation2 + $0x11c] sm:$0xf]
      %v1869 = vld [vmem:[#allocation2 + $0x120] sm:$0xf]
      %v1870 = vld [vmem:[#allocation2 + $0x124] sm:$0x3]
      %v1871 = vld [vmem:[#allocation2 + $0x124] sm:$0xc]
      %v1872 = vld [vmem:[#allocation2 + $0x128] sm:$0xf]
      %v1873 = vld [vmem:[#allocation2 + $0x12c] sm:$0xf]
      %v1874 = vld [vmem:[#allocation2 + $0x130] sm:$0xf]
      %v1875 = vunpack.c.l.bf16 %v1867
      %v1876 = vunpack.c.l.bf16 %v1868
      %v1877 = vunpack.c.l.bf16 %v1869
      %v1878 = vunpack.c.l.bf16 %v1870
      %v1879 = vunpack.c.l.bf16 %v1871
      %v1880 = vunpack.c.l.bf16 %v1872
      %v1881 = vunpack.c.l.bf16 %v1873
      %v1882 = vunpack.c.l.bf16 %v1874
      %v1887 = vrot.slane %v1879, 4
      %v1888 = vrot.slane %v1880, 4
      %v1889 = vsel %vm1416, %v1887, %v1888
      %v1890 = vrot.slane %v1881, 4
      %v1891 = vsel %vm1416, %v1888, %v1890
      %v1892 = vrot.slane %v1882, 4
      %v1893 = vsel %vm1416, %v1890, %v1892
      %v1898 = vmax.f32 %v1875, %v1889
      %v1899 = vmax.f32 %v1876, %v1891
      %v1900 = vmax.f32 %v1877, %v1893
      %v1901 = vmax.f32 %v1878, %v1892
      %v1902 = vpack.c.bf16 %v1898, %v1898
      %v1903 = vpack.c.bf16 %v1899, %v1899
      %v1904 = vpack.c.bf16 %v1900, %v1900
      %v1905 = vpack.c.bf16 %v1901, %v1901
      %v1906 = vunpack.c.l.bf16 %v1902
      %v1907 = vunpack.c.l.bf16 %v1903
      %v1908 = vunpack.c.l.bf16 %v1904
      %v1909 = vunpack.c.l.bf16 %v1905
      %1910 = vst [vmem:[#allocation3 + $0x118] sm:$0xff] %v1906
      %1911 = vst [vmem:[#allocation3 + $0x120] sm:$0xff] %v1907
      %1912 = vst [vmem:[#allocation3 + $0x128] sm:$0xff] %v1908
      %1913 = vst [vmem:[#allocation3 + $0x130] sm:$0xf] %v1909
      %v1914 = vld [vmem:[#allocation2 + $0x134] sm:$0xf]
      %v1915 = vld [vmem:[#allocation2 + $0x138] sm:$0xf]
      %v1916 = vld [vmem:[#allocation2 + $0x13c] sm:$0xf]
      %v1917 = vld [vmem:[#allocation2 + $0x140] sm:$0x3]
      %v1918 = vld [vmem:[#allocation2 + $0x140] sm:$0xc]
      %v1919 = vld [vmem:[#allocation2 + $0x144] sm:$0xf]
      %v1920 = vld [vmem:[#allocation2 + $0x148] sm:$0xf]
      %v1921 = vld [vmem:[#allocation2 + $0x14c] sm:$0xf]
      %v1922 = vunpack.c.l.bf16 %v1914
      %v1923 = vunpack.c.l.bf16 %v1915
      %v1924 = vunpack.c.l.bf16 %v1916
      %v1925 = vunpack.c.l.bf16 %v1917
      %v1926 = vunpack.c.l.bf16 %v1918
      %v1927 = vunpack.c.l.bf16 %v1919
      %v1928 = vunpack.c.l.bf16 %v1920
      %v1929 = vunpack.c.l.bf16 %v1921
      %v1934 = vrot.slane %v1926, 4
      %v1935 = vrot.slane %v1927, 4
      %v1936 = vsel %vm1416, %v1934, %v1935
      %v1937 = vrot.slane %v1928, 4
      %v1938 = vsel %vm1416, %v1935, %v1937
      %v1939 = vrot.slane %v1929, 4
      %v1940 = vsel %vm1416, %v1937, %v1939
      %v1945 = vmax.f32 %v1922, %v1936
      %v1946 = vmax.f32 %v1923, %v1938
      %v1947 = vmax.f32 %v1924, %v1940
      %v1948 = vmax.f32 %v1925, %v1939
      %v1949 = vpack.c.bf16 %v1945, %v1945
      %v1950 = vpack.c.bf16 %v1946, %v1946
      %v1951 = vpack.c.bf16 %v1947, %v1947
      %v1952 = vpack.c.bf16 %v1948, %v1948
      %v1953 = vunpack.c.l.bf16 %v1949
      %v1954 = vunpack.c.l.bf16 %v1950
      %v1955 = vunpack.c.l.bf16 %v1951
      %v1956 = vunpack.c.l.bf16 %v1952
      %1957 = vst [vmem:[#allocation3 + $0x134] sm:$0xff] %v1953
      %1958 = vst [vmem:[#allocation3 + $0x13c] sm:$0xff] %v1954
      %1959 = vst [vmem:[#allocation3 + $0x144] sm:$0xff] %v1955
      %1960 = vst [vmem:[#allocation3 + $0x14c] sm:$0xf] %v1956
      %v1961 = vld [vmem:[#allocation2 + $0x150] sm:$0xf]
      %v1962 = vld [vmem:[#allocation2 + $0x154] sm:$0xf]
      %v1963 = vld [vmem:[#allocation2 + $0x158] sm:$0xf]
      %v1964 = vld [vmem:[#allocation2 + $0x15c] sm:$0x3]
      %v1965 = vld [vmem:[#allocation2 + $0x15c] sm:$0xc]
      %v1966 = vld [vmem:[#allocation2 + $0x160] sm:$0xf]
      %v1967 = vld [vmem:[#allocation2 + $0x164] sm:$0xf]
      %v1968 = vld [vmem:[#allocation2 + $0x168] sm:$0xf]
      %v1969 = vunpack.c.l.bf16 %v1961
      %v1970 = vunpack.c.l.bf16 %v1962
      %v1971 = vunpack.c.l.bf16 %v1963
      %v1972 = vunpack.c.l.bf16 %v1964
      %v1973 = vunpack.c.l.bf16 %v1965
      %v1974 = vunpack.c.l.bf16 %v1966
      %v1975 = vunpack.c.l.bf16 %v1967
      %v1976 = vunpack.c.l.bf16 %v1968
      %v1981 = vrot.slane %v1973, 4
      %v1982 = vrot.slane %v1974, 4
      %v1983 = vsel %vm1416, %v1981, %v1982
      %v1984 = vrot.slane %v1975, 4
      %v1985 = vsel %vm1416, %v1982, %v1984
      %v1986 = vrot.slane %v1976, 4
      %v1987 = vsel %vm1416, %v1984, %v1986
      %v1992 = vmax.f32 %v1969, %v1983
      %v1993 = vmax.f32 %v1970, %v1985
      %v1994 = vmax.f32 %v1971, %v1987
      %v1995 = vmax.f32 %v1972, %v1986
      %v1996 = vpack.c.bf16 %v1992, %v1992
      %v1997 = vpack.c.bf16 %v1993, %v1993
      %v1998 = vpack.c.bf16 %v1994, %v1994
      %v1999 = vpack.c.bf16 %v1995, %v1995
      %v2000 = vunpack.c.l.bf16 %v1996
      %v2001 = vunpack.c.l.bf16 %v1997
      %v2002 = vunpack.c.l.bf16 %v1998
      %v2003 = vunpack.c.l.bf16 %v1999
      %2004 = vst [vmem:[#allocation3 + $0x150] sm:$0xff] %v2000
      %2005 = vst [vmem:[#allocation3 + $0x158] sm:$0xff] %v2001
      %2006 = vst [vmem:[#allocation3 + $0x160] sm:$0xff] %v2002
      %2007 = vst [vmem:[#allocation3 + $0x168] sm:$0xf] %v2003
      %v2008 = vld [vmem:[#allocation2 + $0x16c] sm:$0xf]
      %v2009 = vld [vmem:[#allocation2 + $0x170] sm:$0xf]
      %v2010 = vld [vmem:[#allocation2 + $0x174] sm:$0xf]
      %v2011 = vld [vmem:[#allocation2 + $0x178] sm:$0x3]
      %v2012 = vld [vmem:[#allocation2 + $0x178] sm:$0xc]
      %v2013 = vld [vmem:[#allocation2 + $0x17c] sm:$0xf]
      %v2014 = vld [vmem:[#allocation2 + $0x180] sm:$0xf]
      %v2015 = vld [vmem:[#allocation2 + $0x184] sm:$0xf]
      %v2016 = vunpack.c.l.bf16 %v2008
      %v2017 = vunpack.c.l.bf16 %v2009
      %v2018 = vunpack.c.l.bf16 %v2010
      %v2019 = vunpack.c.l.bf16 %v2011
      %v2020 = vunpack.c.l.bf16 %v2012
      %v2021 = vunpack.c.l.bf16 %v2013
      %v2022 = vunpack.c.l.bf16 %v2014
      %v2023 = vunpack.c.l.bf16 %v2015
      %v2028 = vrot.slane %v2020, 4
      %v2029 = vrot.slane %v2021, 4
      %v2030 = vsel %vm1416, %v2028, %v2029
      %v2031 = vrot.slane %v2022, 4
      %v2032 = vsel %vm1416, %v2029, %v2031
      %v2033 = vrot.slane %v2023, 4
      %v2034 = vsel %vm1416, %v2031, %v2033
      %v2039 = vmax.f32 %v2016, %v2030
      %v2040 = vmax.f32 %v2017, %v2032
      %v2041 = vmax.f32 %v2018, %v2034
      %v2042 = vmax.f32 %v2019, %v2033
      %v2043 = vpack.c.bf16 %v2039, %v2039
      %v2044 = vpack.c.bf16 %v2040, %v2040
      %v2045 = vpack.c.bf16 %v2041, %v2041
      %v2046 = vpack.c.bf16 %v2042, %v2042
      %v2047 = vunpack.c.l.bf16 %v2043
      %v2048 = vunpack.c.l.bf16 %v2044
      %v2049 = vunpack.c.l.bf16 %v2045
      %v2050 = vunpack.c.l.bf16 %v2046
      %2051 = vst [vmem:[#allocation3 + $0x16c] sm:$0xff] %v2047
      %2052 = vst [vmem:[#allocation3 + $0x174] sm:$0xff] %v2048
      %2053 = vst [vmem:[#allocation3 + $0x17c] sm:$0xff] %v2049
      %2054 = vst [vmem:[#allocation3 + $0x184] sm:$0xf] %v2050
      %v2055 = vld [vmem:[#allocation3] ss:$2 sm:$0xff]
      %s2056 = scalar_lea.vmem [#allocation3], 16
      %v2057 = vld [vmem:[%s2056] ss:$2 sm:$0xff]
      %s2058 = scalar_lea.vmem [#allocation3], 32
      %v2059 = vld [vmem:[%s2058] ss:$2 sm:$0xff]
      %s2060 = scalar_lea.vmem [#allocation3], 48
      %v2061 = vld [vmem:[%s2060] ss:$2 sm:$0xff]
      %s2062 = scalar_lea.vmem [#allocation3], 64
      %v2063 = vld [vmem:[%s2062] ss:$2 sm:$0xff]
      %s2064 = scalar_lea.vmem [#allocation3], 80
      %v2065 = vld [vmem:[%s2064] ss:$2 sm:$0xff]
      %s2066 = scalar_lea.vmem [#allocation3], 96
      %v2067 = vld [vmem:[%s2066] ss:$2 sm:$0xff]
      %s2068 = scalar_lea.vmem [#allocation3], 112
      %v2069 = vld [vmem:[%s2068] ss:$2 sm:$0xff]
      %s2070 = scalar_lea.vmem [#allocation3], 128
      %v2071 = vld [vmem:[%s2070] ss:$2 sm:$0xff]
      %s2072 = scalar_lea.vmem [#allocation3], 144
      %v2073 = vld [vmem:[%s2072] ss:$2 sm:$0xff]
      %s2074 = scalar_lea.vmem [#allocation3], 160
      %v2075 = vld [vmem:[%s2074] ss:$2 sm:$0xff]
      %s2076 = scalar_lea.vmem [#allocation3], 176
      %v2077 = vld [vmem:[%s2076] ss:$2 sm:$0xff]
      %s2078 = scalar_lea.vmem [#allocation3], 192
      %v2079 = vld [vmem:[%s2078] ss:$2 sm:$0xff]
      %s2080 = scalar_lea.vmem [#allocation3], 208
      %v2081 = vld [vmem:[%s2080] ss:$2 sm:$0xff]
      %s2082 = scalar_lea.vmem [#allocation3], 224
      %v2083 = vld [vmem:[%s2082] ss:$2 sm:$0xff]
      %s2084 = scalar_lea.vmem [#allocation3], 240
      %v2085 = vld [vmem:[%s2084] ss:$2 sm:$0xff]
      %s2086 = scalar_lea.vmem [#allocation3], 256
      %v2087 = vld [vmem:[%s2086] ss:$2 sm:$0xff]
      %s2088 = scalar_lea.vmem [#allocation3], 272
      %v2089 = vld [vmem:[%s2088] ss:$2 sm:$0xff]
      %s2090 = scalar_lea.vmem [#allocation3], 288
      %v2091 = vld [vmem:[%s2090] ss:$2 sm:$0xff]
      %s2092 = scalar_lea.vmem [#allocation3], 304
      %v2093 = vld [vmem:[%s2092] ss:$2 sm:$0xff]
      %s2094 = scalar_lea.vmem [#allocation3], 320
      %v2095 = vld [vmem:[%s2094] ss:$2 sm:$0xff]
      %s2096 = scalar_lea.vmem [#allocation3], 336
      %v2097 = vld [vmem:[%s2096] ss:$2 sm:$0xff]
      %s2098 = scalar_lea.vmem [#allocation3], 352
      %v2099 = vld [vmem:[%s2098] ss:$2 sm:$0xff]
      %s2100 = scalar_lea.vmem [#allocation3], 368
      %v2101 = vld [vmem:[%s2100] ss:$2 sm:$0xff]
      %s2102 = scalar_lea.vmem [#allocation3], 384
      %v2103 = vld [vmem:[%s2102] ss:$2 sm:$0xf]
      %s2104 = scalar_lea.vmem [#allocation3], 1
      %v2105 = vld [vmem:[%s2104] ss:$2 sm:$0xff]
      %s2106 = scalar_lea.vmem [#allocation3], 17
      %v2107 = vld [vmem:[%s2106] ss:$2 sm:$0xff]
      %s2108 = scalar_lea.vmem [#allocation3], 33
      %v2109 = vld [vmem:[%s2108] ss:$2 sm:$0xff]
      %s2110 = scalar_lea.vmem [#allocation3], 49
      %v2111 = vld [vmem:[%s2110] ss:$2 sm:$0xff]
      %s2112 = scalar_lea.vmem [#allocation3], 65
      %v2113 = vld [vmem:[%s2112] ss:$2 sm:$0xff]
      %s2114 = scalar_lea.vmem [#allocation3], 81
      %v2115 = vld [vmem:[%s2114] ss:$2 sm:$0xff]
      %s2116 = scalar_lea.vmem [#allocation3], 97
      %v2117 = vld [vmem:[%s2116] ss:$2 sm:$0xff]
      %s2118 = scalar_lea.vmem [#allocation3], 113
      %v2119 = vld [vmem:[%s2118] ss:$2 sm:$0xff]
      %s2120 = scalar_lea.vmem [#allocation3], 129
      %v2121 = vld [vmem:[%s2120] ss:$2 sm:$0xff]
      %s2122 = scalar_lea.vmem [#allocation3], 145
      %v2123 = vld [vmem:[%s2122] ss:$2 sm:$0xff]
      %s2124 = scalar_lea.vmem [#allocation3], 161
      %v2125 = vld [vmem:[%s2124] ss:$2 sm:$0xff]
      %s2126 = scalar_lea.vmem [#allocation3], 177
      %v2127 = vld [vmem:[%s2126] ss:$2 sm:$0xff]
      %s2128 = scalar_lea.vmem [#allocation3], 193
      %v2129 = vld [vmem:[%s2128] ss:$2 sm:$0xff]
      %s2130 = scalar_lea.vmem [#allocation3], 209
      %v2131 = vld [vmem:[%s2130] ss:$2 sm:$0xff]
      %s2132 = scalar_lea.vmem [#allocation3], 225
      %v2133 = vld [vmem:[%s2132] ss:$2 sm:$0xff]
      %s2134 = scalar_lea.vmem [#allocation3], 241
      %v2135 = vld [vmem:[%s2134] ss:$2 sm:$0xff]
      %s2136 = scalar_lea.vmem [#allocation3], 257
      %v2137 = vld [vmem:[%s2136] ss:$2 sm:$0xff]
      %s2138 = scalar_lea.vmem [#allocation3], 273
      %v2139 = vld [vmem:[%s2138] ss:$2 sm:$0xff]
      %s2140 = scalar_lea.vmem [#allocation3], 289
      %v2141 = vld [vmem:[%s2140] ss:$2 sm:$0xff]
      %s2142 = scalar_lea.vmem [#allocation3], 305
      %v2143 = vld [vmem:[%s2142] ss:$2 sm:$0xff]
      %s2144 = scalar_lea.vmem [#allocation3], 321
      %v2145 = vld [vmem:[%s2144] ss:$2 sm:$0xff]
      %s2146 = scalar_lea.vmem [#allocation3], 337
      %v2147 = vld [vmem:[%s2146] ss:$2 sm:$0xff]
      %s2148 = scalar_lea.vmem [#allocation3], 353
      %v2149 = vld [vmem:[%s2148] ss:$2 sm:$0xff]
      %s2150 = scalar_lea.vmem [#allocation3], 369
      %v2151 = vld [vmem:[%s2150] ss:$2 sm:$0xff]
      %s2152 = scalar_lea.vmem [#allocation3], 385
      %v2153 = vld [vmem:[%s2152] ss:$2 sm:$0xf]
      %v2154 = vmax.f32 %v2055, %v2105
      %v2155 = vmax.f32 %v2057, %v2107
      %v2156 = vmax.f32 %v2059, %v2109
      %v2157 = vmax.f32 %v2061, %v2111
      %v2158 = vmax.f32 %v2063, %v2113
      %v2159 = vmax.f32 %v2065, %v2115
      %v2160 = vmax.f32 %v2067, %v2117
      %v2161 = vmax.f32 %v2069, %v2119
      %v2162 = vmax.f32 %v2071, %v2121
      %v2163 = vmax.f32 %v2073, %v2123
      %v2164 = vmax.f32 %v2075, %v2125
      %v2165 = vmax.f32 %v2077, %v2127
      %v2166 = vmax.f32 %v2079, %v2129
      %v2167 = vmax.f32 %v2081, %v2131
      %v2168 = vmax.f32 %v2083, %v2133
      %v2169 = vmax.f32 %v2085, %v2135
      %v2170 = vmax.f32 %v2087, %v2137
      %v2171 = vmax.f32 %v2089, %v2139
      %v2172 = vmax.f32 %v2091, %v2141
      %v2173 = vmax.f32 %v2093, %v2143
      %v2174 = vmax.f32 %v2095, %v2145
      %v2175 = vmax.f32 %v2097, %v2147
      %v2176 = vmax.f32 %v2099, %v2149
      %v2177 = vmax.f32 %v2101, %v2151
      %v2178 = vmax.f32 %v2103, %v2153
      %v2179 = vpack.c.bf16 %v2154, %v2154
      %v2180 = vpack.c.bf16 %v2155, %v2155
      %v2181 = vpack.c.bf16 %v2156, %v2156
      %v2182 = vpack.c.bf16 %v2157, %v2157
      %v2183 = vpack.c.bf16 %v2158, %v2158
      %v2184 = vpack.c.bf16 %v2159, %v2159
      %v2185 = vpack.c.bf16 %v2160, %v2160
      %v2186 = vpack.c.bf16 %v2161, %v2161
      %v2187 = vpack.c.bf16 %v2162, %v2162
      %v2188 = vpack.c.bf16 %v2163, %v2163
      %v2189 = vpack.c.bf16 %v2164, %v2164
      %v2190 = vpack.c.bf16 %v2165, %v2165
      %v2191 = vpack.c.bf16 %v2166, %v2166
      %v2192 = vpack.c.bf16 %v2167, %v2167
      %v2193 = vpack.c.bf16 %v2168, %v2168
      %v2194 = vpack.c.bf16 %v2169, %v2169
      %v2195 = vpack.c.bf16 %v2170, %v2170
      %v2196 = vpack.c.bf16 %v2171, %v2171
      %v2197 = vpack.c.bf16 %v2172, %v2172
      %v2198 = vpack.c.bf16 %v2173, %v2173
      %v2199 = vpack.c.bf16 %v2174, %v2174
      %v2200 = vpack.c.bf16 %v2175, %v2175
      %v2201 = vpack.c.bf16 %v2176, %v2176
      %v2202 = vpack.c.bf16 %v2177, %v2177
      %v2203 = vpack.c.bf16 %v2178, %v2178
      %2204 = vst [vmem:[#allocation4] sm:$0xf] %v2179
      %2205 = vst [vmem:[#allocation4 + $0x4] sm:$0xf] %v2180
      %2206 = vst [vmem:[#allocation4 + $0x8] sm:$0xf] %v2181
      %2207 = vst [vmem:[#allocation4 + $0xc] sm:$0xf] %v2182
      %2208 = vst [vmem:[#allocation4 + $0x10] sm:$0xf] %v2183
      %2209 = vst [vmem:[#allocation4 + $0x14] sm:$0xf] %v2184
      %2210 = vst [vmem:[#allocation4 + $0x18] sm:$0xf] %v2185
      %2211 = vst [vmem:[#allocation4 + $0x1c] sm:$0xf] %v2186
      %2212 = vst [vmem:[#allocation4 + $0x20] sm:$0xf] %v2187
      %2213 = vst [vmem:[#allocation4 + $0x24] sm:$0xf] %v2188
      %2214 = vst [vmem:[#allocation4 + $0x28] sm:$0xf] %v2189
      %2215 = vst [vmem:[#allocation4 + $0x2c] sm:$0xf] %v2190
      %2216 = vst [vmem:[#allocation4 + $0x30] sm:$0xf] %v2191
      %2217 = vst [vmem:[#allocation4 + $0x34] sm:$0xf] %v2192
      %2218 = vst [vmem:[#allocation4 + $0x38] sm:$0xf] %v2193
      %2219 = vst [vmem:[#allocation4 + $0x3c] sm:$0xf] %v2194
      %2220 = vst [vmem:[#allocation4 + $0x40] sm:$0xf] %v2195
      %2221 = vst [vmem:[#allocation4 + $0x44] sm:$0xf] %v2196
      %2222 = vst [vmem:[#allocation4 + $0x48] sm:$0xf] %v2197
      %2223 = vst [vmem:[#allocation4 + $0x4c] sm:$0xf] %v2198
      %2224 = vst [vmem:[#allocation4 + $0x50] sm:$0xf] %v2199
      %2225 = vst [vmem:[#allocation4 + $0x54] sm:$0xf] %v2200
      %2226 = vst [vmem:[#allocation4 + $0x58] sm:$0xf] %v2201
      %2227 = vst [vmem:[#allocation4 + $0x5c] sm:$0xf] %v2202
      %2228 = vst [vmem:[#allocation4 + $0x60] sm:$0x3] %v2203
      %2229 = vst [vmem:[#allocation4 + $0x60] sm:$0xc] 0
      %2230 = vst [vmem:[#allocation4 + $0x64] sm:$0xf] 0
      %v2231 = vld [vmem:[#allocation4] sm:$0xf]
      %v2232 = vld [vmem:[#allocation4 + $0x4] sm:$0xf]
      %v2233 = vld [vmem:[#allocation4 + $0x8] sm:$0xf]
      %v2234 = vld [vmem:[#allocation4 + $0xc] sm:$0xf]
      %v2235 = vld [vmem:[#allocation4 + $0x10] sm:$0xf]
      %v2236 = vld [vmem:[#allocation4 + $0x14] sm:$0xf]
      %v2237 = vld [vmem:[#allocation4 + $0x18] sm:$0xf]
      %v2238 = vld [vmem:[#allocation4 + $0x1c] sm:$0xf]
      %v2239 = vld [vmem:[#allocation4 + $0x20] sm:$0xf]
      %v2240 = vld [vmem:[#allocation4 + $0x24] sm:$0xf]
      %v2241 = vld [vmem:[#allocation4 + $0x28] sm:$0xf]
      %v2242 = vld [vmem:[#allocation4 + $0x2c] sm:$0xf]
      %v2243 = vld [vmem:[#allocation4 + $0x30] sm:$0xf]
      %v2244 = vld [vmem:[#allocation4 + $0x34] sm:$0xf]
      %v2245 = vld [vmem:[#allocation4 + $0x38] sm:$0xf]
      %v2246 = vld [vmem:[#allocation4 + $0x3c] sm:$0xf]
      %v2247 = vld [vmem:[#allocation4 + $0x40] sm:$0xf]
      %v2248 = vld [vmem:[#allocation4 + $0x44] sm:$0x3]
      %v2249 = vld [vmem:[%s3] sm:$0xf]
      %v2250 = vld [vmem:[%s3 + $0x4] sm:$0xf]
      %v2251 = vld [vmem:[%s3 + $0x8] sm:$0xf]
      %v2252 = vld [vmem:[%s3 + $0xc] sm:$0xf]
      %v2253 = vld [vmem:[%s3 + $0x10] sm:$0xf]
      %v2254 = vld [vmem:[%s3 + $0x14] sm:$0xf]
      %v2255 = vld [vmem:[%s3 + $0x18] sm:$0xf]
      %v2256 = vld [vmem:[%s3 + $0x1c] sm:$0xf]
      %v2257 = vld [vmem:[%s3 + $0x20] sm:$0xf]
      %v2258 = vld [vmem:[%s3 + $0x24] sm:$0xf]
      %v2259 = vld [vmem:[%s3 + $0x28] sm:$0xf]
      %v2260 = vld [vmem:[%s3 + $0x2c] sm:$0xf]
      %v2261 = vld [vmem:[%s3 + $0x30] sm:$0xf]
      %v2262 = vld [vmem:[%s3 + $0x34] sm:$0xf]
      %v2263 = vld [vmem:[%s3 + $0x38] sm:$0xf]
      %v2264 = vld [vmem:[%s3 + $0x3c] sm:$0xf]
      %v2265 = vld [vmem:[#allocation4 + $0x44] sm:$0x7]
      %v2266 = vld [vmem:[%s3 + $0x40] sm:$0xf]
      %v2267 = vld [vmem:[%s3 + $0x44] sm:$0xf]
      %v2268 = vld [vmem:[%s3 + $0x48] sm:$0xf]
      %v2269 = vld [vmem:[%s3 + $0x4c] sm:$0xf]
      %v2270 = vld [vmem:[%s3 + $0x50] sm:$0xf]
      %v2271 = vld [vmem:[%s3 + $0x54] sm:$0xf]
      %v2272 = vld [vmem:[%s3 + $0x58] sm:$0xf]
      %v2273 = vld [vmem:[%s3 + $0x5c] sm:$0xf]
      %v2274 = vld [vmem:[%s3 + $0x60] sm:$0xf]
      %v2275 = vld [vmem:[%s3 + $0x64] sm:$0xf]
      %v2276 = vld [vmem:[%s3 + $0x68] sm:$0xf]
      %v2277 = vld [vmem:[%s3 + $0x6c] sm:$0xf]
      %v2278 = vld [vmem:[%s3 + $0x70] sm:$0xf]
      %v2279 = vld [vmem:[%s3 + $0x74] sm:$0xf]
      %v2280 = vld [vmem:[%s3 + $0x78] sm:$0xf]
      %v2281 = vld [vmem:[%s3 + $0x7c] sm:$0xf]
      %v2300 = vunpack.c.l.b16 %v2231
      %v2301 = vunpack.c.l.b16 %v2232
      %v2302 = vunpack.c.l.b16 %v2233
      %v2303 = vunpack.c.l.b16 %v2234
      %v2304 = vunpack.c.l.b16 %v2235
      %v2305 = vunpack.c.l.b16 %v2236
      %v2306 = vunpack.c.l.b16 %v2237
      %v2307 = vunpack.c.l.b16 %v2238
      %v2308 = vunpack.c.l.b16 %v2239
      %v2309 = vunpack.c.l.b16 %v2240
      %v2310 = vunpack.c.l.b16 %v2241
      %v2311 = vunpack.c.l.b16 %v2242
      %v2312 = vunpack.c.l.b16 %v2243
      %v2313 = vunpack.c.l.b16 %v2244
      %v2314 = vunpack.c.l.b16 %v2245
      %v2315 = vunpack.c.l.b16 %v2246
      %v2316 = vunpack.c.l.b16 %v2247
      %v2317 = vunpack.c.l.b16 %v2265
      %v2318 = vpack.c.b16 %v2301, %v2300
      %v2319 = vpack.c.b16 %v2303, %v2302
      %v2320 = vpack.c.b16 %v2305, %v2304
      %v2321 = vpack.c.b16 %v2307, %v2306
      %v2322 = vpack.c.b16 %v2309, %v2308
      %v2323 = vpack.c.b16 %v2311, %v2310
      %v2324 = vpack.c.b16 %v2313, %v2312
      %v2325 = vpack.c.b16 %v2315, %v2314
      %v2326 = vpack.c.b16 %v2317, %v2316
      %vm2327 = vsmask.f32 7424
      %v2329 = vshrl.u32 %v2318, 16
      %v2331 = vshll.u32 %v2318, 16
      %v2333 = vrot.slane %v2331, 1
      %v2334 = vor.u32 %v2329, %v2333
      %v2336 = vshll.u32 %v2319, 16
      %v2338 = vrot.slane %v2336, 1
      %v2339 = vsel %vm2327, %v2334, %v2338
      %v2340 = vshrl.u32 %v2319, 16
      %v2342 = vor.u32 %v2340, %v2338
      %v2344 = vshll.u32 %v2320, 16
      %v2346 = vrot.slane %v2344, 1
      %v2347 = vsel %vm2327, %v2342, %v2346
      %v2348 = vshrl.u32 %v2320, 16
      %v2350 = vor.u32 %v2348, %v2346
      %v2352 = vshll.u32 %v2321, 16
      %v2354 = vrot.slane %v2352, 1
      %v2355 = vsel %vm2327, %v2350, %v2354
      %v2356 = vshrl.u32 %v2321, 16
      %v2358 = vor.u32 %v2356, %v2354
      %v2360 = vshll.u32 %v2322, 16
      %v2362 = vrot.slane %v2360, 1
      %v2363 = vsel %vm2327, %v2358, %v2362
      %v2364 = vshrl.u32 %v2322, 16
      %v2366 = vor.u32 %v2364, %v2362
      %v2368 = vshll.u32 %v2323, 16
      %v2370 = vrot.slane %v2368, 1
      %v2371 = vsel %vm2327, %v2366, %v2370
      %v2372 = vshrl.u32 %v2323, 16
      %v2374 = vor.u32 %v2372, %v2370
      %v2376 = vshll.u32 %v2324, 16
      %v2378 = vrot.slane %v2376, 1
      %v2379 = vsel %vm2327, %v2374, %v2378
      %v2380 = vshrl.u32 %v2324, 16
      %v2382 = vor.u32 %v2380, %v2378
      %v2384 = vshll.u32 %v2325, 16
      %v2386 = vrot.slane %v2384, 1
      %v2387 = vsel %vm2327, %v2382, %v2386
      %v2388 = vshrl.u32 %v2325, 16
      %v2390 = vor.u32 %v2388, %v2386
      %v2392 = vshll.u32 %v2326, 16
      %v2394 = vrot.slane %v2392, 1
      %v2395 = vsel %vm2327, %v2390, %v2394
      %v2396 = vshrl.u32 %v2326, 16
      %v2398 = vor.u32 %v2396, %v2394
      %v2424 = vunpack.c.l.b16 %v2266
      %v2425 = vunpack.c.l.b16 %v2267
      %v2426 = vunpack.c.l.b16 %v2268
      %v2427 = vunpack.c.l.b16 %v2269
      %v2428 = vunpack.c.l.b16 %v2270
      %v2429 = vunpack.c.l.b16 %v2271
      %v2430 = vunpack.c.l.b16 %v2272
      %v2431 = vunpack.c.l.b16 %v2273
      %v2432 = vunpack.c.l.b16 %v2274
      %v2433 = vunpack.c.l.b16 %v2275
      %v2434 = vunpack.c.l.b16 %v2276
      %v2435 = vunpack.c.l.b16 %v2277
      %v2436 = vunpack.c.l.b16 %v2278
      %v2437 = vunpack.c.l.b16 %v2279
      %v2438 = vunpack.c.l.b16 %v2280
      %v2439 = vunpack.c.l.b16 %v2281
      %v2440 = vpack.c.b16 %v2425, %v2424
      %v2441 = vpack.c.b16 %v2427, %v2426
      %v2442 = vpack.c.b16 %v2429, %v2428
      %v2443 = vpack.c.b16 %v2431, %v2430
      %v2444 = vpack.c.b16 %v2433, %v2432
      %v2445 = vpack.c.b16 %v2435, %v2434
      %v2446 = vpack.c.b16 %v2437, %v2436
      %v2447 = vpack.c.b16 %v2439, %v2438
      %2456 = vmatpush.bf16.msra.mxu0 %v2447
      %2457 = vmatpush.bf16.msra.mxu0 %v2446
      %2458 = vmatpush.bf16.msra.mxu0 %v2445
      %2459 = vmatpush.bf16.msra.mxu0 %v2444
      %2460 = vmatpush.bf16.msra.mxu0 %v2443
      %2461 = vmatpush.bf16.msra.mxu0 %v2442
      %2462 = vmatpush.bf16.msra.mxu0 %v2441
      %2463 = vmatpush.bf16.msra.mxu0 %v2440
      %2464 = vmatmul.bf16.gmra.mxu0 %v2339
      %v2465 = vpop.f32.mrf.mxu0
      %v2466 = vadd.f32 0.0, %v2465
      %v2467 = vpop.f32.mrf.mxu0
      %v2468 = vadd.f32 0.0, %v2467
      %2469 = vmatmul.bf16.gmra.mxu0 %v2347
      %v2470 = vpop.f32.mrf.mxu0
      %v2471 = vadd.f32 0.0, %v2470
      %v2472 = vpop.f32.mrf.mxu0
      %v2473 = vadd.f32 0.0, %v2472
      %2474 = vmatmul.bf16.gmra.mxu0 %v2355
      %v2475 = vpop.f32.mrf.mxu0
      %v2476 = vadd.f32 0.0, %v2475
      %v2477 = vpop.f32.mrf.mxu0
      %v2478 = vadd.f32 0.0, %v2477
      %2479 = vmatmul.bf16.gmra.mxu0 %v2363
      %v2480 = vpop.f32.mrf.mxu0
      %v2481 = vadd.f32 0.0, %v2480
      %v2482 = vpop.f32.mrf.mxu0
      %v2483 = vadd.f32 0.0, %v2482
      %2484 = vmatmul.bf16.gmra.mxu0 %v2371
      %v2485 = vpop.f32.mrf.mxu0
      %v2486 = vadd.f32 0.0, %v2485
      %v2487 = vpop.f32.mrf.mxu0
      %v2488 = vadd.f32 0.0, %v2487
      %2489 = vmatmul.bf16.gmra.mxu0 %v2379
      %v2490 = vpop.f32.mrf.mxu0
      %v2491 = vadd.f32 0.0, %v2490
      %v2492 = vpop.f32.mrf.mxu0
      %v2493 = vadd.f32 0.0, %v2492
      %2494 = vmatmul.bf16.gmra.mxu0 %v2387
      %v2495 = vpop.f32.mrf.mxu0
      %v2496 = vadd.f32 0.0, %v2495
      %v2497 = vpop.f32.mrf.mxu0
      %v2498 = vadd.f32 0.0, %v2497
      %2499 = vmatmul.bf16.gmra.mxu0 %v2395
      %v2500 = vpop.f32.mrf.mxu0
      %v2501 = vadd.f32 0.0, %v2500
      %v2502 = vpop.f32.mrf.mxu0
      %v2503 = vadd.f32 0.0, %v2502
      %2504 = vmatmul.bf16.gmra.mxu0 %v2398
      %v2505 = vpop.f32.mrf.mxu0
      %v2506 = vadd.f32 0.0, %v2505
      %v2507 = vpop.f32.mrf.mxu0
      %v2508 = vadd.f32 0.0, %v2507
      %2509 = vdwg.mxu0
      %v2511 = vunpack.c.l.b16 %v2248
      %v2512 = vpack.c.b16 %v2511, %v2316
      %v2538 = vunpack.c.l.b16 %v2249
      %v2539 = vunpack.c.l.b16 %v2250
      %v2540 = vunpack.c.l.b16 %v2251
      %v2541 = vunpack.c.l.b16 %v2252
      %v2542 = vunpack.c.l.b16 %v2253
      %v2543 = vunpack.c.l.b16 %v2254
      %v2544 = vunpack.c.l.b16 %v2255
      %v2545 = vunpack.c.l.b16 %v2256
      %v2546 = vunpack.c.l.b16 %v2257
      %v2547 = vunpack.c.l.b16 %v2258
      %v2548 = vunpack.c.l.b16 %v2259
      %v2549 = vunpack.c.l.b16 %v2260
      %v2550 = vunpack.c.l.b16 %v2261
      %v2551 = vunpack.c.l.b16 %v2262
      %v2552 = vunpack.c.l.b16 %v2263
      %v2553 = vunpack.c.l.b16 %v2264
      %v2554 = vpack.c.b16 %v2539, %v2538
      %v2555 = vpack.c.b16 %v2541, %v2540
      %v2556 = vpack.c.b16 %v2543, %v2542
      %v2557 = vpack.c.b16 %v2545, %v2544
      %v2558 = vpack.c.b16 %v2547, %v2546
      %v2559 = vpack.c.b16 %v2549, %v2548
      %v2560 = vpack.c.b16 %v2551, %v2550
      %v2561 = vpack.c.b16 %v2553, %v2552
      %2570 = vmatpush.bf16.msra.mxu0 %v2561
      %2571 = vmatpush.bf16.msra.mxu0 %v2560
      %2572 = vmatpush.bf16.msra.mxu0 %v2559
      %2573 = vmatpush.bf16.msra.mxu0 %v2558
      %2574 = vmatpush.bf16.msra.mxu0 %v2557
      %2575 = vmatpush.bf16.msra.mxu0 %v2556
      %2576 = vmatpush.bf16.msra.mxu0 %v2555
      %2577 = vmatpush.bf16.msra.mxu0 %v2554
      %2578 = vmatmul.bf16.gmra.mxu0 %v2318
      %v2579 = vpop.f32.mrf.mxu0
      %v2580 = vadd.f32 %v2466, %v2579
      %v2581 = vpop.f32.mrf.mxu0
      %v2582 = vadd.f32 %v2468, %v2581
      %2583 = vmatmul.bf16.gmra.mxu0 %v2319
      %v2584 = vpop.f32.mrf.mxu0
      %v2585 = vadd.f32 %v2471, %v2584
      %v2586 = vpop.f32.mrf.mxu0
      %v2587 = vadd.f32 %v2473, %v2586
      %2588 = vmatmul.bf16.gmra.mxu0 %v2320
      %v2589 = vpop.f32.mrf.mxu0
      %v2590 = vadd.f32 %v2476, %v2589
      %v2591 = vpop.f32.mrf.mxu0
      %v2592 = vadd.f32 %v2478, %v2591
      %2593 = vmatmul.bf16.gmra.mxu0 %v2321
      %v2594 = vpop.f32.mrf.mxu0
      %v2595 = vadd.f32 %v2481, %v2594
      %v2596 = vpop.f32.mrf.mxu0
      %v2597 = vadd.f32 %v2483, %v2596
      %2598 = vmatmul.bf16.gmra.mxu0 %v2322
      %v2599 = vpop.f32.mrf.mxu0
      %v2600 = vadd.f32 %v2486, %v2599
      %v2601 = vpop.f32.mrf.mxu0
      %v2602 = vadd.f32 %v2488, %v2601
      %2603 = vmatmul.bf16.gmra.mxu0 %v2323
      %v2604 = vpop.f32.mrf.mxu0
      %v2605 = vadd.f32 %v2491, %v2604
      %v2606 = vpop.f32.mrf.mxu0
      %v2607 = vadd.f32 %v2493, %v2606
      %2608 = vmatmul.bf16.gmra.mxu0 %v2324
      %v2609 = vpop.f32.mrf.mxu0
      %v2610 = vadd.f32 %v2496, %v2609
      %v2611 = vpop.f32.mrf.mxu0
      %v2612 = vadd.f32 %v2498, %v2611
      %2613 = vmatmul.bf16.gmra.mxu0 %v2325
      %v2614 = vpop.f32.mrf.mxu0
      %v2615 = vadd.f32 %v2501, %v2614
      %v2616 = vpop.f32.mrf.mxu0
      %v2617 = vadd.f32 %v2503, %v2616
      %2618 = vmatmul.bf16.gmra.mxu0 %v2512
      %v2619 = vpop.f32.mrf.mxu0
      %v2620 = vadd.f32 %v2506, %v2619
      %v2621 = vpop.f32.mrf.mxu0
      %v2622 = vadd.f32 %v2508, %v2621
      %2623 = vdwg.mxu0
      %v2624 = vld [vmem:[#allocation4] sm:$0xe]
      %v2625 = vld [vmem:[%s3 + $0x80] sm:$0xf]
      %v2626 = vld [vmem:[%s3 + $0x84] sm:$0xf]
      %v2627 = vld [vmem:[%s3 + $0x88] sm:$0xf]
      %v2628 = vld [vmem:[%s3 + $0x8c] sm:$0xf]
      %v2629 = vld [vmem:[%s3 + $0x90] sm:$0xf]
      %v2630 = vld [vmem:[%s3 + $0x94] sm:$0xf]
      %v2631 = vld [vmem:[%s3 + $0x98] sm:$0xf]
      %v2632 = vld [vmem:[%s3 + $0x9c] sm:$0xf]
      %v2633 = vld [vmem:[%s3 + $0xa0] sm:$0xf]
      %v2634 = vld [vmem:[%s3 + $0xa4] sm:$0xf]
      %v2635 = vld [vmem:[%s3 + $0xa8] sm:$0xf]
      %v2636 = vld [vmem:[%s3 + $0xac] sm:$0xf]
      %v2637 = vld [vmem:[%s3 + $0xb0] sm:$0xf]
      %v2638 = vld [vmem:[%s3 + $0xb4] sm:$0xf]
      %v2639 = vld [vmem:[%s3 + $0xb8] sm:$0xf]
      %v2640 = vld [vmem:[%s3 + $0xbc] sm:$0xf]
      %v2642 = vunpack.c.l.b16 %v2624
      %v2643 = vpack.c.b16 %v2301, %v2642
      %vm2644 = vcmask 1046528
      %v2645 = vrot.slane %v2643, 1
      %v2646 = vrot.slane %v2319, 1
      %v2647 = vsel %vm2644, %v2645, %v2646
      %v2648 = vrot.slane %v2320, 1
      %v2649 = vsel %vm2644, %v2646, %v2648
      %v2650 = vrot.slane %v2321, 1
      %v2651 = vsel %vm2644, %v2648, %v2650
      %v2652 = vrot.slane %v2322, 1
      %v2653 = vsel %vm2644, %v2650, %v2652
      %v2654 = vrot.slane %v2323, 1
      %v2655 = vsel %vm2644, %v2652, %v2654
      %v2656 = vrot.slane %v2324, 1
      %v2657 = vsel %vm2644, %v2654, %v2656
      %v2658 = vrot.slane %v2325, 1
      %v2659 = vsel %vm2644, %v2656, %v2658
      %v2660 = vrot.slane %v2326, 1
      %v2661 = vsel %vm2644, %v2658, %v2660
      %v2687 = vunpack.c.l.b16 %v2625
      %v2688 = vunpack.c.l.b16 %v2626
      %v2689 = vunpack.c.l.b16 %v2627
      %v2690 = vunpack.c.l.b16 %v2628
      %v2691 = vunpack.c.l.b16 %v2629
      %v2692 = vunpack.c.l.b16 %v2630
      %v2693 = vunpack.c.l.b16 %v2631
      %v2694 = vunpack.c.l.b16 %v2632
      %v2695 = vunpack.c.l.b16 %v2633
      %v2696 = vunpack.c.l.b16 %v2634
      %v2697 = vunpack.c.l.b16 %v2635
      %v2698 = vunpack.c.l.b16 %v2636
      %v2699 = vunpack.c.l.b16 %v2637
      %v2700 = vunpack.c.l.b16 %v2638
      %v2701 = vunpack.c.l.b16 %v2639
      %v2702 = vunpack.c.l.b16 %v2640
      %v2703 = vpack.c.b16 %v2688, %v2687
      %v2704 = vpack.c.b16 %v2690, %v2689
      %v2705 = vpack.c.b16 %v2692, %v2691
      %v2706 = vpack.c.b16 %v2694, %v2693
      %v2707 = vpack.c.b16 %v2696, %v2695
      %v2708 = vpack.c.b16 %v2698, %v2697
      %v2709 = vpack.c.b16 %v2700, %v2699
      %v2710 = vpack.c.b16 %v2702, %v2701
      %2719 = vmatpush.bf16.msra.mxu0 %v2710
      %2720 = vmatpush.bf16.msra.mxu0 %v2709
      %2721 = vmatpush.bf16.msra.mxu0 %v2708
      %2722 = vmatpush.bf16.msra.mxu0 %v2707
      %2723 = vmatpush.bf16.msra.mxu0 %v2706
      %2724 = vmatpush.bf16.msra.mxu0 %v2705
      %2725 = vmatpush.bf16.msra.mxu0 %v2704
      %2726 = vmatpush.bf16.msra.mxu0 %v2703
      %2727 = vmatmul.bf16.gmra.mxu0 %v2647
      %v2728 = vpop.f32.mrf.mxu0
      %v2729 = vadd.f32 0.0, %v2728
      %v2730 = vpop.f32.mrf.mxu0
      %v2731 = vadd.f32 0.0, %v2730
      %2732 = vmatmul.bf16.gmra.mxu0 %v2649
      %v2733 = vpop.f32.mrf.mxu0
      %v2734 = vadd.f32 0.0, %v2733
      %v2735 = vpop.f32.mrf.mxu0
      %v2736 = vadd.f32 0.0, %v2735
      %2737 = vmatmul.bf16.gmra.mxu0 %v2651
      %v2738 = vpop.f32.mrf.mxu0
      %v2739 = vadd.f32 0.0, %v2738
      %v2740 = vpop.f32.mrf.mxu0
      %v2741 = vadd.f32 0.0, %v2740
      %2742 = vmatmul.bf16.gmra.mxu0 %v2653
      %v2743 = vpop.f32.mrf.mxu0
      %v2744 = vadd.f32 0.0, %v2743
      %v2745 = vpop.f32.mrf.mxu0
      %v2746 = vadd.f32 0.0, %v2745
      %2747 = vmatmul.bf16.gmra.mxu0 %v2655
      %v2748 = vpop.f32.mrf.mxu0
      %v2749 = vadd.f32 0.0, %v2748
      %v2750 = vpop.f32.mrf.mxu0
      %v2751 = vadd.f32 0.0, %v2750
      %2752 = vmatmul.bf16.gmra.mxu0 %v2657
      %v2753 = vpop.f32.mrf.mxu0
      %v2754 = vadd.f32 0.0, %v2753
      %v2755 = vpop.f32.mrf.mxu0
      %v2756 = vadd.f32 0.0, %v2755
      %2757 = vmatmul.bf16.gmra.mxu0 %v2659
      %v2758 = vpop.f32.mrf.mxu0
      %v2759 = vadd.f32 0.0, %v2758
      %v2760 = vpop.f32.mrf.mxu0
      %v2761 = vadd.f32 0.0, %v2760
      %2762 = vmatmul.bf16.gmra.mxu0 %v2661
      %v2763 = vpop.f32.mrf.mxu0
      %v2764 = vadd.f32 0.0, %v2763
      %v2765 = vpop.f32.mrf.mxu0
      %v2766 = vadd.f32 0.0, %v2765
      %2767 = vmatmul.bf16.gmra.mxu0 %v2660
      %v2768 = vpop.f32.mrf.mxu0
      %v2769 = vadd.f32 0.0, %v2768
      %v2770 = vpop.f32.mrf.mxu0
      %v2771 = vadd.f32 0.0, %v2770
      %2772 = vdwg.mxu0
      %v2773 = vadd.f32 %v2580, %v2729
      %v2774 = vadd.f32 %v2582, %v2731
      %v2775 = vadd.f32 %v2585, %v2734
      %v2776 = vadd.f32 %v2587, %v2736
      %v2777 = vadd.f32 %v2590, %v2739
      %v2778 = vadd.f32 %v2592, %v2741
      %v2779 = vadd.f32 %v2595, %v2744
      %v2780 = vadd.f32 %v2597, %v2746
      %v2781 = vadd.f32 %v2600, %v2749
      %v2782 = vadd.f32 %v2602, %v2751
      %v2783 = vadd.f32 %v2605, %v2754
      %v2784 = vadd.f32 %v2607, %v2756
      %v2785 = vadd.f32 %v2610, %v2759
      %v2786 = vadd.f32 %v2612, %v2761
      %v2787 = vadd.f32 %v2615, %v2764
      %v2788 = vadd.f32 %v2617, %v2766
      %v2789 = vadd.f32 %v2620, %v2769
      %v2790 = vadd.f32 %v2622, %v2771
      %v2791 = vld [vmem:[#allocation4 + $0x44] sm:$0xf]
      %v2792 = vld [vmem:[%s3 + $0xc0] sm:$0xf]
      %v2793 = vld [vmem:[%s3 + $0xc4] sm:$0xf]
      %v2794 = vld [vmem:[%s3 + $0xc8] sm:$0xf]
      %v2795 = vld [vmem:[%s3 + $0xcc] sm:$0xf]
      %v2796 = vld [vmem:[%s3 + $0xd0] sm:$0xf]
      %v2797 = vld [vmem:[%s3 + $0xd4] sm:$0xf]
      %v2798 = vld [vmem:[%s3 + $0xd8] sm:$0xf]
      %v2799 = vld [vmem:[%s3 + $0xdc] sm:$0xf]
      %v2800 = vld [vmem:[%s3 + $0xe0] sm:$0xf]
      %v2801 = vld [vmem:[%s3 + $0xe4] sm:$0xf]
      %v2802 = vld [vmem:[%s3 + $0xe8] sm:$0xf]
      %v2803 = vld [vmem:[%s3 + $0xec] sm:$0xf]
      %v2804 = vld [vmem:[%s3 + $0xf0] sm:$0xf]
      %v2805 = vld [vmem:[%s3 + $0xf4] sm:$0xf]
      %v2806 = vld [vmem:[%s3 + $0xf8] sm:$0xf]
      %v2807 = vld [vmem:[%s3 + $0xfc] sm:$0xf]
      %v2809 = vunpack.c.l.b16 %v2791
      %v2810 = vpack.c.b16 %v2809, %v2316
      %vm2811 = vsmask.f32 6400
      %v2813 = vshrl.u32 %v2643, 16
      %v2815 = vrot.slane %v2813, 1
      %v2816 = vshll.u32 %v2643, 16
      %v2818 = vrot.slane %v2816, 2
      %v2819 = vor.u32 %v2815, %v2818
      %v2820 = vrot.slane %v2340, 1
      %v2821 = vrot.slane %v2336, 2
      %v2822 = vor.u32 %v2820, %v2821
      %v2823 = vsel %vm2811, %v2819, %v2822
      %v2824 = vrot.slane %v2348, 1
      %v2825 = vrot.slane %v2344, 2
      %v2826 = vor.u32 %v2824, %v2825
      %v2827 = vsel %vm2811, %v2822, %v2826
      %v2828 = vrot.slane %v2356, 1
      %v2829 = vrot.slane %v2352, 2
      %v2830 = vor.u32 %v2828, %v2829
      %v2831 = vsel %vm2811, %v2826, %v2830
      %v2832 = vrot.slane %v2364, 1
      %v2833 = vrot.slane %v2360, 2
      %v2834 = vor.u32 %v2832, %v2833
      %v2835 = vsel %vm2811, %v2830, %v2834
      %v2836 = vrot.slane %v2372, 1
      %v2837 = vrot.slane %v2368, 2
      %v2838 = vor.u32 %v2836, %v2837
      %v2839 = vsel %vm2811, %v2834, %v2838
      %v2840 = vrot.slane %v2380, 1
      %v2841 = vrot.slane %v2376, 2
      %v2842 = vor.u32 %v2840, %v2841
      %v2843 = vsel %vm2811, %v2838, %v2842
      %v2844 = vrot.slane %v2388, 1
      %v2845 = vrot.slane %v2384, 2
      %v2846 = vor.u32 %v2844, %v2845
      %v2847 = vsel %vm2811, %v2842, %v2846
      %v2849 = vshrl.u32 %v2810, 16
      %v2851 = vrot.slane %v2849, 1
      %v2852 = vshll.u32 %v2810, 16
      %v2854 = vrot.slane %v2852, 2
      %v2855 = vor.u32 %v2851, %v2854
      %v2856 = vsel %vm2811, %v2846, %v2855
      %v2882 = vunpack.c.l.b16 %v2792
      %v2883 = vunpack.c.l.b16 %v2793
      %v2884 = vunpack.c.l.b16 %v2794
      %v2885 = vunpack.c.l.b16 %v2795
      %v2886 = vunpack.c.l.b16 %v2796
      %v2887 = vunpack.c.l.b16 %v2797
      %v2888 = vunpack.c.l.b16 %v2798
      %v2889 = vunpack.c.l.b16 %v2799
      %v2890 = vunpack.c.l.b16 %v2800
      %v2891 = vunpack.c.l.b16 %v2801
      %v2892 = vunpack.c.l.b16 %v2802
      %v2893 = vunpack.c.l.b16 %v2803
      %v2894 = vunpack.c.l.b16 %v2804
      %v2895 = vunpack.c.l.b16 %v2805
      %v2896 = vunpack.c.l.b16 %v2806
      %v2897 = vunpack.c.l.b16 %v2807
      %v2898 = vpack.c.b16 %v2883, %v2882
      %v2899 = vpack.c.b16 %v2885, %v2884
      %v2900 = vpack.c.b16 %v2887, %v2886
      %v2901 = vpack.c.b16 %v2889, %v2888
      %v2902 = vpack.c.b16 %v2891, %v2890
      %v2903 = vpack.c.b16 %v2893, %v2892
      %v2904 = vpack.c.b16 %v2895, %v2894
      %v2905 = vpack.c.b16 %v2897, %v2896
      %2914 = vmatpush.bf16.msra.mxu0 %v2905
      %2915 = vmatpush.bf16.msra.mxu0 %v2904
      %2916 = vmatpush.bf16.msra.mxu0 %v2903
      %2917 = vmatpush.bf16.msra.mxu0 %v2902
      %2918 = vmatpush.bf16.msra.mxu0 %v2901
      %2919 = vmatpush.bf16.msra.mxu0 %v2900
      %2920 = vmatpush.bf16.msra.mxu0 %v2899
      %2921 = vmatpush.bf16.msra.mxu0 %v2898
      %2922 = vmatmul.bf16.gmra.mxu0 %v2823
      %v2923 = vpop.f32.mrf.mxu0
      %v2924 = vadd.f32 0.0, %v2923
      %v2925 = vpop.f32.mrf.mxu0
      %v2926 = vadd.f32 0.0, %v2925
      %2927 = vmatmul.bf16.gmra.mxu0 %v2827
      %v2928 = vpop.f32.mrf.mxu0
      %v2929 = vadd.f32 0.0, %v2928
      %v2930 = vpop.f32.mrf.mxu0
      %v2931 = vadd.f32 0.0, %v2930
      %2932 = vmatmul.bf16.gmra.mxu0 %v2831
      %v2933 = vpop.f32.mrf.mxu0
      %v2934 = vadd.f32 0.0, %v2933
      %v2935 = vpop.f32.mrf.mxu0
      %v2936 = vadd.f32 0.0, %v2935
      %2937 = vmatmul.bf16.gmra.mxu0 %v2835
      %v2938 = vpop.f32.mrf.mxu0
      %v2939 = vadd.f32 0.0, %v2938
      %v2940 = vpop.f32.mrf.mxu0
      %v2941 = vadd.f32 0.0, %v2940
      %2942 = vmatmul.bf16.gmra.mxu0 %v2839
      %v2943 = vpop.f32.mrf.mxu0
      %v2944 = vadd.f32 0.0, %v2943
      %v2945 = vpop.f32.mrf.mxu0
      %v2946 = vadd.f32 0.0, %v2945
      %2947 = vmatmul.bf16.gmra.mxu0 %v2843
      %v2948 = vpop.f32.mrf.mxu0
      %v2949 = vadd.f32 0.0, %v2948
      %v2950 = vpop.f32.mrf.mxu0
      %v2951 = vadd.f32 0.0, %v2950
      %2952 = vmatmul.bf16.gmra.mxu0 %v2847
      %v2953 = vpop.f32.mrf.mxu0
      %v2954 = vadd.f32 0.0, %v2953
      %v2955 = vpop.f32.mrf.mxu0
      %v2956 = vadd.f32 0.0, %v2955
      %2957 = vmatmul.bf16.gmra.mxu0 %v2856
      %v2958 = vpop.f32.mrf.mxu0
      %v2959 = vadd.f32 0.0, %v2958
      %v2960 = vpop.f32.mrf.mxu0
      %v2961 = vadd.f32 0.0, %v2960
      %2962 = vmatmul.bf16.gmra.mxu0 %v2855
      %v2963 = vpop.f32.mrf.mxu0
      %v2964 = vadd.f32 0.0, %v2963
      %v2965 = vpop.f32.mrf.mxu0
      %v2966 = vadd.f32 0.0, %v2965
      %2967 = vdwg.mxu0
      %v2968 = vadd.f32 %v2773, %v2924
      %v2969 = vadd.f32 %v2774, %v2926
      %v2970 = vadd.f32 %v2775, %v2929
      %v2971 = vadd.f32 %v2776, %v2931
      %v2972 = vadd.f32 %v2777, %v2934
      %v2973 = vadd.f32 %v2778, %v2936
      %v2974 = vadd.f32 %v2779, %v2939
      %v2975 = vadd.f32 %v2780, %v2941
      %v2976 = vadd.f32 %v2781, %v2944
      %v2977 = vadd.f32 %v2782, %v2946
      %v2978 = vadd.f32 %v2783, %v2949
      %v2979 = vadd.f32 %v2784, %v2951
      %v2980 = vadd.f32 %v2785, %v2954
      %v2981 = vadd.f32 %v2786, %v2956
      %v2982 = vadd.f32 %v2787, %v2959
      %v2983 = vadd.f32 %v2788, %v2961
      %v2984 = vadd.f32 %v2789, %v2964
      %v2985 = vadd.f32 %v2790, %v2966
      %v2986 = vld [vmem:[#allocation4] sm:$0xc]
      %v2987 = vld [vmem:[%s3 + $0x100] sm:$0xf]
      %v2988 = vld [vmem:[%s3 + $0x104] sm:$0xf]
      %v2989 = vld [vmem:[%s3 + $0x108] sm:$0xf]
      %v2990 = vld [vmem:[%s3 + $0x10c] sm:$0xf]
      %v2991 = vld [vmem:[%s3 + $0x110] sm:$0xf]
      %v2992 = vld [vmem:[%s3 + $0x114] sm:$0xf]
      %v2993 = vld [vmem:[%s3 + $0x118] sm:$0xf]
      %v2994 = vld [vmem:[%s3 + $0x11c] sm:$0xf]
      %v2995 = vld [vmem:[%s3 + $0x120] sm:$0xf]
      %v2996 = vld [vmem:[%s3 + $0x124] sm:$0xf]
      %v2997 = vld [vmem:[%s3 + $0x128] sm:$0xf]
      %v2998 = vld [vmem:[%s3 + $0x12c] sm:$0xf]
      %v2999 = vld [vmem:[%s3 + $0x130] sm:$0xf]
      %v3000 = vld [vmem:[%s3 + $0x134] sm:$0xf]
      %v3001 = vld [vmem:[%s3 + $0x138] sm:$0xf]
      %v3002 = vld [vmem:[%s3 + $0x13c] sm:$0xf]
      %v3004 = vunpack.c.l.b16 %v2986
      %v3005 = vpack.c.b16 %v2301, %v3004
      %vm3006 = vcmask 1045504
      %v3007 = vrot.slane %v3005, 2
      %v3008 = vrot.slane %v2319, 2
      %v3009 = vsel %vm3006, %v3007, %v3008
      %v3010 = vrot.slane %v2320, 2
      %v3011 = vsel %vm3006, %v3008, %v3010
      %v3012 = vrot.slane %v2321, 2
      %v3013 = vsel %vm3006, %v3010, %v3012
      %v3014 = vrot.slane %v2322, 2
      %v3015 = vsel %vm3006, %v3012, %v3014
      %v3016 = vrot.slane %v2323, 2
      %v3017 = vsel %vm3006, %v3014, %v3016
      %v3018 = vrot.slane %v2324, 2
      %v3019 = vsel %vm3006, %v3016, %v3018
      %v3020 = vrot.slane %v2325, 2
      %v3021 = vsel %vm3006, %v3018, %v3020
      %v3022 = vrot.slane %v2810, 2
      %v3023 = vsel %vm3006, %v3020, %v3022
      %v3049 = vunpack.c.l.b16 %v2987
      %v3050 = vunpack.c.l.b16 %v2988
      %v3051 = vunpack.c.l.b16 %v2989
      %v3052 = vunpack.c.l.b16 %v2990
      %v3053 = vunpack.c.l.b16 %v2991
      %v3054 = vunpack.c.l.b16 %v2992
      %v3055 = vunpack.c.l.b16 %v2993
      %v3056 = vunpack.c.l.b16 %v2994
      %v3057 = vunpack.c.l.b16 %v2995
      %v3058 = vunpack.c.l.b16 %v2996
      %v3059 = vunpack.c.l.b16 %v2997
      %v3060 = vunpack.c.l.b16 %v2998
      %v3061 = vunpack.c.l.b16 %v2999
      %v3062 = vunpack.c.l.b16 %v3000
      %v3063 = vunpack.c.l.b16 %v3001
      %v3064 = vunpack.c.l.b16 %v3002
      %v3065 = vpack.c.b16 %v3050, %v3049
      %v3066 = vpack.c.b16 %v3052, %v3051
      %v3067 = vpack.c.b16 %v3054, %v3053
      %v3068 = vpack.c.b16 %v3056, %v3055
      %v3069 = vpack.c.b16 %v3058, %v3057
      %v3070 = vpack.c.b16 %v3060, %v3059
      %v3071 = vpack.c.b16 %v3062, %v3061
      %v3072 = vpack.c.b16 %v3064, %v3063
      %3081 = vmatpush.bf16.msra.mxu0 %v3072
      %3082 = vmatpush.bf16.msra.mxu0 %v3071
      %3083 = vmatpush.bf16.msra.mxu0 %v3070
      %3084 = vmatpush.bf16.msra.mxu0 %v3069
      %3085 = vmatpush.bf16.msra.mxu0 %v3068
      %3086 = vmatpush.bf16.msra.mxu0 %v3067
      %3087 = vmatpush.bf16.msra.mxu0 %v3066
      %3088 = vmatpush.bf16.msra.mxu0 %v3065
      %3089 = vmatmul.bf16.gmra.mxu0 %v3009
      %v3090 = vpop.f32.mrf.mxu0
      %v3091 = vadd.f32 0.0, %v3090
      %v3092 = vpop.f32.mrf.mxu0
      %v3093 = vadd.f32 0.0, %v3092
      %3094 = vmatmul.bf16.gmra.mxu0 %v3011
      %v3095 = vpop.f32.mrf.mxu0
      %v3096 = vadd.f32 0.0, %v3095
      %v3097 = vpop.f32.mrf.mxu0
      %v3098 = vadd.f32 0.0, %v3097
      %3099 = vmatmul.bf16.gmra.mxu0 %v3013
      %v3100 = vpop.f32.mrf.mxu0
      %v3101 = vadd.f32 0.0, %v3100
      %v3102 = vpop.f32.mrf.mxu0
      %v3103 = vadd.f32 0.0, %v3102
      %3104 = vmatmul.bf16.gmra.mxu0 %v3015
      %v3105 = vpop.f32.mrf.mxu0
      %v3106 = vadd.f32 0.0, %v3105
      %v3107 = vpop.f32.mrf.mxu0
      %v3108 = vadd.f32 0.0, %v3107
      %3109 = vmatmul.bf16.gmra.mxu0 %v3017
      %v3110 = vpop.f32.mrf.mxu0
      %v3111 = vadd.f32 0.0, %v3110
      %v3112 = vpop.f32.mrf.mxu0
      %v3113 = vadd.f32 0.0, %v3112
      %3114 = vmatmul.bf16.gmra.mxu0 %v3019
      %v3115 = vpop.f32.mrf.mxu0
      %v3116 = vadd.f32 0.0, %v3115
      %v3117 = vpop.f32.mrf.mxu0
      %v3118 = vadd.f32 0.0, %v3117
      %3119 = vmatmul.bf16.gmra.mxu0 %v3021
      %v3120 = vpop.f32.mrf.mxu0
      %v3121 = vadd.f32 0.0, %v3120
      %v3122 = vpop.f32.mrf.mxu0
      %v3123 = vadd.f32 0.0, %v3122
      %3124 = vmatmul.bf16.gmra.mxu0 %v3023
      %v3125 = vpop.f32.mrf.mxu0
      %v3126 = vadd.f32 0.0, %v3125
      %v3127 = vpop.f32.mrf.mxu0
      %v3128 = vadd.f32 0.0, %v3127
      %3129 = vmatmul.bf16.gmra.mxu0 %v3022
      %v3130 = vpop.f32.mrf.mxu0
      %v3131 = vadd.f32 0.0, %v3130
      %v3132 = vpop.f32.mrf.mxu0
      %v3133 = vadd.f32 0.0, %v3132
      %3134 = vdwg.mxu0
      %v3135 = vadd.f32 %v2968, %v3091
      %v3136 = vadd.f32 %v2969, %v3093
      %v3137 = vadd.f32 %v2970, %v3096
      %v3138 = vadd.f32 %v2971, %v3098
      %v3139 = vadd.f32 %v2972, %v3101
      %v3140 = vadd.f32 %v2973, %v3103
      %v3141 = vadd.f32 %v2974, %v3106
      %v3142 = vadd.f32 %v2975, %v3108
      %v3143 = vadd.f32 %v2976, %v3111
      %v3144 = vadd.f32 %v2977, %v3113
      %v3145 = vadd.f32 %v2978, %v3116
      %v3146 = vadd.f32 %v2979, %v3118
      %v3147 = vadd.f32 %v2980, %v3121
      %v3148 = vadd.f32 %v2981, %v3123
      %v3149 = vadd.f32 %v2982, %v3126
      %v3150 = vadd.f32 %v2983, %v3128
      %v3151 = vadd.f32 %v2984, %v3131
      %v3152 = vadd.f32 %v2985, %v3133
      %v3153 = vld [vmem:[#allocation4 + $0x4] sm:$0x8]
      %v3154 = vld [vmem:[#allocation4 + $0x8] sm:$0xf]
      %v3155 = vld [vmem:[#allocation4 + $0xc] sm:$0xf]
      %v3156 = vld [vmem:[#allocation4 + $0x10] sm:$0xf]
      %v3157 = vld [vmem:[#allocation4 + $0x14] sm:$0xf]
      %v3158 = vld [vmem:[#allocation4 + $0x18] sm:$0xf]
      %v3159 = vld [vmem:[#allocation4 + $0x1c] sm:$0xf]
      %v3160 = vld [vmem:[#allocation4 + $0x20] sm:$0xf]
      %v3161 = vld [vmem:[#allocation4 + $0x24] sm:$0xf]
      %v3162 = vld [vmem:[#allocation4 + $0x28] sm:$0xf]
      %v3163 = vld [vmem:[#allocation4 + $0x2c] sm:$0xf]
      %v3164 = vld [vmem:[#allocation4 + $0x30] sm:$0xf]
      %v3165 = vld [vmem:[#allocation4 + $0x34] sm:$0xf]
      %v3166 = vld [vmem:[#allocation4 + $0x38] sm:$0xf]
      %v3167 = vld [vmem:[#allocation4 + $0x3c] sm:$0xf]
      %v3168 = vld [vmem:[#allocation4 + $0x40] sm:$0xf]
      %v3169 = vld [vmem:[#allocation4 + $0x44] sm:$0xf]
      %v3170 = vld [vmem:[#allocation4 + $0x48] sm:$0xf]
      %v3171 = vld [vmem:[#allocation4 + $0x4c] sm:$0x1]
      %v3172 = vld [vmem:[%s3 + $0x140] sm:$0xf]
      %v3173 = vld [vmem:[%s3 + $0x144] sm:$0xf]
      %v3174 = vld [vmem:[%s3 + $0x148] sm:$0xf]
      %v3175 = vld [vmem:[%s3 + $0x14c] sm:$0xf]
      %v3176 = vld [vmem:[%s3 + $0x150] sm:$0xf]
      %v3177 = vld [vmem:[%s3 + $0x154] sm:$0xf]
      %v3178 = vld [vmem:[%s3 + $0x158] sm:$0xf]
      %v3179 = vld [vmem:[%s3 + $0x15c] sm:$0xf]
      %v3180 = vld [vmem:[%s3 + $0x160] sm:$0xf]
      %v3181 = vld [vmem:[%s3 + $0x164] sm:$0xf]
      %v3182 = vld [vmem:[%s3 + $0x168] sm:$0xf]
      %v3183 = vld [vmem:[%s3 + $0x16c] sm:$0xf]
      %v3184 = vld [vmem:[%s3 + $0x170] sm:$0xf]
      %v3185 = vld [vmem:[%s3 + $0x174] sm:$0xf]
      %v3186 = vld [vmem:[%s3 + $0x178] sm:$0xf]
      %v3187 = vld [vmem:[%s3 + $0x17c] sm:$0xf]
      %v3207 = vunpack.c.l.b16 %v3153
      %v3208 = vunpack.c.l.b16 %v3154
      %v3209 = vunpack.c.l.b16 %v3155
      %v3210 = vunpack.c.l.b16 %v3156
      %v3211 = vunpack.c.l.b16 %v3157
      %v3212 = vunpack.c.l.b16 %v3158
      %v3213 = vunpack.c.l.b16 %v3159
      %v3214 = vunpack.c.l.b16 %v3160
      %v3215 = vunpack.c.l.b16 %v3161
      %v3216 = vunpack.c.l.b16 %v3162
      %v3217 = vunpack.c.l.b16 %v3163
      %v3218 = vunpack.c.l.b16 %v3164
      %v3219 = vunpack.c.l.b16 %v3165
      %v3220 = vunpack.c.l.b16 %v3166
      %v3221 = vunpack.c.l.b16 %v3167
      %v3222 = vunpack.c.l.b16 %v3168
      %v3223 = vunpack.c.l.b16 %v3169
      %v3224 = vunpack.c.l.b16 %v3170
      %v3225 = vunpack.c.l.b16 %v3171
      %v3226 = vpack.c.b16 %v3208, %v3207
      %v3227 = vpack.c.b16 %v3210, %v3209
      %v3228 = vpack.c.b16 %v3212, %v3211
      %v3229 = vpack.c.b16 %v3214, %v3213
      %v3230 = vpack.c.b16 %v3216, %v3215
      %v3231 = vpack.c.b16 %v3218, %v3217
      %v3232 = vpack.c.b16 %v3220, %v3219
      %v3233 = vpack.c.b16 %v3222, %v3221
      %v3234 = vpack.c.b16 %v3224, %v3223
      %v3235 = vpack.c.b16 %v3225, %v3225
      %vm3236 = vcmask 1044480
      %v3237 = vrot.slane %v3226, 3
      %v3238 = vrot.slane %v3227, 3
      %v3239 = vsel %vm3236, %v3237, %v3238
      %v3240 = vrot.slane %v3228, 3
      %v3241 = vsel %vm3236, %v3238, %v3240
      %v3242 = vrot.slane %v3229, 3
      %v3243 = vsel %vm3236, %v3240, %v3242
      %v3244 = vrot.slane %v3230, 3
      %v3245 = vsel %vm3236, %v3242, %v3244
      %v3246 = vrot.slane %v3231, 3
      %v3247 = vsel %vm3236, %v3244, %v3246
      %v3248 = vrot.slane %v3232, 3
      %v3249 = vsel %vm3236, %v3246, %v3248
      %v3250 = vrot.slane %v3233, 3
      %v3251 = vsel %vm3236, %v3248, %v3250
      %v3252 = vrot.slane %v3234, 3
      %v3253 = vsel %vm3236, %v3250, %v3252
      %v3254 = vrot.slane %v3235, 3
      %v3255 = vsel %vm3236, %v3252, %v3254
      %v3281 = vunpack.c.l.b16 %v3172
      %v3282 = vunpack.c.l.b16 %v3173
      %v3283 = vunpack.c.l.b16 %v3174
      %v3284 = vunpack.c.l.b16 %v3175
      %v3285 = vunpack.c.l.b16 %v3176
      %v3286 = vunpack.c.l.b16 %v3177
      %v3287 = vunpack.c.l.b16 %v3178
      %v3288 = vunpack.c.l.b16 %v3179
      %v3289 = vunpack.c.l.b16 %v3180
      %v3290 = vunpack.c.l.b16 %v3181
      %v3291 = vunpack.c.l.b16 %v3182
      %v3292 = vunpack.c.l.b16 %v3183
      %v3293 = vunpack.c.l.b16 %v3184
      %v3294 = vunpack.c.l.b16 %v3185
      %v3295 = vunpack.c.l.b16 %v3186
      %v3296 = vunpack.c.l.b16 %v3187
      %v3297 = vpack.c.b16 %v3282, %v3281
      %v3298 = vpack.c.b16 %v3284, %v3283
      %v3299 = vpack.c.b16 %v3286, %v3285
      %v3300 = vpack.c.b16 %v3288, %v3287
      %v3301 = vpack.c.b16 %v3290, %v3289
      %v3302 = vpack.c.b16 %v3292, %v3291
      %v3303 = vpack.c.b16 %v3294, %v3293
      %v3304 = vpack.c.b16 %v3296, %v3295
      %3313 = vmatpush.bf16.msra.mxu0 %v3304
      %3314 = vmatpush.bf16.msra.mxu0 %v3303
      %3315 = vmatpush.bf16.msra.mxu0 %v3302
      %3316 = vmatpush.bf16.msra.mxu0 %v3301
      %3317 = vmatpush.bf16.msra.mxu0 %v3300
      %3318 = vmatpush.bf16.msra.mxu0 %v3299
      %3319 = vmatpush.bf16.msra.mxu0 %v3298
      %3320 = vmatpush.bf16.msra.mxu0 %v3297
      %3321 = vmatmul.bf16.gmra.mxu0 %v3239
      %v3322 = vpop.f32.mrf.mxu0
      %v3323 = vadd.f32 0.0, %v3322
      %v3324 = vpop.f32.mrf.mxu0
      %v3325 = vadd.f32 0.0, %v3324
      %3326 = vmatmul.bf16.gmra.mxu0 %v3241
      %v3327 = vpop.f32.mrf.mxu0
      %v3328 = vadd.f32 0.0, %v3327
      %v3329 = vpop.f32.mrf.mxu0
      %v3330 = vadd.f32 0.0, %v3329
      %3331 = vmatmul.bf16.gmra.mxu0 %v3243
      %v3332 = vpop.f32.mrf.mxu0
      %v3333 = vadd.f32 0.0, %v3332
      %v3334 = vpop.f32.mrf.mxu0
      %v3335 = vadd.f32 0.0, %v3334
      %3336 = vmatmul.bf16.gmra.mxu0 %v3245
      %v3337 = vpop.f32.mrf.mxu0
      %v3338 = vadd.f32 0.0, %v3337
      %v3339 = vpop.f32.mrf.mxu0
      %v3340 = vadd.f32 0.0, %v3339
      %3341 = vmatmul.bf16.gmra.mxu0 %v3247
      %v3342 = vpop.f32.mrf.mxu0
      %v3343 = vadd.f32 0.0, %v3342
      %v3344 = vpop.f32.mrf.mxu0
      %v3345 = vadd.f32 0.0, %v3344
      %3346 = vmatmul.bf16.gmra.mxu0 %v3249
      %v3347 = vpop.f32.mrf.mxu0
      %v3348 = vadd.f32 0.0, %v3347
      %v3349 = vpop.f32.mrf.mxu0
      %v3350 = vadd.f32 0.0, %v3349
      %3351 = vmatmul.bf16.gmra.mxu0 %v3251
      %v3352 = vpop.f32.mrf.mxu0
      %v3353 = vadd.f32 0.0, %v3352
      %v3354 = vpop.f32.mrf.mxu0
      %v3355 = vadd.f32 0.0, %v3354
      %3356 = vmatmul.bf16.gmra.mxu0 %v3253
      %v3357 = vpop.f32.mrf.mxu0
      %v3358 = vadd.f32 0.0, %v3357
      %v3359 = vpop.f32.mrf.mxu0
      %v3360 = vadd.f32 0.0, %v3359
      %3361 = vmatmul.bf16.gmra.mxu0 %v3255
      %v3362 = vpop.f32.mrf.mxu0
      %v3363 = vadd.f32 0.0, %v3362
      %v3364 = vpop.f32.mrf.mxu0
      %v3365 = vadd.f32 0.0, %v3364
      %3366 = vdwg.mxu0
      %v3367 = vadd.f32 %v3135, %v3323
      %v3368 = vadd.f32 %v3136, %v3325
      %v3369 = vadd.f32 %v3137, %v3328
      %v3370 = vadd.f32 %v3138, %v3330
      %v3371 = vadd.f32 %v3139, %v3333
      %v3372 = vadd.f32 %v3140, %v3335
      %v3373 = vadd.f32 %v3141, %v3338
      %v3374 = vadd.f32 %v3142, %v3340
      %v3375 = vadd.f32 %v3143, %v3343
      %v3376 = vadd.f32 %v3144, %v3345
      %v3377 = vadd.f32 %v3145, %v3348
      %v3378 = vadd.f32 %v3146, %v3350
      %v3379 = vadd.f32 %v3147, %v3353
      %v3380 = vadd.f32 %v3148, %v3355
      %v3381 = vadd.f32 %v3149, %v3358
      %v3382 = vadd.f32 %v3150, %v3360
      %v3383 = vadd.f32 %v3151, %v3363
      %v3384 = vadd.f32 %v3152, %v3365
      %v3385 = vld [vmem:[#allocation4 + $0x4c] sm:$0x3]
      %v3386 = vld [vmem:[%s3 + $0x180] sm:$0xf]
      %v3387 = vld [vmem:[%s3 + $0x184] sm:$0xf]
      %v3388 = vld [vmem:[%s3 + $0x188] sm:$0xf]
      %v3389 = vld [vmem:[%s3 + $0x18c] sm:$0xf]
      %v3390 = vld [vmem:[%s3 + $0x190] sm:$0xf]
      %v3391 = vld [vmem:[%s3 + $0x194] sm:$0xf]
      %v3392 = vld [vmem:[%s3 + $0x198] sm:$0xf]
      %v3393 = vld [vmem:[%s3 + $0x19c] sm:$0xf]
      %v3394 = vld [vmem:[%s3 + $0x1a0] sm:$0xf]
      %v3395 = vld [vmem:[%s3 + $0x1a4] sm:$0xf]
      %v3396 = vld [vmem:[%s3 + $0x1a8] sm:$0xf]
      %v3397 = vld [vmem:[%s3 + $0x1ac] sm:$0xf]
      %v3398 = vld [vmem:[%s3 + $0x1b0] sm:$0xf]
      %v3399 = vld [vmem:[%s3 + $0x1b4] sm:$0xf]
      %v3400 = vld [vmem:[%s3 + $0x1b8] sm:$0xf]
      %v3401 = vld [vmem:[%s3 + $0x1bc] sm:$0xf]
      %v3403 = vunpack.c.l.b16 %v3385
      %v3404 = vpack.c.b16 %v3403, %v3403
      %vm3405 = vsmask.f32 4352
      %v3407 = vshrl.u32 %v3226, 16
      %v3409 = vrot.slane %v3407, 3
      %v3410 = vshll.u32 %v3226, 16
      %v3412 = vrot.slane %v3410, 4
      %v3413 = vor.u32 %v3409, %v3412
      %v3415 = vshrl.u32 %v3227, 16
      %v3417 = vrot.slane %v3415, 3
      %v3418 = vshll.u32 %v3227, 16
      %v3420 = vrot.slane %v3418, 4
      %v3421 = vor.u32 %v3417, %v3420
      %v3422 = vsel %vm3405, %v3413, %v3421
      %v3424 = vshrl.u32 %v3228, 16
      %v3426 = vrot.slane %v3424, 3
      %v3427 = vshll.u32 %v3228, 16
      %v3429 = vrot.slane %v3427, 4
      %v3430 = vor.u32 %v3426, %v3429
      %v3431 = vsel %vm3405, %v3421, %v3430
      %v3433 = vshrl.u32 %v3229, 16
      %v3435 = vrot.slane %v3433, 3
      %v3436 = vshll.u32 %v3229, 16
      %v3438 = vrot.slane %v3436, 4
      %v3439 = vor.u32 %v3435, %v3438
      %v3440 = vsel %vm3405, %v3430, %v3439
      %v3442 = vshrl.u32 %v3230, 16
      %v3444 = vrot.slane %v3442, 3
      %v3445 = vshll.u32 %v3230, 16
      %v3447 = vrot.slane %v3445, 4
      %v3448 = vor.u32 %v3444, %v3447
      %v3449 = vsel %vm3405, %v3439, %v3448
      %v3451 = vshrl.u32 %v3231, 16
      %v3453 = vrot.slane %v3451, 3
      %v3454 = vshll.u32 %v3231, 16
      %v3456 = vrot.slane %v3454, 4
      %v3457 = vor.u32 %v3453, %v3456
      %v3458 = vsel %vm3405, %v3448, %v3457
      %v3460 = vshrl.u32 %v3232, 16
      %v3462 = vrot.slane %v3460, 3
      %v3463 = vshll.u32 %v3232, 16
      %v3465 = vrot.slane %v3463, 4
      %v3466 = vor.u32 %v3462, %v3465
      %v3467 = vsel %vm3405, %v3457, %v3466
      %v3469 = vshrl.u32 %v3233, 16
      %v3471 = vrot.slane %v3469, 3
      %v3472 = vshll.u32 %v3233, 16
      %v3474 = vrot.slane %v3472, 4
      %v3475 = vor.u32 %v3471, %v3474
      %v3476 = vsel %vm3405, %v3466, %v3475
      %v3478 = vshrl.u32 %v3234, 16
      %v3480 = vrot.slane %v3478, 3
      %v3481 = vshll.u32 %v3234, 16
      %v3483 = vrot.slane %v3481, 4
      %v3484 = vor.u32 %v3480, %v3483
      %v3485 = vsel %vm3405, %v3475, %v3484
      %v3487 = vshrl.u32 %v3404, 16
      %v3489 = vrot.slane %v3487, 3
      %v3490 = vshll.u32 %v3404, 16
      %v3492 = vrot.slane %v3490, 4
      %v3493 = vor.u32 %v3489, %v3492
      %v3494 = vsel %vm3405, %v3484, %v3493
      %v3520 = vunpack.c.l.b16 %v3386
      %v3521 = vunpack.c.l.b16 %v3387
      %v3522 = vunpack.c.l.b16 %v3388
      %v3523 = vunpack.c.l.b16 %v3389
      %v3524 = vunpack.c.l.b16 %v3390
      %v3525 = vunpack.c.l.b16 %v3391
      %v3526 = vunpack.c.l.b16 %v3392
      %v3527 = vunpack.c.l.b16 %v3393
      %v3528 = vunpack.c.l.b16 %v3394
      %v3529 = vunpack.c.l.b16 %v3395
      %v3530 = vunpack.c.l.b16 %v3396
      %v3531 = vunpack.c.l.b16 %v3397
      %v3532 = vunpack.c.l.b16 %v3398
      %v3533 = vunpack.c.l.b16 %v3399
      %v3534 = vunpack.c.l.b16 %v3400
      %v3535 = vunpack.c.l.b16 %v3401
      %v3536 = vpack.c.b16 %v3521, %v3520
      %v3537 = vpack.c.b16 %v3523, %v3522
      %v3538 = vpack.c.b16 %v3525, %v3524
      %v3539 = vpack.c.b16 %v3527, %v3526
      %v3540 = vpack.c.b16 %v3529, %v3528
      %v3541 = vpack.c.b16 %v3531, %v3530
      %v3542 = vpack.c.b16 %v3533, %v3532
      %v3543 = vpack.c.b16 %v3535, %v3534
      %3552 = vmatpush.bf16.msra.mxu0 %v3543
      %3553 = vmatpush.bf16.msra.mxu0 %v3542
      %3554 = vmatpush.bf16.msra.mxu0 %v3541
      %3555 = vmatpush.bf16.msra.mxu0 %v3540
      %3556 = vmatpush.bf16.msra.mxu0 %v3539
      %3557 = vmatpush.bf16.msra.mxu0 %v3538
      %3558 = vmatpush.bf16.msra.mxu0 %v3537
      %3559 = vmatpush.bf16.msra.mxu0 %v3536
      %3560 = vmatmul.bf16.gmra.mxu0 %v3422
      %v3561 = vpop.f32.mrf.mxu0
      %v3562 = vadd.f32 0.0, %v3561
      %v3563 = vpop.f32.mrf.mxu0
      %v3564 = vadd.f32 0.0, %v3563
      %3565 = vmatmul.bf16.gmra.mxu0 %v3431
      %v3566 = vpop.f32.mrf.mxu0
      %v3567 = vadd.f32 0.0, %v3566
      %v3568 = vpop.f32.mrf.mxu0
      %v3569 = vadd.f32 0.0, %v3568
      %3570 = vmatmul.bf16.gmra.mxu0 %v3440
      %v3571 = vpop.f32.mrf.mxu0
      %v3572 = vadd.f32 0.0, %v3571
      %v3573 = vpop.f32.mrf.mxu0
      %v3574 = vadd.f32 0.0, %v3573
      %3575 = vmatmul.bf16.gmra.mxu0 %v3449
      %v3576 = vpop.f32.mrf.mxu0
      %v3577 = vadd.f32 0.0, %v3576
      %v3578 = vpop.f32.mrf.mxu0
      %v3579 = vadd.f32 0.0, %v3578
      %3580 = vmatmul.bf16.gmra.mxu0 %v3458
      %v3581 = vpop.f32.mrf.mxu0
      %v3582 = vadd.f32 0.0, %v3581
      %v3583 = vpop.f32.mrf.mxu0
      %v3584 = vadd.f32 0.0, %v3583
      %3585 = vmatmul.bf16.gmra.mxu0 %v3467
      %v3586 = vpop.f32.mrf.mxu0
      %v3587 = vadd.f32 0.0, %v3586
      %v3588 = vpop.f32.mrf.mxu0
      %v3589 = vadd.f32 0.0, %v3588
      %3590 = vmatmul.bf16.gmra.mxu0 %v3476
      %v3591 = vpop.f32.mrf.mxu0
      %v3592 = vadd.f32 0.0, %v3591
      %v3593 = vpop.f32.mrf.mxu0
      %v3594 = vadd.f32 0.0, %v3593
      %3595 = vmatmul.bf16.gmra.mxu0 %v3485
      %v3596 = vpop.f32.mrf.mxu0
      %v3597 = vadd.f32 0.0, %v3596
      %v3598 = vpop.f32.mrf.mxu0
      %v3599 = vadd.f32 0.0, %v3598
      %3600 = vmatmul.bf16.gmra.mxu0 %v3494
      %v3601 = vpop.f32.mrf.mxu0
      %v3602 = vadd.f32 0.0, %v3601
      %v3603 = vpop.f32.mrf.mxu0
      %v3604 = vadd.f32 0.0, %v3603
      %3605 = vdwg.mxu0
      %v3606 = vadd.f32 %v3367, %v3562
      %v3607 = vadd.f32 %v3368, %v3564
      %v3608 = vadd.f32 %v3369, %v3567
      %v3609 = vadd.f32 %v3370, %v3569
      %v3610 = vadd.f32 %v3371, %v3572
      %v3611 = vadd.f32 %v3372, %v3574
      %v3612 = vadd.f32 %v3373, %v3577
      %v3613 = vadd.f32 %v3374, %v3579
      %v3614 = vadd.f32 %v3375, %v3582
      %v3615 = vadd.f32 %v3376, %v3584
      %v3616 = vadd.f32 %v3377, %v3587
      %v3617 = vadd.f32 %v3378, %v3589
      %v3618 = vadd.f32 %v3379, %v3592
      %v3619 = vadd.f32 %v3380, %v3594
      %v3620 = vadd.f32 %v3381, %v3597
      %v3621 = vadd.f32 %v3382, %v3599
      %v3622 = vadd.f32 %v3383, %v3602
      %v3623 = vadd.f32 %v3384, %v3604
      %v3624 = vld [vmem:[%s3 + $0x1c0] sm:$0xf]
      %v3625 = vld [vmem:[%s3 + $0x1c4] sm:$0xf]
      %v3626 = vld [vmem:[%s3 + $0x1c8] sm:$0xf]
      %v3627 = vld [vmem:[%s3 + $0x1cc] sm:$0xf]
      %v3628 = vld [vmem:[%s3 + $0x1d0] sm:$0xf]
      %v3629 = vld [vmem:[%s3 + $0x1d4] sm:$0xf]
      %v3630 = vld [vmem:[%s3 + $0x1d8] sm:$0xf]
      %v3631 = vld [vmem:[%s3 + $0x1dc] sm:$0xf]
      %v3632 = vld [vmem:[%s3 + $0x1e0] sm:$0xf]
      %v3633 = vld [vmem:[%s3 + $0x1e4] sm:$0xf]
      %v3634 = vld [vmem:[%s3 + $0x1e8] sm:$0xf]
      %v3635 = vld [vmem:[%s3 + $0x1ec] sm:$0xf]
      %v3636 = vld [vmem:[%s3 + $0x1f0] sm:$0xf]
      %v3637 = vld [vmem:[%s3 + $0x1f4] sm:$0xf]
      %v3638 = vld [vmem:[%s3 + $0x1f8] sm:$0xf]
      %v3639 = vld [vmem:[%s3 + $0x1fc] sm:$0xf]
      %v3640 = vpack.c.b16 %v3209, %v3208
      %v3641 = vpack.c.b16 %v3211, %v3210
      %v3642 = vpack.c.b16 %v3213, %v3212
      %v3643 = vpack.c.b16 %v3215, %v3214
      %v3644 = vpack.c.b16 %v3217, %v3216
      %v3645 = vpack.c.b16 %v3219, %v3218
      %v3646 = vpack.c.b16 %v3221, %v3220
      %v3647 = vpack.c.b16 %v3223, %v3222
      %v3648 = vpack.c.b16 %v3403, %v3224
      %v3674 = vunpack.c.l.b16 %v3624
      %v3675 = vunpack.c.l.b16 %v3625
      %v3676 = vunpack.c.l.b16 %v3626
      %v3677 = vunpack.c.l.b16 %v3627
      %v3678 = vunpack.c.l.b16 %v3628
      %v3679 = vunpack.c.l.b16 %v3629
      %v3680 = vunpack.c.l.b16 %v3630
      %v3681 = vunpack.c.l.b16 %v3631
      %v3682 = vunpack.c.l.b16 %v3632
      %v3683 = vunpack.c.l.b16 %v3633
      %v3684 = vunpack.c.l.b16 %v3634
      %v3685 = vunpack.c.l.b16 %v3635
      %v3686 = vunpack.c.l.b16 %v3636
      %v3687 = vunpack.c.l.b16 %v3637
      %v3688 = vunpack.c.l.b16 %v3638
      %v3689 = vunpack.c.l.b16 %v3639
      %v3690 = vpack.c.b16 %v3675, %v3674
      %v3691 = vpack.c.b16 %v3677, %v3676
      %v3692 = vpack.c.b16 %v3679, %v3678
      %v3693 = vpack.c.b16 %v3681, %v3680
      %v3694 = vpack.c.b16 %v3683, %v3682
      %v3695 = vpack.c.b16 %v3685, %v3684
      %v3696 = vpack.c.b16 %v3687, %v3686
      %v3697 = vpack.c.b16 %v3689, %v3688
      %3706 = vmatpush.bf16.msra.mxu0 %v3697
      %3707 = vmatpush.bf16.msra.mxu0 %v3696
      %3708 = vmatpush.bf16.msra.mxu0 %v3695
      %3709 = vmatpush.bf16.msra.mxu0 %v3694
      %3710 = vmatpush.bf16.msra.mxu0 %v3693
      %3711 = vmatpush.bf16.msra.mxu0 %v3692
      %3712 = vmatpush.bf16.msra.mxu0 %v3691
      %3713 = vmatpush.bf16.msra.mxu0 %v3690
      %3714 = vmatmul.bf16.gmra.mxu0 %v3640
      %v3715 = vpop.f32.mrf.mxu0
      %v3716 = vadd.f32 0.0, %v3715
      %v3717 = vpop.f32.mrf.mxu0
      %v3718 = vadd.f32 0.0, %v3717
      %3719 = vmatmul.bf16.gmra.mxu0 %v3641
      %v3720 = vpop.f32.mrf.mxu0
      %v3721 = vadd.f32 0.0, %v3720
      %v3722 = vpop.f32.mrf.mxu0
      %v3723 = vadd.f32 0.0, %v3722
      %3724 = vmatmul.bf16.gmra.mxu0 %v3642
      %v3725 = vpop.f32.mrf.mxu0
      %v3726 = vadd.f32 0.0, %v3725
      %v3727 = vpop.f32.mrf.mxu0
      %v3728 = vadd.f32 0.0, %v3727
      %3729 = vmatmul.bf16.gmra.mxu0 %v3643
      %v3730 = vpop.f32.mrf.mxu0
      %v3731 = vadd.f32 0.0, %v3730
      %v3732 = vpop.f32.mrf.mxu0
      %v3733 = vadd.f32 0.0, %v3732
      %3734 = vmatmul.bf16.gmra.mxu0 %v3644
      %v3735 = vpop.f32.mrf.mxu0
      %v3736 = vadd.f32 0.0, %v3735
      %v3737 = vpop.f32.mrf.mxu0
      %v3738 = vadd.f32 0.0, %v3737
      %3739 = vmatmul.bf16.gmra.mxu0 %v3645
      %v3740 = vpop.f32.mrf.mxu0
      %v3741 = vadd.f32 0.0, %v3740
      %v3742 = vpop.f32.mrf.mxu0
      %v3743 = vadd.f32 0.0, %v3742
      %3744 = vmatmul.bf16.gmra.mxu0 %v3646
      %v3745 = vpop.f32.mrf.mxu0
      %v3746 = vadd.f32 0.0, %v3745
      %v3747 = vpop.f32.mrf.mxu0
      %v3748 = vadd.f32 0.0, %v3747
      %3749 = vmatmul.bf16.gmra.mxu0 %v3647
      %v3750 = vpop.f32.mrf.mxu0
      %v3751 = vadd.f32 0.0, %v3750
      %v3752 = vpop.f32.mrf.mxu0
      %v3753 = vadd.f32 0.0, %v3752
      %3754 = vmatmul.bf16.gmra.mxu0 %v3648
      %v3755 = vpop.f32.mrf.mxu0
      %v3756 = vadd.f32 0.0, %v3755
      %v3757 = vpop.f32.mrf.mxu0
      %v3758 = vadd.f32 0.0, %v3757
      %3759 = vdwg.mxu0
      %v3760 = vadd.f32 %v3606, %v3716
      %v3761 = vadd.f32 %v3607, %v3718
      %v3762 = vadd.f32 %v3608, %v3721
      %v3763 = vadd.f32 %v3609, %v3723
      %v3764 = vadd.f32 %v3610, %v3726
      %v3765 = vadd.f32 %v3611, %v3728
      %v3766 = vadd.f32 %v3612, %v3731
      %v3767 = vadd.f32 %v3613, %v3733
      %v3768 = vadd.f32 %v3614, %v3736
      %v3769 = vadd.f32 %v3615, %v3738
      %v3770 = vadd.f32 %v3616, %v3741
      %v3771 = vadd.f32 %v3617, %v3743
      %v3772 = vadd.f32 %v3618, %v3746
      %v3773 = vadd.f32 %v3619, %v3748
      %v3774 = vadd.f32 %v3620, %v3751
      %v3775 = vadd.f32 %v3621, %v3753
      %v3776 = vadd.f32 %v3622, %v3756
      %v3777 = vadd.f32 %v3623, %v3758
      %v3778 = vld [vmem:[#allocation4 + $0x4c] sm:$0x7]
      %v3779 = vld [vmem:[%s3 + $0x200] sm:$0xf]
      %v3780 = vld [vmem:[%s3 + $0x204] sm:$0xf]
      %v3781 = vld [vmem:[%s3 + $0x208] sm:$0xf]
      %v3782 = vld [vmem:[%s3 + $0x20c] sm:$0xf]
      %v3783 = vld [vmem:[%s3 + $0x210] sm:$0xf]
      %v3784 = vld [vmem:[%s3 + $0x214] sm:$0xf]
      %v3785 = vld [vmem:[%s3 + $0x218] sm:$0xf]
      %v3786 = vld [vmem:[%s3 + $0x21c] sm:$0xf]
      %v3787 = vld [vmem:[%s3 + $0x220] sm:$0xf]
      %v3788 = vld [vmem:[%s3 + $0x224] sm:$0xf]
      %v3789 = vld [vmem:[%s3 + $0x228] sm:$0xf]
      %v3790 = vld [vmem:[%s3 + $0x22c] sm:$0xf]
      %v3791 = vld [vmem:[%s3 + $0x230] sm:$0xf]
      %v3792 = vld [vmem:[%s3 + $0x234] sm:$0xf]
      %v3793 = vld [vmem:[%s3 + $0x238] sm:$0xf]
      %v3794 = vld [vmem:[%s3 + $0x23c] sm:$0xf]
      %v3796 = vunpack.c.l.b16 %v3778
      %v3797 = vpack.c.b16 %v3796, %v3224
      %v3799 = vshrl.u32 %v3640, 16
      %v3801 = vshll.u32 %v3640, 16
      %v3803 = vrot.slane %v3801, 1
      %v3804 = vor.u32 %v3799, %v3803
      %v3806 = vshll.u32 %v3641, 16
      %v3808 = vrot.slane %v3806, 1
      %v3809 = vsel %vm2327, %v3804, %v3808
      %v3810 = vshrl.u32 %v3641, 16
      %v3812 = vor.u32 %v3810, %v3808
      %v3814 = vshll.u32 %v3642, 16
      %v3816 = vrot.slane %v3814, 1
      %v3817 = vsel %vm2327, %v3812, %v3816
      %v3818 = vshrl.u32 %v3642, 16
      %v3820 = vor.u32 %v3818, %v3816
      %v3822 = vshll.u32 %v3643, 16
      %v3824 = vrot.slane %v3822, 1
      %v3825 = vsel %vm2327, %v3820, %v3824
      %v3826 = vshrl.u32 %v3643, 16
      %v3828 = vor.u32 %v3826, %v3824
      %v3830 = vshll.u32 %v3644, 16
      %v3832 = vrot.slane %v3830, 1
      %v3833 = vsel %vm2327, %v3828, %v3832
      %v3834 = vshrl.u32 %v3644, 16
      %v3836 = vor.u32 %v3834, %v3832
      %v3838 = vshll.u32 %v3645, 16
      %v3840 = vrot.slane %v3838, 1
      %v3841 = vsel %vm2327, %v3836, %v3840
      %v3842 = vshrl.u32 %v3645, 16
      %v3844 = vor.u32 %v3842, %v3840
      %v3846 = vshll.u32 %v3646, 16
      %v3848 = vrot.slane %v3846, 1
      %v3849 = vsel %vm2327, %v3844, %v3848
      %v3850 = vshrl.u32 %v3646, 16
      %v3852 = vor.u32 %v3850, %v3848
      %v3854 = vshll.u32 %v3647, 16
      %v3856 = vrot.slane %v3854, 1
      %v3857 = vsel %vm2327, %v3852, %v3856
      %v3858 = vshrl.u32 %v3647, 16
      %v3860 = vor.u32 %v3858, %v3856
      %v3862 = vshll.u32 %v3797, 16
      %v3864 = vrot.slane %v3862, 1
      %v3865 = vsel %vm2327, %v3860, %v3864
      %v3866 = vshrl.u32 %v3797, 16
      %v3868 = vor.u32 %v3866, %v3864
      %v3894 = vunpack.c.l.b16 %v3779
      %v3895 = vunpack.c.l.b16 %v3780
      %v3896 = vunpack.c.l.b16 %v3781
      %v3897 = vunpack.c.l.b16 %v3782
      %v3898 = vunpack.c.l.b16 %v3783
      %v3899 = vunpack.c.l.b16 %v3784
      %v3900 = vunpack.c.l.b16 %v3785
      %v3901 = vunpack.c.l.b16 %v3786
      %v3902 = vunpack.c.l.b16 %v3787
      %v3903 = vunpack.c.l.b16 %v3788
      %v3904 = vunpack.c.l.b16 %v3789
      %v3905 = vunpack.c.l.b16 %v3790
      %v3906 = vunpack.c.l.b16 %v3791
      %v3907 = vunpack.c.l.b16 %v3792
      %v3908 = vunpack.c.l.b16 %v3793
      %v3909 = vunpack.c.l.b16 %v3794
      %v3910 = vpack.c.b16 %v3895, %v3894
      %v3911 = vpack.c.b16 %v3897, %v3896
      %v3912 = vpack.c.b16 %v3899, %v3898
      %v3913 = vpack.c.b16 %v3901, %v3900
      %v3914 = vpack.c.b16 %v3903, %v3902
      %v3915 = vpack.c.b16 %v3905, %v3904
      %v3916 = vpack.c.b16 %v3907, %v3906
      %v3917 = vpack.c.b16 %v3909, %v3908
      %3926 = vmatpush.bf16.msra.mxu0 %v3917
      %3927 = vmatpush.bf16.msra.mxu0 %v3916
      %3928 = vmatpush.bf16.msra.mxu0 %v3915
      %3929 = vmatpush.bf16.msra.mxu0 %v3914
      %3930 = vmatpush.bf16.msra.mxu0 %v3913
      %3931 = vmatpush.bf16.msra.mxu0 %v3912
      %3932 = vmatpush.bf16.msra.mxu0 %v3911
      %3933 = vmatpush.bf16.msra.mxu0 %v3910
      %3934 = vmatmul.bf16.gmra.mxu0 %v3809
      %v3935 = vpop.f32.mrf.mxu0
      %v3936 = vadd.f32 0.0, %v3935
      %v3937 = vpop.f32.mrf.mxu0
      %v3938 = vadd.f32 0.0, %v3937
      %3939 = vmatmul.bf16.gmra.mxu0 %v3817
      %v3940 = vpop.f32.mrf.mxu0
      %v3941 = vadd.f32 0.0, %v3940
      %v3942 = vpop.f32.mrf.mxu0
      %v3943 = vadd.f32 0.0, %v3942
      %3944 = vmatmul.bf16.gmra.mxu0 %v3825
      %v3945 = vpop.f32.mrf.mxu0
      %v3946 = vadd.f32 0.0, %v3945
      %v3947 = vpop.f32.mrf.mxu0
      %v3948 = vadd.f32 0.0, %v3947
      %3949 = vmatmul.bf16.gmra.mxu0 %v3833
      %v3950 = vpop.f32.mrf.mxu0
      %v3951 = vadd.f32 0.0, %v3950
      %v3952 = vpop.f32.mrf.mxu0
      %v3953 = vadd.f32 0.0, %v3952
      %3954 = vmatmul.bf16.gmra.mxu0 %v3841
      %v3955 = vpop.f32.mrf.mxu0
      %v3956 = vadd.f32 0.0, %v3955
      %v3957 = vpop.f32.mrf.mxu0
      %v3958 = vadd.f32 0.0, %v3957
      %3959 = vmatmul.bf16.gmra.mxu0 %v3849
      %v3960 = vpop.f32.mrf.mxu0
      %v3961 = vadd.f32 0.0, %v3960
      %v3962 = vpop.f32.mrf.mxu0
      %v3963 = vadd.f32 0.0, %v3962
      %3964 = vmatmul.bf16.gmra.mxu0 %v3857
      %v3965 = vpop.f32.mrf.mxu0
      %v3966 = vadd.f32 0.0, %v3965
      %v3967 = vpop.f32.mrf.mxu0
      %v3968 = vadd.f32 0.0, %v3967
      %3969 = vmatmul.bf16.gmra.mxu0 %v3865
      %v3970 = vpop.f32.mrf.mxu0
      %v3971 = vadd.f32 0.0, %v3970
      %v3972 = vpop.f32.mrf.mxu0
      %v3973 = vadd.f32 0.0, %v3972
      %3974 = vmatmul.bf16.gmra.mxu0 %v3868
      %v3975 = vpop.f32.mrf.mxu0
      %v3976 = vadd.f32 0.0, %v3975
      %v3977 = vpop.f32.mrf.mxu0
      %v3978 = vadd.f32 0.0, %v3977
      %3979 = vdwg.mxu0
      %v3980 = vadd.f32 %v3760, %v3936
      %v3981 = vadd.f32 %v3761, %v3938
      %v3982 = vadd.f32 %v3762, %v3941
      %v3983 = vadd.f32 %v3763, %v3943
      %v3984 = vadd.f32 %v3764, %v3946
      %v3985 = vadd.f32 %v3765, %v3948
      %v3986 = vadd.f32 %v3766, %v3951
      %v3987 = vadd.f32 %v3767, %v3953
      %v3988 = vadd.f32 %v3768, %v3956
      %v3989 = vadd.f32 %v3769, %v3958
      %v3990 = vadd.f32 %v3770, %v3961
      %v3991 = vadd.f32 %v3771, %v3963
      %v3992 = vadd.f32 %v3772, %v3966
      %v3993 = vadd.f32 %v3773, %v3968
      %v3994 = vadd.f32 %v3774, %v3971
      %v3995 = vadd.f32 %v3775, %v3973
      %v3996 = vadd.f32 %v3776, %v3976
      %v3997 = vadd.f32 %v3777, %v3978
      %v3998 = vld [vmem:[#allocation4 + $0x8] sm:$0xe]
      %v3999 = vld [vmem:[%s3 + $0x240] sm:$0xf]
      %v4000 = vld [vmem:[%s3 + $0x244] sm:$0xf]
      %v4001 = vld [vmem:[%s3 + $0x248] sm:$0xf]
      %v4002 = vld [vmem:[%s3 + $0x24c] sm:$0xf]
      %v4003 = vld [vmem:[%s3 + $0x250] sm:$0xf]
      %v4004 = vld [vmem:[%s3 + $0x254] sm:$0xf]
      %v4005 = vld [vmem:[%s3 + $0x258] sm:$0xf]
      %v4006 = vld [vmem:[%s3 + $0x25c] sm:$0xf]
      %v4007 = vld [vmem:[%s3 + $0x260] sm:$0xf]
      %v4008 = vld [vmem:[%s3 + $0x264] sm:$0xf]
      %v4009 = vld [vmem:[%s3 + $0x268] sm:$0xf]
      %v4010 = vld [vmem:[%s3 + $0x26c] sm:$0xf]
      %v4011 = vld [vmem:[%s3 + $0x270] sm:$0xf]
      %v4012 = vld [vmem:[%s3 + $0x274] sm:$0xf]
      %v4013 = vld [vmem:[%s3 + $0x278] sm:$0xf]
      %v4014 = vld [vmem:[%s3 + $0x27c] sm:$0xf]
      %v4016 = vunpack.c.l.b16 %v3998
      %v4017 = vpack.c.b16 %v3209, %v4016
      %v4018 = vrot.slane %v4017, 1
      %v4019 = vrot.slane %v3641, 1
      %v4020 = vsel %vm2644, %v4018, %v4019
      %v4021 = vrot.slane %v3642, 1
      %v4022 = vsel %vm2644, %v4019, %v4021
      %v4023 = vrot.slane %v3643, 1
      %v4024 = vsel %vm2644, %v4021, %v4023
      %v4025 = vrot.slane %v3644, 1
      %v4026 = vsel %vm2644, %v4023, %v4025
      %v4027 = vrot.slane %v3645, 1
      %v4028 = vsel %vm2644, %v4025, %v4027
      %v4029 = vrot.slane %v3646, 1
      %v4030 = vsel %vm2644, %v4027, %v4029
      %v4031 = vrot.slane %v3647, 1
      %v4032 = vsel %vm2644, %v4029, %v4031
      %v4033 = vrot.slane %v3797, 1
      %v4034 = vsel %vm2644, %v4031, %v4033
      %v4060 = vunpack.c.l.b16 %v3999
      %v4061 = vunpack.c.l.b16 %v4000
      %v4062 = vunpack.c.l.b16 %v4001
      %v4063 = vunpack.c.l.b16 %v4002
      %v4064 = vunpack.c.l.b16 %v4003
      %v4065 = vunpack.c.l.b16 %v4004
      %v4066 = vunpack.c.l.b16 %v4005
      %v4067 = vunpack.c.l.b16 %v4006
      %v4068 = vunpack.c.l.b16 %v4007
      %v4069 = vunpack.c.l.b16 %v4008
      %v4070 = vunpack.c.l.b16 %v4009
      %v4071 = vunpack.c.l.b16 %v4010
      %v4072 = vunpack.c.l.b16 %v4011
      %v4073 = vunpack.c.l.b16 %v4012
      %v4074 = vunpack.c.l.b16 %v4013
      %v4075 = vunpack.c.l.b16 %v4014
      %v4076 = vpack.c.b16 %v4061, %v4060
      %v4077 = vpack.c.b16 %v4063, %v4062
      %v4078 = vpack.c.b16 %v4065, %v4064
      %v4079 = vpack.c.b16 %v4067, %v4066
      %v4080 = vpack.c.b16 %v4069, %v4068
      %v4081 = vpack.c.b16 %v4071, %v4070
      %v4082 = vpack.c.b16 %v4073, %v4072
      %v4083 = vpack.c.b16 %v4075, %v4074
      %4092 = vmatpush.bf16.msra.mxu0 %v4083
      %4093 = vmatpush.bf16.msra.mxu0 %v4082
      %4094 = vmatpush.bf16.msra.mxu0 %v4081
      %4095 = vmatpush.bf16.msra.mxu0 %v4080
      %4096 = vmatpush.bf16.msra.mxu0 %v4079
      %4097 = vmatpush.bf16.msra.mxu0 %v4078
      %4098 = vmatpush.bf16.msra.mxu0 %v4077
      %4099 = vmatpush.bf16.msra.mxu0 %v4076
      %4100 = vmatmul.bf16.gmra.mxu0 %v4020
      %v4101 = vpop.f32.mrf.mxu0
      %v4102 = vadd.f32 0.0, %v4101
      %v4103 = vpop.f32.mrf.mxu0
      %v4104 = vadd.f32 0.0, %v4103
      %4105 = vmatmul.bf16.gmra.mxu0 %v4022
      %v4106 = vpop.f32.mrf.mxu0
      %v4107 = vadd.f32 0.0, %v4106
      %v4108 = vpop.f32.mrf.mxu0
      %v4109 = vadd.f32 0.0, %v4108
      %4110 = vmatmul.bf16.gmra.mxu0 %v4024
      %v4111 = vpop.f32.mrf.mxu0
      %v4112 = vadd.f32 0.0, %v4111
      %v4113 = vpop.f32.mrf.mxu0
      %v4114 = vadd.f32 0.0, %v4113
      %4115 = vmatmul.bf16.gmra.mxu0 %v4026
      %v4116 = vpop.f32.mrf.mxu0
      %v4117 = vadd.f32 0.0, %v4116
      %v4118 = vpop.f32.mrf.mxu0
      %v4119 = vadd.f32 0.0, %v4118
      %4120 = vmatmul.bf16.gmra.mxu0 %v4028
      %v4121 = vpop.f32.mrf.mxu0
      %v4122 = vadd.f32 0.0, %v4121
      %v4123 = vpop.f32.mrf.mxu0
      %v4124 = vadd.f32 0.0, %v4123
      %4125 = vmatmul.bf16.gmra.mxu0 %v4030
      %v4126 = vpop.f32.mrf.mxu0
      %v4127 = vadd.f32 0.0, %v4126
      %v4128 = vpop.f32.mrf.mxu0
      %v4129 = vadd.f32 0.0, %v4128
      %4130 = vmatmul.bf16.gmra.mxu0 %v4032
      %v4131 = vpop.f32.mrf.mxu0
      %v4132 = vadd.f32 0.0, %v4131
      %v4133 = vpop.f32.mrf.mxu0
      %v4134 = vadd.f32 0.0, %v4133
      %4135 = vmatmul.bf16.gmra.mxu0 %v4034
      %v4136 = vpop.f32.mrf.mxu0
      %v4137 = vadd.f32 0.0, %v4136
      %v4138 = vpop.f32.mrf.mxu0
      %v4139 = vadd.f32 0.0, %v4138
      %4140 = vmatmul.bf16.gmra.mxu0 %v4033
      %v4141 = vpop.f32.mrf.mxu0
      %v4142 = vadd.f32 0.0, %v4141
      %v4143 = vpop.f32.mrf.mxu0
      %v4144 = vadd.f32 0.0, %v4143
      %4145 = vdwg.mxu0
      %v4146 = vadd.f32 %v3980, %v4102
      %v4147 = vadd.f32 %v3981, %v4104
      %v4148 = vadd.f32 %v3982, %v4107
      %v4149 = vadd.f32 %v3983, %v4109
      %v4150 = vadd.f32 %v3984, %v4112
      %v4151 = vadd.f32 %v3985, %v4114
      %v4152 = vadd.f32 %v3986, %v4117
      %v4153 = vadd.f32 %v3987, %v4119
      %v4154 = vadd.f32 %v3988, %v4122
      %v4155 = vadd.f32 %v3989, %v4124
      %v4156 = vadd.f32 %v3990, %v4127
      %v4157 = vadd.f32 %v3991, %v4129
      %v4158 = vadd.f32 %v3992, %v4132
      %v4159 = vadd.f32 %v3993, %v4134
      %v4160 = vadd.f32 %v3994, %v4137
      %v4161 = vadd.f32 %v3995, %v4139
      %v4162 = vadd.f32 %v3996, %v4142
      %v4163 = vadd.f32 %v3997, %v4144
      %v4164 = vld [vmem:[#allocation4 + $0xc] sm:$0xc]
      %v4165 = vld [vmem:[#allocation4 + $0x10] sm:$0xf]
      %v4166 = vld [vmem:[#allocation4 + $0x14] sm:$0xf]
      %v4167 = vld [vmem:[#allocation4 + $0x18] sm:$0xf]
      %v4168 = vld [vmem:[#allocation4 + $0x1c] sm:$0xf]
      %v4169 = vld [vmem:[#allocation4 + $0x20] sm:$0xf]
      %v4170 = vld [vmem:[#allocation4 + $0x24] sm:$0xf]
      %v4171 = vld [vmem:[#allocation4 + $0x28] sm:$0xf]
      %v4172 = vld [vmem:[#allocation4 + $0x2c] sm:$0xf]
      %v4173 = vld [vmem:[#allocation4 + $0x30] sm:$0xf]
      %v4174 = vld [vmem:[#allocation4 + $0x34] sm:$0xf]
      %v4175 = vld [vmem:[#allocation4 + $0x38] sm:$0xf]
      %v4176 = vld [vmem:[#allocation4 + $0x3c] sm:$0xf]
      %v4177 = vld [vmem:[#allocation4 + $0x40] sm:$0xf]
      %v4178 = vld [vmem:[#allocation4 + $0x44] sm:$0xf]
      %v4179 = vld [vmem:[#allocation4 + $0x48] sm:$0xf]
      %v4180 = vld [vmem:[#allocation4 + $0x4c] sm:$0xf]
      %v4181 = vld [vmem:[#allocation4 + $0x50] sm:$0xf]
      %v4182 = vld [vmem:[%s3 + $0x280] sm:$0xf]
      %v4183 = vld [vmem:[%s3 + $0x284] sm:$0xf]
      %v4184 = vld [vmem:[%s3 + $0x288] sm:$0xf]
      %v4185 = vld [vmem:[%s3 + $0x28c] sm:$0xf]
      %v4186 = vld [vmem:[%s3 + $0x290] sm:$0xf]
      %v4187 = vld [vmem:[%s3 + $0x294] sm:$0xf]
      %v4188 = vld [vmem:[%s3 + $0x298] sm:$0xf]
      %v4189 = vld [vmem:[%s3 + $0x29c] sm:$0xf]
      %v4190 = vld [vmem:[%s3 + $0x2a0] sm:$0xf]
      %v4191 = vld [vmem:[%s3 + $0x2a4] sm:$0xf]
      %v4192 = vld [vmem:[%s3 + $0x2a8] sm:$0xf]
      %v4193 = vld [vmem:[%s3 + $0x2ac] sm:$0xf]
      %v4194 = vld [vmem:[%s3 + $0x2b0] sm:$0xf]
      %v4195 = vld [vmem:[%s3 + $0x2b4] sm:$0xf]
      %v4196 = vld [vmem:[%s3 + $0x2b8] sm:$0xf]
      %v4197 = vld [vmem:[%s3 + $0x2bc] sm:$0xf]
      %v4216 = vunpack.c.l.b16 %v4164
      %v4217 = vunpack.c.l.b16 %v4165
      %v4218 = vunpack.c.l.b16 %v4166
      %v4219 = vunpack.c.l.b16 %v4167
      %v4220 = vunpack.c.l.b16 %v4168
      %v4221 = vunpack.c.l.b16 %v4169
      %v4222 = vunpack.c.l.b16 %v4170
      %v4223 = vunpack.c.l.b16 %v4171
      %v4224 = vunpack.c.l.b16 %v4172
      %v4225 = vunpack.c.l.b16 %v4173
      %v4226 = vunpack.c.l.b16 %v4174
      %v4227 = vunpack.c.l.b16 %v4175
      %v4228 = vunpack.c.l.b16 %v4176
      %v4229 = vunpack.c.l.b16 %v4177
      %v4230 = vunpack.c.l.b16 %v4178
      %v4231 = vunpack.c.l.b16 %v4179
      %v4232 = vunpack.c.l.b16 %v4180
      %v4233 = vunpack.c.l.b16 %v4181
      %v4234 = vpack.c.b16 %v4217, %v4216
      %v4235 = vpack.c.b16 %v4219, %v4218
      %v4236 = vpack.c.b16 %v4221, %v4220
      %v4237 = vpack.c.b16 %v4223, %v4222
      %v4238 = vpack.c.b16 %v4225, %v4224
      %v4239 = vpack.c.b16 %v4227, %v4226
      %v4240 = vpack.c.b16 %v4229, %v4228
      %v4241 = vpack.c.b16 %v4231, %v4230
      %v4242 = vpack.c.b16 %v4233, %v4232
      %v4243 = vrot.slane %v4234, 2
      %v4244 = vrot.slane %v4235, 2
      %v4245 = vsel %vm3006, %v4243, %v4244
      %v4246 = vrot.slane %v4236, 2
      %v4247 = vsel %vm3006, %v4244, %v4246
      %v4248 = vrot.slane %v4237, 2
      %v4249 = vsel %vm3006, %v4246, %v4248
      %v4250 = vrot.slane %v4238, 2
      %v4251 = vsel %vm3006, %v4248, %v4250
      %v4252 = vrot.slane %v4239, 2
      %v4253 = vsel %vm3006, %v4250, %v4252
      %v4254 = vrot.slane %v4240, 2
      %v4255 = vsel %vm3006, %v4252, %v4254
      %v4256 = vrot.slane %v4241, 2
      %v4257 = vsel %vm3006, %v4254, %v4256
      %v4258 = vrot.slane %v4242, 2
      %v4259 = vsel %vm3006, %v4256, %v4258
      %v4285 = vunpack.c.l.b16 %v4182
      %v4286 = vunpack.c.l.b16 %v4183
      %v4287 = vunpack.c.l.b16 %v4184
      %v4288 = vunpack.c.l.b16 %v4185
      %v4289 = vunpack.c.l.b16 %v4186
      %v4290 = vunpack.c.l.b16 %v4187
      %v4291 = vunpack.c.l.b16 %v4188
      %v4292 = vunpack.c.l.b16 %v4189
      %v4293 = vunpack.c.l.b16 %v4190
      %v4294 = vunpack.c.l.b16 %v4191
      %v4295 = vunpack.c.l.b16 %v4192
      %v4296 = vunpack.c.l.b16 %v4193
      %v4297 = vunpack.c.l.b16 %v4194
      %v4298 = vunpack.c.l.b16 %v4195
      %v4299 = vunpack.c.l.b16 %v4196
      %v4300 = vunpack.c.l.b16 %v4197
      %v4301 = vpack.c.b16 %v4286, %v4285
      %v4302 = vpack.c.b16 %v4288, %v4287
      %v4303 = vpack.c.b16 %v4290, %v4289
      %v4304 = vpack.c.b16 %v4292, %v4291
      %v4305 = vpack.c.b16 %v4294, %v4293
      %v4306 = vpack.c.b16 %v4296, %v4295
      %v4307 = vpack.c.b16 %v4298, %v4297
      %v4308 = vpack.c.b16 %v4300, %v4299
      %4317 = vmatpush.bf16.msra.mxu0 %v4308
      %4318 = vmatpush.bf16.msra.mxu0 %v4307
      %4319 = vmatpush.bf16.msra.mxu0 %v4306
      %4320 = vmatpush.bf16.msra.mxu0 %v4305
      %4321 = vmatpush.bf16.msra.mxu0 %v4304
      %4322 = vmatpush.bf16.msra.mxu0 %v4303
      %4323 = vmatpush.bf16.msra.mxu0 %v4302
      %4324 = vmatpush.bf16.msra.mxu0 %v4301
      %4325 = vmatmul.bf16.gmra.mxu0 %v4245
      %v4326 = vpop.f32.mrf.mxu0
      %v4327 = vadd.f32 0.0, %v4326
      %v4328 = vpop.f32.mrf.mxu0
      %v4329 = vadd.f32 0.0, %v4328
      %4330 = vmatmul.bf16.gmra.mxu0 %v4247
      %v4331 = vpop.f32.mrf.mxu0
      %v4332 = vadd.f32 0.0, %v4331
      %v4333 = vpop.f32.mrf.mxu0
      %v4334 = vadd.f32 0.0, %v4333
      %4335 = vmatmul.bf16.gmra.mxu0 %v4249
      %v4336 = vpop.f32.mrf.mxu0
      %v4337 = vadd.f32 0.0, %v4336
      %v4338 = vpop.f32.mrf.mxu0
      %v4339 = vadd.f32 0.0, %v4338
      %4340 = vmatmul.bf16.gmra.mxu0 %v4251
      %v4341 = vpop.f32.mrf.mxu0
      %v4342 = vadd.f32 0.0, %v4341
      %v4343 = vpop.f32.mrf.mxu0
      %v4344 = vadd.f32 0.0, %v4343
      %4345 = vmatmul.bf16.gmra.mxu0 %v4253
      %v4346 = vpop.f32.mrf.mxu0
      %v4347 = vadd.f32 0.0, %v4346
      %v4348 = vpop.f32.mrf.mxu0
      %v4349 = vadd.f32 0.0, %v4348
      %4350 = vmatmul.bf16.gmra.mxu0 %v4255
      %v4351 = vpop.f32.mrf.mxu0
      %v4352 = vadd.f32 0.0, %v4351
      %v4353 = vpop.f32.mrf.mxu0
      %v4354 = vadd.f32 0.0, %v4353
      %4355 = vmatmul.bf16.gmra.mxu0 %v4257
      %v4356 = vpop.f32.mrf.mxu0
      %v4357 = vadd.f32 0.0, %v4356
      %v4358 = vpop.f32.mrf.mxu0
      %v4359 = vadd.f32 0.0, %v4358
      %4360 = vmatmul.bf16.gmra.mxu0 %v4259
      %v4361 = vpop.f32.mrf.mxu0
      %v4362 = vadd.f32 0.0, %v4361
      %v4363 = vpop.f32.mrf.mxu0
      %v4364 = vadd.f32 0.0, %v4363
      %4365 = vmatmul.bf16.gmra.mxu0 %v4258
      %v4366 = vpop.f32.mrf.mxu0
      %v4367 = vadd.f32 0.0, %v4366
      %v4368 = vpop.f32.mrf.mxu0
      %v4369 = vadd.f32 0.0, %v4368
      %4370 = vdwg.mxu0
      %v4371 = vadd.f32 %v4146, %v4327
      %v4372 = vadd.f32 %v4147, %v4329
      %v4373 = vadd.f32 %v4148, %v4332
      %v4374 = vadd.f32 %v4149, %v4334
      %v4375 = vadd.f32 %v4150, %v4337
      %v4376 = vadd.f32 %v4151, %v4339
      %v4377 = vadd.f32 %v4152, %v4342
      %v4378 = vadd.f32 %v4153, %v4344
      %v4379 = vadd.f32 %v4154, %v4347
      %v4380 = vadd.f32 %v4155, %v4349
      %v4381 = vadd.f32 %v4156, %v4352
      %v4382 = vadd.f32 %v4157, %v4354
      %v4383 = vadd.f32 %v4158, %v4357
      %v4384 = vadd.f32 %v4159, %v4359
      %v4385 = vadd.f32 %v4160, %v4362
      %v4386 = vadd.f32 %v4161, %v4364
      %v4387 = vadd.f32 %v4162, %v4367
      %v4388 = vadd.f32 %v4163, %v4369
      %v4389 = vld [vmem:[#allocation4 + $0xc] sm:$0xc]
      %v4390 = vld [vmem:[#allocation4 + $0x10] sm:$0xf]
      %v4391 = vld [vmem:[#allocation4 + $0x14] sm:$0xf]
      %v4392 = vld [vmem:[#allocation4 + $0x18] sm:$0xf]
      %v4393 = vld [vmem:[#allocation4 + $0x1c] sm:$0xf]
      %v4394 = vld [vmem:[#allocation4 + $0x20] sm:$0xf]
      %v4395 = vld [vmem:[#allocation4 + $0x24] sm:$0xf]
      %v4396 = vld [vmem:[#allocation4 + $0x28] sm:$0xf]
      %v4397 = vld [vmem:[#allocation4 + $0x2c] sm:$0xf]
      %v4398 = vld [vmem:[#allocation4 + $0x30] sm:$0xf]
      %v4399 = vld [vmem:[#allocation4 + $0x34] sm:$0xf]
      %v4400 = vld [vmem:[#allocation4 + $0x38] sm:$0xf]
      %v4401 = vld [vmem:[#allocation4 + $0x3c] sm:$0xf]
      %v4402 = vld [vmem:[#allocation4 + $0x40] sm:$0xf]
      %v4403 = vld [vmem:[#allocation4 + $0x44] sm:$0xf]
      %v4404 = vld [vmem:[#allocation4 + $0x48] sm:$0xf]
      %v4405 = vld [vmem:[#allocation4 + $0x4c] sm:$0xf]
      %v4406 = vld [vmem:[#allocation4 + $0x50] sm:$0xf]
      %v4407 = vld [vmem:[#allocation4 + $0x54] sm:$0x1]
      %v4408 = vld [vmem:[%s3 + $0x2c0] sm:$0xf]
      %v4409 = vld [vmem:[%s3 + $0x2c4] sm:$0xf]
      %v4410 = vld [vmem:[%s3 + $0x2c8] sm:$0xf]
      %v4411 = vld [vmem:[%s3 + $0x2cc] sm:$0xf]
      %v4412 = vld [vmem:[%s3 + $0x2d0] sm:$0xf]
      %v4413 = vld [vmem:[%s3 + $0x2d4] sm:$0xf]
      %v4414 = vld [vmem:[%s3 + $0x2d8] sm:$0xf]
      %v4415 = vld [vmem:[%s3 + $0x2dc] sm:$0xf]
      %v4416 = vld [vmem:[%s3 + $0x2e0] sm:$0xf]
      %v4417 = vld [vmem:[%s3 + $0x2e4] sm:$0xf]
      %v4418 = vld [vmem:[%s3 + $0x2e8] sm:$0xf]
      %v4419 = vld [vmem:[%s3 + $0x2ec] sm:$0xf]
      %v4420 = vld [vmem:[%s3 + $0x2f0] sm:$0xf]
      %v4421 = vld [vmem:[%s3 + $0x2f4] sm:$0xf]
      %v4422 = vld [vmem:[%s3 + $0x2f8] sm:$0xf]
      %v4423 = vld [vmem:[%s3 + $0x2fc] sm:$0xf]
      %v4443 = vunpack.c.l.b16 %v4389
      %v4444 = vunpack.c.l.b16 %v4390
      %v4445 = vunpack.c.l.b16 %v4391
      %v4446 = vunpack.c.l.b16 %v4392
      %v4447 = vunpack.c.l.b16 %v4393
      %v4448 = vunpack.c.l.b16 %v4394
      %v4449 = vunpack.c.l.b16 %v4395
      %v4450 = vunpack.c.l.b16 %v4396
      %v4451 = vunpack.c.l.b16 %v4397
      %v4452 = vunpack.c.l.b16 %v4398
      %v4453 = vunpack.c.l.b16 %v4399
      %v4454 = vunpack.c.l.b16 %v4400
      %v4455 = vunpack.c.l.b16 %v4401
      %v4456 = vunpack.c.l.b16 %v4402
      %v4457 = vunpack.c.l.b16 %v4403
      %v4458 = vunpack.c.l.b16 %v4404
      %v4459 = vunpack.c.l.b16 %v4405
      %v4460 = vunpack.c.l.b16 %v4406
      %v4461 = vunpack.c.l.b16 %v4407
      %v4462 = vpack.c.b16 %v4444, %v4443
      %v4463 = vpack.c.b16 %v4446, %v4445
      %v4464 = vpack.c.b16 %v4448, %v4447
      %v4465 = vpack.c.b16 %v4450, %v4449
      %v4466 = vpack.c.b16 %v4452, %v4451
      %v4467 = vpack.c.b16 %v4454, %v4453
      %v4468 = vpack.c.b16 %v4456, %v4455
      %v4469 = vpack.c.b16 %v4458, %v4457
      %v4470 = vpack.c.b16 %v4460, %v4459
      %v4471 = vpack.c.b16 %v4461, %v4461
      %vm4472 = vsmask.f32 5376
      %v4474 = vshrl.u32 %v4462, 16
      %v4476 = vrot.slane %v4474, 2
      %v4477 = vshll.u32 %v4462, 16
      %v4479 = vrot.slane %v4477, 3
      %v4480 = vor.u32 %v4476, %v4479
      %v4482 = vshrl.u32 %v4463, 16
      %v4484 = vrot.slane %v4482, 2
      %v4485 = vshll.u32 %v4463, 16
      %v4487 = vrot.slane %v4485, 3
      %v4488 = vor.u32 %v4484, %v4487
      %v4489 = vsel %vm4472, %v4480, %v4488
      %v4491 = vshrl.u32 %v4464, 16
      %v4493 = vrot.slane %v4491, 2
      %v4494 = vshll.u32 %v4464, 16
      %v4496 = vrot.slane %v4494, 3
      %v4497 = vor.u32 %v4493, %v4496
      %v4498 = vsel %vm4472, %v4488, %v4497
      %v4500 = vshrl.u32 %v4465, 16
      %v4502 = vrot.slane %v4500, 2
      %v4503 = vshll.u32 %v4465, 16
      %v4505 = vrot.slane %v4503, 3
      %v4506 = vor.u32 %v4502, %v4505
      %v4507 = vsel %vm4472, %v4497, %v4506
      %v4509 = vshrl.u32 %v4466, 16
      %v4511 = vrot.slane %v4509, 2
      %v4512 = vshll.u32 %v4466, 16
      %v4514 = vrot.slane %v4512, 3
      %v4515 = vor.u32 %v4511, %v4514
      %v4516 = vsel %vm4472, %v4506, %v4515
      %v4518 = vshrl.u32 %v4467, 16
      %v4520 = vrot.slane %v4518, 2
      %v4521 = vshll.u32 %v4467, 16
      %v4523 = vrot.slane %v4521, 3
      %v4524 = vor.u32 %v4520, %v4523
      %v4525 = vsel %vm4472, %v4515, %v4524
      %v4527 = vshrl.u32 %v4468, 16
      %v4529 = vrot.slane %v4527, 2
      %v4530 = vshll.u32 %v4468, 16
      %v4532 = vrot.slane %v4530, 3
      %v4533 = vor.u32 %v4529, %v4532
      %v4534 = vsel %vm4472, %v4524, %v4533
      %v4536 = vshrl.u32 %v4469, 16
      %v4538 = vrot.slane %v4536, 2
      %v4539 = vshll.u32 %v4469, 16
      %v4541 = vrot.slane %v4539, 3
      %v4542 = vor.u32 %v4538, %v4541
      %v4543 = vsel %vm4472, %v4533, %v4542
      %v4545 = vshrl.u32 %v4470, 16
      %v4547 = vrot.slane %v4545, 2
      %v4548 = vshll.u32 %v4470, 16
      %v4550 = vrot.slane %v4548, 3
      %v4551 = vor.u32 %v4547, %v4550
      %v4552 = vsel %vm4472, %v4542, %v4551
      %v4554 = vshll.u32 %v4471, 16
      %v4556 = vrot.slane %v4554, 3
      %v4557 = vsel %vm4472, %v4551, %v4556
      %v4583 = vunpack.c.l.b16 %v4408
      %v4584 = vunpack.c.l.b16 %v4409
      %v4585 = vunpack.c.l.b16 %v4410
      %v4586 = vunpack.c.l.b16 %v4411
      %v4587 = vunpack.c.l.b16 %v4412
      %v4588 = vunpack.c.l.b16 %v4413
      %v4589 = vunpack.c.l.b16 %v4414
      %v4590 = vunpack.c.l.b16 %v4415
      %v4591 = vunpack.c.l.b16 %v4416
      %v4592 = vunpack.c.l.b16 %v4417
      %v4593 = vunpack.c.l.b16 %v4418
      %v4594 = vunpack.c.l.b16 %v4419
      %v4595 = vunpack.c.l.b16 %v4420
      %v4596 = vunpack.c.l.b16 %v4421
      %v4597 = vunpack.c.l.b16 %v4422
      %v4598 = vunpack.c.l.b16 %v4423
      %v4599 = vpack.c.b16 %v4584, %v4583
      %v4600 = vpack.c.b16 %v4586, %v4585
      %v4601 = vpack.c.b16 %v4588, %v4587
      %v4602 = vpack.c.b16 %v4590, %v4589
      %v4603 = vpack.c.b16 %v4592, %v4591
      %v4604 = vpack.c.b16 %v4594, %v4593
      %v4605 = vpack.c.b16 %v4596, %v4595
      %v4606 = vpack.c.b16 %v4598, %v4597
      %4615 = vmatpush.bf16.msra.mxu0 %v4606
      %4616 = vmatpush.bf16.msra.mxu0 %v4605
      %4617 = vmatpush.bf16.msra.mxu0 %v4604
      %4618 = vmatpush.bf16.msra.mxu0 %v4603
      %4619 = vmatpush.bf16.msra.mxu0 %v4602
      %4620 = vmatpush.bf16.msra.mxu0 %v4601
      %4621 = vmatpush.bf16.msra.mxu0 %v4600
      %4622 = vmatpush.bf16.msra.mxu0 %v4599
      %4623 = vmatmul.bf16.gmra.mxu0 %v4489
      %v4624 = vpop.f32.mrf.mxu0
      %v4625 = vadd.f32 0.0, %v4624
      %v4626 = vpop.f32.mrf.mxu0
      %v4627 = vadd.f32 0.0, %v4626
      %4628 = vmatmul.bf16.gmra.mxu0 %v4498
      %v4629 = vpop.f32.mrf.mxu0
      %v4630 = vadd.f32 0.0, %v4629
      %v4631 = vpop.f32.mrf.mxu0
      %v4632 = vadd.f32 0.0, %v4631
      %4633 = vmatmul.bf16.gmra.mxu0 %v4507
      %v4634 = vpop.f32.mrf.mxu0
      %v4635 = vadd.f32 0.0, %v4634
      %v4636 = vpop.f32.mrf.mxu0
      %v4637 = vadd.f32 0.0, %v4636
      %4638 = vmatmul.bf16.gmra.mxu0 %v4516
      %v4639 = vpop.f32.mrf.mxu0
      %v4640 = vadd.f32 0.0, %v4639
      %v4641 = vpop.f32.mrf.mxu0
      %v4642 = vadd.f32 0.0, %v4641
      %4643 = vmatmul.bf16.gmra.mxu0 %v4525
      %v4644 = vpop.f32.mrf.mxu0
      %v4645 = vadd.f32 0.0, %v4644
      %v4646 = vpop.f32.mrf.mxu0
      %v4647 = vadd.f32 0.0, %v4646
      %4648 = vmatmul.bf16.gmra.mxu0 %v4534
      %v4649 = vpop.f32.mrf.mxu0
      %v4650 = vadd.f32 0.0, %v4649
      %v4651 = vpop.f32.mrf.mxu0
      %v4652 = vadd.f32 0.0, %v4651
      %4653 = vmatmul.bf16.gmra.mxu0 %v4543
      %v4654 = vpop.f32.mrf.mxu0
      %v4655 = vadd.f32 0.0, %v4654
      %v4656 = vpop.f32.mrf.mxu0
      %v4657 = vadd.f32 0.0, %v4656
      %4658 = vmatmul.bf16.gmra.mxu0 %v4552
      %v4659 = vpop.f32.mrf.mxu0
      %v4660 = vadd.f32 0.0, %v4659
      %v4661 = vpop.f32.mrf.mxu0
      %v4662 = vadd.f32 0.0, %v4661
      %4663 = vmatmul.bf16.gmra.mxu0 %v4557
      %v4664 = vpop.f32.mrf.mxu0
      %v4665 = vadd.f32 0.0, %v4664
      %v4666 = vpop.f32.mrf.mxu0
      %v4667 = vadd.f32 0.0, %v4666
      %4668 = vdwg.mxu0
      %v4669 = vadd.f32 %v4371, %v4625
      %v4670 = vadd.f32 %v4372, %v4627
      %v4671 = vadd.f32 %v4373, %v4630
      %v4672 = vadd.f32 %v4374, %v4632
      %v4673 = vadd.f32 %v4375, %v4635
      %v4674 = vadd.f32 %v4376, %v4637
      %v4675 = vadd.f32 %v4377, %v4640
      %v4676 = vadd.f32 %v4378, %v4642
      %v4677 = vadd.f32 %v4379, %v4645
      %v4678 = vadd.f32 %v4380, %v4647
      %v4679 = vadd.f32 %v4381, %v4650
      %v4680 = vadd.f32 %v4382, %v4652
      %v4681 = vadd.f32 %v4383, %v4655
      %v4682 = vadd.f32 %v4384, %v4657
      %v4683 = vadd.f32 %v4385, %v4660
      %v4684 = vadd.f32 %v4386, %v4662
      %v4685 = vadd.f32 %v4387, %v4665
      %v4686 = vadd.f32 %v4388, %v4667
      %v4687 = vld [vmem:[#allocation4 + $0xc] sm:$0x8]
      %v4688 = vld [vmem:[%s3 + $0x300] sm:$0xf]
      %v4689 = vld [vmem:[%s3 + $0x304] sm:$0xf]
      %v4690 = vld [vmem:[%s3 + $0x308] sm:$0xf]
      %v4691 = vld [vmem:[%s3 + $0x30c] sm:$0xf]
      %v4692 = vld [vmem:[%s3 + $0x310] sm:$0xf]
      %v4693 = vld [vmem:[%s3 + $0x314] sm:$0xf]
      %v4694 = vld [vmem:[%s3 + $0x318] sm:$0xf]
      %v4695 = vld [vmem:[%s3 + $0x31c] sm:$0xf]
      %v4696 = vld [vmem:[%s3 + $0x320] sm:$0xf]
      %v4697 = vld [vmem:[%s3 + $0x324] sm:$0xf]
      %v4698 = vld [vmem:[%s3 + $0x328] sm:$0xf]
      %v4699 = vld [vmem:[%s3 + $0x32c] sm:$0xf]
      %v4700 = vld [vmem:[%s3 + $0x330] sm:$0xf]
      %v4701 = vld [vmem:[%s3 + $0x334] sm:$0xf]
      %v4702 = vld [vmem:[%s3 + $0x338] sm:$0xf]
      %v4703 = vld [vmem:[%s3 + $0x33c] sm:$0xf]
      %v4705 = vunpack.c.l.b16 %v4687
      %v4706 = vpack.c.b16 %v4444, %v4705
      %v4707 = vrot.slane %v4706, 3
      %v4708 = vrot.slane %v4463, 3
      %v4709 = vsel %vm3236, %v4707, %v4708
      %v4710 = vrot.slane %v4464, 3
      %v4711 = vsel %vm3236, %v4708, %v4710
      %v4712 = vrot.slane %v4465, 3
      %v4713 = vsel %vm3236, %v4710, %v4712
      %v4714 = vrot.slane %v4466, 3
      %v4715 = vsel %vm3236, %v4712, %v4714
      %v4716 = vrot.slane %v4467, 3
      %v4717 = vsel %vm3236, %v4714, %v4716
      %v4718 = vrot.slane %v4468, 3
      %v4719 = vsel %vm3236, %v4716, %v4718
      %v4720 = vrot.slane %v4469, 3
      %v4721 = vsel %vm3236, %v4718, %v4720
      %v4722 = vrot.slane %v4470, 3
      %v4723 = vsel %vm3236, %v4720, %v4722
      %v4724 = vrot.slane %v4471, 3
      %v4725 = vsel %vm3236, %v4722, %v4724
      %v4751 = vunpack.c.l.b16 %v4688
      %v4752 = vunpack.c.l.b16 %v4689
      %v4753 = vunpack.c.l.b16 %v4690
      %v4754 = vunpack.c.l.b16 %v4691
      %v4755 = vunpack.c.l.b16 %v4692
      %v4756 = vunpack.c.l.b16 %v4693
      %v4757 = vunpack.c.l.b16 %v4694
      %v4758 = vunpack.c.l.b16 %v4695
      %v4759 = vunpack.c.l.b16 %v4696
      %v4760 = vunpack.c.l.b16 %v4697
      %v4761 = vunpack.c.l.b16 %v4698
      %v4762 = vunpack.c.l.b16 %v4699
      %v4763 = vunpack.c.l.b16 %v4700
      %v4764 = vunpack.c.l.b16 %v4701
      %v4765 = vunpack.c.l.b16 %v4702
      %v4766 = vunpack.c.l.b16 %v4703
      %v4767 = vpack.c.b16 %v4752, %v4751
      %v4768 = vpack.c.b16 %v4754, %v4753
      %v4769 = vpack.c.b16 %v4756, %v4755
      %v4770 = vpack.c.b16 %v4758, %v4757
      %v4771 = vpack.c.b16 %v4760, %v4759
      %v4772 = vpack.c.b16 %v4762, %v4761
      %v4773 = vpack.c.b16 %v4764, %v4763
      %v4774 = vpack.c.b16 %v4766, %v4765
      %4783 = vmatpush.bf16.msra.mxu0 %v4774
      %4784 = vmatpush.bf16.msra.mxu0 %v4773
      %4785 = vmatpush.bf16.msra.mxu0 %v4772
      %4786 = vmatpush.bf16.msra.mxu0 %v4771
      %4787 = vmatpush.bf16.msra.mxu0 %v4770
      %4788 = vmatpush.bf16.msra.mxu0 %v4769
      %4789 = vmatpush.bf16.msra.mxu0 %v4768
      %4790 = vmatpush.bf16.msra.mxu0 %v4767
      %4791 = vmatmul.bf16.gmra.mxu0 %v4709
      %v4792 = vpop.f32.mrf.mxu0
      %v4793 = vadd.f32 0.0, %v4792
      %v4794 = vpop.f32.mrf.mxu0
      %v4795 = vadd.f32 0.0, %v4794
      %4796 = vmatmul.bf16.gmra.mxu0 %v4711
      %v4797 = vpop.f32.mrf.mxu0
      %v4798 = vadd.f32 0.0, %v4797
      %v4799 = vpop.f32.mrf.mxu0
      %v4800 = vadd.f32 0.0, %v4799
      %4801 = vmatmul.bf16.gmra.mxu0 %v4713
      %v4802 = vpop.f32.mrf.mxu0
      %v4803 = vadd.f32 0.0, %v4802
      %v4804 = vpop.f32.mrf.mxu0
      %v4805 = vadd.f32 0.0, %v4804
      %4806 = vmatmul.bf16.gmra.mxu0 %v4715
      %v4807 = vpop.f32.mrf.mxu0
      %v4808 = vadd.f32 0.0, %v4807
      %v4809 = vpop.f32.mrf.mxu0
      %v4810 = vadd.f32 0.0, %v4809
      %4811 = vmatmul.bf16.gmra.mxu0 %v4717
      %v4812 = vpop.f32.mrf.mxu0
      %v4813 = vadd.f32 0.0, %v4812
      %v4814 = vpop.f32.mrf.mxu0
      %v4815 = vadd.f32 0.0, %v4814
      %4816 = vmatmul.bf16.gmra.mxu0 %v4719
      %v4817 = vpop.f32.mrf.mxu0
      %v4818 = vadd.f32 0.0, %v4817
      %v4819 = vpop.f32.mrf.mxu0
      %v4820 = vadd.f32 0.0, %v4819
      %4821 = vmatmul.bf16.gmra.mxu0 %v4721
      %v4822 = vpop.f32.mrf.mxu0
      %v4823 = vadd.f32 0.0, %v4822
      %v4824 = vpop.f32.mrf.mxu0
      %v4825 = vadd.f32 0.0, %v4824
      %4826 = vmatmul.bf16.gmra.mxu0 %v4723
      %v4827 = vpop.f32.mrf.mxu0
      %v4828 = vadd.f32 0.0, %v4827
      %v4829 = vpop.f32.mrf.mxu0
      %v4830 = vadd.f32 0.0, %v4829
      %4831 = vmatmul.bf16.gmra.mxu0 %v4725
      %v4832 = vpop.f32.mrf.mxu0
      %v4833 = vadd.f32 0.0, %v4832
      %v4834 = vpop.f32.mrf.mxu0
      %v4835 = vadd.f32 0.0, %v4834
      %4836 = vdwg.mxu0
      %v4837 = vadd.f32 %v4669, %v4793
      %v4838 = vadd.f32 %v4670, %v4795
      %v4839 = vadd.f32 %v4671, %v4798
      %v4840 = vadd.f32 %v4672, %v4800
      %v4841 = vadd.f32 %v4673, %v4803
      %v4842 = vadd.f32 %v4674, %v4805
      %v4843 = vadd.f32 %v4675, %v4808
      %v4844 = vadd.f32 %v4676, %v4810
      %v4845 = vadd.f32 %v4677, %v4813
      %v4846 = vadd.f32 %v4678, %v4815
      %v4847 = vadd.f32 %v4679, %v4818
      %v4848 = vadd.f32 %v4680, %v4820
      %v4849 = vadd.f32 %v4681, %v4823
      %v4850 = vadd.f32 %v4682, %v4825
      %v4851 = vadd.f32 %v4683, %v4828
      %v4852 = vadd.f32 %v4684, %v4830
      %v4853 = vadd.f32 %v4685, %v4833
      %v4854 = vadd.f32 %v4686, %v4835
      %v4855 = vld [vmem:[#allocation4 + $0x54] sm:$0x3]
      %v4856 = vld [vmem:[%s3 + $0x340] sm:$0xf]
      %v4857 = vld [vmem:[%s3 + $0x344] sm:$0xf]
      %v4858 = vld [vmem:[%s3 + $0x348] sm:$0xf]
      %v4859 = vld [vmem:[%s3 + $0x34c] sm:$0xf]
      %v4860 = vld [vmem:[%s3 + $0x350] sm:$0xf]
      %v4861 = vld [vmem:[%s3 + $0x354] sm:$0xf]
      %v4862 = vld [vmem:[%s3 + $0x358] sm:$0xf]
      %v4863 = vld [vmem:[%s3 + $0x35c] sm:$0xf]
      %v4864 = vld [vmem:[%s3 + $0x360] sm:$0xf]
      %v4865 = vld [vmem:[%s3 + $0x364] sm:$0xf]
      %v4866 = vld [vmem:[%s3 + $0x368] sm:$0xf]
      %v4867 = vld [vmem:[%s3 + $0x36c] sm:$0xf]
      %v4868 = vld [vmem:[%s3 + $0x370] sm:$0xf]
      %v4869 = vld [vmem:[%s3 + $0x374] sm:$0xf]
      %v4870 = vld [vmem:[%s3 + $0x378] sm:$0xf]
      %v4871 = vld [vmem:[%s3 + $0x37c] sm:$0xf]
      %v4873 = vunpack.c.l.b16 %v4855
      %v4874 = vpack.c.b16 %v4873, %v4873
      %v4876 = vshrl.u32 %v4706, 16
      %v4878 = vrot.slane %v4876, 3
      %v4879 = vshll.u32 %v4706, 16
      %v4881 = vrot.slane %v4879, 4
      %v4882 = vor.u32 %v4878, %v4881
      %v4883 = vrot.slane %v4482, 3
      %v4884 = vrot.slane %v4485, 4
      %v4885 = vor.u32 %v4883, %v4884
      %v4886 = vsel %vm3405, %v4882, %v4885
      %v4887 = vrot.slane %v4491, 3
      %v4888 = vrot.slane %v4494, 4
      %v4889 = vor.u32 %v4887, %v4888
      %v4890 = vsel %vm3405, %v4885, %v4889
      %v4891 = vrot.slane %v4500, 3
      %v4892 = vrot.slane %v4503, 4
      %v4893 = vor.u32 %v4891, %v4892
      %v4894 = vsel %vm3405, %v4889, %v4893
      %v4895 = vrot.slane %v4509, 3
      %v4896 = vrot.slane %v4512, 4
      %v4897 = vor.u32 %v4895, %v4896
      %v4898 = vsel %vm3405, %v4893, %v4897
      %v4899 = vrot.slane %v4518, 3
      %v4900 = vrot.slane %v4521, 4
      %v4901 = vor.u32 %v4899, %v4900
      %v4902 = vsel %vm3405, %v4897, %v4901
      %v4903 = vrot.slane %v4527, 3
      %v4904 = vrot.slane %v4530, 4
      %v4905 = vor.u32 %v4903, %v4904
      %v4906 = vsel %vm3405, %v4901, %v4905
      %v4907 = vrot.slane %v4536, 3
      %v4908 = vrot.slane %v4539, 4
      %v4909 = vor.u32 %v4907, %v4908
      %v4910 = vsel %vm3405, %v4905, %v4909
      %v4911 = vrot.slane %v4545, 3
      %v4912 = vrot.slane %v4548, 4
      %v4913 = vor.u32 %v4911, %v4912
      %v4914 = vsel %vm3405, %v4909, %v4913
      %v4916 = vshrl.u32 %v4874, 16
      %v4918 = vrot.slane %v4916, 3
      %v4919 = vshll.u32 %v4874, 16
      %v4921 = vrot.slane %v4919, 4
      %v4922 = vor.u32 %v4918, %v4921
      %v4923 = vsel %vm3405, %v4913, %v4922
      %v4949 = vunpack.c.l.b16 %v4856
      %v4950 = vunpack.c.l.b16 %v4857
      %v4951 = vunpack.c.l.b16 %v4858
      %v4952 = vunpack.c.l.b16 %v4859
      %v4953 = vunpack.c.l.b16 %v4860
      %v4954 = vunpack.c.l.b16 %v4861
      %v4955 = vunpack.c.l.b16 %v4862
      %v4956 = vunpack.c.l.b16 %v4863
      %v4957 = vunpack.c.l.b16 %v4864
      %v4958 = vunpack.c.l.b16 %v4865
      %v4959 = vunpack.c.l.b16 %v4866
      %v4960 = vunpack.c.l.b16 %v4867
      %v4961 = vunpack.c.l.b16 %v4868
      %v4962 = vunpack.c.l.b16 %v4869
      %v4963 = vunpack.c.l.b16 %v4870
      %v4964 = vunpack.c.l.b16 %v4871
      %v4965 = vpack.c.b16 %v4950, %v4949
      %v4966 = vpack.c.b16 %v4952, %v4951
      %v4967 = vpack.c.b16 %v4954, %v4953
      %v4968 = vpack.c.b16 %v4956, %v4955
      %v4969 = vpack.c.b16 %v4958, %v4957
      %v4970 = vpack.c.b16 %v4960, %v4959
      %v4971 = vpack.c.b16 %v4962, %v4961
      %v4972 = vpack.c.b16 %v4964, %v4963
      %4981 = vmatpush.bf16.msra.mxu0 %v4972
      %4982 = vmatpush.bf16.msra.mxu0 %v4971
      %4983 = vmatpush.bf16.msra.mxu0 %v4970
      %4984 = vmatpush.bf16.msra.mxu0 %v4969
      %4985 = vmatpush.bf16.msra.mxu0 %v4968
      %4986 = vmatpush.bf16.msra.mxu0 %v4967
      %4987 = vmatpush.bf16.msra.mxu0 %v4966
      %4988 = vmatpush.bf16.msra.mxu0 %v4965
      %4989 = vmatmul.bf16.gmra.mxu0 %v4886
      %v4990 = vpop.f32.mrf.mxu0
      %v4991 = vadd.f32 0.0, %v4990
      %v4992 = vpop.f32.mrf.mxu0
      %v4993 = vadd.f32 0.0, %v4992
      %4994 = vmatmul.bf16.gmra.mxu0 %v4890
      %v4995 = vpop.f32.mrf.mxu0
      %v4996 = vadd.f32 0.0, %v4995
      %v4997 = vpop.f32.mrf.mxu0
      %v4998 = vadd.f32 0.0, %v4997
      %4999 = vmatmul.bf16.gmra.mxu0 %v4894
      %v5000 = vpop.f32.mrf.mxu0
      %v5001 = vadd.f32 0.0, %v5000
      %v5002 = vpop.f32.mrf.mxu0
      %v5003 = vadd.f32 0.0, %v5002
      %5004 = vmatmul.bf16.gmra.mxu0 %v4898
      %v5005 = vpop.f32.mrf.mxu0
      %v5006 = vadd.f32 0.0, %v5005
      %v5007 = vpop.f32.mrf.mxu0
      %v5008 = vadd.f32 0.0, %v5007
      %5009 = vmatmul.bf16.gmra.mxu0 %v4902
      %v5010 = vpop.f32.mrf.mxu0
      %v5011 = vadd.f32 0.0, %v5010
      %v5012 = vpop.f32.mrf.mxu0
      %v5013 = vadd.f32 0.0, %v5012
      %5014 = vmatmul.bf16.gmra.mxu0 %v4906
      %v5015 = vpop.f32.mrf.mxu0
      %v5016 = vadd.f32 0.0, %v5015
      %v5017 = vpop.f32.mrf.mxu0
      %v5018 = vadd.f32 0.0, %v5017
      %5019 = vmatmul.bf16.gmra.mxu0 %v4910
      %v5020 = vpop.f32.mrf.mxu0
      %v5021 = vadd.f32 0.0, %v5020
      %v5022 = vpop.f32.mrf.mxu0
      %v5023 = vadd.f32 0.0, %v5022
      %5024 = vmatmul.bf16.gmra.mxu0 %v4914
      %v5025 = vpop.f32.mrf.mxu0
      %v5026 = vadd.f32 0.0, %v5025
      %v5027 = vpop.f32.mrf.mxu0
      %v5028 = vadd.f32 0.0, %v5027
      %5029 = vmatmul.bf16.gmra.mxu0 %v4923
      %v5030 = vpop.f32.mrf.mxu0
      %v5031 = vadd.f32 0.0, %v5030
      %v5032 = vpop.f32.mrf.mxu0
      %v5033 = vadd.f32 0.0, %v5032
      %5034 = vdwg.mxu0
      %v5035 = vadd.f32 %v4837, %v4991
      %v5036 = vadd.f32 %v4838, %v4993
      %v5037 = vadd.f32 %v4839, %v4996
      %v5038 = vadd.f32 %v4840, %v4998
      %v5039 = vadd.f32 %v4841, %v5001
      %v5040 = vadd.f32 %v4842, %v5003
      %v5041 = vadd.f32 %v4843, %v5006
      %v5042 = vadd.f32 %v4844, %v5008
      %v5043 = vadd.f32 %v4845, %v5011
      %v5044 = vadd.f32 %v4846, %v5013
      %v5045 = vadd.f32 %v4847, %v5016
      %v5046 = vadd.f32 %v4848, %v5018
      %v5047 = vadd.f32 %v4849, %v5021
      %v5048 = vadd.f32 %v4850, %v5023
      %v5049 = vadd.f32 %v4851, %v5026
      %v5050 = vadd.f32 %v4852, %v5028
      %v5051 = vadd.f32 %v4853, %v5031
      %v5052 = vadd.f32 %v4854, %v5033
      %v5053 = vld [vmem:[%s3 + $0x380] sm:$0xf]
      %v5054 = vld [vmem:[%s3 + $0x384] sm:$0xf]
      %v5055 = vld [vmem:[%s3 + $0x388] sm:$0xf]
      %v5056 = vld [vmem:[%s3 + $0x38c] sm:$0xf]
      %v5057 = vld [vmem:[%s3 + $0x390] sm:$0xf]
      %v5058 = vld [vmem:[%s3 + $0x394] sm:$0xf]
      %v5059 = vld [vmem:[%s3 + $0x398] sm:$0xf]
      %v5060 = vld [vmem:[%s3 + $0x39c] sm:$0xf]
      %v5061 = vld [vmem:[%s3 + $0x3a0] sm:$0xf]
      %v5062 = vld [vmem:[%s3 + $0x3a4] sm:$0xf]
      %v5063 = vld [vmem:[%s3 + $0x3a8] sm:$0xf]
      %v5064 = vld [vmem:[%s3 + $0x3ac] sm:$0xf]
      %v5065 = vld [vmem:[%s3 + $0x3b0] sm:$0xf]
      %v5066 = vld [vmem:[%s3 + $0x3b4] sm:$0xf]
      %v5067 = vld [vmem:[%s3 + $0x3b8] sm:$0xf]
      %v5068 = vld [vmem:[%s3 + $0x3bc] sm:$0xf]
      %v5069 = vpack.c.b16 %v4445, %v4444
      %v5070 = vpack.c.b16 %v4447, %v4446
      %v5071 = vpack.c.b16 %v4449, %v4448
      %v5072 = vpack.c.b16 %v4451, %v4450
      %v5073 = vpack.c.b16 %v4453, %v4452
      %v5074 = vpack.c.b16 %v4455, %v4454
      %v5075 = vpack.c.b16 %v4457, %v4456
      %v5076 = vpack.c.b16 %v4459, %v4458
      %v5077 = vpack.c.b16 %v4873, %v4460
      %v5103 = vunpack.c.l.b16 %v5053
      %v5104 = vunpack.c.l.b16 %v5054
      %v5105 = vunpack.c.l.b16 %v5055
      %v5106 = vunpack.c.l.b16 %v5056
      %v5107 = vunpack.c.l.b16 %v5057
      %v5108 = vunpack.c.l.b16 %v5058
      %v5109 = vunpack.c.l.b16 %v5059
      %v5110 = vunpack.c.l.b16 %v5060
      %v5111 = vunpack.c.l.b16 %v5061
      %v5112 = vunpack.c.l.b16 %v5062
      %v5113 = vunpack.c.l.b16 %v5063
      %v5114 = vunpack.c.l.b16 %v5064
      %v5115 = vunpack.c.l.b16 %v5065
      %v5116 = vunpack.c.l.b16 %v5066
      %v5117 = vunpack.c.l.b16 %v5067
      %v5118 = vunpack.c.l.b16 %v5068
      %v5119 = vpack.c.b16 %v5104, %v5103
      %v5120 = vpack.c.b16 %v5106, %v5105
      %v5121 = vpack.c.b16 %v5108, %v5107
      %v5122 = vpack.c.b16 %v5110, %v5109
      %v5123 = vpack.c.b16 %v5112, %v5111
      %v5124 = vpack.c.b16 %v5114, %v5113
      %v5125 = vpack.c.b16 %v5116, %v5115
      %v5126 = vpack.c.b16 %v5118, %v5117
      %5135 = vmatpush.bf16.msra.mxu0 %v5126
      %5136 = vmatpush.bf16.msra.mxu0 %v5125
      %5137 = vmatpush.bf16.msra.mxu0 %v5124
      %5138 = vmatpush.bf16.msra.mxu0 %v5123
      %5139 = vmatpush.bf16.msra.mxu0 %v5122
      %5140 = vmatpush.bf16.msra.mxu0 %v5121
      %5141 = vmatpush.bf16.msra.mxu0 %v5120
      %5142 = vmatpush.bf16.msra.mxu0 %v5119
      %5143 = vmatmul.bf16.gmra.mxu0 %v5069
      %v5144 = vpop.f32.mrf.mxu0
      %v5145 = vadd.f32 0.0, %v5144
      %v5146 = vpop.f32.mrf.mxu0
      %v5147 = vadd.f32 0.0, %v5146
      %5148 = vmatmul.bf16.gmra.mxu0 %v5070
      %v5149 = vpop.f32.mrf.mxu0
      %v5150 = vadd.f32 0.0, %v5149
      %v5151 = vpop.f32.mrf.mxu0
      %v5152 = vadd.f32 0.0, %v5151
      %5153 = vmatmul.bf16.gmra.mxu0 %v5071
      %v5154 = vpop.f32.mrf.mxu0
      %v5155 = vadd.f32 0.0, %v5154
      %v5156 = vpop.f32.mrf.mxu0
      %v5157 = vadd.f32 0.0, %v5156
      %5158 = vmatmul.bf16.gmra.mxu0 %v5072
      %v5159 = vpop.f32.mrf.mxu0
      %v5160 = vadd.f32 0.0, %v5159
      %v5161 = vpop.f32.mrf.mxu0
      %v5162 = vadd.f32 0.0, %v5161
      %5163 = vmatmul.bf16.gmra.mxu0 %v5073
      %v5164 = vpop.f32.mrf.mxu0
      %v5165 = vadd.f32 0.0, %v5164
      %v5166 = vpop.f32.mrf.mxu0
      %v5167 = vadd.f32 0.0, %v5166
      %5168 = vmatmul.bf16.gmra.mxu0 %v5074
      %v5169 = vpop.f32.mrf.mxu0
      %v5170 = vadd.f32 0.0, %v5169
      %v5171 = vpop.f32.mrf.mxu0
      %v5172 = vadd.f32 0.0, %v5171
      %5173 = vmatmul.bf16.gmra.mxu0 %v5075
      %v5174 = vpop.f32.mrf.mxu0
      %v5175 = vadd.f32 0.0, %v5174
      %v5176 = vpop.f32.mrf.mxu0
      %v5177 = vadd.f32 0.0, %v5176
      %5178 = vmatmul.bf16.gmra.mxu0 %v5076
      %v5179 = vpop.f32.mrf.mxu0
      %v5180 = vadd.f32 0.0, %v5179
      %v5181 = vpop.f32.mrf.mxu0
      %v5182 = vadd.f32 0.0, %v5181
      %5183 = vmatmul.bf16.gmra.mxu0 %v5077
      %v5184 = vpop.f32.mrf.mxu0
      %v5185 = vadd.f32 0.0, %v5184
      %v5186 = vpop.f32.mrf.mxu0
      %v5187 = vadd.f32 0.0, %v5186
      %5188 = vdwg.mxu0
      %v5189 = vadd.f32 %v5035, %v5145
      %v5190 = vadd.f32 %v5036, %v5147
      %v5191 = vadd.f32 %v5037, %v5150
      %v5192 = vadd.f32 %v5038, %v5152
      %v5193 = vadd.f32 %v5039, %v5155
      %v5194 = vadd.f32 %v5040, %v5157
      %v5195 = vadd.f32 %v5041, %v5160
      %v5196 = vadd.f32 %v5042, %v5162
      %v5197 = vadd.f32 %v5043, %v5165
      %v5198 = vadd.f32 %v5044, %v5167
      %v5199 = vadd.f32 %v5045, %v5170
      %v5200 = vadd.f32 %v5046, %v5172
      %v5201 = vadd.f32 %v5047, %v5175
      %v5202 = vadd.f32 %v5048, %v5177
      %v5203 = vadd.f32 %v5049, %v5180
      %v5204 = vadd.f32 %v5050, %v5182
      %v5205 = vadd.f32 %v5051, %v5185
      %v5206 = vadd.f32 %v5052, %v5187
      %v5207 = vld [vmem:[#allocation4 + $0x14] sm:$0xe]
      %v5208 = vld [vmem:[#allocation4 + $0x18] sm:$0xf]
      %v5209 = vld [vmem:[#allocation4 + $0x1c] sm:$0xf]
      %v5210 = vld [vmem:[#allocation4 + $0x20] sm:$0xf]
      %v5211 = vld [vmem:[#allocation4 + $0x24] sm:$0xf]
      %v5212 = vld [vmem:[#allocation4 + $0x28] sm:$0xf]
      %v5213 = vld [vmem:[#allocation4 + $0x2c] sm:$0xf]
      %v5214 = vld [vmem:[#allocation4 + $0x30] sm:$0xf]
      %v5215 = vld [vmem:[#allocation4 + $0x34] sm:$0xf]
      %v5216 = vld [vmem:[#allocation4 + $0x38] sm:$0xf]
      %v5217 = vld [vmem:[#allocation4 + $0x3c] sm:$0xf]
      %v5218 = vld [vmem:[#allocation4 + $0x40] sm:$0xf]
      %v5219 = vld [vmem:[#allocation4 + $0x44] sm:$0xf]
      %v5220 = vld [vmem:[#allocation4 + $0x48] sm:$0xf]
      %v5221 = vld [vmem:[#allocation4 + $0x4c] sm:$0xf]
      %v5222 = vld [vmem:[#allocation4 + $0x50] sm:$0xf]
      %v5223 = vld [vmem:[#allocation4 + $0x54] sm:$0xf]
      %v5224 = vld [vmem:[#allocation4 + $0x58] sm:$0x7]
      %v5225 = vld [vmem:[%s3 + $0x3c0] sm:$0xf]
      %v5226 = vld [vmem:[%s3 + $0x3c4] sm:$0xf]
      %v5227 = vld [vmem:[%s3 + $0x3c8] sm:$0xf]
      %v5228 = vld [vmem:[%s3 + $0x3cc] sm:$0xf]
      %v5229 = vld [vmem:[%s3 + $0x3d0] sm:$0xf]
      %v5230 = vld [vmem:[%s3 + $0x3d4] sm:$0xf]
      %v5231 = vld [vmem:[%s3 + $0x3d8] sm:$0xf]
      %v5232 = vld [vmem:[%s3 + $0x3dc] sm:$0xf]
      %v5233 = vld [vmem:[%s3 + $0x3e0] sm:$0xf]
      %v5234 = vld [vmem:[%s3 + $0x3e4] sm:$0xf]
      %v5235 = vld [vmem:[%s3 + $0x3e8] sm:$0xf]
      %v5236 = vld [vmem:[%s3 + $0x3ec] sm:$0xf]
      %v5237 = vld [vmem:[%s3 + $0x3f0] sm:$0xf]
      %v5238 = vld [vmem:[%s3 + $0x3f4] sm:$0xf]
      %v5239 = vld [vmem:[%s3 + $0x3f8] sm:$0xf]
      %v5240 = vld [vmem:[%s3 + $0x3fc] sm:$0xf]
      %v5259 = vunpack.c.l.b16 %v5207
      %v5260 = vunpack.c.l.b16 %v5208
      %v5261 = vunpack.c.l.b16 %v5209
      %v5262 = vunpack.c.l.b16 %v5210
      %v5263 = vunpack.c.l.b16 %v5211
      %v5264 = vunpack.c.l.b16 %v5212
      %v5265 = vunpack.c.l.b16 %v5213
      %v5266 = vunpack.c.l.b16 %v5214
      %v5267 = vunpack.c.l.b16 %v5215
      %v5268 = vunpack.c.l.b16 %v5216
      %v5269 = vunpack.c.l.b16 %v5217
      %v5270 = vunpack.c.l.b16 %v5218
      %v5271 = vunpack.c.l.b16 %v5219
      %v5272 = vunpack.c.l.b16 %v5220
      %v5273 = vunpack.c.l.b16 %v5221
      %v5274 = vunpack.c.l.b16 %v5222
      %v5275 = vunpack.c.l.b16 %v5223
      %v5276 = vunpack.c.l.b16 %v5224
      %v5277 = vpack.c.b16 %v5260, %v5259
      %v5278 = vpack.c.b16 %v5262, %v5261
      %v5279 = vpack.c.b16 %v5264, %v5263
      %v5280 = vpack.c.b16 %v5266, %v5265
      %v5281 = vpack.c.b16 %v5268, %v5267
      %v5282 = vpack.c.b16 %v5270, %v5269
      %v5283 = vpack.c.b16 %v5272, %v5271
      %v5284 = vpack.c.b16 %v5274, %v5273
      %v5285 = vpack.c.b16 %v5276, %v5275
      %v5286 = vrot.slane %v5277, 1
      %v5287 = vrot.slane %v5278, 1
      %v5288 = vsel %vm2644, %v5286, %v5287
      %v5289 = vrot.slane %v5279, 1
      %v5290 = vsel %vm2644, %v5287, %v5289
      %v5291 = vrot.slane %v5280, 1
      %v5292 = vsel %vm2644, %v5289, %v5291
      %v5293 = vrot.slane %v5281, 1
      %v5294 = vsel %vm2644, %v5291, %v5293
      %v5295 = vrot.slane %v5282, 1
      %v5296 = vsel %vm2644, %v5293, %v5295
      %v5297 = vrot.slane %v5283, 1
      %v5298 = vsel %vm2644, %v5295, %v5297
      %v5299 = vrot.slane %v5284, 1
      %v5300 = vsel %vm2644, %v5297, %v5299
      %v5301 = vrot.slane %v5285, 1
      %v5302 = vsel %vm2644, %v5299, %v5301
      %v5328 = vunpack.c.l.b16 %v5225
      %v5329 = vunpack.c.l.b16 %v5226
      %v5330 = vunpack.c.l.b16 %v5227
      %v5331 = vunpack.c.l.b16 %v5228
      %v5332 = vunpack.c.l.b16 %v5229
      %v5333 = vunpack.c.l.b16 %v5230
      %v5334 = vunpack.c.l.b16 %v5231
      %v5335 = vunpack.c.l.b16 %v5232
      %v5336 = vunpack.c.l.b16 %v5233
      %v5337 = vunpack.c.l.b16 %v5234
      %v5338 = vunpack.c.l.b16 %v5235
      %v5339 = vunpack.c.l.b16 %v5236
      %v5340 = vunpack.c.l.b16 %v5237
      %v5341 = vunpack.c.l.b16 %v5238
      %v5342 = vunpack.c.l.b16 %v5239
      %v5343 = vunpack.c.l.b16 %v5240
      %v5344 = vpack.c.b16 %v5329, %v5328
      %v5345 = vpack.c.b16 %v5331, %v5330
      %v5346 = vpack.c.b16 %v5333, %v5332
      %v5347 = vpack.c.b16 %v5335, %v5334
      %v5348 = vpack.c.b16 %v5337, %v5336
      %v5349 = vpack.c.b16 %v5339, %v5338
      %v5350 = vpack.c.b16 %v5341, %v5340
      %v5351 = vpack.c.b16 %v5343, %v5342
      %5360 = vmatpush.bf16.msra.mxu0 %v5351
      %5361 = vmatpush.bf16.msra.mxu0 %v5350
      %5362 = vmatpush.bf16.msra.mxu0 %v5349
      %5363 = vmatpush.bf16.msra.mxu0 %v5348
      %5364 = vmatpush.bf16.msra.mxu0 %v5347
      %5365 = vmatpush.bf16.msra.mxu0 %v5346
      %5366 = vmatpush.bf16.msra.mxu0 %v5345
      %5367 = vmatpush.bf16.msra.mxu0 %v5344
      %5368 = vmatmul.bf16.gmra.mxu0 %v5288
      %v5369 = vpop.f32.mrf.mxu0
      %v5370 = vadd.f32 0.0, %v5369
      %v5371 = vpop.f32.mrf.mxu0
      %v5372 = vadd.f32 0.0, %v5371
      %5373 = vmatmul.bf16.gmra.mxu0 %v5290
      %v5374 = vpop.f32.mrf.mxu0
      %v5375 = vadd.f32 0.0, %v5374
      %v5376 = vpop.f32.mrf.mxu0
      %v5377 = vadd.f32 0.0, %v5376
      %5378 = vmatmul.bf16.gmra.mxu0 %v5292
      %v5379 = vpop.f32.mrf.mxu0
      %v5380 = vadd.f32 0.0, %v5379
      %v5381 = vpop.f32.mrf.mxu0
      %v5382 = vadd.f32 0.0, %v5381
      %5383 = vmatmul.bf16.gmra.mxu0 %v5294
      %v5384 = vpop.f32.mrf.mxu0
      %v5385 = vadd.f32 0.0, %v5384
      %v5386 = vpop.f32.mrf.mxu0
      %v5387 = vadd.f32 0.0, %v5386
      %5388 = vmatmul.bf16.gmra.mxu0 %v5296
      %v5389 = vpop.f32.mrf.mxu0
      %v5390 = vadd.f32 0.0, %v5389
      %v5391 = vpop.f32.mrf.mxu0
      %v5392 = vadd.f32 0.0, %v5391
      %5393 = vmatmul.bf16.gmra.mxu0 %v5298
      %v5394 = vpop.f32.mrf.mxu0
      %v5395 = vadd.f32 0.0, %v5394
      %v5396 = vpop.f32.mrf.mxu0
      %v5397 = vadd.f32 0.0, %v5396
      %5398 = vmatmul.bf16.gmra.mxu0 %v5300
      %v5399 = vpop.f32.mrf.mxu0
      %v5400 = vadd.f32 0.0, %v5399
      %v5401 = vpop.f32.mrf.mxu0
      %v5402 = vadd.f32 0.0, %v5401
      %5403 = vmatmul.bf16.gmra.mxu0 %v5302
      %v5404 = vpop.f32.mrf.mxu0
      %v5405 = vadd.f32 0.0, %v5404
      %v5406 = vpop.f32.mrf.mxu0
      %v5407 = vadd.f32 0.0, %v5406
      %5408 = vmatmul.bf16.gmra.mxu0 %v5301
      %v5409 = vpop.f32.mrf.mxu0
      %v5410 = vadd.f32 0.0, %v5409
      %v5411 = vpop.f32.mrf.mxu0
      %v5412 = vadd.f32 0.0, %v5411
      %5413 = vdwg.mxu0
      %v5414 = vadd.f32 %v5189, %v5370
      %v5415 = vadd.f32 %v5190, %v5372
      %v5416 = vadd.f32 %v5191, %v5375
      %v5417 = vadd.f32 %v5192, %v5377
      %v5418 = vadd.f32 %v5193, %v5380
      %v5419 = vadd.f32 %v5194, %v5382
      %v5420 = vadd.f32 %v5195, %v5385
      %v5421 = vadd.f32 %v5196, %v5387
      %v5422 = vadd.f32 %v5197, %v5390
      %v5423 = vadd.f32 %v5198, %v5392
      %v5424 = vadd.f32 %v5199, %v5395
      %v5425 = vadd.f32 %v5200, %v5397
      %v5426 = vadd.f32 %v5201, %v5400
      %v5427 = vadd.f32 %v5202, %v5402
      %v5428 = vadd.f32 %v5203, %v5405
      %v5429 = vadd.f32 %v5204, %v5407
      %v5430 = vadd.f32 %v5205, %v5410
      %v5431 = vadd.f32 %v5206, %v5412
      %v5432 = vld [vmem:[#allocation4 + $0x58] sm:$0xf]
      %v5433 = vld [vmem:[%s3 + $0x400] sm:$0xf]
      %v5434 = vld [vmem:[%s3 + $0x404] sm:$0xf]
      %v5435 = vld [vmem:[%s3 + $0x408] sm:$0xf]
      %v5436 = vld [vmem:[%s3 + $0x40c] sm:$0xf]
      %v5437 = vld [vmem:[%s3 + $0x410] sm:$0xf]
      %v5438 = vld [vmem:[%s3 + $0x414] sm:$0xf]
      %v5439 = vld [vmem:[%s3 + $0x418] sm:$0xf]
      %v5440 = vld [vmem:[%s3 + $0x41c] sm:$0xf]
      %v5441 = vld [vmem:[%s3 + $0x420] sm:$0xf]
      %v5442 = vld [vmem:[%s3 + $0x424] sm:$0xf]
      %v5443 = vld [vmem:[%s3 + $0x428] sm:$0xf]
      %v5444 = vld [vmem:[%s3 + $0x42c] sm:$0xf]
      %v5445 = vld [vmem:[%s3 + $0x430] sm:$0xf]
      %v5446 = vld [vmem:[%s3 + $0x434] sm:$0xf]
      %v5447 = vld [vmem:[%s3 + $0x438] sm:$0xf]
      %v5448 = vld [vmem:[%s3 + $0x43c] sm:$0xf]
      %v5450 = vunpack.c.l.b16 %v5432
      %v5451 = vpack.c.b16 %v5450, %v5275
      %v5453 = vshrl.u32 %v5277, 16
      %v5455 = vrot.slane %v5453, 1
      %v5456 = vshll.u32 %v5277, 16
      %v5458 = vrot.slane %v5456, 2
      %v5459 = vor.u32 %v5455, %v5458
      %v5461 = vshrl.u32 %v5278, 16
      %v5463 = vrot.slane %v5461, 1
      %v5464 = vshll.u32 %v5278, 16
      %v5466 = vrot.slane %v5464, 2
      %v5467 = vor.u32 %v5463, %v5466
      %v5468 = vsel %vm2811, %v5459, %v5467
      %v5470 = vshrl.u32 %v5279, 16
      %v5472 = vrot.slane %v5470, 1
      %v5473 = vshll.u32 %v5279, 16
      %v5475 = vrot.slane %v5473, 2
      %v5476 = vor.u32 %v5472, %v5475
      %v5477 = vsel %vm2811, %v5467, %v5476
      %v5479 = vshrl.u32 %v5280, 16
      %v5481 = vrot.slane %v5479, 1
      %v5482 = vshll.u32 %v5280, 16
      %v5484 = vrot.slane %v5482, 2
      %v5485 = vor.u32 %v5481, %v5484
      %v5486 = vsel %vm2811, %v5476, %v5485
      %v5488 = vshrl.u32 %v5281, 16
      %v5490 = vrot.slane %v5488, 1
      %v5491 = vshll.u32 %v5281, 16
      %v5493 = vrot.slane %v5491, 2
      %v5494 = vor.u32 %v5490, %v5493
      %v5495 = vsel %vm2811, %v5485, %v5494
      %v5497 = vshrl.u32 %v5282, 16
      %v5499 = vrot.slane %v5497, 1
      %v5500 = vshll.u32 %v5282, 16
      %v5502 = vrot.slane %v5500, 2
      %v5503 = vor.u32 %v5499, %v5502
      %v5504 = vsel %vm2811, %v5494, %v5503
      %v5506 = vshrl.u32 %v5283, 16
      %v5508 = vrot.slane %v5506, 1
      %v5509 = vshll.u32 %v5283, 16
      %v5511 = vrot.slane %v5509, 2
      %v5512 = vor.u32 %v5508, %v5511
      %v5513 = vsel %vm2811, %v5503, %v5512
      %v5515 = vshrl.u32 %v5284, 16
      %v5517 = vrot.slane %v5515, 1
      %v5518 = vshll.u32 %v5284, 16
      %v5520 = vrot.slane %v5518, 2
      %v5521 = vor.u32 %v5517, %v5520
      %v5522 = vsel %vm2811, %v5512, %v5521
      %v5524 = vshrl.u32 %v5451, 16
      %v5526 = vrot.slane %v5524, 1
      %v5527 = vshll.u32 %v5451, 16
      %v5529 = vrot.slane %v5527, 2
      %v5530 = vor.u32 %v5526, %v5529
      %v5531 = vsel %vm2811, %v5521, %v5530
      %v5557 = vunpack.c.l.b16 %v5433
      %v5558 = vunpack.c.l.b16 %v5434
      %v5559 = vunpack.c.l.b16 %v5435
      %v5560 = vunpack.c.l.b16 %v5436
      %v5561 = vunpack.c.l.b16 %v5437
      %v5562 = vunpack.c.l.b16 %v5438
      %v5563 = vunpack.c.l.b16 %v5439
      %v5564 = vunpack.c.l.b16 %v5440
      %v5565 = vunpack.c.l.b16 %v5441
      %v5566 = vunpack.c.l.b16 %v5442
      %v5567 = vunpack.c.l.b16 %v5443
      %v5568 = vunpack.c.l.b16 %v5444
      %v5569 = vunpack.c.l.b16 %v5445
      %v5570 = vunpack.c.l.b16 %v5446
      %v5571 = vunpack.c.l.b16 %v5447
      %v5572 = vunpack.c.l.b16 %v5448
      %v5573 = vpack.c.b16 %v5558, %v5557
      %v5574 = vpack.c.b16 %v5560, %v5559
      %v5575 = vpack.c.b16 %v5562, %v5561
      %v5576 = vpack.c.b16 %v5564, %v5563
      %v5577 = vpack.c.b16 %v5566, %v5565
      %v5578 = vpack.c.b16 %v5568, %v5567
      %v5579 = vpack.c.b16 %v5570, %v5569
      %v5580 = vpack.c.b16 %v5572, %v5571
      %5589 = vmatpush.bf16.msra.mxu0 %v5580
      %5590 = vmatpush.bf16.msra.mxu0 %v5579
      %5591 = vmatpush.bf16.msra.mxu0 %v5578
      %5592 = vmatpush.bf16.msra.mxu0 %v5577
      %5593 = vmatpush.bf16.msra.mxu0 %v5576
      %5594 = vmatpush.bf16.msra.mxu0 %v5575
      %5595 = vmatpush.bf16.msra.mxu0 %v5574
      %5596 = vmatpush.bf16.msra.mxu0 %v5573
      %5597 = vmatmul.bf16.gmra.mxu0 %v5468
      %v5598 = vpop.f32.mrf.mxu0
      %v5599 = vadd.f32 0.0, %v5598
      %v5600 = vpop.f32.mrf.mxu0
      %v5601 = vadd.f32 0.0, %v5600
      %5602 = vmatmul.bf16.gmra.mxu0 %v5477
      %v5603 = vpop.f32.mrf.mxu0
      %v5604 = vadd.f32 0.0, %v5603
      %v5605 = vpop.f32.mrf.mxu0
      %v5606 = vadd.f32 0.0, %v5605
      %5607 = vmatmul.bf16.gmra.mxu0 %v5486
      %v5608 = vpop.f32.mrf.mxu0
      %v5609 = vadd.f32 0.0, %v5608
      %v5610 = vpop.f32.mrf.mxu0
      %v5611 = vadd.f32 0.0, %v5610
      %5612 = vmatmul.bf16.gmra.mxu0 %v5495
      %v5613 = vpop.f32.mrf.mxu0
      %v5614 = vadd.f32 0.0, %v5613
      %v5615 = vpop.f32.mrf.mxu0
      %v5616 = vadd.f32 0.0, %v5615
      %5617 = vmatmul.bf16.gmra.mxu0 %v5504
      %v5618 = vpop.f32.mrf.mxu0
      %v5619 = vadd.f32 0.0, %v5618
      %v5620 = vpop.f32.mrf.mxu0
      %v5621 = vadd.f32 0.0, %v5620
      %5622 = vmatmul.bf16.gmra.mxu0 %v5513
      %v5623 = vpop.f32.mrf.mxu0
      %v5624 = vadd.f32 0.0, %v5623
      %v5625 = vpop.f32.mrf.mxu0
      %v5626 = vadd.f32 0.0, %v5625
      %5627 = vmatmul.bf16.gmra.mxu0 %v5522
      %v5628 = vpop.f32.mrf.mxu0
      %v5629 = vadd.f32 0.0, %v5628
      %v5630 = vpop.f32.mrf.mxu0
      %v5631 = vadd.f32 0.0, %v5630
      %5632 = vmatmul.bf16.gmra.mxu0 %v5531
      %v5633 = vpop.f32.mrf.mxu0
      %v5634 = vadd.f32 0.0, %v5633
      %v5635 = vpop.f32.mrf.mxu0
      %v5636 = vadd.f32 0.0, %v5635
      %5637 = vmatmul.bf16.gmra.mxu0 %v5530
      %v5638 = vpop.f32.mrf.mxu0
      %v5639 = vadd.f32 0.0, %v5638
      %v5640 = vpop.f32.mrf.mxu0
      %v5641 = vadd.f32 0.0, %v5640
      %5642 = vdwg.mxu0
      %v5643 = vadd.f32 %v5414, %v5599
      %v5644 = vadd.f32 %v5415, %v5601
      %v5645 = vadd.f32 %v5416, %v5604
      %v5646 = vadd.f32 %v5417, %v5606
      %v5647 = vadd.f32 %v5418, %v5609
      %v5648 = vadd.f32 %v5419, %v5611
      %v5649 = vadd.f32 %v5420, %v5614
      %v5650 = vadd.f32 %v5421, %v5616
      %v5651 = vadd.f32 %v5422, %v5619
      %v5652 = vadd.f32 %v5423, %v5621
      %v5653 = vadd.f32 %v5424, %v5624
      %v5654 = vadd.f32 %v5425, %v5626
      %v5655 = vadd.f32 %v5426, %v5629
      %v5656 = vadd.f32 %v5427, %v5631
      %v5657 = vadd.f32 %v5428, %v5634
      %v5658 = vadd.f32 %v5429, %v5636
      %v5659 = vadd.f32 %v5430, %v5639
      %v5660 = vadd.f32 %v5431, %v5641
      %v5661 = vld [vmem:[#allocation4 + $0x14] sm:$0xc]
      %v5662 = vld [vmem:[%s3 + $0x440] sm:$0xf]
      %v5663 = vld [vmem:[%s3 + $0x444] sm:$0xf]
      %v5664 = vld [vmem:[%s3 + $0x448] sm:$0xf]
      %v5665 = vld [vmem:[%s3 + $0x44c] sm:$0xf]
      %v5666 = vld [vmem:[%s3 + $0x450] sm:$0xf]
      %v5667 = vld [vmem:[%s3 + $0x454] sm:$0xf]
      %v5668 = vld [vmem:[%s3 + $0x458] sm:$0xf]
      %v5669 = vld [vmem:[%s3 + $0x45c] sm:$0xf]
      %v5670 = vld [vmem:[%s3 + $0x460] sm:$0xf]
      %v5671 = vld [vmem:[%s3 + $0x464] sm:$0xf]
      %v5672 = vld [vmem:[%s3 + $0x468] sm:$0xf]
      %v5673 = vld [vmem:[%s3 + $0x46c] sm:$0xf]
      %v5674 = vld [vmem:[%s3 + $0x470] sm:$0xf]
      %v5675 = vld [vmem:[%s3 + $0x474] sm:$0xf]
      %v5676 = vld [vmem:[%s3 + $0x478] sm:$0xf]
      %v5677 = vld [vmem:[%s3 + $0x47c] sm:$0xf]
      %v5679 = vunpack.c.l.b16 %v5661
      %v5680 = vpack.c.b16 %v5260, %v5679
      %v5681 = vrot.slane %v5680, 2
      %v5682 = vrot.slane %v5278, 2
      %v5683 = vsel %vm3006, %v5681, %v5682
      %v5684 = vrot.slane %v5279, 2
      %v5685 = vsel %vm3006, %v5682, %v5684
      %v5686 = vrot.slane %v5280, 2
      %v5687 = vsel %vm3006, %v5684, %v5686
      %v5688 = vrot.slane %v5281, 2
      %v5689 = vsel %vm3006, %v5686, %v5688
      %v5690 = vrot.slane %v5282, 2
      %v5691 = vsel %vm3006, %v5688, %v5690
      %v5692 = vrot.slane %v5283, 2
      %v5693 = vsel %vm3006, %v5690, %v5692
      %v5694 = vrot.slane %v5284, 2
      %v5695 = vsel %vm3006, %v5692, %v5694
      %v5696 = vrot.slane %v5451, 2
      %v5697 = vsel %vm3006, %v5694, %v5696
      %v5723 = vunpack.c.l.b16 %v5662
      %v5724 = vunpack.c.l.b16 %v5663
      %v5725 = vunpack.c.l.b16 %v5664
      %v5726 = vunpack.c.l.b16 %v5665
      %v5727 = vunpack.c.l.b16 %v5666
      %v5728 = vunpack.c.l.b16 %v5667
      %v5729 = vunpack.c.l.b16 %v5668
      %v5730 = vunpack.c.l.b16 %v5669
      %v5731 = vunpack.c.l.b16 %v5670
      %v5732 = vunpack.c.l.b16 %v5671
      %v5733 = vunpack.c.l.b16 %v5672
      %v5734 = vunpack.c.l.b16 %v5673
      %v5735 = vunpack.c.l.b16 %v5674
      %v5736 = vunpack.c.l.b16 %v5675
      %v5737 = vunpack.c.l.b16 %v5676
      %v5738 = vunpack.c.l.b16 %v5677
      %v5739 = vpack.c.b16 %v5724, %v5723
      %v5740 = vpack.c.b16 %v5726, %v5725
      %v5741 = vpack.c.b16 %v5728, %v5727
      %v5742 = vpack.c.b16 %v5730, %v5729
      %v5743 = vpack.c.b16 %v5732, %v5731
      %v5744 = vpack.c.b16 %v5734, %v5733
      %v5745 = vpack.c.b16 %v5736, %v5735
      %v5746 = vpack.c.b16 %v5738, %v5737
      %5755 = vmatpush.bf16.msra.mxu0 %v5746
      %5756 = vmatpush.bf16.msra.mxu0 %v5745
      %5757 = vmatpush.bf16.msra.mxu0 %v5744
      %5758 = vmatpush.bf16.msra.mxu0 %v5743
      %5759 = vmatpush.bf16.msra.mxu0 %v5742
      %5760 = vmatpush.bf16.msra.mxu0 %v5741
      %5761 = vmatpush.bf16.msra.mxu0 %v5740
      %5762 = vmatpush.bf16.msra.mxu0 %v5739
      %5763 = vmatmul.bf16.gmra.mxu0 %v5683
      %v5764 = vpop.f32.mrf.mxu0
      %v5765 = vadd.f32 0.0, %v5764
      %v5766 = vpop.f32.mrf.mxu0
      %v5767 = vadd.f32 0.0, %v5766
      %5768 = vmatmul.bf16.gmra.mxu0 %v5685
      %v5769 = vpop.f32.mrf.mxu0
      %v5770 = vadd.f32 0.0, %v5769
      %v5771 = vpop.f32.mrf.mxu0
      %v5772 = vadd.f32 0.0, %v5771
      %5773 = vmatmul.bf16.gmra.mxu0 %v5687
      %v5774 = vpop.f32.mrf.mxu0
      %v5775 = vadd.f32 0.0, %v5774
      %v5776 = vpop.f32.mrf.mxu0
      %v5777 = vadd.f32 0.0, %v5776
      %5778 = vmatmul.bf16.gmra.mxu0 %v5689
      %v5779 = vpop.f32.mrf.mxu0
      %v5780 = vadd.f32 0.0, %v5779
      %v5781 = vpop.f32.mrf.mxu0
      %v5782 = vadd.f32 0.0, %v5781
      %5783 = vmatmul.bf16.gmra.mxu0 %v5691
      %v5784 = vpop.f32.mrf.mxu0
      %v5785 = vadd.f32 0.0, %v5784
      %v5786 = vpop.f32.mrf.mxu0
      %v5787 = vadd.f32 0.0, %v5786
      %5788 = vmatmul.bf16.gmra.mxu0 %v5693
      %v5789 = vpop.f32.mrf.mxu0
      %v5790 = vadd.f32 0.0, %v5789
      %v5791 = vpop.f32.mrf.mxu0
      %v5792 = vadd.f32 0.0, %v5791
      %5793 = vmatmul.bf16.gmra.mxu0 %v5695
      %v5794 = vpop.f32.mrf.mxu0
      %v5795 = vadd.f32 0.0, %v5794
      %v5796 = vpop.f32.mrf.mxu0
      %v5797 = vadd.f32 0.0, %v5796
      %5798 = vmatmul.bf16.gmra.mxu0 %v5697
      %v5799 = vpop.f32.mrf.mxu0
      %v5800 = vadd.f32 0.0, %v5799
      %v5801 = vpop.f32.mrf.mxu0
      %v5802 = vadd.f32 0.0, %v5801
      %5803 = vmatmul.bf16.gmra.mxu0 %v5696
      %v5804 = vpop.f32.mrf.mxu0
      %v5805 = vadd.f32 0.0, %v5804
      %v5806 = vpop.f32.mrf.mxu0
      %v5807 = vadd.f32 0.0, %v5806
      %5808 = vdwg.mxu0
      %v5809 = vadd.f32 %v5643, %v5765
      %v5810 = vadd.f32 %v5644, %v5767
      %v5811 = vadd.f32 %v5645, %v5770
      %v5812 = vadd.f32 %v5646, %v5772
      %v5813 = vadd.f32 %v5647, %v5775
      %v5814 = vadd.f32 %v5648, %v5777
      %v5815 = vadd.f32 %v5649, %v5780
      %v5816 = vadd.f32 %v5650, %v5782
      %v5817 = vadd.f32 %v5651, %v5785
      %v5818 = vadd.f32 %v5652, %v5787
      %v5819 = vadd.f32 %v5653, %v5790
      %v5820 = vadd.f32 %v5654, %v5792
      %v5821 = vadd.f32 %v5655, %v5795
      %v5822 = vadd.f32 %v5656, %v5797
      %v5823 = vadd.f32 %v5657, %v5800
      %v5824 = vadd.f32 %v5658, %v5802
      %v5825 = vadd.f32 %v5659, %v5805
      %v5826 = vadd.f32 %v5660, %v5807
      %v5827 = vld [vmem:[#allocation4 + $0x14] sm:$0xc]
      %v5828 = vld [vmem:[#allocation4 + $0x18] sm:$0xf]
      %v5829 = vld [vmem:[#allocation4 + $0x1c] sm:$0xf]
      %v5830 = vld [vmem:[#allocation4 + $0x20] sm:$0xf]
      %v5831 = vld [vmem:[#allocation4 + $0x24] sm:$0xf]
      %v5832 = vld [vmem:[#allocation4 + $0x28] sm:$0xf]
      %v5833 = vld [vmem:[#allocation4 + $0x2c] sm:$0xf]
      %v5834 = vld [vmem:[#allocation4 + $0x30] sm:$0xf]
      %v5835 = vld [vmem:[#allocation4 + $0x34] sm:$0xf]
      %v5836 = vld [vmem:[#allocation4 + $0x38] sm:$0xf]
      %v5837 = vld [vmem:[#allocation4 + $0x3c] sm:$0xf]
      %v5838 = vld [vmem:[#allocation4 + $0x40] sm:$0xf]
      %v5839 = vld [vmem:[#allocation4 + $0x44] sm:$0xf]
      %v5840 = vld [vmem:[#allocation4 + $0x48] sm:$0xf]
      %v5841 = vld [vmem:[#allocation4 + $0x4c] sm:$0xf]
      %v5842 = vld [vmem:[#allocation4 + $0x50] sm:$0xf]
      %v5843 = vld [vmem:[#allocation4 + $0x54] sm:$0xf]
      %v5844 = vld [vmem:[#allocation4 + $0x58] sm:$0xf]
      %v5845 = vld [vmem:[#allocation4 + $0x5c] sm:$0x1]
      %v5846 = vld [vmem:[%s3 + $0x480] sm:$0xf]
      %v5847 = vld [vmem:[%s3 + $0x484] sm:$0xf]
      %v5848 = vld [vmem:[%s3 + $0x488] sm:$0xf]
      %v5849 = vld [vmem:[%s3 + $0x48c] sm:$0xf]
      %v5850 = vld [vmem:[%s3 + $0x490] sm:$0xf]
      %v5851 = vld [vmem:[%s3 + $0x494] sm:$0xf]
      %v5852 = vld [vmem:[%s3 + $0x498] sm:$0xf]
      %v5853 = vld [vmem:[%s3 + $0x49c] sm:$0xf]
      %v5854 = vld [vmem:[%s3 + $0x4a0] sm:$0xf]
      %v5855 = vld [vmem:[%s3 + $0x4a4] sm:$0xf]
      %v5856 = vld [vmem:[%s3 + $0x4a8] sm:$0xf]
      %v5857 = vld [vmem:[%s3 + $0x4ac] sm:$0xf]
      %v5858 = vld [vmem:[%s3 + $0x4b0] sm:$0xf]
      %v5859 = vld [vmem:[%s3 + $0x4b4] sm:$0xf]
      %v5860 = vld [vmem:[%s3 + $0x4b8] sm:$0xf]
      %v5861 = vld [vmem:[%s3 + $0x4bc] sm:$0xf]
      %v5881 = vunpack.c.l.b16 %v5827
      %v5882 = vunpack.c.l.b16 %v5828
      %v5883 = vunpack.c.l.b16 %v5829
      %v5884 = vunpack.c.l.b16 %v5830
      %v5885 = vunpack.c.l.b16 %v5831
      %v5886 = vunpack.c.l.b16 %v5832
      %v5887 = vunpack.c.l.b16 %v5833
      %v5888 = vunpack.c.l.b16 %v5834
      %v5889 = vunpack.c.l.b16 %v5835
      %v5890 = vunpack.c.l.b16 %v5836
      %v5891 = vunpack.c.l.b16 %v5837
      %v5892 = vunpack.c.l.b16 %v5838
      %v5893 = vunpack.c.l.b16 %v5839
      %v5894 = vunpack.c.l.b16 %v5840
      %v5895 = vunpack.c.l.b16 %v5841
      %v5896 = vunpack.c.l.b16 %v5842
      %v5897 = vunpack.c.l.b16 %v5843
      %v5898 = vunpack.c.l.b16 %v5844
      %v5899 = vunpack.c.l.b16 %v5845
      %v5900 = vpack.c.b16 %v5882, %v5881
      %v5901 = vpack.c.b16 %v5884, %v5883
      %v5902 = vpack.c.b16 %v5886, %v5885
      %v5903 = vpack.c.b16 %v5888, %v5887
      %v5904 = vpack.c.b16 %v5890, %v5889
      %v5905 = vpack.c.b16 %v5892, %v5891
      %v5906 = vpack.c.b16 %v5894, %v5893
      %v5907 = vpack.c.b16 %v5896, %v5895
      %v5908 = vpack.c.b16 %v5898, %v5897
      %v5909 = vpack.c.b16 %v5899, %v5899
      %v5911 = vshrl.u32 %v5900, 16
      %v5913 = vrot.slane %v5911, 2
      %v5914 = vshll.u32 %v5900, 16
      %v5916 = vrot.slane %v5914, 3
      %v5917 = vor.u32 %v5913, %v5916
      %v5919 = vshrl.u32 %v5901, 16
      %v5921 = vrot.slane %v5919, 2
      %v5922 = vshll.u32 %v5901, 16
      %v5924 = vrot.slane %v5922, 3
      %v5925 = vor.u32 %v5921, %v5924
      %v5926 = vsel %vm4472, %v5917, %v5925
      %v5928 = vshrl.u32 %v5902, 16
      %v5930 = vrot.slane %v5928, 2
      %v5931 = vshll.u32 %v5902, 16
      %v5933 = vrot.slane %v5931, 3
      %v5934 = vor.u32 %v5930, %v5933
      %v5935 = vsel %vm4472, %v5925, %v5934
      %v5937 = vshrl.u32 %v5903, 16
      %v5939 = vrot.slane %v5937, 2
      %v5940 = vshll.u32 %v5903, 16
      %v5942 = vrot.slane %v5940, 3
      %v5943 = vor.u32 %v5939, %v5942
      %v5944 = vsel %vm4472, %v5934, %v5943
      %v5946 = vshrl.u32 %v5904, 16
      %v5948 = vrot.slane %v5946, 2
      %v5949 = vshll.u32 %v5904, 16
      %v5951 = vrot.slane %v5949, 3
      %v5952 = vor.u32 %v5948, %v5951
      %v5953 = vsel %vm4472, %v5943, %v5952
      %v5955 = vshrl.u32 %v5905, 16
      %v5957 = vrot.slane %v5955, 2
      %v5958 = vshll.u32 %v5905, 16
      %v5960 = vrot.slane %v5958, 3
      %v5961 = vor.u32 %v5957, %v5960
      %v5962 = vsel %vm4472, %v5952, %v5961
      %v5964 = vshrl.u32 %v5906, 16
      %v5966 = vrot.slane %v5964, 2
      %v5967 = vshll.u32 %v5906, 16
      %v5969 = vrot.slane %v5967, 3
      %v5970 = vor.u32 %v5966, %v5969
      %v5971 = vsel %vm4472, %v5961, %v5970
      %v5973 = vshrl.u32 %v5907, 16
      %v5975 = vrot.slane %v5973, 2
      %v5976 = vshll.u32 %v5907, 16
      %v5978 = vrot.slane %v5976, 3
      %v5979 = vor.u32 %v5975, %v5978
      %v5980 = vsel %vm4472, %v5970, %v5979
      %v5982 = vshrl.u32 %v5908, 16
      %v5984 = vrot.slane %v5982, 2
      %v5985 = vshll.u32 %v5908, 16
      %v5987 = vrot.slane %v5985, 3
      %v5988 = vor.u32 %v5984, %v5987
      %v5989 = vsel %vm4472, %v5979, %v5988
      %v5991 = vshll.u32 %v5909, 16
      %v5993 = vrot.slane %v5991, 3
      %v5994 = vsel %vm4472, %v5988, %v5993
      %v6020 = vunpack.c.l.b16 %v5846
      %v6021 = vunpack.c.l.b16 %v5847
      %v6022 = vunpack.c.l.b16 %v5848
      %v6023 = vunpack.c.l.b16 %v5849
      %v6024 = vunpack.c.l.b16 %v5850
      %v6025 = vunpack.c.l.b16 %v5851
      %v6026 = vunpack.c.l.b16 %v5852
      %v6027 = vunpack.c.l.b16 %v5853
      %v6028 = vunpack.c.l.b16 %v5854
      %v6029 = vunpack.c.l.b16 %v5855
      %v6030 = vunpack.c.l.b16 %v5856
      %v6031 = vunpack.c.l.b16 %v5857
      %v6032 = vunpack.c.l.b16 %v5858
      %v6033 = vunpack.c.l.b16 %v5859
      %v6034 = vunpack.c.l.b16 %v5860
      %v6035 = vunpack.c.l.b16 %v5861
      %v6036 = vpack.c.b16 %v6021, %v6020
      %v6037 = vpack.c.b16 %v6023, %v6022
      %v6038 = vpack.c.b16 %v6025, %v6024
      %v6039 = vpack.c.b16 %v6027, %v6026
      %v6040 = vpack.c.b16 %v6029, %v6028
      %v6041 = vpack.c.b16 %v6031, %v6030
      %v6042 = vpack.c.b16 %v6033, %v6032
      %v6043 = vpack.c.b16 %v6035, %v6034
      %6052 = vmatpush.bf16.msra.mxu0 %v6043
      %6053 = vmatpush.bf16.msra.mxu0 %v6042
      %6054 = vmatpush.bf16.msra.mxu0 %v6041
      %6055 = vmatpush.bf16.msra.mxu0 %v6040
      %6056 = vmatpush.bf16.msra.mxu0 %v6039
      %6057 = vmatpush.bf16.msra.mxu0 %v6038
      %6058 = vmatpush.bf16.msra.mxu0 %v6037
      %6059 = vmatpush.bf16.msra.mxu0 %v6036
      %6060 = vmatmul.bf16.gmra.mxu0 %v5926
      %v6061 = vpop.f32.mrf.mxu0
      %v6062 = vadd.f32 0.0, %v6061
      %v6063 = vpop.f32.mrf.mxu0
      %v6064 = vadd.f32 0.0, %v6063
      %6065 = vmatmul.bf16.gmra.mxu0 %v5935
      %v6066 = vpop.f32.mrf.mxu0
      %v6067 = vadd.f32 0.0, %v6066
      %v6068 = vpop.f32.mrf.mxu0
      %v6069 = vadd.f32 0.0, %v6068
      %6070 = vmatmul.bf16.gmra.mxu0 %v5944
      %v6071 = vpop.f32.mrf.mxu0
      %v6072 = vadd.f32 0.0, %v6071
      %v6073 = vpop.f32.mrf.mxu0
      %v6074 = vadd.f32 0.0, %v6073
      %6075 = vmatmul.bf16.gmra.mxu0 %v5953
      %v6076 = vpop.f32.mrf.mxu0
      %v6077 = vadd.f32 0.0, %v6076
      %v6078 = vpop.f32.mrf.mxu0
      %v6079 = vadd.f32 0.0, %v6078
      %6080 = vmatmul.bf16.gmra.mxu0 %v5962
      %v6081 = vpop.f32.mrf.mxu0
      %v6082 = vadd.f32 0.0, %v6081
      %v6083 = vpop.f32.mrf.mxu0
      %v6084 = vadd.f32 0.0, %v6083
      %6085 = vmatmul.bf16.gmra.mxu0 %v5971
      %v6086 = vpop.f32.mrf.mxu0
      %v6087 = vadd.f32 0.0, %v6086
      %v6088 = vpop.f32.mrf.mxu0
      %v6089 = vadd.f32 0.0, %v6088
      %6090 = vmatmul.bf16.gmra.mxu0 %v5980
      %v6091 = vpop.f32.mrf.mxu0
      %v6092 = vadd.f32 0.0, %v6091
      %v6093 = vpop.f32.mrf.mxu0
      %v6094 = vadd.f32 0.0, %v6093
      %6095 = vmatmul.bf16.gmra.mxu0 %v5989
      %v6096 = vpop.f32.mrf.mxu0
      %v6097 = vadd.f32 0.0, %v6096
      %v6098 = vpop.f32.mrf.mxu0
      %v6099 = vadd.f32 0.0, %v6098
      %6100 = vmatmul.bf16.gmra.mxu0 %v5994
      %v6101 = vpop.f32.mrf.mxu0
      %v6102 = vadd.f32 0.0, %v6101
      %v6103 = vpop.f32.mrf.mxu0
      %v6104 = vadd.f32 0.0, %v6103
      %6105 = vdwg.mxu0
      %v6106 = vadd.f32 %v5809, %v6062
      %v6107 = vadd.f32 %v5810, %v6064
      %v6108 = vadd.f32 %v5811, %v6067
      %v6109 = vadd.f32 %v5812, %v6069
      %v6110 = vadd.f32 %v5813, %v6072
      %v6111 = vadd.f32 %v5814, %v6074
      %v6112 = vadd.f32 %v5815, %v6077
      %v6113 = vadd.f32 %v5816, %v6079
      %v6114 = vadd.f32 %v5817, %v6082
      %v6115 = vadd.f32 %v5818, %v6084
      %v6116 = vadd.f32 %v5819, %v6087
      %v6117 = vadd.f32 %v5820, %v6089
      %v6118 = vadd.f32 %v5821, %v6092
      %v6119 = vadd.f32 %v5822, %v6094
      %v6120 = vadd.f32 %v5823, %v6097
      %v6121 = vadd.f32 %v5824, %v6099
      %v6122 = vadd.f32 %v5825, %v6102
      %v6123 = vadd.f32 %v5826, %v6104
      %v6124 = vld [vmem:[#allocation4 + $0x14] sm:$0x8]
      %v6125 = vld [vmem:[%s3 + $0x4c0] sm:$0xf]
      %v6126 = vld [vmem:[%s3 + $0x4c4] sm:$0xf]
      %v6127 = vld [vmem:[%s3 + $0x4c8] sm:$0xf]
      %v6128 = vld [vmem:[%s3 + $0x4cc] sm:$0xf]
      %v6129 = vld [vmem:[%s3 + $0x4d0] sm:$0xf]
      %v6130 = vld [vmem:[%s3 + $0x4d4] sm:$0xf]
      %v6131 = vld [vmem:[%s3 + $0x4d8] sm:$0xf]
      %v6132 = vld [vmem:[%s3 + $0x4dc] sm:$0xf]
      %v6133 = vld [vmem:[%s3 + $0x4e0] sm:$0xf]
      %v6134 = vld [vmem:[%s3 + $0x4e4] sm:$0xf]
      %v6135 = vld [vmem:[%s3 + $0x4e8] sm:$0xf]
      %v6136 = vld [vmem:[%s3 + $0x4ec] sm:$0xf]
      %v6137 = vld [vmem:[%s3 + $0x4f0] sm:$0xf]
      %v6138 = vld [vmem:[%s3 + $0x4f4] sm:$0xf]
      %v6139 = vld [vmem:[%s3 + $0x4f8] sm:$0xf]
      %v6140 = vld [vmem:[%s3 + $0x4fc] sm:$0xf]
      %v6142 = vunpack.c.l.b16 %v6124
      %v6143 = vpack.c.b16 %v5882, %v6142
      %v6144 = vrot.slane %v6143, 3
      %v6145 = vrot.slane %v5901, 3
      %v6146 = vsel %vm3236, %v6144, %v6145
      %v6147 = vrot.slane %v5902, 3
      %v6148 = vsel %vm3236, %v6145, %v6147
      %v6149 = vrot.slane %v5903, 3
      %v6150 = vsel %vm3236, %v6147, %v6149
      %v6151 = vrot.slane %v5904, 3
      %v6152 = vsel %vm3236, %v6149, %v6151
      %v6153 = vrot.slane %v5905, 3
      %v6154 = vsel %vm3236, %v6151, %v6153
      %v6155 = vrot.slane %v5906, 3
      %v6156 = vsel %vm3236, %v6153, %v6155
      %v6157 = vrot.slane %v5907, 3
      %v6158 = vsel %vm3236, %v6155, %v6157
      %v6159 = vrot.slane %v5908, 3
      %v6160 = vsel %vm3236, %v6157, %v6159
      %v6161 = vrot.slane %v5909, 3
      %v6162 = vsel %vm3236, %v6159, %v6161
      %v6188 = vunpack.c.l.b16 %v6125
      %v6189 = vunpack.c.l.b16 %v6126
      %v6190 = vunpack.c.l.b16 %v6127
      %v6191 = vunpack.c.l.b16 %v6128
      %v6192 = vunpack.c.l.b16 %v6129
      %v6193 = vunpack.c.l.b16 %v6130
      %v6194 = vunpack.c.l.b16 %v6131
      %v6195 = vunpack.c.l.b16 %v6132
      %v6196 = vunpack.c.l.b16 %v6133
      %v6197 = vunpack.c.l.b16 %v6134
      %v6198 = vunpack.c.l.b16 %v6135
      %v6199 = vunpack.c.l.b16 %v6136
      %v6200 = vunpack.c.l.b16 %v6137
      %v6201 = vunpack.c.l.b16 %v6138
      %v6202 = vunpack.c.l.b16 %v6139
      %v6203 = vunpack.c.l.b16 %v6140
      %v6204 = vpack.c.b16 %v6189, %v6188
      %v6205 = vpack.c.b16 %v6191, %v6190
      %v6206 = vpack.c.b16 %v6193, %v6192
      %v6207 = vpack.c.b16 %v6195, %v6194
      %v6208 = vpack.c.b16 %v6197, %v6196
      %v6209 = vpack.c.b16 %v6199, %v6198
      %v6210 = vpack.c.b16 %v6201, %v6200
      %v6211 = vpack.c.b16 %v6203, %v6202
      %6220 = vmatpush.bf16.msra.mxu0 %v6211
      %6221 = vmatpush.bf16.msra.mxu0 %v6210
      %6222 = vmatpush.bf16.msra.mxu0 %v6209
      %6223 = vmatpush.bf16.msra.mxu0 %v6208
      %6224 = vmatpush.bf16.msra.mxu0 %v6207
      %6225 = vmatpush.bf16.msra.mxu0 %v6206
      %6226 = vmatpush.bf16.msra.mxu0 %v6205
      %6227 = vmatpush.bf16.msra.mxu0 %v6204
      %6228 = vmatmul.bf16.gmra.mxu0 %v6146
      %v6229 = vpop.f32.mrf.mxu0
      %v6230 = vadd.f32 0.0, %v6229
      %v6231 = vpop.f32.mrf.mxu0
      %v6232 = vadd.f32 0.0, %v6231
      %6233 = vmatmul.bf16.gmra.mxu0 %v6148
      %v6234 = vpop.f32.mrf.mxu0
      %v6235 = vadd.f32 0.0, %v6234
      %v6236 = vpop.f32.mrf.mxu0
      %v6237 = vadd.f32 0.0, %v6236
      %6238 = vmatmul.bf16.gmra.mxu0 %v6150
      %v6239 = vpop.f32.mrf.mxu0
      %v6240 = vadd.f32 0.0, %v6239
      %v6241 = vpop.f32.mrf.mxu0
      %v6242 = vadd.f32 0.0, %v6241
      %6243 = vmatmul.bf16.gmra.mxu0 %v6152
      %v6244 = vpop.f32.mrf.mxu0
      %v6245 = vadd.f32 0.0, %v6244
      %v6246 = vpop.f32.mrf.mxu0
      %v6247 = vadd.f32 0.0, %v6246
      %6248 = vmatmul.bf16.gmra.mxu0 %v6154
      %v6249 = vpop.f32.mrf.mxu0
      %v6250 = vadd.f32 0.0, %v6249
      %v6251 = vpop.f32.mrf.mxu0
      %v6252 = vadd.f32 0.0, %v6251
      %6253 = vmatmul.bf16.gmra.mxu0 %v6156
      %v6254 = vpop.f32.mrf.mxu0
      %v6255 = vadd.f32 0.0, %v6254
      %v6256 = vpop.f32.mrf.mxu0
      %v6257 = vadd.f32 0.0, %v6256
      %6258 = vmatmul.bf16.gmra.mxu0 %v6158
      %v6259 = vpop.f32.mrf.mxu0
      %v6260 = vadd.f32 0.0, %v6259
      %v6261 = vpop.f32.mrf.mxu0
      %v6262 = vadd.f32 0.0, %v6261
      %6263 = vmatmul.bf16.gmra.mxu0 %v6160
      %v6264 = vpop.f32.mrf.mxu0
      %v6265 = vadd.f32 0.0, %v6264
      %v6266 = vpop.f32.mrf.mxu0
      %v6267 = vadd.f32 0.0, %v6266
      %6268 = vmatmul.bf16.gmra.mxu0 %v6162
      %v6269 = vpop.f32.mrf.mxu0
      %v6270 = vadd.f32 0.0, %v6269
      %v6271 = vpop.f32.mrf.mxu0
      %v6272 = vadd.f32 0.0, %v6271
      %6273 = vdwg.mxu0
      %v6274 = vadd.f32 %v6106, %v6230
      %v6275 = vadd.f32 %v6107, %v6232
      %v6276 = vadd.f32 %v6108, %v6235
      %v6277 = vadd.f32 %v6109, %v6237
      %v6278 = vadd.f32 %v6110, %v6240
      %v6279 = vadd.f32 %v6111, %v6242
      %v6280 = vadd.f32 %v6112, %v6245
      %v6281 = vadd.f32 %v6113, %v6247
      %v6282 = vadd.f32 %v6114, %v6250
      %v6283 = vadd.f32 %v6115, %v6252
      %v6284 = vadd.f32 %v6116, %v6255
      %v6285 = vadd.f32 %v6117, %v6257
      %v6286 = vadd.f32 %v6118, %v6260
      %v6287 = vadd.f32 %v6119, %v6262
      %v6288 = vadd.f32 %v6120, %v6265
      %v6289 = vadd.f32 %v6121, %v6267
      %v6290 = vadd.f32 %v6122, %v6270
      %v6291 = vadd.f32 %v6123, %v6272
      %v6292 = vld [vmem:[#allocation4 + $0x1c] sm:$0xf]
      %v6293 = vld [vmem:[#allocation4 + $0x20] sm:$0xf]
      %v6294 = vld [vmem:[#allocation4 + $0x24] sm:$0xf]
      %v6295 = vld [vmem:[#allocation4 + $0x28] sm:$0xf]
      %v6296 = vld [vmem:[#allocation4 + $0x2c] sm:$0xf]
      %v6297 = vld [vmem:[#allocation4 + $0x30] sm:$0xf]
      %v6298 = vld [vmem:[#allocation4 + $0x34] sm:$0xf]
      %v6299 = vld [vmem:[#allocation4 + $0x38] sm:$0xf]
      %v6300 = vld [vmem:[#allocation4 + $0x3c] sm:$0xf]
      %v6301 = vld [vmem:[#allocation4 + $0x40] sm:$0xf]
      %v6302 = vld [vmem:[#allocation4 + $0x44] sm:$0xf]
      %v6303 = vld [vmem:[#allocation4 + $0x48] sm:$0xf]
      %v6304 = vld [vmem:[#allocation4 + $0x4c] sm:$0xf]
      %v6305 = vld [vmem:[#allocation4 + $0x50] sm:$0xf]
      %v6306 = vld [vmem:[#allocation4 + $0x54] sm:$0xf]
      %v6307 = vld [vmem:[#allocation4 + $0x58] sm:$0xf]
      %v6308 = vld [vmem:[#allocation4 + $0x5c] sm:$0xf]
      %v6309 = vld [vmem:[#allocation4 + $0x60] sm:$0x3]
      %v6310 = vld [vmem:[%s3 + $0x500] sm:$0xf]
      %v6311 = vld [vmem:[%s3 + $0x504] sm:$0xf]
      %v6312 = vld [vmem:[%s3 + $0x508] sm:$0xf]
      %v6313 = vld [vmem:[%s3 + $0x50c] sm:$0xf]
      %v6314 = vld [vmem:[%s3 + $0x510] sm:$0xf]
      %v6315 = vld [vmem:[%s3 + $0x514] sm:$0xf]
      %v6316 = vld [vmem:[%s3 + $0x518] sm:$0xf]
      %v6317 = vld [vmem:[%s3 + $0x51c] sm:$0xf]
      %v6318 = vld [vmem:[%s3 + $0x520] sm:$0xf]
      %v6319 = vld [vmem:[%s3 + $0x524] sm:$0xf]
      %v6320 = vld [vmem:[%s3 + $0x528] sm:$0xf]
      %v6321 = vld [vmem:[%s3 + $0x52c] sm:$0xf]
      %v6322 = vld [vmem:[%s3 + $0x530] sm:$0xf]
      %v6323 = vld [vmem:[%s3 + $0x534] sm:$0xf]
      %v6324 = vld [vmem:[%s3 + $0x538] sm:$0xf]
      %v6325 = vld [vmem:[%s3 + $0x53c] sm:$0xf]
      %v6344 = vunpack.c.l.b16 %v6292
      %v6345 = vunpack.c.l.b16 %v6293
      %v6346 = vunpack.c.l.b16 %v6294
      %v6347 = vunpack.c.l.b16 %v6295
      %v6348 = vunpack.c.l.b16 %v6296
      %v6349 = vunpack.c.l.b16 %v6297
      %v6350 = vunpack.c.l.b16 %v6298
      %v6351 = vunpack.c.l.b16 %v6299
      %v6352 = vunpack.c.l.b16 %v6300
      %v6353 = vunpack.c.l.b16 %v6301
      %v6354 = vunpack.c.l.b16 %v6302
      %v6355 = vunpack.c.l.b16 %v6303
      %v6356 = vunpack.c.l.b16 %v6304
      %v6357 = vunpack.c.l.b16 %v6305
      %v6358 = vunpack.c.l.b16 %v6306
      %v6359 = vunpack.c.l.b16 %v6307
      %v6360 = vunpack.c.l.b16 %v6308
      %v6361 = vunpack.c.l.b16 %v6309
      %v6362 = vpack.c.b16 %v6345, %v6344
      %v6363 = vpack.c.b16 %v6347, %v6346
      %v6364 = vpack.c.b16 %v6349, %v6348
      %v6365 = vpack.c.b16 %v6351, %v6350
      %v6366 = vpack.c.b16 %v6353, %v6352
      %v6367 = vpack.c.b16 %v6355, %v6354
      %v6368 = vpack.c.b16 %v6357, %v6356
      %v6369 = vpack.c.b16 %v6359, %v6358
      %v6370 = vpack.c.b16 %v6361, %v6360
      %v6396 = vunpack.c.l.b16 %v6310
      %v6397 = vunpack.c.l.b16 %v6311
      %v6398 = vunpack.c.l.b16 %v6312
      %v6399 = vunpack.c.l.b16 %v6313
      %v6400 = vunpack.c.l.b16 %v6314
      %v6401 = vunpack.c.l.b16 %v6315
      %v6402 = vunpack.c.l.b16 %v6316
      %v6403 = vunpack.c.l.b16 %v6317
      %v6404 = vunpack.c.l.b16 %v6318
      %v6405 = vunpack.c.l.b16 %v6319
      %v6406 = vunpack.c.l.b16 %v6320
      %v6407 = vunpack.c.l.b16 %v6321
      %v6408 = vunpack.c.l.b16 %v6322
      %v6409 = vunpack.c.l.b16 %v6323
      %v6410 = vunpack.c.l.b16 %v6324
      %v6411 = vunpack.c.l.b16 %v6325
      %v6412 = vpack.c.b16 %v6397, %v6396
      %v6413 = vpack.c.b16 %v6399, %v6398
      %v6414 = vpack.c.b16 %v6401, %v6400
      %v6415 = vpack.c.b16 %v6403, %v6402
      %v6416 = vpack.c.b16 %v6405, %v6404
      %v6417 = vpack.c.b16 %v6407, %v6406
      %v6418 = vpack.c.b16 %v6409, %v6408
      %v6419 = vpack.c.b16 %v6411, %v6410
      %6428 = vmatpush.bf16.msra.mxu0 %v6419
      %6429 = vmatpush.bf16.msra.mxu0 %v6418
      %6430 = vmatpush.bf16.msra.mxu0 %v6417
      %6431 = vmatpush.bf16.msra.mxu0 %v6416
      %6432 = vmatpush.bf16.msra.mxu0 %v6415
      %6433 = vmatpush.bf16.msra.mxu0 %v6414
      %6434 = vmatpush.bf16.msra.mxu0 %v6413
      %6435 = vmatpush.bf16.msra.mxu0 %v6412
      %6436 = vmatmul.bf16.gmra.mxu0 %v6362
      %v6437 = vpop.f32.mrf.mxu0
      %v6438 = vadd.f32 0.0, %v6437
      %v6439 = vpop.f32.mrf.mxu0
      %v6440 = vadd.f32 0.0, %v6439
      %6441 = vmatmul.bf16.gmra.mxu0 %v6363
      %v6442 = vpop.f32.mrf.mxu0
      %v6443 = vadd.f32 0.0, %v6442
      %v6444 = vpop.f32.mrf.mxu0
      %v6445 = vadd.f32 0.0, %v6444
      %6446 = vmatmul.bf16.gmra.mxu0 %v6364
      %v6447 = vpop.f32.mrf.mxu0
      %v6448 = vadd.f32 0.0, %v6447
      %v6449 = vpop.f32.mrf.mxu0
      %v6450 = vadd.f32 0.0, %v6449
      %6451 = vmatmul.bf16.gmra.mxu0 %v6365
      %v6452 = vpop.f32.mrf.mxu0
      %v6453 = vadd.f32 0.0, %v6452
      %v6454 = vpop.f32.mrf.mxu0
      %v6455 = vadd.f32 0.0, %v6454
      %6456 = vmatmul.bf16.gmra.mxu0 %v6366
      %v6457 = vpop.f32.mrf.mxu0
      %v6458 = vadd.f32 0.0, %v6457
      %v6459 = vpop.f32.mrf.mxu0
      %v6460 = vadd.f32 0.0, %v6459
      %6461 = vmatmul.bf16.gmra.mxu0 %v6367
      %v6462 = vpop.f32.mrf.mxu0
      %v6463 = vadd.f32 0.0, %v6462
      %v6464 = vpop.f32.mrf.mxu0
      %v6465 = vadd.f32 0.0, %v6464
      %6466 = vmatmul.bf16.gmra.mxu0 %v6368
      %v6467 = vpop.f32.mrf.mxu0
      %v6468 = vadd.f32 0.0, %v6467
      %v6469 = vpop.f32.mrf.mxu0
      %v6470 = vadd.f32 0.0, %v6469
      %6471 = vmatmul.bf16.gmra.mxu0 %v6369
      %v6472 = vpop.f32.mrf.mxu0
      %v6473 = vadd.f32 0.0, %v6472
      %v6474 = vpop.f32.mrf.mxu0
      %v6475 = vadd.f32 0.0, %v6474
      %6476 = vmatmul.bf16.gmra.mxu0 %v6370
      %v6477 = vpop.f32.mrf.mxu0
      %v6478 = vadd.f32 0.0, %v6477
      %v6479 = vpop.f32.mrf.mxu0
      %v6480 = vadd.f32 0.0, %v6479
      %6481 = vdwg.mxu0
      %v6482 = vadd.f32 %v6274, %v6438
      %v6483 = vadd.f32 %v6275, %v6440
      %v6484 = vadd.f32 %v6276, %v6443
      %v6485 = vadd.f32 %v6277, %v6445
      %v6486 = vadd.f32 %v6278, %v6448
      %v6487 = vadd.f32 %v6279, %v6450
      %v6488 = vadd.f32 %v6280, %v6453
      %v6489 = vadd.f32 %v6281, %v6455
      %v6490 = vadd.f32 %v6282, %v6458
      %v6491 = vadd.f32 %v6283, %v6460
      %v6492 = vadd.f32 %v6284, %v6463
      %v6493 = vadd.f32 %v6285, %v6465
      %v6494 = vadd.f32 %v6286, %v6468
      %v6495 = vadd.f32 %v6287, %v6470
      %v6496 = vadd.f32 %v6288, %v6473
      %v6497 = vadd.f32 %v6289, %v6475
      %v6498 = vadd.f32 %v6290, %v6478
      %v6499 = vadd.f32 %v6291, %v6480
      %v6500 = vld [vmem:[#allocation4 + $0x60] sm:$0x7]
      %v6501 = vld [vmem:[%s3 + $0x540] sm:$0xf]
      %v6502 = vld [vmem:[%s3 + $0x544] sm:$0xf]
      %v6503 = vld [vmem:[%s3 + $0x548] sm:$0xf]
      %v6504 = vld [vmem:[%s3 + $0x54c] sm:$0xf]
      %v6505 = vld [vmem:[%s3 + $0x550] sm:$0xf]
      %v6506 = vld [vmem:[%s3 + $0x554] sm:$0xf]
      %v6507 = vld [vmem:[%s3 + $0x558] sm:$0xf]
      %v6508 = vld [vmem:[%s3 + $0x55c] sm:$0xf]
      %v6509 = vld [vmem:[%s3 + $0x560] sm:$0xf]
      %v6510 = vld [vmem:[%s3 + $0x564] sm:$0xf]
      %v6511 = vld [vmem:[%s3 + $0x568] sm:$0xf]
      %v6512 = vld [vmem:[%s3 + $0x56c] sm:$0xf]
      %v6513 = vld [vmem:[%s3 + $0x570] sm:$0xf]
      %v6514 = vld [vmem:[%s3 + $0x574] sm:$0xf]
      %v6515 = vld [vmem:[%s3 + $0x578] sm:$0xf]
      %v6516 = vld [vmem:[%s3 + $0x57c] sm:$0xf]
      %v6518 = vunpack.c.l.b16 %v6500
      %v6519 = vpack.c.b16 %v6518, %v6360
      %v6521 = vshrl.u32 %v6362, 16
      %v6523 = vshll.u32 %v6362, 16
      %v6525 = vrot.slane %v6523, 1
      %v6526 = vor.u32 %v6521, %v6525
      %v6528 = vshll.u32 %v6363, 16
      %v6530 = vrot.slane %v6528, 1
      %v6531 = vsel %vm2327, %v6526, %v6530
      %v6532 = vshrl.u32 %v6363, 16
      %v6534 = vor.u32 %v6532, %v6530
      %v6536 = vshll.u32 %v6364, 16
      %v6538 = vrot.slane %v6536, 1
      %v6539 = vsel %vm2327, %v6534, %v6538
      %v6540 = vshrl.u32 %v6364, 16
      %v6542 = vor.u32 %v6540, %v6538
      %v6544 = vshll.u32 %v6365, 16
      %v6546 = vrot.slane %v6544, 1
      %v6547 = vsel %vm2327, %v6542, %v6546
      %v6548 = vshrl.u32 %v6365, 16
      %v6550 = vor.u32 %v6548, %v6546
      %v6552 = vshll.u32 %v6366, 16
      %v6554 = vrot.slane %v6552, 1
      %v6555 = vsel %vm2327, %v6550, %v6554
      %v6556 = vshrl.u32 %v6366, 16
      %v6558 = vor.u32 %v6556, %v6554
      %v6560 = vshll.u32 %v6367, 16
      %v6562 = vrot.slane %v6560, 1
      %v6563 = vsel %vm2327, %v6558, %v6562
      %v6564 = vshrl.u32 %v6367, 16
      %v6566 = vor.u32 %v6564, %v6562
      %v6568 = vshll.u32 %v6368, 16
      %v6570 = vrot.slane %v6568, 1
      %v6571 = vsel %vm2327, %v6566, %v6570
      %v6572 = vshrl.u32 %v6368, 16
      %v6574 = vor.u32 %v6572, %v6570
      %v6576 = vshll.u32 %v6369, 16
      %v6578 = vrot.slane %v6576, 1
      %v6579 = vsel %vm2327, %v6574, %v6578
      %v6580 = vshrl.u32 %v6369, 16
      %v6582 = vor.u32 %v6580, %v6578
      %v6584 = vshll.u32 %v6519, 16
      %v6586 = vrot.slane %v6584, 1
      %v6587 = vsel %vm2327, %v6582, %v6586
      %v6588 = vshrl.u32 %v6519, 16
      %v6590 = vor.u32 %v6588, %v6586
      %v6616 = vunpack.c.l.b16 %v6501
      %v6617 = vunpack.c.l.b16 %v6502
      %v6618 = vunpack.c.l.b16 %v6503
      %v6619 = vunpack.c.l.b16 %v6504
      %v6620 = vunpack.c.l.b16 %v6505
      %v6621 = vunpack.c.l.b16 %v6506
      %v6622 = vunpack.c.l.b16 %v6507
      %v6623 = vunpack.c.l.b16 %v6508
      %v6624 = vunpack.c.l.b16 %v6509
      %v6625 = vunpack.c.l.b16 %v6510
      %v6626 = vunpack.c.l.b16 %v6511
      %v6627 = vunpack.c.l.b16 %v6512
      %v6628 = vunpack.c.l.b16 %v6513
      %v6629 = vunpack.c.l.b16 %v6514
      %v6630 = vunpack.c.l.b16 %v6515
      %v6631 = vunpack.c.l.b16 %v6516
      %v6632 = vpack.c.b16 %v6617, %v6616
      %v6633 = vpack.c.b16 %v6619, %v6618
      %v6634 = vpack.c.b16 %v6621, %v6620
      %v6635 = vpack.c.b16 %v6623, %v6622
      %v6636 = vpack.c.b16 %v6625, %v6624
      %v6637 = vpack.c.b16 %v6627, %v6626
      %v6638 = vpack.c.b16 %v6629, %v6628
      %v6639 = vpack.c.b16 %v6631, %v6630
      %6648 = vmatpush.bf16.msra.mxu0 %v6639
      %6649 = vmatpush.bf16.msra.mxu0 %v6638
      %6650 = vmatpush.bf16.msra.mxu0 %v6637
      %6651 = vmatpush.bf16.msra.mxu0 %v6636
      %6652 = vmatpush.bf16.msra.mxu0 %v6635
      %6653 = vmatpush.bf16.msra.mxu0 %v6634
      %6654 = vmatpush.bf16.msra.mxu0 %v6633
      %6655 = vmatpush.bf16.msra.mxu0 %v6632
      %6656 = vmatmul.bf16.gmra.mxu0 %v6531
      %v6657 = vpop.f32.mrf.mxu0
      %v6658 = vadd.f32 0.0, %v6657
      %v6659 = vpop.f32.mrf.mxu0
      %v6660 = vadd.f32 0.0, %v6659
      %6661 = vmatmul.bf16.gmra.mxu0 %v6539
      %v6662 = vpop.f32.mrf.mxu0
      %v6663 = vadd.f32 0.0, %v6662
      %v6664 = vpop.f32.mrf.mxu0
      %v6665 = vadd.f32 0.0, %v6664
      %6666 = vmatmul.bf16.gmra.mxu0 %v6547
      %v6667 = vpop.f32.mrf.mxu0
      %v6668 = vadd.f32 0.0, %v6667
      %v6669 = vpop.f32.mrf.mxu0
      %v6670 = vadd.f32 0.0, %v6669
      %6671 = vmatmul.bf16.gmra.mxu0 %v6555
      %v6672 = vpop.f32.mrf.mxu0
      %v6673 = vadd.f32 0.0, %v6672
      %v6674 = vpop.f32.mrf.mxu0
      %v6675 = vadd.f32 0.0, %v6674
      %6676 = vmatmul.bf16.gmra.mxu0 %v6563
      %v6677 = vpop.f32.mrf.mxu0
      %v6678 = vadd.f32 0.0, %v6677
      %v6679 = vpop.f32.mrf.mxu0
      %v6680 = vadd.f32 0.0, %v6679
      %6681 = vmatmul.bf16.gmra.mxu0 %v6571
      %v6682 = vpop.f32.mrf.mxu0
      %v6683 = vadd.f32 0.0, %v6682
      %v6684 = vpop.f32.mrf.mxu0
      %v6685 = vadd.f32 0.0, %v6684
      %6686 = vmatmul.bf16.gmra.mxu0 %v6579
      %v6687 = vpop.f32.mrf.mxu0
      %v6688 = vadd.f32 0.0, %v6687
      %v6689 = vpop.f32.mrf.mxu0
      %v6690 = vadd.f32 0.0, %v6689
      %6691 = vmatmul.bf16.gmra.mxu0 %v6587
      %v6692 = vpop.f32.mrf.mxu0
      %v6693 = vadd.f32 0.0, %v6692
      %v6694 = vpop.f32.mrf.mxu0
      %v6695 = vadd.f32 0.0, %v6694
      %6696 = vmatmul.bf16.gmra.mxu0 %v6590
      %v6697 = vpop.f32.mrf.mxu0
      %v6698 = vadd.f32 0.0, %v6697
      %v6699 = vpop.f32.mrf.mxu0
      %v6700 = vadd.f32 0.0, %v6699
      %6701 = vdwg.mxu0
      %v6702 = vadd.f32 %v6482, %v6658
      %v6703 = vadd.f32 %v6483, %v6660
      %v6704 = vadd.f32 %v6484, %v6663
      %v6705 = vadd.f32 %v6485, %v6665
      %v6706 = vadd.f32 %v6486, %v6668
      %v6707 = vadd.f32 %v6487, %v6670
      %v6708 = vadd.f32 %v6488, %v6673
      %v6709 = vadd.f32 %v6489, %v6675
      %v6710 = vadd.f32 %v6490, %v6678
      %v6711 = vadd.f32 %v6491, %v6680
      %v6712 = vadd.f32 %v6492, %v6683
      %v6713 = vadd.f32 %v6493, %v6685
      %v6714 = vadd.f32 %v6494, %v6688
      %v6715 = vadd.f32 %v6495, %v6690
      %v6716 = vadd.f32 %v6496, %v6693
      %v6717 = vadd.f32 %v6497, %v6695
      %v6718 = vadd.f32 %v6498, %v6698
      %v6719 = vadd.f32 %v6499, %v6700
      %v6720 = vld [vmem:[#allocation4 + $0x1c] sm:$0xe]
      %v6721 = vld [vmem:[%s3 + $0x580] sm:$0xf]
      %v6722 = vld [vmem:[%s3 + $0x584] sm:$0xf]
      %v6723 = vld [vmem:[%s3 + $0x588] sm:$0xf]
      %v6724 = vld [vmem:[%s3 + $0x58c] sm:$0xf]
      %v6725 = vld [vmem:[%s3 + $0x590] sm:$0xf]
      %v6726 = vld [vmem:[%s3 + $0x594] sm:$0xf]
      %v6727 = vld [vmem:[%s3 + $0x598] sm:$0xf]
      %v6728 = vld [vmem:[%s3 + $0x59c] sm:$0xf]
      %v6729 = vld [vmem:[%s3 + $0x5a0] sm:$0xf]
      %v6730 = vld [vmem:[%s3 + $0x5a4] sm:$0xf]
      %v6731 = vld [vmem:[%s3 + $0x5a8] sm:$0xf]
      %v6732 = vld [vmem:[%s3 + $0x5ac] sm:$0xf]
      %v6733 = vld [vmem:[%s3 + $0x5b0] sm:$0xf]
      %v6734 = vld [vmem:[%s3 + $0x5b4] sm:$0xf]
      %v6735 = vld [vmem:[%s3 + $0x5b8] sm:$0xf]
      %v6736 = vld [vmem:[%s3 + $0x5bc] sm:$0xf]
      %v6738 = vunpack.c.l.b16 %v6720
      %v6739 = vpack.c.b16 %v6345, %v6738
      %v6740 = vrot.slane %v6739, 1
      %v6741 = vrot.slane %v6363, 1
      %v6742 = vsel %vm2644, %v6740, %v6741
      %v6743 = vrot.slane %v6364, 1
      %v6744 = vsel %vm2644, %v6741, %v6743
      %v6745 = vrot.slane %v6365, 1
      %v6746 = vsel %vm2644, %v6743, %v6745
      %v6747 = vrot.slane %v6366, 1
      %v6748 = vsel %vm2644, %v6745, %v6747
      %v6749 = vrot.slane %v6367, 1
      %v6750 = vsel %vm2644, %v6747, %v6749
      %v6751 = vrot.slane %v6368, 1
      %v6752 = vsel %vm2644, %v6749, %v6751
      %v6753 = vrot.slane %v6369, 1
      %v6754 = vsel %vm2644, %v6751, %v6753
      %v6755 = vrot.slane %v6519, 1
      %v6756 = vsel %vm2644, %v6753, %v6755
      %v6782 = vunpack.c.l.b16 %v6721
      %v6783 = vunpack.c.l.b16 %v6722
      %v6784 = vunpack.c.l.b16 %v6723
      %v6785 = vunpack.c.l.b16 %v6724
      %v6786 = vunpack.c.l.b16 %v6725
      %v6787 = vunpack.c.l.b16 %v6726
      %v6788 = vunpack.c.l.b16 %v6727
      %v6789 = vunpack.c.l.b16 %v6728
      %v6790 = vunpack.c.l.b16 %v6729
      %v6791 = vunpack.c.l.b16 %v6730
      %v6792 = vunpack.c.l.b16 %v6731
      %v6793 = vunpack.c.l.b16 %v6732
      %v6794 = vunpack.c.l.b16 %v6733
      %v6795 = vunpack.c.l.b16 %v6734
      %v6796 = vunpack.c.l.b16 %v6735
      %v6797 = vunpack.c.l.b16 %v6736
      %v6798 = vpack.c.b16 %v6783, %v6782
      %v6799 = vpack.c.b16 %v6785, %v6784
      %v6800 = vpack.c.b16 %v6787, %v6786
      %v6801 = vpack.c.b16 %v6789, %v6788
      %v6802 = vpack.c.b16 %v6791, %v6790
      %v6803 = vpack.c.b16 %v6793, %v6792
      %v6804 = vpack.c.b16 %v6795, %v6794
      %v6805 = vpack.c.b16 %v6797, %v6796
      %6814 = vmatpush.bf16.msra.mxu0 %v6805
      %6815 = vmatpush.bf16.msra.mxu0 %v6804
      %6816 = vmatpush.bf16.msra.mxu0 %v6803
      %6817 = vmatpush.bf16.msra.mxu0 %v6802
      %6818 = vmatpush.bf16.msra.mxu0 %v6801
      %6819 = vmatpush.bf16.msra.mxu0 %v6800
      %6820 = vmatpush.bf16.msra.mxu0 %v6799
      %6821 = vmatpush.bf16.msra.mxu0 %v6798
      %6822 = vmatmul.bf16.gmra.mxu0 %v6742
      %v6823 = vpop.f32.mrf.mxu0
      %v6824 = vadd.f32 0.0, %v6823
      %v6825 = vpop.f32.mrf.mxu0
      %v6826 = vadd.f32 0.0, %v6825
      %6827 = vmatmul.bf16.gmra.mxu0 %v6744
      %v6828 = vpop.f32.mrf.mxu0
      %v6829 = vadd.f32 0.0, %v6828
      %v6830 = vpop.f32.mrf.mxu0
      %v6831 = vadd.f32 0.0, %v6830
      %6832 = vmatmul.bf16.gmra.mxu0 %v6746
      %v6833 = vpop.f32.mrf.mxu0
      %v6834 = vadd.f32 0.0, %v6833
      %v6835 = vpop.f32.mrf.mxu0
      %v6836 = vadd.f32 0.0, %v6835
      %6837 = vmatmul.bf16.gmra.mxu0 %v6748
      %v6838 = vpop.f32.mrf.mxu0
      %v6839 = vadd.f32 0.0, %v6838
      %v6840 = vpop.f32.mrf.mxu0
      %v6841 = vadd.f32 0.0, %v6840
      %6842 = vmatmul.bf16.gmra.mxu0 %v6750
      %v6843 = vpop.f32.mrf.mxu0
      %v6844 = vadd.f32 0.0, %v6843
      %v6845 = vpop.f32.mrf.mxu0
      %v6846 = vadd.f32 0.0, %v6845
      %6847 = vmatmul.bf16.gmra.mxu0 %v6752
      %v6848 = vpop.f32.mrf.mxu0
      %v6849 = vadd.f32 0.0, %v6848
      %v6850 = vpop.f32.mrf.mxu0
      %v6851 = vadd.f32 0.0, %v6850
      %6852 = vmatmul.bf16.gmra.mxu0 %v6754
      %v6853 = vpop.f32.mrf.mxu0
      %v6854 = vadd.f32 0.0, %v6853
      %v6855 = vpop.f32.mrf.mxu0
      %v6856 = vadd.f32 0.0, %v6855
      %6857 = vmatmul.bf16.gmra.mxu0 %v6756
      %v6858 = vpop.f32.mrf.mxu0
      %v6859 = vadd.f32 0.0, %v6858
      %v6860 = vpop.f32.mrf.mxu0
      %v6861 = vadd.f32 0.0, %v6860
      %6862 = vmatmul.bf16.gmra.mxu0 %v6755
      %v6863 = vpop.f32.mrf.mxu0
      %v6864 = vadd.f32 0.0, %v6863
      %v6865 = vpop.f32.mrf.mxu0
      %v6866 = vadd.f32 0.0, %v6865
      %6867 = vdwg.mxu0
      %v6868 = vadd.f32 %v6702, %v6824
      %v6869 = vadd.f32 %v6703, %v6826
      %v6870 = vadd.f32 %v6704, %v6829
      %v6871 = vadd.f32 %v6705, %v6831
      %v6872 = vadd.f32 %v6706, %v6834
      %v6873 = vadd.f32 %v6707, %v6836
      %v6874 = vadd.f32 %v6708, %v6839
      %v6875 = vadd.f32 %v6709, %v6841
      %v6876 = vadd.f32 %v6710, %v6844
      %v6877 = vadd.f32 %v6711, %v6846
      %v6878 = vadd.f32 %v6712, %v6849
      %v6879 = vadd.f32 %v6713, %v6851
      %v6880 = vadd.f32 %v6714, %v6854
      %v6881 = vadd.f32 %v6715, %v6856
      %v6882 = vadd.f32 %v6716, %v6859
      %v6883 = vadd.f32 %v6717, %v6861
      %v6884 = vadd.f32 %v6718, %v6864
      %v6885 = vadd.f32 %v6719, %v6866
      %v6886 = vld [vmem:[#allocation4 + $0x60] sm:$0xf]
      %v6887 = vld [vmem:[%s3 + $0x5c0] sm:$0xf]
      %v6888 = vld [vmem:[%s3 + $0x5c4] sm:$0xf]
      %v6889 = vld [vmem:[%s3 + $0x5c8] sm:$0xf]
      %v6890 = vld [vmem:[%s3 + $0x5cc] sm:$0xf]
      %v6891 = vld [vmem:[%s3 + $0x5d0] sm:$0xf]
      %v6892 = vld [vmem:[%s3 + $0x5d4] sm:$0xf]
      %v6893 = vld [vmem:[%s3 + $0x5d8] sm:$0xf]
      %v6894 = vld [vmem:[%s3 + $0x5dc] sm:$0xf]
      %v6895 = vld [vmem:[%s3 + $0x5e0] sm:$0xf]
      %v6896 = vld [vmem:[%s3 + $0x5e4] sm:$0xf]
      %v6897 = vld [vmem:[%s3 + $0x5e8] sm:$0xf]
      %v6898 = vld [vmem:[%s3 + $0x5ec] sm:$0xf]
      %v6899 = vld [vmem:[%s3 + $0x5f0] sm:$0xf]
      %v6900 = vld [vmem:[%s3 + $0x5f4] sm:$0xf]
      %v6901 = vld [vmem:[%s3 + $0x5f8] sm:$0xf]
      %v6902 = vld [vmem:[%s3 + $0x5fc] sm:$0xf]
      %v6904 = vunpack.c.l.b16 %v6886
      %v6905 = vpack.c.b16 %v6904, %v6360
      %v6907 = vshrl.u32 %v6739, 16
      %v6909 = vrot.slane %v6907, 1
      %v6910 = vshll.u32 %v6739, 16
      %v6912 = vrot.slane %v6910, 2
      %v6913 = vor.u32 %v6909, %v6912
      %v6914 = vrot.slane %v6532, 1
      %v6915 = vrot.slane %v6528, 2
      %v6916 = vor.u32 %v6914, %v6915
      %v6917 = vsel %vm2811, %v6913, %v6916
      %v6918 = vrot.slane %v6540, 1
      %v6919 = vrot.slane %v6536, 2
      %v6920 = vor.u32 %v6918, %v6919
      %v6921 = vsel %vm2811, %v6916, %v6920
      %v6922 = vrot.slane %v6548, 1
      %v6923 = vrot.slane %v6544, 2
      %v6924 = vor.u32 %v6922, %v6923
      %v6925 = vsel %vm2811, %v6920, %v6924
      %v6926 = vrot.slane %v6556, 1
      %v6927 = vrot.slane %v6552, 2
      %v6928 = vor.u32 %v6926, %v6927
      %v6929 = vsel %vm2811, %v6924, %v6928
      %v6930 = vrot.slane %v6564, 1
      %v6931 = vrot.slane %v6560, 2
      %v6932 = vor.u32 %v6930, %v6931
      %v6933 = vsel %vm2811, %v6928, %v6932
      %v6934 = vrot.slane %v6572, 1
      %v6935 = vrot.slane %v6568, 2
      %v6936 = vor.u32 %v6934, %v6935
      %v6937 = vsel %vm2811, %v6932, %v6936
      %v6938 = vrot.slane %v6580, 1
      %v6939 = vrot.slane %v6576, 2
      %v6940 = vor.u32 %v6938, %v6939
      %v6941 = vsel %vm2811, %v6936, %v6940
      %v6943 = vshrl.u32 %v6905, 16
      %v6945 = vrot.slane %v6943, 1
      %v6946 = vshll.u32 %v6905, 16
      %v6948 = vrot.slane %v6946, 2
      %v6949 = vor.u32 %v6945, %v6948
      %v6950 = vsel %vm2811, %v6940, %v6949
      %v6976 = vunpack.c.l.b16 %v6887
      %v6977 = vunpack.c.l.b16 %v6888
      %v6978 = vunpack.c.l.b16 %v6889
      %v6979 = vunpack.c.l.b16 %v6890
      %v6980 = vunpack.c.l.b16 %v6891
      %v6981 = vunpack.c.l.b16 %v6892
      %v6982 = vunpack.c.l.b16 %v6893
      %v6983 = vunpack.c.l.b16 %v6894
      %v6984 = vunpack.c.l.b16 %v6895
      %v6985 = vunpack.c.l.b16 %v6896
      %v6986 = vunpack.c.l.b16 %v6897
      %v6987 = vunpack.c.l.b16 %v6898
      %v6988 = vunpack.c.l.b16 %v6899
      %v6989 = vunpack.c.l.b16 %v6900
      %v6990 = vunpack.c.l.b16 %v6901
      %v6991 = vunpack.c.l.b16 %v6902
      %v6992 = vpack.c.b16 %v6977, %v6976
      %v6993 = vpack.c.b16 %v6979, %v6978
      %v6994 = vpack.c.b16 %v6981, %v6980
      %v6995 = vpack.c.b16 %v6983, %v6982
      %v6996 = vpack.c.b16 %v6985, %v6984
      %v6997 = vpack.c.b16 %v6987, %v6986
      %v6998 = vpack.c.b16 %v6989, %v6988
      %v6999 = vpack.c.b16 %v6991, %v6990
      %7008 = vmatpush.bf16.msra.mxu0 %v6999
      %7009 = vmatpush.bf16.msra.mxu0 %v6998
      %7010 = vmatpush.bf16.msra.mxu0 %v6997
      %7011 = vmatpush.bf16.msra.mxu0 %v6996
      %7012 = vmatpush.bf16.msra.mxu0 %v6995
      %7013 = vmatpush.bf16.msra.mxu0 %v6994
      %7014 = vmatpush.bf16.msra.mxu0 %v6993
      %7015 = vmatpush.bf16.msra.mxu0 %v6992
      %7016 = vmatmul.bf16.gmra.mxu0 %v6917
      %v7017 = vpop.f32.mrf.mxu0
      %v7018 = vadd.f32 0.0, %v7017
      %v7019 = vpop.f32.mrf.mxu0
      %v7020 = vadd.f32 0.0, %v7019
      %7021 = vmatmul.bf16.gmra.mxu0 %v6921
      %v7022 = vpop.f32.mrf.mxu0
      %v7023 = vadd.f32 0.0, %v7022
      %v7024 = vpop.f32.mrf.mxu0
      %v7025 = vadd.f32 0.0, %v7024
      %7026 = vmatmul.bf16.gmra.mxu0 %v6925
      %v7027 = vpop.f32.mrf.mxu0
      %v7028 = vadd.f32 0.0, %v7027
      %v7029 = vpop.f32.mrf.mxu0
      %v7030 = vadd.f32 0.0, %v7029
      %7031 = vmatmul.bf16.gmra.mxu0 %v6929
      %v7032 = vpop.f32.mrf.mxu0
      %v7033 = vadd.f32 0.0, %v7032
      %v7034 = vpop.f32.mrf.mxu0
      %v7035 = vadd.f32 0.0, %v7034
      %7036 = vmatmul.bf16.gmra.mxu0 %v6933
      %v7037 = vpop.f32.mrf.mxu0
      %v7038 = vadd.f32 0.0, %v7037
      %v7039 = vpop.f32.mrf.mxu0
      %v7040 = vadd.f32 0.0, %v7039
      %7041 = vmatmul.bf16.gmra.mxu0 %v6937
      %v7042 = vpop.f32.mrf.mxu0
      %v7043 = vadd.f32 0.0, %v7042
      %v7044 = vpop.f32.mrf.mxu0
      %v7045 = vadd.f32 0.0, %v7044
      %7046 = vmatmul.bf16.gmra.mxu0 %v6941
      %v7047 = vpop.f32.mrf.mxu0
      %v7048 = vadd.f32 0.0, %v7047
      %v7049 = vpop.f32.mrf.mxu0
      %v7050 = vadd.f32 0.0, %v7049
      %7051 = vmatmul.bf16.gmra.mxu0 %v6950
      %v7052 = vpop.f32.mrf.mxu0
      %v7053 = vadd.f32 0.0, %v7052
      %v7054 = vpop.f32.mrf.mxu0
      %v7055 = vadd.f32 0.0, %v7054
      %7056 = vmatmul.bf16.gmra.mxu0 %v6949
      %v7057 = vpop.f32.mrf.mxu0
      %v7058 = vadd.f32 0.0, %v7057
      %v7059 = vpop.f32.mrf.mxu0
      %v7060 = vadd.f32 0.0, %v7059
      %7061 = vdwg.mxu0
      %v7062 = vadd.f32 %v6868, %v7018
      %v7063 = vadd.f32 %v6869, %v7020
      %v7064 = vadd.f32 %v6870, %v7023
      %v7065 = vadd.f32 %v6871, %v7025
      %v7066 = vadd.f32 %v6872, %v7028
      %v7067 = vadd.f32 %v6873, %v7030
      %v7068 = vadd.f32 %v6874, %v7033
      %v7069 = vadd.f32 %v6875, %v7035
      %v7070 = vadd.f32 %v6876, %v7038
      %v7071 = vadd.f32 %v6877, %v7040
      %v7072 = vadd.f32 %v6878, %v7043
      %v7073 = vadd.f32 %v6879, %v7045
      %v7074 = vadd.f32 %v6880, %v7048
      %v7075 = vadd.f32 %v6881, %v7050
      %v7076 = vadd.f32 %v6882, %v7053
      %v7077 = vadd.f32 %v6883, %v7055
      %v7078 = vadd.f32 %v6884, %v7058
      %v7079 = vadd.f32 %v6885, %v7060
      %v7080 = vld [vmem:[#allocation4 + $0x1c] sm:$0xc]
      %v7081 = vld [vmem:[%s3 + $0x600] sm:$0xf]
      %v7082 = vld [vmem:[%s3 + $0x604] sm:$0xf]
      %v7083 = vld [vmem:[%s3 + $0x608] sm:$0xf]
      %v7084 = vld [vmem:[%s3 + $0x60c] sm:$0xf]
      %v7085 = vld [vmem:[%s3 + $0x610] sm:$0xf]
      %v7086 = vld [vmem:[%s3 + $0x614] sm:$0xf]
      %v7087 = vld [vmem:[%s3 + $0x618] sm:$0xf]
      %v7088 = vld [vmem:[%s3 + $0x61c] sm:$0xf]
      %v7089 = vld [vmem:[%s3 + $0x620] sm:$0xf]
      %v7090 = vld [vmem:[%s3 + $0x624] sm:$0xf]
      %v7091 = vld [vmem:[%s3 + $0x628] sm:$0xf]
      %v7092 = vld [vmem:[%s3 + $0x62c] sm:$0xf]
      %v7093 = vld [vmem:[%s3 + $0x630] sm:$0xf]
      %v7094 = vld [vmem:[%s3 + $0x634] sm:$0xf]
      %v7095 = vld [vmem:[%s3 + $0x638] sm:$0xf]
      %v7096 = vld [vmem:[%s3 + $0x63c] sm:$0xf]
      %v7098 = vunpack.c.l.b16 %v7080
      %v7099 = vpack.c.b16 %v6345, %v7098
      %v7100 = vrot.slane %v7099, 2
      %v7101 = vrot.slane %v6363, 2
      %v7102 = vsel %vm3006, %v7100, %v7101
      %v7103 = vrot.slane %v6364, 2
      %v7104 = vsel %vm3006, %v7101, %v7103
      %v7105 = vrot.slane %v6365, 2
      %v7106 = vsel %vm3006, %v7103, %v7105
      %v7107 = vrot.slane %v6366, 2
      %v7108 = vsel %vm3006, %v7105, %v7107
      %v7109 = vrot.slane %v6367, 2
      %v7110 = vsel %vm3006, %v7107, %v7109
      %v7111 = vrot.slane %v6368, 2
      %v7112 = vsel %vm3006, %v7109, %v7111
      %v7113 = vrot.slane %v6369, 2
      %v7114 = vsel %vm3006, %v7111, %v7113
      %v7115 = vrot.slane %v6905, 2
      %v7116 = vsel %vm3006, %v7113, %v7115
      %v7142 = vunpack.c.l.b16 %v7081
      %v7143 = vunpack.c.l.b16 %v7082
      %v7144 = vunpack.c.l.b16 %v7083
      %v7145 = vunpack.c.l.b16 %v7084
      %v7146 = vunpack.c.l.b16 %v7085
      %v7147 = vunpack.c.l.b16 %v7086
      %v7148 = vunpack.c.l.b16 %v7087
      %v7149 = vunpack.c.l.b16 %v7088
      %v7150 = vunpack.c.l.b16 %v7089
      %v7151 = vunpack.c.l.b16 %v7090
      %v7152 = vunpack.c.l.b16 %v7091
      %v7153 = vunpack.c.l.b16 %v7092
      %v7154 = vunpack.c.l.b16 %v7093
      %v7155 = vunpack.c.l.b16 %v7094
      %v7156 = vunpack.c.l.b16 %v7095
      %v7157 = vunpack.c.l.b16 %v7096
      %v7158 = vpack.c.b16 %v7143, %v7142
      %v7159 = vpack.c.b16 %v7145, %v7144
      %v7160 = vpack.c.b16 %v7147, %v7146
      %v7161 = vpack.c.b16 %v7149, %v7148
      %v7162 = vpack.c.b16 %v7151, %v7150
      %v7163 = vpack.c.b16 %v7153, %v7152
      %v7164 = vpack.c.b16 %v7155, %v7154
      %v7165 = vpack.c.b16 %v7157, %v7156
      %7174 = vmatpush.bf16.msra.mxu0 %v7165
      %7175 = vmatpush.bf16.msra.mxu0 %v7164
      %7176 = vmatpush.bf16.msra.mxu0 %v7163
      %7177 = vmatpush.bf16.msra.mxu0 %v7162
      %7178 = vmatpush.bf16.msra.mxu0 %v7161
      %7179 = vmatpush.bf16.msra.mxu0 %v7160
      %7180 = vmatpush.bf16.msra.mxu0 %v7159
      %7181 = vmatpush.bf16.msra.mxu0 %v7158
      %7182 = vmatmul.bf16.gmra.mxu0 %v7102
      %v7183 = vpop.f32.mrf.mxu0
      %v7184 = vadd.f32 0.0, %v7183
      %v7185 = vpop.f32.mrf.mxu0
      %v7186 = vadd.f32 0.0, %v7185
      %7187 = vmatmul.bf16.gmra.mxu0 %v7104
      %v7188 = vpop.f32.mrf.mxu0
      %v7189 = vadd.f32 0.0, %v7188
      %v7190 = vpop.f32.mrf.mxu0
      %v7191 = vadd.f32 0.0, %v7190
      %7192 = vmatmul.bf16.gmra.mxu0 %v7106
      %v7193 = vpop.f32.mrf.mxu0
      %v7194 = vadd.f32 0.0, %v7193
      %v7195 = vpop.f32.mrf.mxu0
      %v7196 = vadd.f32 0.0, %v7195
      %7197 = vmatmul.bf16.gmra.mxu0 %v7108
      %v7198 = vpop.f32.mrf.mxu0
      %v7199 = vadd.f32 0.0, %v7198
      %v7200 = vpop.f32.mrf.mxu0
      %v7201 = vadd.f32 0.0, %v7200
      %7202 = vmatmul.bf16.gmra.mxu0 %v7110
      %v7203 = vpop.f32.mrf.mxu0
      %v7204 = vadd.f32 0.0, %v7203
      %v7205 = vpop.f32.mrf.mxu0
      %v7206 = vadd.f32 0.0, %v7205
      %7207 = vmatmul.bf16.gmra.mxu0 %v7112
      %v7208 = vpop.f32.mrf.mxu0
      %v7209 = vadd.f32 0.0, %v7208
      %v7210 = vpop.f32.mrf.mxu0
      %v7211 = vadd.f32 0.0, %v7210
      %7212 = vmatmul.bf16.gmra.mxu0 %v7114
      %v7213 = vpop.f32.mrf.mxu0
      %v7214 = vadd.f32 0.0, %v7213
      %v7215 = vpop.f32.mrf.mxu0
      %v7216 = vadd.f32 0.0, %v7215
      %7217 = vmatmul.bf16.gmra.mxu0 %v7116
      %v7218 = vpop.f32.mrf.mxu0
      %v7219 = vadd.f32 0.0, %v7218
      %v7220 = vpop.f32.mrf.mxu0
      %v7221 = vadd.f32 0.0, %v7220
      %7222 = vmatmul.bf16.gmra.mxu0 %v7115
      %v7223 = vpop.f32.mrf.mxu0
      %v7224 = vadd.f32 0.0, %v7223
      %v7225 = vpop.f32.mrf.mxu0
      %v7226 = vadd.f32 0.0, %v7225
      %7227 = vdwg.mxu0
      %v7228 = vadd.f32 %v7062, %v7184
      %v7229 = vadd.f32 %v7063, %v7186
      %v7230 = vadd.f32 %v7064, %v7189
      %v7231 = vadd.f32 %v7065, %v7191
      %v7232 = vadd.f32 %v7066, %v7194
      %v7233 = vadd.f32 %v7067, %v7196
      %v7234 = vadd.f32 %v7068, %v7199
      %v7235 = vadd.f32 %v7069, %v7201
      %v7236 = vadd.f32 %v7070, %v7204
      %v7237 = vadd.f32 %v7071, %v7206
      %v7238 = vadd.f32 %v7072, %v7209
      %v7239 = vadd.f32 %v7073, %v7211
      %v7240 = vadd.f32 %v7074, %v7214
      %v7241 = vadd.f32 %v7075, %v7216
      %v7242 = vadd.f32 %v7076, %v7219
      %v7243 = vadd.f32 %v7077, %v7221
      %v7244 = vadd.f32 %v7078, %v7224
      %v7245 = vadd.f32 %v7079, %v7226
      %v7246 = vld [vmem:[%s4] sm:$0x1]
      %v7248 = vperm.slane %v7246, 0
      %v7250 = vadd.f32 %v7228, %v7248
      %v7251 = vadd.f32 %v7229, %v7248
      %v7252 = vadd.f32 %v7230, %v7248
      %v7253 = vadd.f32 %v7231, %v7248
      %v7254 = vadd.f32 %v7232, %v7248
      %v7255 = vadd.f32 %v7233, %v7248
      %v7256 = vadd.f32 %v7234, %v7248
      %v7257 = vadd.f32 %v7235, %v7248
      %v7258 = vadd.f32 %v7236, %v7248
      %v7259 = vadd.f32 %v7237, %v7248
      %v7260 = vadd.f32 %v7238, %v7248
      %v7261 = vadd.f32 %v7239, %v7248
      %v7262 = vadd.f32 %v7240, %v7248
      %v7263 = vadd.f32 %v7241, %v7248
      %v7264 = vadd.f32 %v7242, %v7248
      %v7265 = vadd.f32 %v7243, %v7248
      %v7266 = vadd.f32 %v7244, %v7248
      %v7267 = vadd.f32 %v7245, %v7248
      %v7268 = vmax.f32 %v7250, 0.0
      %v7269 = vmax.f32 %v7251, 0.0
      %v7270 = vmax.f32 %v7252, 0.0
      %v7271 = vmax.f32 %v7253, 0.0
      %v7272 = vmax.f32 %v7254, 0.0
      %v7273 = vmax.f32 %v7255, 0.0
      %v7274 = vmax.f32 %v7256, 0.0
      %v7275 = vmax.f32 %v7257, 0.0
      %v7276 = vmax.f32 %v7258, 0.0
      %v7277 = vmax.f32 %v7259, 0.0
      %v7278 = vmax.f32 %v7260, 0.0
      %v7279 = vmax.f32 %v7261, 0.0
      %v7280 = vmax.f32 %v7262, 0.0
      %v7281 = vmax.f32 %v7263, 0.0
      %v7282 = vmax.f32 %v7264, 0.0
      %v7283 = vmax.f32 %v7265, 0.0
      %v7284 = vmax.f32 %v7266, 0.0
      %v7285 = vmax.f32 %v7267, 0.0
      %7286 = vst [vmem:[#allocation5] sm:$0xff] %v7268
      %7287 = vst [vmem:[#allocation5 + $0x8] sm:$0xff] %v7269
      %7288 = vst [vmem:[#allocation5 + $0x10] sm:$0xff] %v7270
      %7289 = vst [vmem:[#allocation5 + $0x18] sm:$0xff] %v7271
      %7290 = vst [vmem:[#allocation5 + $0x20] sm:$0xff] %v7272
      %7291 = vst [vmem:[#allocation5 + $0x28] sm:$0xff] %v7273
      %7292 = vst [vmem:[#allocation5 + $0x30] sm:$0xff] %v7274
      %7293 = vst [vmem:[#allocation5 + $0x38] sm:$0xff] %v7275
      %7294 = vst [vmem:[#allocation5 + $0x40] sm:$0xff] %v7276
      %7295 = vst [vmem:[#allocation5 + $0x48] sm:$0xff] %v7277
      %7296 = vst [vmem:[#allocation5 + $0x50] sm:$0xff] %v7278
      %7297 = vst [vmem:[#allocation5 + $0x58] sm:$0xff] %v7279
      %7298 = vst [vmem:[#allocation5 + $0x60] sm:$0xff] %v7280
      %7299 = vst [vmem:[#allocation5 + $0x68] sm:$0xff] %v7281
      %7300 = vst [vmem:[#allocation5 + $0x70] sm:$0xff] %v7282
      %7301 = vst [vmem:[#allocation5 + $0x78] sm:$0xff] %v7283
      %7302 = vst [vmem:[#allocation5 + $0x80] sm:$0xff] %v7284
      %7303 = vst [vmem:[#allocation5 + $0x88] sm:$0xf] %v7285
      %v7304 = vld [vmem:[#allocation5] ss:$2 sm:$0x1f]
      %s7305 = scalar_lea.vmem [#allocation5], 1
      %v7306 = vld [vmem:[%s7305] ss:$2 sm:$0x1f]
      %v7307 = vmax.f32 %v7304, %v7306
      %s7308 = scalar_lea.vmem [#allocation5], 14
      %v7309 = vld [vmem:[%s7308] ss:$2 sm:$0x1f]
      %s7310 = scalar_lea.vmem [#allocation5], 15
      %v7311 = vld [vmem:[%s7310] ss:$2 sm:$0x1f]
      %v7312 = vmax.f32 %v7309, %v7311
      %v7313 = vmax.f32 %v7307, %v7312
      %v7314 = vpack.c.bf16 %v7313, %v7313
      %vm7315 = vcmask 1042432
      %vm7316 = vsmask.f32 2304
      %vm7317 = vmand %vm7315, %vm7316
      %v7318 = vld [vmem:[#allocation6] sm:$0x7]
      %v7319 = vsel %vm7317, %v7314, %v7318
      %7320 = vst [vmem:[#allocation6] sm:$0x7] %v7319
      %s7321 = scalar_lea.vmem [#allocation5], 28
      %v7322 = vld [vmem:[%s7321] ss:$2 sm:$0x1f]
      %s7323 = scalar_lea.vmem [#allocation5], 29
      %v7324 = vld [vmem:[%s7323] ss:$2 sm:$0x1f]
      %v7325 = vmax.f32 %v7322, %v7324
      %s7326 = scalar_lea.vmem [#allocation5], 42
      %v7327 = vld [vmem:[%s7326] ss:$2 sm:$0x1f]
      %s7328 = scalar_lea.vmem [#allocation5], 43
      %v7329 = vld [vmem:[%s7328] ss:$2 sm:$0x1f]
      %v7330 = vmax.f32 %v7327, %v7329
      %v7331 = vmax.f32 %v7325, %v7330
      %v7332 = vpack.c.bf16 %v7331, %v7331
      %v7334 = vshrl.u32 %v7332, 16
      %v7336 = vrot.slane %v7334, 5
      %v7337 = vshll.u32 %v7332, 16
      %v7339 = vrot.slane %v7337, 6
      %v7340 = vor.u32 %v7336, %v7339
      %v7341 = vrot.slane %v7340, 4
      %vm7344 = vcmask 1043458
      %vm7345 = vsmask.f32 7946
      %vm7346 = vmand %vm7344, %vm7345
      %v7347 = vld [vmem:[#allocation6] sm:$0xc]
      %v7348 = vsel %vm7346, %v7340, %v7347
      %7349 = vst [vmem:[#allocation6] sm:$0xc] %v7348
      %7350 = vst [vmem:[#allocation6 + $0x4] sm:$0x1] %v7341
      %s7351 = scalar_lea.vmem [#allocation5], 56
      %v7352 = vld [vmem:[%s7351] ss:$2 sm:$0x1f]
      %s7353 = scalar_lea.vmem [#allocation5], 57
      %v7354 = vld [vmem:[%s7353] ss:$2 sm:$0x1f]
      %v7355 = vmax.f32 %v7352, %v7354
      %s7356 = scalar_lea.vmem [#allocation5], 70
      %v7357 = vld [vmem:[%s7356] ss:$2 sm:$0x1f]
      %s7358 = scalar_lea.vmem [#allocation5], 71
      %v7359 = vld [vmem:[%s7358] ss:$2 sm:$0x1f]
      %v7360 = vmax.f32 %v7357, %v7359
      %v7361 = vmax.f32 %v7355, %v7360
      %v7362 = vpack.c.bf16 %v7361, %v7361
      %v7364 = vrot.slane %v7362, 7
      %vm7366 = vcmask 1043457
      %vm7367 = vsmask.f32 3328
      %vm7368 = vmand %vm7366, %vm7367
      %v7369 = vld [vmem:[#allocation6 + $0x4] sm:$0xe]
      %v7370 = vsel %vm7368, %v7364, %v7369
      %7371 = vst [vmem:[#allocation6 + $0x4] sm:$0xe] %v7370
      %s7372 = scalar_lea.vmem [#allocation5], 84
      %v7373 = vld [vmem:[%s7372] ss:$2 sm:$0x1f]
      %s7374 = scalar_lea.vmem [#allocation5], 85
      %v7375 = vld [vmem:[%s7374] ss:$2 sm:$0x1f]
      %v7376 = vmax.f32 %v7373, %v7375
      %s7377 = scalar_lea.vmem [#allocation5], 98
      %v7378 = vld [vmem:[%s7377] ss:$2 sm:$0x1f]
      %s7379 = scalar_lea.vmem [#allocation5], 99
      %v7380 = vld [vmem:[%s7379] ss:$2 sm:$0x1f]
      %v7381 = vmax.f32 %v7378, %v7380
      %v7382 = vmax.f32 %v7376, %v7381
      %v7383 = vpack.c.bf16 %v7382, %v7382
      %v7385 = vshll.u32 %v7383, 16
      %v7387 = vrot.slane %v7385, 5
      %v7388 = vshrl.u32 %v7383, 16
      %v7390 = vrot.slane %v7388, 4
      %v7391 = vor.u32 %v7390, %v7387
      %v7392 = vrot.slane %v7391, 4
      %vm7395 = vcmask 1043459
      %vm7396 = vsmask.f32 7950
      %vm7397 = vmand %vm7395, %vm7396
      %v7398 = vld [vmem:[#allocation6 + $0x4] sm:$0x8]
      %v7399 = vsel %vm7397, %v7387, %v7398
      %7400 = vst [vmem:[#allocation6 + $0x4] sm:$0x8] %v7399
      %7401 = vst [vmem:[#allocation6 + $0x8] sm:$0x3] %v7392
      %s7402 = scalar_lea.vmem [#allocation5], 112
      %v7403 = vld [vmem:[%s7402] ss:$2 sm:$0x1f]
      %s7404 = scalar_lea.vmem [#allocation5], 113
      %v7405 = vld [vmem:[%s7404] ss:$2 sm:$0x1f]
      %v7406 = vmax.f32 %v7403, %v7405
      %s7407 = scalar_lea.vmem [#allocation5], 126
      %v7408 = vld [vmem:[%s7407] ss:$2 sm:$0x1f]
      %s7409 = scalar_lea.vmem [#allocation5], 127
      %v7410 = vld [vmem:[%s7409] ss:$2 sm:$0x1f]
      %v7411 = vmax.f32 %v7408, %v7410
      %v7412 = vmax.f32 %v7406, %v7411
      %v7413 = vpack.c.bf16 %v7412, %v7412
      %v7415 = vrot.slane %v7413, 6
      %v7416 = vrot.slane %v7415, 4
      %7419 = vst [vmem:[#allocation6 + $0x8] sm:$0xc] %v7415
      %vm7420 = vcmask 1040384
      %vm7421 = vsmask.f32 256
      %vm7422 = vmand %vm7420, %vm7421
      %v7423 = vld [vmem:[#allocation6 + $0xc] sm:$0x1]
      %v7424 = vsel %vm7422, %v7416, %v7423
      %7425 = vst [vmem:[#allocation6 + $0xc] sm:$0x1] %v7424
      %v7426 = vld [vmem:[#allocation6] sm:$0x1]
      %v7427 = vld [vmem:[%s5] sm:$0xf]
      %v7428 = vld [vmem:[%s5 + $0x4] sm:$0xf]
      %v7429 = vld [vmem:[%s5 + $0x8] sm:$0xf]
      %v7430 = vld [vmem:[%s5 + $0xc] sm:$0xf]
      %v7431 = vld [vmem:[%s5 + $0x10] sm:$0xf]
      %v7432 = vld [vmem:[%s5 + $0x14] sm:$0xf]
      %v7433 = vld [vmem:[%s5 + $0x18] sm:$0xf]
      %v7434 = vld [vmem:[%s5 + $0x1c] sm:$0xf]
      %v7435 = vld [vmem:[%s5 + $0x20] sm:$0xf]
      %v7436 = vld [vmem:[%s5 + $0x24] sm:$0xf]
      %v7437 = vld [vmem:[%s5 + $0x28] sm:$0xf]
      %v7438 = vld [vmem:[%s5 + $0x2c] sm:$0xf]
      %v7439 = vld [vmem:[%s5 + $0x30] sm:$0xf]
      %v7440 = vld [vmem:[%s5 + $0x34] sm:$0xf]
      %v7441 = vld [vmem:[%s5 + $0x38] sm:$0xf]
      %v7442 = vld [vmem:[%s5 + $0x3c] sm:$0xf]
      %v7443 = vld [vmem:[%s5 + $0x40] sm:$0xf]
      %v7444 = vld [vmem:[%s5 + $0x44] sm:$0xf]
      %v7445 = vld [vmem:[%s5 + $0x48] sm:$0xf]
      %v7446 = vld [vmem:[%s5 + $0x4c] sm:$0xf]
      %v7447 = vld [vmem:[%s5 + $0x50] sm:$0xf]
      %v7448 = vld [vmem:[%s5 + $0x54] sm:$0xf]
      %v7449 = vld [vmem:[%s5 + $0x58] sm:$0xf]
      %v7450 = vld [vmem:[%s5 + $0x5c] sm:$0xf]
      %v7451 = vld [vmem:[%s5 + $0x60] sm:$0xf]
      %v7452 = vld [vmem:[%s5 + $0x64] sm:$0xf]
      %v7453 = vld [vmem:[%s5 + $0x68] sm:$0xf]
      %v7454 = vld [vmem:[%s5 + $0x6c] sm:$0xf]
      %v7455 = vld [vmem:[%s5 + $0x70] sm:$0xf]
      %v7456 = vld [vmem:[%s5 + $0x74] sm:$0xf]
      %v7457 = vld [vmem:[%s5 + $0x78] sm:$0xf]
      %v7458 = vld [vmem:[%s5 + $0x7c] sm:$0xf]
      %v7460 = vunpack.c.l.b16 %v7426
      %v7461 = vpack.c.b16 %v7460, %v7460
      %v7463 = vshrl.u32 %v7461, 16
      %v7482 = vunpack.c.l.b16 %v7443
      %v7483 = vunpack.c.l.b16 %v7444
      %v7484 = vunpack.c.l.b16 %v7445
      %v7485 = vunpack.c.l.b16 %v7446
      %v7486 = vunpack.c.l.b16 %v7447
      %v7487 = vunpack.c.l.b16 %v7448
      %v7488 = vunpack.c.l.b16 %v7449
      %v7489 = vunpack.c.l.b16 %v7450
      %v7490 = vunpack.c.l.b16 %v7451
      %v7491 = vunpack.c.l.b16 %v7452
      %v7492 = vunpack.c.l.b16 %v7453
      %v7493 = vunpack.c.l.b16 %v7454
      %v7494 = vunpack.c.l.b16 %v7455
      %v7495 = vunpack.c.l.b16 %v7456
      %v7496 = vunpack.c.l.b16 %v7457
      %v7497 = vunpack.c.l.b16 %v7458
      %v7498 = vpack.c.b16 %v7483, %v7482
      %v7499 = vpack.c.b16 %v7485, %v7484
      %v7500 = vpack.c.b16 %v7487, %v7486
      %v7501 = vpack.c.b16 %v7489, %v7488
      %v7502 = vpack.c.b16 %v7491, %v7490
      %v7503 = vpack.c.b16 %v7493, %v7492
      %v7504 = vpack.c.b16 %v7495, %v7494
      %v7505 = vpack.c.b16 %v7497, %v7496
      %7514 = vmatpush.bf16.msra.mxu0 %v7505
      %7515 = vmatpush.bf16.msra.mxu0 %v7504
      %7516 = vmatpush.bf16.msra.mxu0 %v7503
      %7517 = vmatpush.bf16.msra.mxu0 %v7502
      %7518 = vmatpush.bf16.msra.mxu0 %v7501
      %7519 = vmatpush.bf16.msra.mxu0 %v7500
      %7520 = vmatpush.bf16.msra.mxu0 %v7499
      %7521 = vmatpush.bf16.msra.mxu0 %v7498
      %7522 = vmatmul.bf16.gmra.mxu0 %v7463
      %v7523 = vpop.f32.mrf.mxu0
      %v7524 = vadd.f32 0.0, %v7523
      %v7525 = vpop.f32.mrf.mxu0
      %7526 = vdwg.mxu0
      %v7543 = vunpack.c.l.b16 %v7427
      %v7544 = vunpack.c.l.b16 %v7428
      %v7545 = vunpack.c.l.b16 %v7429
      %v7546 = vunpack.c.l.b16 %v7430
      %v7547 = vunpack.c.l.b16 %v7431
      %v7548 = vunpack.c.l.b16 %v7432
      %v7549 = vunpack.c.l.b16 %v7433
      %v7550 = vunpack.c.l.b16 %v7434
      %v7551 = vunpack.c.l.b16 %v7435
      %v7552 = vunpack.c.l.b16 %v7436
      %v7553 = vunpack.c.l.b16 %v7437
      %v7554 = vunpack.c.l.b16 %v7438
      %v7555 = vunpack.c.l.b16 %v7439
      %v7556 = vunpack.c.l.b16 %v7440
      %v7557 = vunpack.c.l.b16 %v7441
      %v7558 = vunpack.c.l.b16 %v7442
      %v7559 = vpack.c.b16 %v7544, %v7543
      %v7560 = vpack.c.b16 %v7546, %v7545
      %v7561 = vpack.c.b16 %v7548, %v7547
      %v7562 = vpack.c.b16 %v7550, %v7549
      %v7563 = vpack.c.b16 %v7552, %v7551
      %v7564 = vpack.c.b16 %v7554, %v7553
      %v7565 = vpack.c.b16 %v7556, %v7555
      %v7566 = vpack.c.b16 %v7558, %v7557
      %7575 = vmatpush.bf16.msra.mxu0 %v7566
      %7576 = vmatpush.bf16.msra.mxu0 %v7565
      %7577 = vmatpush.bf16.msra.mxu0 %v7564
      %7578 = vmatpush.bf16.msra.mxu0 %v7563
      %7579 = vmatpush.bf16.msra.mxu0 %v7562
      %7580 = vmatpush.bf16.msra.mxu0 %v7561
      %7581 = vmatpush.bf16.msra.mxu0 %v7560
      %7582 = vmatpush.bf16.msra.mxu0 %v7559
      %7583 = vmatmul.bf16.gmra.mxu0 %v7426
      %v7584 = vpop.f32.mrf.mxu0
      %v7585 = vadd.f32 %v7524, %v7584
      %v7586 = vpop.f32.mrf.mxu0
      %7587 = vdwg.mxu0
      %v7588 = vld [vmem:[#allocation6] sm:$0x2]
      %v7589 = vld [vmem:[%s5 + $0x80] sm:$0xf]
      %v7590 = vld [vmem:[%s5 + $0x84] sm:$0xf]
      %v7591 = vld [vmem:[%s5 + $0x88] sm:$0xf]
      %v7592 = vld [vmem:[%s5 + $0x8c] sm:$0xf]
      %v7593 = vld [vmem:[%s5 + $0x90] sm:$0xf]
      %v7594 = vld [vmem:[%s5 + $0x94] sm:$0xf]
      %v7595 = vld [vmem:[%s5 + $0x98] sm:$0xf]
      %v7596 = vld [vmem:[%s5 + $0x9c] sm:$0xf]
      %v7597 = vld [vmem:[%s5 + $0xa0] sm:$0xf]
      %v7598 = vld [vmem:[%s5 + $0xa4] sm:$0xf]
      %v7599 = vld [vmem:[%s5 + $0xa8] sm:$0xf]
      %v7600 = vld [vmem:[%s5 + $0xac] sm:$0xf]
      %v7601 = vld [vmem:[%s5 + $0xb0] sm:$0xf]
      %v7602 = vld [vmem:[%s5 + $0xb4] sm:$0xf]
      %v7603 = vld [vmem:[%s5 + $0xb8] sm:$0xf]
      %v7604 = vld [vmem:[%s5 + $0xbc] sm:$0xf]
      %v7606 = vunpack.c.l.b16 %v7588
      %v7607 = vpack.c.b16 %v7606, %v7606
      %v7608 = vrot.slane %v7607, 1
      %v7626 = vunpack.c.l.b16 %v7589
      %v7627 = vunpack.c.l.b16 %v7590
      %v7628 = vunpack.c.l.b16 %v7591
      %v7629 = vunpack.c.l.b16 %v7592
      %v7630 = vunpack.c.l.b16 %v7593
      %v7631 = vunpack.c.l.b16 %v7594
      %v7632 = vunpack.c.l.b16 %v7595
      %v7633 = vunpack.c.l.b16 %v7596
      %v7634 = vunpack.c.l.b16 %v7597
      %v7635 = vunpack.c.l.b16 %v7598
      %v7636 = vunpack.c.l.b16 %v7599
      %v7637 = vunpack.c.l.b16 %v7600
      %v7638 = vunpack.c.l.b16 %v7601
      %v7639 = vunpack.c.l.b16 %v7602
      %v7640 = vunpack.c.l.b16 %v7603
      %v7641 = vunpack.c.l.b16 %v7604
      %v7642 = vpack.c.b16 %v7627, %v7626
      %v7643 = vpack.c.b16 %v7629, %v7628
      %v7644 = vpack.c.b16 %v7631, %v7630
      %v7645 = vpack.c.b16 %v7633, %v7632
      %v7646 = vpack.c.b16 %v7635, %v7634
      %v7647 = vpack.c.b16 %v7637, %v7636
      %v7648 = vpack.c.b16 %v7639, %v7638
      %v7649 = vpack.c.b16 %v7641, %v7640
      %7658 = vmatpush.bf16.msra.mxu0 %v7649
      %7659 = vmatpush.bf16.msra.mxu0 %v7648
      %7660 = vmatpush.bf16.msra.mxu0 %v7647
      %7661 = vmatpush.bf16.msra.mxu0 %v7646
      %7662 = vmatpush.bf16.msra.mxu0 %v7645
      %7663 = vmatpush.bf16.msra.mxu0 %v7644
      %7664 = vmatpush.bf16.msra.mxu0 %v7643
      %7665 = vmatpush.bf16.msra.mxu0 %v7642
      %7666 = vmatmul.bf16.gmra.mxu0 %v7608
      %v7667 = vpop.f32.mrf.mxu0
      %v7668 = vadd.f32 0.0, %v7667
      %v7669 = vpop.f32.mrf.mxu0
      %7670 = vdwg.mxu0
      %v7671 = vadd.f32 %v7585, %v7668
      %v7672 = vld [vmem:[%s5 + $0xc0] sm:$0xf]
      %v7673 = vld [vmem:[%s5 + $0xc4] sm:$0xf]
      %v7674 = vld [vmem:[%s5 + $0xc8] sm:$0xf]
      %v7675 = vld [vmem:[%s5 + $0xcc] sm:$0xf]
      %v7676 = vld [vmem:[%s5 + $0xd0] sm:$0xf]
      %v7677 = vld [vmem:[%s5 + $0xd4] sm:$0xf]
      %v7678 = vld [vmem:[%s5 + $0xd8] sm:$0xf]
      %v7679 = vld [vmem:[%s5 + $0xdc] sm:$0xf]
      %v7680 = vld [vmem:[%s5 + $0xe0] sm:$0xf]
      %v7681 = vld [vmem:[%s5 + $0xe4] sm:$0xf]
      %v7682 = vld [vmem:[%s5 + $0xe8] sm:$0xf]
      %v7683 = vld [vmem:[%s5 + $0xec] sm:$0xf]
      %v7684 = vld [vmem:[%s5 + $0xf0] sm:$0xf]
      %v7685 = vld [vmem:[%s5 + $0xf4] sm:$0xf]
      %v7686 = vld [vmem:[%s5 + $0xf8] sm:$0xf]
      %v7687 = vld [vmem:[%s5 + $0xfc] sm:$0xf]
      %v7689 = vshrl.u32 %v7607, 16
      %v7691 = vrot.slane %v7689, 1
      %v7709 = vunpack.c.l.b16 %v7672
      %v7710 = vunpack.c.l.b16 %v7673
      %v7711 = vunpack.c.l.b16 %v7674
      %v7712 = vunpack.c.l.b16 %v7675
      %v7713 = vunpack.c.l.b16 %v7676
      %v7714 = vunpack.c.l.b16 %v7677
      %v7715 = vunpack.c.l.b16 %v7678
      %v7716 = vunpack.c.l.b16 %v7679
      %v7717 = vunpack.c.l.b16 %v7680
      %v7718 = vunpack.c.l.b16 %v7681
      %v7719 = vunpack.c.l.b16 %v7682
      %v7720 = vunpack.c.l.b16 %v7683
      %v7721 = vunpack.c.l.b16 %v7684
      %v7722 = vunpack.c.l.b16 %v7685
      %v7723 = vunpack.c.l.b16 %v7686
      %v7724 = vunpack.c.l.b16 %v7687
      %v7725 = vpack.c.b16 %v7710, %v7709
      %v7726 = vpack.c.b16 %v7712, %v7711
      %v7727 = vpack.c.b16 %v7714, %v7713
      %v7728 = vpack.c.b16 %v7716, %v7715
      %v7729 = vpack.c.b16 %v7718, %v7717
      %v7730 = vpack.c.b16 %v7720, %v7719
      %v7731 = vpack.c.b16 %v7722, %v7721
      %v7732 = vpack.c.b16 %v7724, %v7723
      %7741 = vmatpush.bf16.msra.mxu0 %v7732
      %7742 = vmatpush.bf16.msra.mxu0 %v7731
      %7743 = vmatpush.bf16.msra.mxu0 %v7730
      %7744 = vmatpush.bf16.msra.mxu0 %v7729
      %7745 = vmatpush.bf16.msra.mxu0 %v7728
      %7746 = vmatpush.bf16.msra.mxu0 %v7727
      %7747 = vmatpush.bf16.msra.mxu0 %v7726
      %7748 = vmatpush.bf16.msra.mxu0 %v7725
      %7749 = vmatmul.bf16.gmra.mxu0 %v7691
      %v7750 = vpop.f32.mrf.mxu0
      %v7751 = vadd.f32 0.0, %v7750
      %v7752 = vpop.f32.mrf.mxu0
      %7753 = vdwg.mxu0
      %v7754 = vadd.f32 %v7671, %v7751
      %v7755 = vld [vmem:[#allocation6] sm:$0x4]
      %v7756 = vld [vmem:[%s5 + $0x100] sm:$0xf]
      %v7757 = vld [vmem:[%s5 + $0x104] sm:$0xf]
      %v7758 = vld [vmem:[%s5 + $0x108] sm:$0xf]
      %v7759 = vld [vmem:[%s5 + $0x10c] sm:$0xf]
      %v7760 = vld [vmem:[%s5 + $0x110] sm:$0xf]
      %v7761 = vld [vmem:[%s5 + $0x114] sm:$0xf]
      %v7762 = vld [vmem:[%s5 + $0x118] sm:$0xf]
      %v7763 = vld [vmem:[%s5 + $0x11c] sm:$0xf]
      %v7764 = vld [vmem:[%s5 + $0x120] sm:$0xf]
      %v7765 = vld [vmem:[%s5 + $0x124] sm:$0xf]
      %v7766 = vld [vmem:[%s5 + $0x128] sm:$0xf]
      %v7767 = vld [vmem:[%s5 + $0x12c] sm:$0xf]
      %v7768 = vld [vmem:[%s5 + $0x130] sm:$0xf]
      %v7769 = vld [vmem:[%s5 + $0x134] sm:$0xf]
      %v7770 = vld [vmem:[%s5 + $0x138] sm:$0xf]
      %v7771 = vld [vmem:[%s5 + $0x13c] sm:$0xf]
      %v7773 = vunpack.c.l.b16 %v7755
      %v7774 = vpack.c.b16 %v7773, %v7773
      %v7775 = vrot.slane %v7774, 2
      %v7793 = vunpack.c.l.b16 %v7756
      %v7794 = vunpack.c.l.b16 %v7757
      %v7795 = vunpack.c.l.b16 %v7758
      %v7796 = vunpack.c.l.b16 %v7759
      %v7797 = vunpack.c.l.b16 %v7760
      %v7798 = vunpack.c.l.b16 %v7761
      %v7799 = vunpack.c.l.b16 %v7762
      %v7800 = vunpack.c.l.b16 %v7763
      %v7801 = vunpack.c.l.b16 %v7764
      %v7802 = vunpack.c.l.b16 %v7765
      %v7803 = vunpack.c.l.b16 %v7766
      %v7804 = vunpack.c.l.b16 %v7767
      %v7805 = vunpack.c.l.b16 %v7768
      %v7806 = vunpack.c.l.b16 %v7769
      %v7807 = vunpack.c.l.b16 %v7770
      %v7808 = vunpack.c.l.b16 %v7771
      %v7809 = vpack.c.b16 %v7794, %v7793
      %v7810 = vpack.c.b16 %v7796, %v7795
      %v7811 = vpack.c.b16 %v7798, %v7797
      %v7812 = vpack.c.b16 %v7800, %v7799
      %v7813 = vpack.c.b16 %v7802, %v7801
      %v7814 = vpack.c.b16 %v7804, %v7803
      %v7815 = vpack.c.b16 %v7806, %v7805
      %v7816 = vpack.c.b16 %v7808, %v7807
      %7825 = vmatpush.bf16.msra.mxu0 %v7816
      %7826 = vmatpush.bf16.msra.mxu0 %v7815
      %7827 = vmatpush.bf16.msra.mxu0 %v7814
      %7828 = vmatpush.bf16.msra.mxu0 %v7813
      %7829 = vmatpush.bf16.msra.mxu0 %v7812
      %7830 = vmatpush.bf16.msra.mxu0 %v7811
      %7831 = vmatpush.bf16.msra.mxu0 %v7810
      %7832 = vmatpush.bf16.msra.mxu0 %v7809
      %7833 = vmatmul.bf16.gmra.mxu0 %v7775
      %v7834 = vpop.f32.mrf.mxu0
      %v7835 = vadd.f32 0.0, %v7834
      %v7836 = vpop.f32.mrf.mxu0
      %7837 = vdwg.mxu0
      %v7838 = vadd.f32 %v7754, %v7835
      %v7839 = vld [vmem:[%s5 + $0x140] sm:$0xf]
      %v7840 = vld [vmem:[%s5 + $0x144] sm:$0xf]
      %v7841 = vld [vmem:[%s5 + $0x148] sm:$0xf]
      %v7842 = vld [vmem:[%s5 + $0x14c] sm:$0xf]
      %v7843 = vld [vmem:[%s5 + $0x150] sm:$0xf]
      %v7844 = vld [vmem:[%s5 + $0x154] sm:$0xf]
      %v7845 = vld [vmem:[%s5 + $0x158] sm:$0xf]
      %v7846 = vld [vmem:[%s5 + $0x15c] sm:$0xf]
      %v7847 = vld [vmem:[%s5 + $0x160] sm:$0xf]
      %v7848 = vld [vmem:[%s5 + $0x164] sm:$0xf]
      %v7849 = vld [vmem:[%s5 + $0x168] sm:$0xf]
      %v7850 = vld [vmem:[%s5 + $0x16c] sm:$0xf]
      %v7851 = vld [vmem:[%s5 + $0x170] sm:$0xf]
      %v7852 = vld [vmem:[%s5 + $0x174] sm:$0xf]
      %v7853 = vld [vmem:[%s5 + $0x178] sm:$0xf]
      %v7854 = vld [vmem:[%s5 + $0x17c] sm:$0xf]
      %v7856 = vshrl.u32 %v7774, 16
      %v7858 = vrot.slane %v7856, 2
      %v7876 = vunpack.c.l.b16 %v7839
      %v7877 = vunpack.c.l.b16 %v7840
      %v7878 = vunpack.c.l.b16 %v7841
      %v7879 = vunpack.c.l.b16 %v7842
      %v7880 = vunpack.c.l.b16 %v7843
      %v7881 = vunpack.c.l.b16 %v7844
      %v7882 = vunpack.c.l.b16 %v7845
      %v7883 = vunpack.c.l.b16 %v7846
      %v7884 = vunpack.c.l.b16 %v7847
      %v7885 = vunpack.c.l.b16 %v7848
      %v7886 = vunpack.c.l.b16 %v7849
      %v7887 = vunpack.c.l.b16 %v7850
      %v7888 = vunpack.c.l.b16 %v7851
      %v7889 = vunpack.c.l.b16 %v7852
      %v7890 = vunpack.c.l.b16 %v7853
      %v7891 = vunpack.c.l.b16 %v7854
      %v7892 = vpack.c.b16 %v7877, %v7876
      %v7893 = vpack.c.b16 %v7879, %v7878
      %v7894 = vpack.c.b16 %v7881, %v7880
      %v7895 = vpack.c.b16 %v7883, %v7882
      %v7896 = vpack.c.b16 %v7885, %v7884
      %v7897 = vpack.c.b16 %v7887, %v7886
      %v7898 = vpack.c.b16 %v7889, %v7888
      %v7899 = vpack.c.b16 %v7891, %v7890
      %7908 = vmatpush.bf16.msra.mxu0 %v7899
      %7909 = vmatpush.bf16.msra.mxu0 %v7898
      %7910 = vmatpush.bf16.msra.mxu0 %v7897
      %7911 = vmatpush.bf16.msra.mxu0 %v7896
      %7912 = vmatpush.bf16.msra.mxu0 %v7895
      %7913 = vmatpush.bf16.msra.mxu0 %v7894
      %7914 = vmatpush.bf16.msra.mxu0 %v7893
      %7915 = vmatpush.bf16.msra.mxu0 %v7892
      %7916 = vmatmul.bf16.gmra.mxu0 %v7858
      %v7917 = vpop.f32.mrf.mxu0
      %v7918 = vadd.f32 0.0, %v7917
      %v7919 = vpop.f32.mrf.mxu0
      %7920 = vdwg.mxu0
      %v7921 = vadd.f32 %v7838, %v7918
      %v7922 = vld [vmem:[#allocation6] sm:$0x8]
      %v7923 = vld [vmem:[%s5 + $0x180] sm:$0xf]
      %v7924 = vld [vmem:[%s5 + $0x184] sm:$0xf]
      %v7925 = vld [vmem:[%s5 + $0x188] sm:$0xf]
      %v7926 = vld [vmem:[%s5 + $0x18c] sm:$0xf]
      %v7927 = vld [vmem:[%s5 + $0x190] sm:$0xf]
      %v7928 = vld [vmem:[%s5 + $0x194] sm:$0xf]
      %v7929 = vld [vmem:[%s5 + $0x198] sm:$0xf]
      %v7930 = vld [vmem:[%s5 + $0x19c] sm:$0xf]
      %v7931 = vld [vmem:[%s5 + $0x1a0] sm:$0xf]
      %v7932 = vld [vmem:[%s5 + $0x1a4] sm:$0xf]
      %v7933 = vld [vmem:[%s5 + $0x1a8] sm:$0xf]
      %v7934 = vld [vmem:[%s5 + $0x1ac] sm:$0xf]
      %v7935 = vld [vmem:[%s5 + $0x1b0] sm:$0xf]
      %v7936 = vld [vmem:[%s5 + $0x1b4] sm:$0xf]
      %v7937 = vld [vmem:[%s5 + $0x1b8] sm:$0xf]
      %v7938 = vld [vmem:[%s5 + $0x1bc] sm:$0xf]
      %v7940 = vunpack.c.l.b16 %v7922
      %v7941 = vpack.c.b16 %v7940, %v7940
      %v7942 = vrot.slane %v7941, 3
      %v7960 = vunpack.c.l.b16 %v7923
      %v7961 = vunpack.c.l.b16 %v7924
      %v7962 = vunpack.c.l.b16 %v7925
      %v7963 = vunpack.c.l.b16 %v7926
      %v7964 = vunpack.c.l.b16 %v7927
      %v7965 = vunpack.c.l.b16 %v7928
      %v7966 = vunpack.c.l.b16 %v7929
      %v7967 = vunpack.c.l.b16 %v7930
      %v7968 = vunpack.c.l.b16 %v7931
      %v7969 = vunpack.c.l.b16 %v7932
      %v7970 = vunpack.c.l.b16 %v7933
      %v7971 = vunpack.c.l.b16 %v7934
      %v7972 = vunpack.c.l.b16 %v7935
      %v7973 = vunpack.c.l.b16 %v7936
      %v7974 = vunpack.c.l.b16 %v7937
      %v7975 = vunpack.c.l.b16 %v7938
      %v7976 = vpack.c.b16 %v7961, %v7960
      %v7977 = vpack.c.b16 %v7963, %v7962
      %v7978 = vpack.c.b16 %v7965, %v7964
      %v7979 = vpack.c.b16 %v7967, %v7966
      %v7980 = vpack.c.b16 %v7969, %v7968
      %v7981 = vpack.c.b16 %v7971, %v7970
      %v7982 = vpack.c.b16 %v7973, %v7972
      %v7983 = vpack.c.b16 %v7975, %v7974
      %7992 = vmatpush.bf16.msra.mxu0 %v7983
      %7993 = vmatpush.bf16.msra.mxu0 %v7982
      %7994 = vmatpush.bf16.msra.mxu0 %v7981
      %7995 = vmatpush.bf16.msra.mxu0 %v7980
      %7996 = vmatpush.bf16.msra.mxu0 %v7979
      %7997 = vmatpush.bf16.msra.mxu0 %v7978
      %7998 = vmatpush.bf16.msra.mxu0 %v7977
      %7999 = vmatpush.bf16.msra.mxu0 %v7976
      %8000 = vmatmul.bf16.gmra.mxu0 %v7942
      %v8001 = vpop.f32.mrf.mxu0
      %v8002 = vadd.f32 0.0, %v8001
      %v8003 = vpop.f32.mrf.mxu0
      %8004 = vdwg.mxu0
      %v8005 = vadd.f32 %v7921, %v8002
      %v8006 = vld [vmem:[%s5 + $0x1c0] sm:$0xf]
      %v8007 = vld [vmem:[%s5 + $0x1c4] sm:$0xf]
      %v8008 = vld [vmem:[%s5 + $0x1c8] sm:$0xf]
      %v8009 = vld [vmem:[%s5 + $0x1cc] sm:$0xf]
      %v8010 = vld [vmem:[%s5 + $0x1d0] sm:$0xf]
      %v8011 = vld [vmem:[%s5 + $0x1d4] sm:$0xf]
      %v8012 = vld [vmem:[%s5 + $0x1d8] sm:$0xf]
      %v8013 = vld [vmem:[%s5 + $0x1dc] sm:$0xf]
      %v8014 = vld [vmem:[%s5 + $0x1e0] sm:$0xf]
      %v8015 = vld [vmem:[%s5 + $0x1e4] sm:$0xf]
      %v8016 = vld [vmem:[%s5 + $0x1e8] sm:$0xf]
      %v8017 = vld [vmem:[%s5 + $0x1ec] sm:$0xf]
      %v8018 = vld [vmem:[%s5 + $0x1f0] sm:$0xf]
      %v8019 = vld [vmem:[%s5 + $0x1f4] sm:$0xf]
      %v8020 = vld [vmem:[%s5 + $0x1f8] sm:$0xf]
      %v8021 = vld [vmem:[%s5 + $0x1fc] sm:$0xf]
      %v8023 = vshrl.u32 %v7941, 16
      %v8025 = vrot.slane %v8023, 3
      %v8043 = vunpack.c.l.b16 %v8006
      %v8044 = vunpack.c.l.b16 %v8007
      %v8045 = vunpack.c.l.b16 %v8008
      %v8046 = vunpack.c.l.b16 %v8009
      %v8047 = vunpack.c.l.b16 %v8010
      %v8048 = vunpack.c.l.b16 %v8011
      %v8049 = vunpack.c.l.b16 %v8012
      %v8050 = vunpack.c.l.b16 %v8013
      %v8051 = vunpack.c.l.b16 %v8014
      %v8052 = vunpack.c.l.b16 %v8015
      %v8053 = vunpack.c.l.b16 %v8016
      %v8054 = vunpack.c.l.b16 %v8017
      %v8055 = vunpack.c.l.b16 %v8018
      %v8056 = vunpack.c.l.b16 %v8019
      %v8057 = vunpack.c.l.b16 %v8020
      %v8058 = vunpack.c.l.b16 %v8021
      %v8059 = vpack.c.b16 %v8044, %v8043
      %v8060 = vpack.c.b16 %v8046, %v8045
      %v8061 = vpack.c.b16 %v8048, %v8047
      %v8062 = vpack.c.b16 %v8050, %v8049
      %v8063 = vpack.c.b16 %v8052, %v8051
      %v8064 = vpack.c.b16 %v8054, %v8053
      %v8065 = vpack.c.b16 %v8056, %v8055
      %v8066 = vpack.c.b16 %v8058, %v8057
      %8075 = vmatpush.bf16.msra.mxu0 %v8066
      %8076 = vmatpush.bf16.msra.mxu0 %v8065
      %8077 = vmatpush.bf16.msra.mxu0 %v8064
      %8078 = vmatpush.bf16.msra.mxu0 %v8063
      %8079 = vmatpush.bf16.msra.mxu0 %v8062
      %8080 = vmatpush.bf16.msra.mxu0 %v8061
      %8081 = vmatpush.bf16.msra.mxu0 %v8060
      %8082 = vmatpush.bf16.msra.mxu0 %v8059
      %8083 = vmatmul.bf16.gmra.mxu0 %v8025
      %v8084 = vpop.f32.mrf.mxu0
      %v8085 = vadd.f32 0.0, %v8084
      %v8086 = vpop.f32.mrf.mxu0
      %8087 = vdwg.mxu0
      %v8088 = vadd.f32 %v8005, %v8085
      %v8089 = vld [vmem:[#allocation6 + $0x4] sm:$0x1]
      %v8090 = vld [vmem:[%s5 + $0x200] sm:$0xf]
      %v8091 = vld [vmem:[%s5 + $0x204] sm:$0xf]
      %v8092 = vld [vmem:[%s5 + $0x208] sm:$0xf]
      %v8093 = vld [vmem:[%s5 + $0x20c] sm:$0xf]
      %v8094 = vld [vmem:[%s5 + $0x210] sm:$0xf]
      %v8095 = vld [vmem:[%s5 + $0x214] sm:$0xf]
      %v8096 = vld [vmem:[%s5 + $0x218] sm:$0xf]
      %v8097 = vld [vmem:[%s5 + $0x21c] sm:$0xf]
      %v8098 = vld [vmem:[%s5 + $0x220] sm:$0xf]
      %v8099 = vld [vmem:[%s5 + $0x224] sm:$0xf]
      %v8100 = vld [vmem:[%s5 + $0x228] sm:$0xf]
      %v8101 = vld [vmem:[%s5 + $0x22c] sm:$0xf]
      %v8102 = vld [vmem:[%s5 + $0x230] sm:$0xf]
      %v8103 = vld [vmem:[%s5 + $0x234] sm:$0xf]
      %v8104 = vld [vmem:[%s5 + $0x238] sm:$0xf]
      %v8105 = vld [vmem:[%s5 + $0x23c] sm:$0xf]
      %v8122 = vunpack.c.l.b16 %v8090
      %v8123 = vunpack.c.l.b16 %v8091
      %v8124 = vunpack.c.l.b16 %v8092
      %v8125 = vunpack.c.l.b16 %v8093
      %v8126 = vunpack.c.l.b16 %v8094
      %v8127 = vunpack.c.l.b16 %v8095
      %v8128 = vunpack.c.l.b16 %v8096
      %v8129 = vunpack.c.l.b16 %v8097
      %v8130 = vunpack.c.l.b16 %v8098
      %v8131 = vunpack.c.l.b16 %v8099
      %v8132 = vunpack.c.l.b16 %v8100
      %v8133 = vunpack.c.l.b16 %v8101
      %v8134 = vunpack.c.l.b16 %v8102
      %v8135 = vunpack.c.l.b16 %v8103
      %v8136 = vunpack.c.l.b16 %v8104
      %v8137 = vunpack.c.l.b16 %v8105
      %v8138 = vpack.c.b16 %v8123, %v8122
      %v8139 = vpack.c.b16 %v8125, %v8124
      %v8140 = vpack.c.b16 %v8127, %v8126
      %v8141 = vpack.c.b16 %v8129, %v8128
      %v8142 = vpack.c.b16 %v8131, %v8130
      %v8143 = vpack.c.b16 %v8133, %v8132
      %v8144 = vpack.c.b16 %v8135, %v8134
      %v8145 = vpack.c.b16 %v8137, %v8136
      %8154 = vmatpush.bf16.msra.mxu0 %v8145
      %8155 = vmatpush.bf16.msra.mxu0 %v8144
      %8156 = vmatpush.bf16.msra.mxu0 %v8143
      %8157 = vmatpush.bf16.msra.mxu0 %v8142
      %8158 = vmatpush.bf16.msra.mxu0 %v8141
      %8159 = vmatpush.bf16.msra.mxu0 %v8140
      %8160 = vmatpush.bf16.msra.mxu0 %v8139
      %8161 = vmatpush.bf16.msra.mxu0 %v8138
      %8162 = vmatmul.bf16.gmra.mxu0 %v8089
      %v8163 = vpop.f32.mrf.mxu0
      %v8164 = vadd.f32 0.0, %v8163
      %v8165 = vpop.f32.mrf.mxu0
      %8166 = vdwg.mxu0
      %v8167 = vadd.f32 %v8088, %v8164
      %v8168 = vld [vmem:[%s5 + $0x240] sm:$0xf]
      %v8169 = vld [vmem:[%s5 + $0x244] sm:$0xf]
      %v8170 = vld [vmem:[%s5 + $0x248] sm:$0xf]
      %v8171 = vld [vmem:[%s5 + $0x24c] sm:$0xf]
      %v8172 = vld [vmem:[%s5 + $0x250] sm:$0xf]
      %v8173 = vld [vmem:[%s5 + $0x254] sm:$0xf]
      %v8174 = vld [vmem:[%s5 + $0x258] sm:$0xf]
      %v8175 = vld [vmem:[%s5 + $0x25c] sm:$0xf]
      %v8176 = vld [vmem:[%s5 + $0x260] sm:$0xf]
      %v8177 = vld [vmem:[%s5 + $0x264] sm:$0xf]
      %v8178 = vld [vmem:[%s5 + $0x268] sm:$0xf]
      %v8179 = vld [vmem:[%s5 + $0x26c] sm:$0xf]
      %v8180 = vld [vmem:[%s5 + $0x270] sm:$0xf]
      %v8181 = vld [vmem:[%s5 + $0x274] sm:$0xf]
      %v8182 = vld [vmem:[%s5 + $0x278] sm:$0xf]
      %v8183 = vld [vmem:[%s5 + $0x27c] sm:$0xf]
      %v8185 = vunpack.c.l.b16 %v8089
      %v8186 = vpack.c.b16 %v8185, %v8185
      %v8188 = vshrl.u32 %v8186, 16
      %v8207 = vunpack.c.l.b16 %v8168
      %v8208 = vunpack.c.l.b16 %v8169
      %v8209 = vunpack.c.l.b16 %v8170
      %v8210 = vunpack.c.l.b16 %v8171
      %v8211 = vunpack.c.l.b16 %v8172
      %v8212 = vunpack.c.l.b16 %v8173
      %v8213 = vunpack.c.l.b16 %v8174
      %v8214 = vunpack.c.l.b16 %v8175
      %v8215 = vunpack.c.l.b16 %v8176
      %v8216 = vunpack.c.l.b16 %v8177
      %v8217 = vunpack.c.l.b16 %v8178
      %v8218 = vunpack.c.l.b16 %v8179
      %v8219 = vunpack.c.l.b16 %v8180
      %v8220 = vunpack.c.l.b16 %v8181
      %v8221 = vunpack.c.l.b16 %v8182
      %v8222 = vunpack.c.l.b16 %v8183
      %v8223 = vpack.c.b16 %v8208, %v8207
      %v8224 = vpack.c.b16 %v8210, %v8209
      %v8225 = vpack.c.b16 %v8212, %v8211
      %v8226 = vpack.c.b16 %v8214, %v8213
      %v8227 = vpack.c.b16 %v8216, %v8215
      %v8228 = vpack.c.b16 %v8218, %v8217
      %v8229 = vpack.c.b16 %v8220, %v8219
      %v8230 = vpack.c.b16 %v8222, %v8221
      %8239 = vmatpush.bf16.msra.mxu0 %v8230
      %8240 = vmatpush.bf16.msra.mxu0 %v8229
      %8241 = vmatpush.bf16.msra.mxu0 %v8228
      %8242 = vmatpush.bf16.msra.mxu0 %v8227
      %8243 = vmatpush.bf16.msra.mxu0 %v8226
      %8244 = vmatpush.bf16.msra.mxu0 %v8225
      %8245 = vmatpush.bf16.msra.mxu0 %v8224
      %8246 = vmatpush.bf16.msra.mxu0 %v8223
      %8247 = vmatmul.bf16.gmra.mxu0 %v8188
      %v8248 = vpop.f32.mrf.mxu0
      %v8249 = vadd.f32 0.0, %v8248
      %v8250 = vpop.f32.mrf.mxu0
      %8251 = vdwg.mxu0
      %v8252 = vadd.f32 %v8167, %v8249
      %v8253 = vld [vmem:[#allocation6 + $0x4] sm:$0x2]
      %v8254 = vld [vmem:[%s5 + $0x280] sm:$0xf]
      %v8255 = vld [vmem:[%s5 + $0x284] sm:$0xf]
      %v8256 = vld [vmem:[%s5 + $0x288] sm:$0xf]
      %v8257 = vld [vmem:[%s5 + $0x28c] sm:$0xf]
      %v8258 = vld [vmem:[%s5 + $0x290] sm:$0xf]
      %v8259 = vld [vmem:[%s5 + $0x294] sm:$0xf]
      %v8260 = vld [vmem:[%s5 + $0x298] sm:$0xf]
      %v8261 = vld [vmem:[%s5 + $0x29c] sm:$0xf]
      %v8262 = vld [vmem:[%s5 + $0x2a0] sm:$0xf]
      %v8263 = vld [vmem:[%s5 + $0x2a4] sm:$0xf]
      %v8264 = vld [vmem:[%s5 + $0x2a8] sm:$0xf]
      %v8265 = vld [vmem:[%s5 + $0x2ac] sm:$0xf]
      %v8266 = vld [vmem:[%s5 + $0x2b0] sm:$0xf]
      %v8267 = vld [vmem:[%s5 + $0x2b4] sm:$0xf]
      %v8268 = vld [vmem:[%s5 + $0x2b8] sm:$0xf]
      %v8269 = vld [vmem:[%s5 + $0x2bc] sm:$0xf]
      %v8271 = vunpack.c.l.b16 %v8253
      %v8272 = vpack.c.b16 %v8271, %v8271
      %v8273 = vrot.slane %v8272, 1
      %v8291 = vunpack.c.l.b16 %v8254
      %v8292 = vunpack.c.l.b16 %v8255
      %v8293 = vunpack.c.l.b16 %v8256
      %v8294 = vunpack.c.l.b16 %v8257
      %v8295 = vunpack.c.l.b16 %v8258
      %v8296 = vunpack.c.l.b16 %v8259
      %v8297 = vunpack.c.l.b16 %v8260
      %v8298 = vunpack.c.l.b16 %v8261
      %v8299 = vunpack.c.l.b16 %v8262
      %v8300 = vunpack.c.l.b16 %v8263
      %v8301 = vunpack.c.l.b16 %v8264
      %v8302 = vunpack.c.l.b16 %v8265
      %v8303 = vunpack.c.l.b16 %v8266
      %v8304 = vunpack.c.l.b16 %v8267
      %v8305 = vunpack.c.l.b16 %v8268
      %v8306 = vunpack.c.l.b16 %v8269
      %v8307 = vpack.c.b16 %v8292, %v8291
      %v8308 = vpack.c.b16 %v8294, %v8293
      %v8309 = vpack.c.b16 %v8296, %v8295
      %v8310 = vpack.c.b16 %v8298, %v8297
      %v8311 = vpack.c.b16 %v8300, %v8299
      %v8312 = vpack.c.b16 %v8302, %v8301
      %v8313 = vpack.c.b16 %v8304, %v8303
      %v8314 = vpack.c.b16 %v8306, %v8305
      %8323 = vmatpush.bf16.msra.mxu0 %v8314
      %8324 = vmatpush.bf16.msra.mxu0 %v8313
      %8325 = vmatpush.bf16.msra.mxu0 %v8312
      %8326 = vmatpush.bf16.msra.mxu0 %v8311
      %8327 = vmatpush.bf16.msra.mxu0 %v8310
      %8328 = vmatpush.bf16.msra.mxu0 %v8309
      %8329 = vmatpush.bf16.msra.mxu0 %v8308
      %8330 = vmatpush.bf16.msra.mxu0 %v8307
      %8331 = vmatmul.bf16.gmra.mxu0 %v8273
      %v8332 = vpop.f32.mrf.mxu0
      %v8333 = vadd.f32 0.0, %v8332
      %v8334 = vpop.f32.mrf.mxu0
      %8335 = vdwg.mxu0
      %v8336 = vadd.f32 %v8252, %v8333
      %v8337 = vld [vmem:[%s5 + $0x2c0] sm:$0xf]
      %v8338 = vld [vmem:[%s5 + $0x2c4] sm:$0xf]
      %v8339 = vld [vmem:[%s5 + $0x2c8] sm:$0xf]
      %v8340 = vld [vmem:[%s5 + $0x2cc] sm:$0xf]
      %v8341 = vld [vmem:[%s5 + $0x2d0] sm:$0xf]
      %v8342 = vld [vmem:[%s5 + $0x2d4] sm:$0xf]
      %v8343 = vld [vmem:[%s5 + $0x2d8] sm:$0xf]
      %v8344 = vld [vmem:[%s5 + $0x2dc] sm:$0xf]
      %v8345 = vld [vmem:[%s5 + $0x2e0] sm:$0xf]
      %v8346 = vld [vmem:[%s5 + $0x2e4] sm:$0xf]
      %v8347 = vld [vmem:[%s5 + $0x2e8] sm:$0xf]
      %v8348 = vld [vmem:[%s5 + $0x2ec] sm:$0xf]
      %v8349 = vld [vmem:[%s5 + $0x2f0] sm:$0xf]
      %v8350 = vld [vmem:[%s5 + $0x2f4] sm:$0xf]
      %v8351 = vld [vmem:[%s5 + $0x2f8] sm:$0xf]
      %v8352 = vld [vmem:[%s5 + $0x2fc] sm:$0xf]
      %v8354 = vshrl.u32 %v8272, 16
      %v8356 = vrot.slane %v8354, 1
      %v8374 = vunpack.c.l.b16 %v8337
      %v8375 = vunpack.c.l.b16 %v8338
      %v8376 = vunpack.c.l.b16 %v8339
      %v8377 = vunpack.c.l.b16 %v8340
      %v8378 = vunpack.c.l.b16 %v8341
      %v8379 = vunpack.c.l.b16 %v8342
      %v8380 = vunpack.c.l.b16 %v8343
      %v8381 = vunpack.c.l.b16 %v8344
      %v8382 = vunpack.c.l.b16 %v8345
      %v8383 = vunpack.c.l.b16 %v8346
      %v8384 = vunpack.c.l.b16 %v8347
      %v8385 = vunpack.c.l.b16 %v8348
      %v8386 = vunpack.c.l.b16 %v8349
      %v8387 = vunpack.c.l.b16 %v8350
      %v8388 = vunpack.c.l.b16 %v8351
      %v8389 = vunpack.c.l.b16 %v8352
      %v8390 = vpack.c.b16 %v8375, %v8374
      %v8391 = vpack.c.b16 %v8377, %v8376
      %v8392 = vpack.c.b16 %v8379, %v8378
      %v8393 = vpack.c.b16 %v8381, %v8380
      %v8394 = vpack.c.b16 %v8383, %v8382
      %v8395 = vpack.c.b16 %v8385, %v8384
      %v8396 = vpack.c.b16 %v8387, %v8386
      %v8397 = vpack.c.b16 %v8389, %v8388
      %8406 = vmatpush.bf16.msra.mxu0 %v8397
      %8407 = vmatpush.bf16.msra.mxu0 %v8396
      %8408 = vmatpush.bf16.msra.mxu0 %v8395
      %8409 = vmatpush.bf16.msra.mxu0 %v8394
      %8410 = vmatpush.bf16.msra.mxu0 %v8393
      %8411 = vmatpush.bf16.msra.mxu0 %v8392
      %8412 = vmatpush.bf16.msra.mxu0 %v8391
      %8413 = vmatpush.bf16.msra.mxu0 %v8390
      %8414 = vmatmul.bf16.gmra.mxu0 %v8356
      %v8415 = vpop.f32.mrf.mxu0
      %v8416 = vadd.f32 0.0, %v8415
      %v8417 = vpop.f32.mrf.mxu0
      %8418 = vdwg.mxu0
      %v8419 = vadd.f32 %v8336, %v8416
      %v8420 = vld [vmem:[#allocation6 + $0x4] sm:$0x4]
      %v8421 = vld [vmem:[%s5 + $0x300] sm:$0xf]
      %v8422 = vld [vmem:[%s5 + $0x304] sm:$0xf]
      %v8423 = vld [vmem:[%s5 + $0x308] sm:$0xf]
      %v8424 = vld [vmem:[%s5 + $0x30c] sm:$0xf]
      %v8425 = vld [vmem:[%s5 + $0x310] sm:$0xf]
      %v8426 = vld [vmem:[%s5 + $0x314] sm:$0xf]
      %v8427 = vld [vmem:[%s5 + $0x318] sm:$0xf]
      %v8428 = vld [vmem:[%s5 + $0x31c] sm:$0xf]
      %v8429 = vld [vmem:[%s5 + $0x320] sm:$0xf]
      %v8430 = vld [vmem:[%s5 + $0x324] sm:$0xf]
      %v8431 = vld [vmem:[%s5 + $0x328] sm:$0xf]
      %v8432 = vld [vmem:[%s5 + $0x32c] sm:$0xf]
      %v8433 = vld [vmem:[%s5 + $0x330] sm:$0xf]
      %v8434 = vld [vmem:[%s5 + $0x334] sm:$0xf]
      %v8435 = vld [vmem:[%s5 + $0x338] sm:$0xf]
      %v8436 = vld [vmem:[%s5 + $0x33c] sm:$0xf]
      %v8438 = vunpack.c.l.b16 %v8420
      %v8439 = vpack.c.b16 %v8438, %v8438
      %v8440 = vrot.slane %v8439, 2
      %v8458 = vunpack.c.l.b16 %v8421
      %v8459 = vunpack.c.l.b16 %v8422
      %v8460 = vunpack.c.l.b16 %v8423
      %v8461 = vunpack.c.l.b16 %v8424
      %v8462 = vunpack.c.l.b16 %v8425
      %v8463 = vunpack.c.l.b16 %v8426
      %v8464 = vunpack.c.l.b16 %v8427
      %v8465 = vunpack.c.l.b16 %v8428
      %v8466 = vunpack.c.l.b16 %v8429
      %v8467 = vunpack.c.l.b16 %v8430
      %v8468 = vunpack.c.l.b16 %v8431
      %v8469 = vunpack.c.l.b16 %v8432
      %v8470 = vunpack.c.l.b16 %v8433
      %v8471 = vunpack.c.l.b16 %v8434
      %v8472 = vunpack.c.l.b16 %v8435
      %v8473 = vunpack.c.l.b16 %v8436
      %v8474 = vpack.c.b16 %v8459, %v8458
      %v8475 = vpack.c.b16 %v8461, %v8460
      %v8476 = vpack.c.b16 %v8463, %v8462
      %v8477 = vpack.c.b16 %v8465, %v8464
      %v8478 = vpack.c.b16 %v8467, %v8466
      %v8479 = vpack.c.b16 %v8469, %v8468
      %v8480 = vpack.c.b16 %v8471, %v8470
      %v8481 = vpack.c.b16 %v8473, %v8472
      %8490 = vmatpush.bf16.msra.mxu0 %v8481
      %8491 = vmatpush.bf16.msra.mxu0 %v8480
      %8492 = vmatpush.bf16.msra.mxu0 %v8479
      %8493 = vmatpush.bf16.msra.mxu0 %v8478
      %8494 = vmatpush.bf16.msra.mxu0 %v8477
      %8495 = vmatpush.bf16.msra.mxu0 %v8476
      %8496 = vmatpush.bf16.msra.mxu0 %v8475
      %8497 = vmatpush.bf16.msra.mxu0 %v8474
      %8498 = vmatmul.bf16.gmra.mxu0 %v8440
      %v8499 = vpop.f32.mrf.mxu0
      %v8500 = vadd.f32 0.0, %v8499
      %v8501 = vpop.f32.mrf.mxu0
      %8502 = vdwg.mxu0
      %v8503 = vadd.f32 %v8419, %v8500
      %v8504 = vld [vmem:[%s5 + $0x340] sm:$0xf]
      %v8505 = vld [vmem:[%s5 + $0x344] sm:$0xf]
      %v8506 = vld [vmem:[%s5 + $0x348] sm:$0xf]
      %v8507 = vld [vmem:[%s5 + $0x34c] sm:$0xf]
      %v8508 = vld [vmem:[%s5 + $0x350] sm:$0xf]
      %v8509 = vld [vmem:[%s5 + $0x354] sm:$0xf]
      %v8510 = vld [vmem:[%s5 + $0x358] sm:$0xf]
      %v8511 = vld [vmem:[%s5 + $0x35c] sm:$0xf]
      %v8512 = vld [vmem:[%s5 + $0x360] sm:$0xf]
      %v8513 = vld [vmem:[%s5 + $0x364] sm:$0xf]
      %v8514 = vld [vmem:[%s5 + $0x368] sm:$0xf]
      %v8515 = vld [vmem:[%s5 + $0x36c] sm:$0xf]
      %v8516 = vld [vmem:[%s5 + $0x370] sm:$0xf]
      %v8517 = vld [vmem:[%s5 + $0x374] sm:$0xf]
      %v8518 = vld [vmem:[%s5 + $0x378] sm:$0xf]
      %v8519 = vld [vmem:[%s5 + $0x37c] sm:$0xf]
      %v8521 = vshrl.u32 %v8439, 16
      %v8523 = vrot.slane %v8521, 2
      %v8541 = vunpack.c.l.b16 %v8504
      %v8542 = vunpack.c.l.b16 %v8505
      %v8543 = vunpack.c.l.b16 %v8506
      %v8544 = vunpack.c.l.b16 %v8507
      %v8545 = vunpack.c.l.b16 %v8508
      %v8546 = vunpack.c.l.b16 %v8509
      %v8547 = vunpack.c.l.b16 %v8510
      %v8548 = vunpack.c.l.b16 %v8511
      %v8549 = vunpack.c.l.b16 %v8512
      %v8550 = vunpack.c.l.b16 %v8513
      %v8551 = vunpack.c.l.b16 %v8514
      %v8552 = vunpack.c.l.b16 %v8515
      %v8553 = vunpack.c.l.b16 %v8516
      %v8554 = vunpack.c.l.b16 %v8517
      %v8555 = vunpack.c.l.b16 %v8518
      %v8556 = vunpack.c.l.b16 %v8519
      %v8557 = vpack.c.b16 %v8542, %v8541
      %v8558 = vpack.c.b16 %v8544, %v8543
      %v8559 = vpack.c.b16 %v8546, %v8545
      %v8560 = vpack.c.b16 %v8548, %v8547
      %v8561 = vpack.c.b16 %v8550, %v8549
      %v8562 = vpack.c.b16 %v8552, %v8551
      %v8563 = vpack.c.b16 %v8554, %v8553
      %v8564 = vpack.c.b16 %v8556, %v8555
      %8573 = vmatpush.bf16.msra.mxu0 %v8564
      %8574 = vmatpush.bf16.msra.mxu0 %v8563
      %8575 = vmatpush.bf16.msra.mxu0 %v8562
      %8576 = vmatpush.bf16.msra.mxu0 %v8561
      %8577 = vmatpush.bf16.msra.mxu0 %v8560
      %8578 = vmatpush.bf16.msra.mxu0 %v8559
      %8579 = vmatpush.bf16.msra.mxu0 %v8558
      %8580 = vmatpush.bf16.msra.mxu0 %v8557
      %8581 = vmatmul.bf16.gmra.mxu0 %v8523
      %v8582 = vpop.f32.mrf.mxu0
      %v8583 = vadd.f32 0.0, %v8582
      %v8584 = vpop.f32.mrf.mxu0
      %8585 = vdwg.mxu0
      %v8586 = vadd.f32 %v8503, %v8583
      %v8587 = vld [vmem:[#allocation6 + $0x4] sm:$0x8]
      %v8588 = vld [vmem:[%s5 + $0x380] sm:$0xf]
      %v8589 = vld [vmem:[%s5 + $0x384] sm:$0xf]
      %v8590 = vld [vmem:[%s5 + $0x388] sm:$0xf]
      %v8591 = vld [vmem:[%s5 + $0x38c] sm:$0xf]
      %v8592 = vld [vmem:[%s5 + $0x390] sm:$0xf]
      %v8593 = vld [vmem:[%s5 + $0x394] sm:$0xf]
      %v8594 = vld [vmem:[%s5 + $0x398] sm:$0xf]
      %v8595 = vld [vmem:[%s5 + $0x39c] sm:$0xf]
      %v8596 = vld [vmem:[%s5 + $0x3a0] sm:$0xf]
      %v8597 = vld [vmem:[%s5 + $0x3a4] sm:$0xf]
      %v8598 = vld [vmem:[%s5 + $0x3a8] sm:$0xf]
      %v8599 = vld [vmem:[%s5 + $0x3ac] sm:$0xf]
      %v8600 = vld [vmem:[%s5 + $0x3b0] sm:$0xf]
      %v8601 = vld [vmem:[%s5 + $0x3b4] sm:$0xf]
      %v8602 = vld [vmem:[%s5 + $0x3b8] sm:$0xf]
      %v8603 = vld [vmem:[%s5 + $0x3bc] sm:$0xf]
      %v8605 = vunpack.c.l.b16 %v8587
      %v8606 = vpack.c.b16 %v8605, %v8605
      %v8607 = vrot.slane %v8606, 3
      %v8625 = vunpack.c.l.b16 %v8588
      %v8626 = vunpack.c.l.b16 %v8589
      %v8627 = vunpack.c.l.b16 %v8590
      %v8628 = vunpack.c.l.b16 %v8591
      %v8629 = vunpack.c.l.b16 %v8592
      %v8630 = vunpack.c.l.b16 %v8593
      %v8631 = vunpack.c.l.b16 %v8594
      %v8632 = vunpack.c.l.b16 %v8595
      %v8633 = vunpack.c.l.b16 %v8596
      %v8634 = vunpack.c.l.b16 %v8597
      %v8635 = vunpack.c.l.b16 %v8598
      %v8636 = vunpack.c.l.b16 %v8599
      %v8637 = vunpack.c.l.b16 %v8600
      %v8638 = vunpack.c.l.b16 %v8601
      %v8639 = vunpack.c.l.b16 %v8602
      %v8640 = vunpack.c.l.b16 %v8603
      %v8641 = vpack.c.b16 %v8626, %v8625
      %v8642 = vpack.c.b16 %v8628, %v8627
      %v8643 = vpack.c.b16 %v8630, %v8629
      %v8644 = vpack.c.b16 %v8632, %v8631
      %v8645 = vpack.c.b16 %v8634, %v8633
      %v8646 = vpack.c.b16 %v8636, %v8635
      %v8647 = vpack.c.b16 %v8638, %v8637
      %v8648 = vpack.c.b16 %v8640, %v8639
      %8657 = vmatpush.bf16.msra.mxu0 %v8648
      %8658 = vmatpush.bf16.msra.mxu0 %v8647
      %8659 = vmatpush.bf16.msra.mxu0 %v8646
      %8660 = vmatpush.bf16.msra.mxu0 %v8645
      %8661 = vmatpush.bf16.msra.mxu0 %v8644
      %8662 = vmatpush.bf16.msra.mxu0 %v8643
      %8663 = vmatpush.bf16.msra.mxu0 %v8642
      %8664 = vmatpush.bf16.msra.mxu0 %v8641
      %8665 = vmatmul.bf16.gmra.mxu0 %v8607
      %v8666 = vpop.f32.mrf.mxu0
      %v8667 = vadd.f32 0.0, %v8666
      %v8668 = vpop.f32.mrf.mxu0
      %8669 = vdwg.mxu0
      %v8670 = vadd.f32 %v8586, %v8667
      %v8671 = vld [vmem:[%s5 + $0x3c0] sm:$0xf]
      %v8672 = vld [vmem:[%s5 + $0x3c4] sm:$0xf]
      %v8673 = vld [vmem:[%s5 + $0x3c8] sm:$0xf]
      %v8674 = vld [vmem:[%s5 + $0x3cc] sm:$0xf]
      %v8675 = vld [vmem:[%s5 + $0x3d0] sm:$0xf]
      %v8676 = vld [vmem:[%s5 + $0x3d4] sm:$0xf]
      %v8677 = vld [vmem:[%s5 + $0x3d8] sm:$0xf]
      %v8678 = vld [vmem:[%s5 + $0x3dc] sm:$0xf]
      %v8679 = vld [vmem:[%s5 + $0x3e0] sm:$0xf]
      %v8680 = vld [vmem:[%s5 + $0x3e4] sm:$0xf]
      %v8681 = vld [vmem:[%s5 + $0x3e8] sm:$0xf]
      %v8682 = vld [vmem:[%s5 + $0x3ec] sm:$0xf]
      %v8683 = vld [vmem:[%s5 + $0x3f0] sm:$0xf]
      %v8684 = vld [vmem:[%s5 + $0x3f4] sm:$0xf]
      %v8685 = vld [vmem:[%s5 + $0x3f8] sm:$0xf]
      %v8686 = vld [vmem:[%s5 + $0x3fc] sm:$0xf]
      %v8688 = vshrl.u32 %v8606, 16
      %v8690 = vrot.slane %v8688, 3
      %v8708 = vunpack.c.l.b16 %v8671
      %v8709 = vunpack.c.l.b16 %v8672
      %v8710 = vunpack.c.l.b16 %v8673
      %v8711 = vunpack.c.l.b16 %v8674
      %v8712 = vunpack.c.l.b16 %v8675
      %v8713 = vunpack.c.l.b16 %v8676
      %v8714 = vunpack.c.l.b16 %v8677
      %v8715 = vunpack.c.l.b16 %v8678
      %v8716 = vunpack.c.l.b16 %v8679
      %v8717 = vunpack.c.l.b16 %v8680
      %v8718 = vunpack.c.l.b16 %v8681
      %v8719 = vunpack.c.l.b16 %v8682
      %v8720 = vunpack.c.l.b16 %v8683
      %v8721 = vunpack.c.l.b16 %v8684
      %v8722 = vunpack.c.l.b16 %v8685
      %v8723 = vunpack.c.l.b16 %v8686
      %v8724 = vpack.c.b16 %v8709, %v8708
      %v8725 = vpack.c.b16 %v8711, %v8710
      %v8726 = vpack.c.b16 %v8713, %v8712
      %v8727 = vpack.c.b16 %v8715, %v8714
      %v8728 = vpack.c.b16 %v8717, %v8716
      %v8729 = vpack.c.b16 %v8719, %v8718
      %v8730 = vpack.c.b16 %v8721, %v8720
      %v8731 = vpack.c.b16 %v8723, %v8722
      %8740 = vmatpush.bf16.msra.mxu0 %v8731
      %8741 = vmatpush.bf16.msra.mxu0 %v8730
      %8742 = vmatpush.bf16.msra.mxu0 %v8729
      %8743 = vmatpush.bf16.msra.mxu0 %v8728
      %8744 = vmatpush.bf16.msra.mxu0 %v8727
      %8745 = vmatpush.bf16.msra.mxu0 %v8726
      %8746 = vmatpush.bf16.msra.mxu0 %v8725
      %8747 = vmatpush.bf16.msra.mxu0 %v8724
      %8748 = vmatmul.bf16.gmra.mxu0 %v8690
      %v8749 = vpop.f32.mrf.mxu0
      %v8750 = vadd.f32 0.0, %v8749
      %v8751 = vpop.f32.mrf.mxu0
      %8752 = vdwg.mxu0
      %v8753 = vadd.f32 %v8670, %v8750
      %v8754 = vld [vmem:[#allocation6 + $0x8] sm:$0x1]
      %v8755 = vld [vmem:[%s5 + $0x400] sm:$0xf]
      %v8756 = vld [vmem:[%s5 + $0x404] sm:$0xf]
      %v8757 = vld [vmem:[%s5 + $0x408] sm:$0xf]
      %v8758 = vld [vmem:[%s5 + $0x40c] sm:$0xf]
      %v8759 = vld [vmem:[%s5 + $0x410] sm:$0xf]
      %v8760 = vld [vmem:[%s5 + $0x414] sm:$0xf]
      %v8761 = vld [vmem:[%s5 + $0x418] sm:$0xf]
      %v8762 = vld [vmem:[%s5 + $0x41c] sm:$0xf]
      %v8763 = vld [vmem:[%s5 + $0x420] sm:$0xf]
      %v8764 = vld [vmem:[%s5 + $0x424] sm:$0xf]
      %v8765 = vld [vmem:[%s5 + $0x428] sm:$0xf]
      %v8766 = vld [vmem:[%s5 + $0x42c] sm:$0xf]
      %v8767 = vld [vmem:[%s5 + $0x430] sm:$0xf]
      %v8768 = vld [vmem:[%s5 + $0x434] sm:$0xf]
      %v8769 = vld [vmem:[%s5 + $0x438] sm:$0xf]
      %v8770 = vld [vmem:[%s5 + $0x43c] sm:$0xf]
      %v8787 = vunpack.c.l.b16 %v8755
      %v8788 = vunpack.c.l.b16 %v8756
      %v8789 = vunpack.c.l.b16 %v8757
      %v8790 = vunpack.c.l.b16 %v8758
      %v8791 = vunpack.c.l.b16 %v8759
      %v8792 = vunpack.c.l.b16 %v8760
      %v8793 = vunpack.c.l.b16 %v8761
      %v8794 = vunpack.c.l.b16 %v8762
      %v8795 = vunpack.c.l.b16 %v8763
      %v8796 = vunpack.c.l.b16 %v8764
      %v8797 = vunpack.c.l.b16 %v8765
      %v8798 = vunpack.c.l.b16 %v8766
      %v8799 = vunpack.c.l.b16 %v8767
      %v8800 = vunpack.c.l.b16 %v8768
      %v8801 = vunpack.c.l.b16 %v8769
      %v8802 = vunpack.c.l.b16 %v8770
      %v8803 = vpack.c.b16 %v8788, %v8787
      %v8804 = vpack.c.b16 %v8790, %v8789
      %v8805 = vpack.c.b16 %v8792, %v8791
      %v8806 = vpack.c.b16 %v8794, %v8793
      %v8807 = vpack.c.b16 %v8796, %v8795
      %v8808 = vpack.c.b16 %v8798, %v8797
      %v8809 = vpack.c.b16 %v8800, %v8799
      %v8810 = vpack.c.b16 %v8802, %v8801
      %8819 = vmatpush.bf16.msra.mxu0 %v8810
      %8820 = vmatpush.bf16.msra.mxu0 %v8809
      %8821 = vmatpush.bf16.msra.mxu0 %v8808
      %8822 = vmatpush.bf16.msra.mxu0 %v8807
      %8823 = vmatpush.bf16.msra.mxu0 %v8806
      %8824 = vmatpush.bf16.msra.mxu0 %v8805
      %8825 = vmatpush.bf16.msra.mxu0 %v8804
      %8826 = vmatpush.bf16.msra.mxu0 %v8803
      %8827 = vmatmul.bf16.gmra.mxu0 %v8754
      %v8828 = vpop.f32.mrf.mxu0
      %v8829 = vadd.f32 0.0, %v8828
      %v8830 = vpop.f32.mrf.mxu0
      %8831 = vdwg.mxu0
      %v8832 = vadd.f32 %v8753, %v8829
      %v8833 = vld [vmem:[%s5 + $0x440] sm:$0xf]
      %v8834 = vld [vmem:[%s5 + $0x444] sm:$0xf]
      %v8835 = vld [vmem:[%s5 + $0x448] sm:$0xf]
      %v8836 = vld [vmem:[%s5 + $0x44c] sm:$0xf]
      %v8837 = vld [vmem:[%s5 + $0x450] sm:$0xf]
      %v8838 = vld [vmem:[%s5 + $0x454] sm:$0xf]
      %v8839 = vld [vmem:[%s5 + $0x458] sm:$0xf]
      %v8840 = vld [vmem:[%s5 + $0x45c] sm:$0xf]
      %v8841 = vld [vmem:[%s5 + $0x460] sm:$0xf]
      %v8842 = vld [vmem:[%s5 + $0x464] sm:$0xf]
      %v8843 = vld [vmem:[%s5 + $0x468] sm:$0xf]
      %v8844 = vld [vmem:[%s5 + $0x46c] sm:$0xf]
      %v8845 = vld [vmem:[%s5 + $0x470] sm:$0xf]
      %v8846 = vld [vmem:[%s5 + $0x474] sm:$0xf]
      %v8847 = vld [vmem:[%s5 + $0x478] sm:$0xf]
      %v8848 = vld [vmem:[%s5 + $0x47c] sm:$0xf]
      %v8850 = vunpack.c.l.b16 %v8754
      %v8851 = vpack.c.b16 %v8850, %v8850
      %v8853 = vshrl.u32 %v8851, 16
      %v8872 = vunpack.c.l.b16 %v8833
      %v8873 = vunpack.c.l.b16 %v8834
      %v8874 = vunpack.c.l.b16 %v8835
      %v8875 = vunpack.c.l.b16 %v8836
      %v8876 = vunpack.c.l.b16 %v8837
      %v8877 = vunpack.c.l.b16 %v8838
      %v8878 = vunpack.c.l.b16 %v8839
      %v8879 = vunpack.c.l.b16 %v8840
      %v8880 = vunpack.c.l.b16 %v8841
      %v8881 = vunpack.c.l.b16 %v8842
      %v8882 = vunpack.c.l.b16 %v8843
      %v8883 = vunpack.c.l.b16 %v8844
      %v8884 = vunpack.c.l.b16 %v8845
      %v8885 = vunpack.c.l.b16 %v8846
      %v8886 = vunpack.c.l.b16 %v8847
      %v8887 = vunpack.c.l.b16 %v8848
      %v8888 = vpack.c.b16 %v8873, %v8872
      %v8889 = vpack.c.b16 %v8875, %v8874
      %v8890 = vpack.c.b16 %v8877, %v8876
      %v8891 = vpack.c.b16 %v8879, %v8878
      %v8892 = vpack.c.b16 %v8881, %v8880
      %v8893 = vpack.c.b16 %v8883, %v8882
      %v8894 = vpack.c.b16 %v8885, %v8884
      %v8895 = vpack.c.b16 %v8887, %v8886
      %8904 = vmatpush.bf16.msra.mxu0 %v8895
      %8905 = vmatpush.bf16.msra.mxu0 %v8894
      %8906 = vmatpush.bf16.msra.mxu0 %v8893
      %8907 = vmatpush.bf16.msra.mxu0 %v8892
      %8908 = vmatpush.bf16.msra.mxu0 %v8891
      %8909 = vmatpush.bf16.msra.mxu0 %v8890
      %8910 = vmatpush.bf16.msra.mxu0 %v8889
      %8911 = vmatpush.bf16.msra.mxu0 %v8888
      %8912 = vmatmul.bf16.gmra.mxu0 %v8853
      %v8913 = vpop.f32.mrf.mxu0
      %v8914 = vadd.f32 0.0, %v8913
      %v8915 = vpop.f32.mrf.mxu0
      %8916 = vdwg.mxu0
      %v8917 = vadd.f32 %v8832, %v8914
      %v8918 = vld [vmem:[#allocation6 + $0x8] sm:$0x2]
      %v8919 = vld [vmem:[%s5 + $0x480] sm:$0xf]
      %v8920 = vld [vmem:[%s5 + $0x484] sm:$0xf]
      %v8921 = vld [vmem:[%s5 + $0x488] sm:$0xf]
      %v8922 = vld [vmem:[%s5 + $0x48c] sm:$0xf]
      %v8923 = vld [vmem:[%s5 + $0x490] sm:$0xf]
      %v8924 = vld [vmem:[%s5 + $0x494] sm:$0xf]
      %v8925 = vld [vmem:[%s5 + $0x498] sm:$0xf]
      %v8926 = vld [vmem:[%s5 + $0x49c] sm:$0xf]
      %v8927 = vld [vmem:[%s5 + $0x4a0] sm:$0xf]
      %v8928 = vld [vmem:[%s5 + $0x4a4] sm:$0xf]
      %v8929 = vld [vmem:[%s5 + $0x4a8] sm:$0xf]
      %v8930 = vld [vmem:[%s5 + $0x4ac] sm:$0xf]
      %v8931 = vld [vmem:[%s5 + $0x4b0] sm:$0xf]
      %v8932 = vld [vmem:[%s5 + $0x4b4] sm:$0xf]
      %v8933 = vld [vmem:[%s5 + $0x4b8] sm:$0xf]
      %v8934 = vld [vmem:[%s5 + $0x4bc] sm:$0xf]
      %v8936 = vunpack.c.l.b16 %v8918
      %v8937 = vpack.c.b16 %v8936, %v8936
      %v8938 = vrot.slane %v8937, 1
      %v8956 = vunpack.c.l.b16 %v8919
      %v8957 = vunpack.c.l.b16 %v8920
      %v8958 = vunpack.c.l.b16 %v8921
      %v8959 = vunpack.c.l.b16 %v8922
      %v8960 = vunpack.c.l.b16 %v8923
      %v8961 = vunpack.c.l.b16 %v8924
      %v8962 = vunpack.c.l.b16 %v8925
      %v8963 = vunpack.c.l.b16 %v8926
      %v8964 = vunpack.c.l.b16 %v8927
      %v8965 = vunpack.c.l.b16 %v8928
      %v8966 = vunpack.c.l.b16 %v8929
      %v8967 = vunpack.c.l.b16 %v8930
      %v8968 = vunpack.c.l.b16 %v8931
      %v8969 = vunpack.c.l.b16 %v8932
      %v8970 = vunpack.c.l.b16 %v8933
      %v8971 = vunpack.c.l.b16 %v8934
      %v8972 = vpack.c.b16 %v8957, %v8956
      %v8973 = vpack.c.b16 %v8959, %v8958
      %v8974 = vpack.c.b16 %v8961, %v8960
      %v8975 = vpack.c.b16 %v8963, %v8962
      %v8976 = vpack.c.b16 %v8965, %v8964
      %v8977 = vpack.c.b16 %v8967, %v8966
      %v8978 = vpack.c.b16 %v8969, %v8968
      %v8979 = vpack.c.b16 %v8971, %v8970
      %8988 = vmatpush.bf16.msra.mxu0 %v8979
      %8989 = vmatpush.bf16.msra.mxu0 %v8978
      %8990 = vmatpush.bf16.msra.mxu0 %v8977
      %8991 = vmatpush.bf16.msra.mxu0 %v8976
      %8992 = vmatpush.bf16.msra.mxu0 %v8975
      %8993 = vmatpush.bf16.msra.mxu0 %v8974
      %8994 = vmatpush.bf16.msra.mxu0 %v8973
      %8995 = vmatpush.bf16.msra.mxu0 %v8972
      %8996 = vmatmul.bf16.gmra.mxu0 %v8938
      %v8997 = vpop.f32.mrf.mxu0
      %v8998 = vadd.f32 0.0, %v8997
      %v8999 = vpop.f32.mrf.mxu0
      %9000 = vdwg.mxu0
      %v9001 = vadd.f32 %v8917, %v8998
      %v9002 = vld [vmem:[%s5 + $0x4c0] sm:$0xf]
      %v9003 = vld [vmem:[%s5 + $0x4c4] sm:$0xf]
      %v9004 = vld [vmem:[%s5 + $0x4c8] sm:$0xf]
      %v9005 = vld [vmem:[%s5 + $0x4cc] sm:$0xf]
      %v9006 = vld [vmem:[%s5 + $0x4d0] sm:$0xf]
      %v9007 = vld [vmem:[%s5 + $0x4d4] sm:$0xf]
      %v9008 = vld [vmem:[%s5 + $0x4d8] sm:$0xf]
      %v9009 = vld [vmem:[%s5 + $0x4dc] sm:$0xf]
      %v9010 = vld [vmem:[%s5 + $0x4e0] sm:$0xf]
      %v9011 = vld [vmem:[%s5 + $0x4e4] sm:$0xf]
      %v9012 = vld [vmem:[%s5 + $0x4e8] sm:$0xf]
      %v9013 = vld [vmem:[%s5 + $0x4ec] sm:$0xf]
      %v9014 = vld [vmem:[%s5 + $0x4f0] sm:$0xf]
      %v9015 = vld [vmem:[%s5 + $0x4f4] sm:$0xf]
      %v9016 = vld [vmem:[%s5 + $0x4f8] sm:$0xf]
      %v9017 = vld [vmem:[%s5 + $0x4fc] sm:$0xf]
      %v9019 = vshrl.u32 %v8937, 16
      %v9021 = vrot.slane %v9019, 1
      %v9039 = vunpack.c.l.b16 %v9002
      %v9040 = vunpack.c.l.b16 %v9003
      %v9041 = vunpack.c.l.b16 %v9004
      %v9042 = vunpack.c.l.b16 %v9005
      %v9043 = vunpack.c.l.b16 %v9006
      %v9044 = vunpack.c.l.b16 %v9007
      %v9045 = vunpack.c.l.b16 %v9008
      %v9046 = vunpack.c.l.b16 %v9009
      %v9047 = vunpack.c.l.b16 %v9010
      %v9048 = vunpack.c.l.b16 %v9011
      %v9049 = vunpack.c.l.b16 %v9012
      %v9050 = vunpack.c.l.b16 %v9013
      %v9051 = vunpack.c.l.b16 %v9014
      %v9052 = vunpack.c.l.b16 %v9015
      %v9053 = vunpack.c.l.b16 %v9016
      %v9054 = vunpack.c.l.b16 %v9017
      %v9055 = vpack.c.b16 %v9040, %v9039
      %v9056 = vpack.c.b16 %v9042, %v9041
      %v9057 = vpack.c.b16 %v9044, %v9043
      %v9058 = vpack.c.b16 %v9046, %v9045
      %v9059 = vpack.c.b16 %v9048, %v9047
      %v9060 = vpack.c.b16 %v9050, %v9049
      %v9061 = vpack.c.b16 %v9052, %v9051
      %v9062 = vpack.c.b16 %v9054, %v9053
      %9071 = vmatpush.bf16.msra.mxu0 %v9062
      %9072 = vmatpush.bf16.msra.mxu0 %v9061
      %9073 = vmatpush.bf16.msra.mxu0 %v9060
      %9074 = vmatpush.bf16.msra.mxu0 %v9059
      %9075 = vmatpush.bf16.msra.mxu0 %v9058
      %9076 = vmatpush.bf16.msra.mxu0 %v9057
      %9077 = vmatpush.bf16.msra.mxu0 %v9056
      %9078 = vmatpush.bf16.msra.mxu0 %v9055
      %9079 = vmatmul.bf16.gmra.mxu0 %v9021
      %v9080 = vpop.f32.mrf.mxu0
      %v9081 = vadd.f32 0.0, %v9080
      %v9082 = vpop.f32.mrf.mxu0
      %9083 = vdwg.mxu0
      %v9084 = vadd.f32 %v9001, %v9081
      %v9085 = vld [vmem:[#allocation6 + $0x8] sm:$0x4]
      %v9086 = vld [vmem:[%s5 + $0x500] sm:$0xf]
      %v9087 = vld [vmem:[%s5 + $0x504] sm:$0xf]
      %v9088 = vld [vmem:[%s5 + $0x508] sm:$0xf]
      %v9089 = vld [vmem:[%s5 + $0x50c] sm:$0xf]
      %v9090 = vld [vmem:[%s5 + $0x510] sm:$0xf]
      %v9091 = vld [vmem:[%s5 + $0x514] sm:$0xf]
      %v9092 = vld [vmem:[%s5 + $0x518] sm:$0xf]
      %v9093 = vld [vmem:[%s5 + $0x51c] sm:$0xf]
      %v9094 = vld [vmem:[%s5 + $0x520] sm:$0xf]
      %v9095 = vld [vmem:[%s5 + $0x524] sm:$0xf]
      %v9096 = vld [vmem:[%s5 + $0x528] sm:$0xf]
      %v9097 = vld [vmem:[%s5 + $0x52c] sm:$0xf]
      %v9098 = vld [vmem:[%s5 + $0x530] sm:$0xf]
      %v9099 = vld [vmem:[%s5 + $0x534] sm:$0xf]
      %v9100 = vld [vmem:[%s5 + $0x538] sm:$0xf]
      %v9101 = vld [vmem:[%s5 + $0x53c] sm:$0xf]
      %v9103 = vunpack.c.l.b16 %v9085
      %v9104 = vpack.c.b16 %v9103, %v9103
      %v9105 = vrot.slane %v9104, 2
      %v9123 = vunpack.c.l.b16 %v9086
      %v9124 = vunpack.c.l.b16 %v9087
      %v9125 = vunpack.c.l.b16 %v9088
      %v9126 = vunpack.c.l.b16 %v9089
      %v9127 = vunpack.c.l.b16 %v9090
      %v9128 = vunpack.c.l.b16 %v9091
      %v9129 = vunpack.c.l.b16 %v9092
      %v9130 = vunpack.c.l.b16 %v9093
      %v9131 = vunpack.c.l.b16 %v9094
      %v9132 = vunpack.c.l.b16 %v9095
      %v9133 = vunpack.c.l.b16 %v9096
      %v9134 = vunpack.c.l.b16 %v9097
      %v9135 = vunpack.c.l.b16 %v9098
      %v9136 = vunpack.c.l.b16 %v9099
      %v9137 = vunpack.c.l.b16 %v9100
      %v9138 = vunpack.c.l.b16 %v9101
      %v9139 = vpack.c.b16 %v9124, %v9123
      %v9140 = vpack.c.b16 %v9126, %v9125
      %v9141 = vpack.c.b16 %v9128, %v9127
      %v9142 = vpack.c.b16 %v9130, %v9129
      %v9143 = vpack.c.b16 %v9132, %v9131
      %v9144 = vpack.c.b16 %v9134, %v9133
      %v9145 = vpack.c.b16 %v9136, %v9135
      %v9146 = vpack.c.b16 %v9138, %v9137
      %9155 = vmatpush.bf16.msra.mxu0 %v9146
      %9156 = vmatpush.bf16.msra.mxu0 %v9145
      %9157 = vmatpush.bf16.msra.mxu0 %v9144
      %9158 = vmatpush.bf16.msra.mxu0 %v9143
      %9159 = vmatpush.bf16.msra.mxu0 %v9142
      %9160 = vmatpush.bf16.msra.mxu0 %v9141
      %9161 = vmatpush.bf16.msra.mxu0 %v9140
      %9162 = vmatpush.bf16.msra.mxu0 %v9139
      %9163 = vmatmul.bf16.gmra.mxu0 %v9105
      %v9164 = vpop.f32.mrf.mxu0
      %v9165 = vadd.f32 0.0, %v9164
      %v9166 = vpop.f32.mrf.mxu0
      %9167 = vdwg.mxu0
      %v9168 = vadd.f32 %v9084, %v9165
      %v9169 = vld [vmem:[%s5 + $0x540] sm:$0xf]
      %v9170 = vld [vmem:[%s5 + $0x544] sm:$0xf]
      %v9171 = vld [vmem:[%s5 + $0x548] sm:$0xf]
      %v9172 = vld [vmem:[%s5 + $0x54c] sm:$0xf]
      %v9173 = vld [vmem:[%s5 + $0x550] sm:$0xf]
      %v9174 = vld [vmem:[%s5 + $0x554] sm:$0xf]
      %v9175 = vld [vmem:[%s5 + $0x558] sm:$0xf]
      %v9176 = vld [vmem:[%s5 + $0x55c] sm:$0xf]
      %v9177 = vld [vmem:[%s5 + $0x560] sm:$0xf]
      %v9178 = vld [vmem:[%s5 + $0x564] sm:$0xf]
      %v9179 = vld [vmem:[%s5 + $0x568] sm:$0xf]
      %v9180 = vld [vmem:[%s5 + $0x56c] sm:$0xf]
      %v9181 = vld [vmem:[%s5 + $0x570] sm:$0xf]
      %v9182 = vld [vmem:[%s5 + $0x574] sm:$0xf]
      %v9183 = vld [vmem:[%s5 + $0x578] sm:$0xf]
      %v9184 = vld [vmem:[%s5 + $0x57c] sm:$0xf]
      %v9186 = vshrl.u32 %v9104, 16
      %v9188 = vrot.slane %v9186, 2
      %v9206 = vunpack.c.l.b16 %v9169
      %v9207 = vunpack.c.l.b16 %v9170
      %v9208 = vunpack.c.l.b16 %v9171
      %v9209 = vunpack.c.l.b16 %v9172
      %v9210 = vunpack.c.l.b16 %v9173
      %v9211 = vunpack.c.l.b16 %v9174
      %v9212 = vunpack.c.l.b16 %v9175
      %v9213 = vunpack.c.l.b16 %v9176
      %v9214 = vunpack.c.l.b16 %v9177
      %v9215 = vunpack.c.l.b16 %v9178
      %v9216 = vunpack.c.l.b16 %v9179
      %v9217 = vunpack.c.l.b16 %v9180
      %v9218 = vunpack.c.l.b16 %v9181
      %v9219 = vunpack.c.l.b16 %v9182
      %v9220 = vunpack.c.l.b16 %v9183
      %v9221 = vunpack.c.l.b16 %v9184
      %v9222 = vpack.c.b16 %v9207, %v9206
      %v9223 = vpack.c.b16 %v9209, %v9208
      %v9224 = vpack.c.b16 %v9211, %v9210
      %v9225 = vpack.c.b16 %v9213, %v9212
      %v9226 = vpack.c.b16 %v9215, %v9214
      %v9227 = vpack.c.b16 %v9217, %v9216
      %v9228 = vpack.c.b16 %v9219, %v9218
      %v9229 = vpack.c.b16 %v9221, %v9220
      %9238 = vmatpush.bf16.msra.mxu0 %v9229
      %9239 = vmatpush.bf16.msra.mxu0 %v9228
      %9240 = vmatpush.bf16.msra.mxu0 %v9227
      %9241 = vmatpush.bf16.msra.mxu0 %v9226
      %9242 = vmatpush.bf16.msra.mxu0 %v9225
      %9243 = vmatpush.bf16.msra.mxu0 %v9224
      %9244 = vmatpush.bf16.msra.mxu0 %v9223
      %9245 = vmatpush.bf16.msra.mxu0 %v9222
      %9246 = vmatmul.bf16.gmra.mxu0 %v9188
      %v9247 = vpop.f32.mrf.mxu0
      %v9248 = vadd.f32 0.0, %v9247
      %v9249 = vpop.f32.mrf.mxu0
      %9250 = vdwg.mxu0
      %v9251 = vadd.f32 %v9168, %v9248
      %v9252 = vld [vmem:[#allocation6 + $0x8] sm:$0x8]
      %v9253 = vld [vmem:[%s5 + $0x580] sm:$0xf]
      %v9254 = vld [vmem:[%s5 + $0x584] sm:$0xf]
      %v9255 = vld [vmem:[%s5 + $0x588] sm:$0xf]
      %v9256 = vld [vmem:[%s5 + $0x58c] sm:$0xf]
      %v9257 = vld [vmem:[%s5 + $0x590] sm:$0xf]
      %v9258 = vld [vmem:[%s5 + $0x594] sm:$0xf]
      %v9259 = vld [vmem:[%s5 + $0x598] sm:$0xf]
      %v9260 = vld [vmem:[%s5 + $0x59c] sm:$0xf]
      %v9261 = vld [vmem:[%s5 + $0x5a0] sm:$0xf]
      %v9262 = vld [vmem:[%s5 + $0x5a4] sm:$0xf]
      %v9263 = vld [vmem:[%s5 + $0x5a8] sm:$0xf]
      %v9264 = vld [vmem:[%s5 + $0x5ac] sm:$0xf]
      %v9265 = vld [vmem:[%s5 + $0x5b0] sm:$0xf]
      %v9266 = vld [vmem:[%s5 + $0x5b4] sm:$0xf]
      %v9267 = vld [vmem:[%s5 + $0x5b8] sm:$0xf]
      %v9268 = vld [vmem:[%s5 + $0x5bc] sm:$0xf]
      %v9270 = vunpack.c.l.b16 %v9252
      %v9271 = vpack.c.b16 %v9270, %v9270
      %v9272 = vrot.slane %v9271, 3
      %v9290 = vunpack.c.l.b16 %v9253
      %v9291 = vunpack.c.l.b16 %v9254
      %v9292 = vunpack.c.l.b16 %v9255
      %v9293 = vunpack.c.l.b16 %v9256
      %v9294 = vunpack.c.l.b16 %v9257
      %v9295 = vunpack.c.l.b16 %v9258
      %v9296 = vunpack.c.l.b16 %v9259
      %v9297 = vunpack.c.l.b16 %v9260
      %v9298 = vunpack.c.l.b16 %v9261
      %v9299 = vunpack.c.l.b16 %v9262
      %v9300 = vunpack.c.l.b16 %v9263
      %v9301 = vunpack.c.l.b16 %v9264
      %v9302 = vunpack.c.l.b16 %v9265
      %v9303 = vunpack.c.l.b16 %v9266
      %v9304 = vunpack.c.l.b16 %v9267
      %v9305 = vunpack.c.l.b16 %v9268
      %v9306 = vpack.c.b16 %v9291, %v9290
      %v9307 = vpack.c.b16 %v9293, %v9292
      %v9308 = vpack.c.b16 %v9295, %v9294
      %v9309 = vpack.c.b16 %v9297, %v9296
      %v9310 = vpack.c.b16 %v9299, %v9298
      %v9311 = vpack.c.b16 %v9301, %v9300
      %v9312 = vpack.c.b16 %v9303, %v9302
      %v9313 = vpack.c.b16 %v9305, %v9304
      %9322 = vmatpush.bf16.msra.mxu0 %v9313
      %9323 = vmatpush.bf16.msra.mxu0 %v9312
      %9324 = vmatpush.bf16.msra.mxu0 %v9311
      %9325 = vmatpush.bf16.msra.mxu0 %v9310
      %9326 = vmatpush.bf16.msra.mxu0 %v9309
      %9327 = vmatpush.bf16.msra.mxu0 %v9308
      %9328 = vmatpush.bf16.msra.mxu0 %v9307
      %9329 = vmatpush.bf16.msra.mxu0 %v9306
      %9330 = vmatmul.bf16.gmra.mxu0 %v9272
      %v9331 = vpop.f32.mrf.mxu0
      %v9332 = vadd.f32 0.0, %v9331
      %v9333 = vpop.f32.mrf.mxu0
      %9334 = vdwg.mxu0
      %v9335 = vadd.f32 %v9251, %v9332
      %v9336 = vld [vmem:[%s5 + $0x5c0] sm:$0xf]
      %v9337 = vld [vmem:[%s5 + $0x5c4] sm:$0xf]
      %v9338 = vld [vmem:[%s5 + $0x5c8] sm:$0xf]
      %v9339 = vld [vmem:[%s5 + $0x5cc] sm:$0xf]
      %v9340 = vld [vmem:[%s5 + $0x5d0] sm:$0xf]
      %v9341 = vld [vmem:[%s5 + $0x5d4] sm:$0xf]
      %v9342 = vld [vmem:[%s5 + $0x5d8] sm:$0xf]
      %v9343 = vld [vmem:[%s5 + $0x5dc] sm:$0xf]
      %v9344 = vld [vmem:[%s5 + $0x5e0] sm:$0xf]
      %v9345 = vld [vmem:[%s5 + $0x5e4] sm:$0xf]
      %v9346 = vld [vmem:[%s5 + $0x5e8] sm:$0xf]
      %v9347 = vld [vmem:[%s5 + $0x5ec] sm:$0xf]
      %v9348 = vld [vmem:[%s5 + $0x5f0] sm:$0xf]
      %v9349 = vld [vmem:[%s5 + $0x5f4] sm:$0xf]
      %v9350 = vld [vmem:[%s5 + $0x5f8] sm:$0xf]
      %v9351 = vld [vmem:[%s5 + $0x5fc] sm:$0xf]
      %v9353 = vshrl.u32 %v9271, 16
      %v9355 = vrot.slane %v9353, 3
      %v9373 = vunpack.c.l.b16 %v9336
      %v9374 = vunpack.c.l.b16 %v9337
      %v9375 = vunpack.c.l.b16 %v9338
      %v9376 = vunpack.c.l.b16 %v9339
      %v9377 = vunpack.c.l.b16 %v9340
      %v9378 = vunpack.c.l.b16 %v9341
      %v9379 = vunpack.c.l.b16 %v9342
      %v9380 = vunpack.c.l.b16 %v9343
      %v9381 = vunpack.c.l.b16 %v9344
      %v9382 = vunpack.c.l.b16 %v9345
      %v9383 = vunpack.c.l.b16 %v9346
      %v9384 = vunpack.c.l.b16 %v9347
      %v9385 = vunpack.c.l.b16 %v9348
      %v9386 = vunpack.c.l.b16 %v9349
      %v9387 = vunpack.c.l.b16 %v9350
      %v9388 = vunpack.c.l.b16 %v9351
      %v9389 = vpack.c.b16 %v9374, %v9373
      %v9390 = vpack.c.b16 %v9376, %v9375
      %v9391 = vpack.c.b16 %v9378, %v9377
      %v9392 = vpack.c.b16 %v9380, %v9379
      %v9393 = vpack.c.b16 %v9382, %v9381
      %v9394 = vpack.c.b16 %v9384, %v9383
      %v9395 = vpack.c.b16 %v9386, %v9385
      %v9396 = vpack.c.b16 %v9388, %v9387
      %9405 = vmatpush.bf16.msra.mxu0 %v9396
      %9406 = vmatpush.bf16.msra.mxu0 %v9395
      %9407 = vmatpush.bf16.msra.mxu0 %v9394
      %9408 = vmatpush.bf16.msra.mxu0 %v9393
      %9409 = vmatpush.bf16.msra.mxu0 %v9392
      %9410 = vmatpush.bf16.msra.mxu0 %v9391
      %9411 = vmatpush.bf16.msra.mxu0 %v9390
      %9412 = vmatpush.bf16.msra.mxu0 %v9389
      %9413 = vmatmul.bf16.gmra.mxu0 %v9355
      %v9414 = vpop.f32.mrf.mxu0
      %v9415 = vadd.f32 0.0, %v9414
      %v9416 = vpop.f32.mrf.mxu0
      %9417 = vdwg.mxu0
      %v9418 = vadd.f32 %v9335, %v9415
      %v9419 = vld [vmem:[#allocation6 + $0xc] sm:$0x1]
      %v9420 = vld [vmem:[%s5 + $0x600] sm:$0xf]
      %v9421 = vld [vmem:[%s5 + $0x604] sm:$0xf]
      %v9422 = vld [vmem:[%s5 + $0x608] sm:$0xf]
      %v9423 = vld [vmem:[%s5 + $0x60c] sm:$0xf]
      %v9424 = vld [vmem:[%s5 + $0x610] sm:$0xf]
      %v9425 = vld [vmem:[%s5 + $0x614] sm:$0xf]
      %v9426 = vld [vmem:[%s5 + $0x618] sm:$0xf]
      %v9427 = vld [vmem:[%s5 + $0x61c] sm:$0xf]
      %v9428 = vld [vmem:[%s5 + $0x620] sm:$0xf]
      %v9429 = vld [vmem:[%s5 + $0x624] sm:$0xf]
      %v9430 = vld [vmem:[%s5 + $0x628] sm:$0xf]
      %v9431 = vld [vmem:[%s5 + $0x62c] sm:$0xf]
      %v9432 = vld [vmem:[%s5 + $0x630] sm:$0xf]
      %v9433 = vld [vmem:[%s5 + $0x634] sm:$0xf]
      %v9434 = vld [vmem:[%s5 + $0x638] sm:$0xf]
      %v9435 = vld [vmem:[%s5 + $0x63c] sm:$0xf]
      %v9452 = vunpack.c.l.b16 %v9420
      %v9453 = vunpack.c.l.b16 %v9421
      %v9454 = vunpack.c.l.b16 %v9422
      %v9455 = vunpack.c.l.b16 %v9423
      %v9456 = vunpack.c.l.b16 %v9424
      %v9457 = vunpack.c.l.b16 %v9425
      %v9458 = vunpack.c.l.b16 %v9426
      %v9459 = vunpack.c.l.b16 %v9427
      %v9460 = vunpack.c.l.b16 %v9428
      %v9461 = vunpack.c.l.b16 %v9429
      %v9462 = vunpack.c.l.b16 %v9430
      %v9463 = vunpack.c.l.b16 %v9431
      %v9464 = vunpack.c.l.b16 %v9432
      %v9465 = vunpack.c.l.b16 %v9433
      %v9466 = vunpack.c.l.b16 %v9434
      %v9467 = vunpack.c.l.b16 %v9435
      %v9468 = vpack.c.b16 %v9453, %v9452
      %v9469 = vpack.c.b16 %v9455, %v9454
      %v9470 = vpack.c.b16 %v9457, %v9456
      %v9471 = vpack.c.b16 %v9459, %v9458
      %v9472 = vpack.c.b16 %v9461, %v9460
      %v9473 = vpack.c.b16 %v9463, %v9462
      %v9474 = vpack.c.b16 %v9465, %v9464
      %v9475 = vpack.c.b16 %v9467, %v9466
      %9484 = vmatpush.bf16.msra.mxu0 %v9475
      %9485 = vmatpush.bf16.msra.mxu0 %v9474
      %9486 = vmatpush.bf16.msra.mxu0 %v9473
      %9487 = vmatpush.bf16.msra.mxu0 %v9472
      %9488 = vmatpush.bf16.msra.mxu0 %v9471
      %9489 = vmatpush.bf16.msra.mxu0 %v9470
      %9490 = vmatpush.bf16.msra.mxu0 %v9469
      %9491 = vmatpush.bf16.msra.mxu0 %v9468
      %9492 = vmatmul.bf16.gmra.mxu0 %v9419
      %v9493 = vpop.f32.mrf.mxu0
      %v9494 = vadd.f32 0.0, %v9493
      %v9495 = vpop.f32.mrf.mxu0
      %9496 = vdwg.mxu0
      %v9497 = vadd.f32 %v9418, %v9494
      %v9498 = vld [vmem:[%s6] sm:$0x1]
      %v9499 = vadd.f32 %v9497, %v9498
      %v9500 = vmax.f32 %v9499, 0.0
      %v9501 = vld [vmem:[%s7] sm:$0xf]
      %v9502 = vld [vmem:[%s7 + $0x4] sm:$0xf]
      %v9503 = vld [vmem:[%s7 + $0x8] sm:$0xf]
      %v9504 = vld [vmem:[%s7 + $0xc] sm:$0xf]
      %v9505 = vld [vmem:[%s7 + $0x10] sm:$0xf]
      %v9506 = vld [vmem:[%s7 + $0x14] sm:$0xf]
      %v9507 = vld [vmem:[%s7 + $0x18] sm:$0xf]
      %v9508 = vld [vmem:[%s7 + $0x1c] sm:$0xf]
      %v9509 = vld [vmem:[%s7 + $0x20] sm:$0xf]
      %v9510 = vld [vmem:[%s7 + $0x24] sm:$0xf]
      %v9511 = vld [vmem:[%s7 + $0x28] sm:$0xf]
      %v9512 = vld [vmem:[%s7 + $0x2c] sm:$0xf]
      %v9513 = vld [vmem:[%s7 + $0x30] sm:$0xf]
      %v9514 = vld [vmem:[%s7 + $0x34] sm:$0xf]
      %v9515 = vld [vmem:[%s7 + $0x38] sm:$0xf]
      %v9516 = vld [vmem:[%s7 + $0x3c] sm:$0xf]
      %v9517 = vunpack.c.l.bf16 %v9501
      %v9518 = vunpack.c.l.bf16 %v9502
      %v9519 = vunpack.c.l.bf16 %v9503
      %v9520 = vunpack.c.l.bf16 %v9504
      %v9521 = vunpack.c.l.bf16 %v9505
      %v9522 = vunpack.c.l.bf16 %v9506
      %v9523 = vunpack.c.l.bf16 %v9507
      %v9524 = vunpack.c.l.bf16 %v9508
      %v9525 = vunpack.c.l.bf16 %v9509
      %v9526 = vunpack.c.l.bf16 %v9510
      %v9527 = vunpack.c.l.bf16 %v9511
      %v9528 = vunpack.c.l.bf16 %v9512
      %v9529 = vunpack.c.l.bf16 %v9513
      %v9530 = vunpack.c.l.bf16 %v9514
      %v9531 = vunpack.c.l.bf16 %v9515
      %v9532 = vunpack.c.l.bf16 %v9516
      %v9533 = vld [vmem:[%s8] sm:$0x1]
      %9534 = vmatpush.msra.mxu0 %v9532
      %9535 = vmatpush.msra.mxu0 %v9531
      %9536 = vmatpush.msra.mxu0 %v9530
      %9537 = vmatpush.msra.mxu0 %v9529
      %9538 = vmatpush.msra.mxu0 %v9528
      %9539 = vmatpush.msra.mxu0 %v9527
      %9540 = vmatpush.msra.mxu0 %v9526
      %9541 = vmatpush.msra.mxu0 %v9525
      %9542 = vmatpush.msra.mxu0 %v9524
      %9543 = vmatpush.msra.mxu0 %v9523
      %9544 = vmatpush.msra.mxu0 %v9522
      %9545 = vmatpush.msra.mxu0 %v9521
      %9546 = vmatpush.msra.mxu0 %v9520
      %9547 = vmatpush.msra.mxu0 %v9519
      %9548 = vmatpush.msra.mxu0 %v9518
      %9549 = vmatpush.msra.mxu0 %v9517
      %9550 = vmatmul.f32.gmra.mxu0 %v9500
      %v9551 = vpop.f32.mrf.mxu0
      %v9552 = vadd.f32 %v9533, %v9551
      %9553 = vdwg.mxu0
      %v9554 = vmax.f32 %v9552, 0.0
      %v9555 = vld [vmem:[%s9] sm:$0xf]
      %v9556 = vld [vmem:[%s9 + $0x4] sm:$0xf]
      %v9557 = vld [vmem:[%s9 + $0x8] sm:$0xf]
      %v9558 = vld [vmem:[%s9 + $0xc] sm:$0xf]
      %v9559 = vld [vmem:[%s9 + $0x10] sm:$0xf]
      %v9560 = vld [vmem:[%s9 + $0x14] sm:$0xf]
      %v9561 = vld [vmem:[%s9 + $0x18] sm:$0xf]
      %v9562 = vld [vmem:[%s9 + $0x1c] sm:$0xf]
      %v9563 = vld [vmem:[%s9 + $0x20] sm:$0xf]
      %v9564 = vld [vmem:[%s9 + $0x24] sm:$0xf]
      %v9565 = vld [vmem:[%s9 + $0x28] sm:$0xf]
      %v9566 = vld [vmem:[%s9 + $0x2c] sm:$0xf]
      %v9567 = vld [vmem:[%s9 + $0x30] sm:$0xf]
      %v9568 = vld [vmem:[%s9 + $0x34] sm:$0xf]
      %v9569 = vld [vmem:[%s9 + $0x38] sm:$0xf]
      %v9570 = vld [vmem:[%s9 + $0x3c] sm:$0xf]
      %v9571 = vunpack.c.l.bf16 %v9555
      %v9572 = vunpack.c.l.bf16 %v9556
      %v9573 = vunpack.c.l.bf16 %v9557
      %v9574 = vunpack.c.l.bf16 %v9558
      %v9575 = vunpack.c.l.bf16 %v9559
      %v9576 = vunpack.c.l.bf16 %v9560
      %v9577 = vunpack.c.l.bf16 %v9561
      %v9578 = vunpack.c.l.bf16 %v9562
      %v9579 = vunpack.c.l.bf16 %v9563
      %v9580 = vunpack.c.l.bf16 %v9564
      %v9581 = vunpack.c.l.bf16 %v9565
      %v9582 = vunpack.c.l.bf16 %v9566
      %v9583 = vunpack.c.l.bf16 %v9567
      %v9584 = vunpack.c.l.bf16 %v9568
      %v9585 = vunpack.c.l.bf16 %v9569
      %v9586 = vunpack.c.l.bf16 %v9570
      %v9587 = vld [vmem:[%s10] sm:$0x1]
      %9588 = vmatpush.msra.mxu0 %v9586
      %9589 = vmatpush.msra.mxu0 %v9585
      %9590 = vmatpush.msra.mxu0 %v9584
      %9591 = vmatpush.msra.mxu0 %v9583
      %9592 = vmatpush.msra.mxu0 %v9582
      %9593 = vmatpush.msra.mxu0 %v9581
      %9594 = vmatpush.msra.mxu0 %v9580
      %9595 = vmatpush.msra.mxu0 %v9579
      %9596 = vmatpush.msra.mxu0 %v9578
      %9597 = vmatpush.msra.mxu0 %v9577
      %9598 = vmatpush.msra.mxu0 %v9576
      %9599 = vmatpush.msra.mxu0 %v9575
      %9600 = vmatpush.msra.mxu0 %v9574
      %9601 = vmatpush.msra.mxu0 %v9573
      %9602 = vmatpush.msra.mxu0 %v9572
      %9603 = vmatpush.msra.mxu0 %v9571
      %9604 = vmatmul.f32.gmra.mxu0 %v9554
      %v9605 = vpop.f32.mrf.mxu0
      %v9606 = vadd.f32 %v9587, %v9605
      %9607 = vdwg.mxu0
      %v9608 = vperm.slane %v9606, 0
      %9609 = vst [vmem:[%s386] sm:$0xff] %v9608
      %p9610 = scmp.lt.s32.totalorder %s22, 1
      %s9611 = scalar_select %p9610, %s22, 1
      %s9612 = smul.addr %s9611, 8
      %s9613 = scalar_lea.vmem %s11, %s9612
      // Predicated region
      $region65: #{net_forward.1} parent=63 // pred_check
        %p9614 = pneg %p276
      $region66: #{net_forward.1} parent=63 // pred_check_branch
        %9616 = sbr.rel (%p9614) target = $region68
      $region67: #{net_forward.1} parent=63 // pred_region
        _
      $region68: #{net_forward.1} parent=63 // pred_fallthru
        _
    $region64: #{net_forward.1} parent=5 // pred_fallthru
      _
    %p9617 = scmp.le.s32.totalorder 2, %s17
    // Predicated region
    $region69: #{net_forward.1} parent=5 // pred_check
      %p9618 = pneg %p9617
    $region70: #{net_forward.1} parent=5 // pred_check_branch
      %9620 = sbr.rel (%p9618) target = $region72
    $region71: #{net_forward.1} parent=5 // pred_region
      %s9621 = ssub.s32 %s17, 2
      // Predicated region
      $region73: #{net_forward.1} parent=71 // pred_check
        %p9622 = pneg %p282
      $region74: #{net_forward.1} parent=71 // pred_check_branch
        %9624 = sbr.rel (%p9622) target = $region76
      $region75: #{net_forward.1} parent=71 // pred_region
        %p9625 = scmp.lt.s32.totalorder %s23, 1
        %s9626 = scalar_select %p9625, %s23, 1
        %s9627 = smul.addr %s9626, 8
        %s9628 = scalar_lea.vmem %s11, %s9627
      $region76: #{net_forward.1} parent=71 // pred_fallthru
        _
    $region72: #{net_forward.1} parent=5 // pred_fallthru
      _
  $region6: #{net_forward.1} parent=0 // loop_footer
    %s21 = sadd.s32 1, %s17
  $region7: #{net_forward.1} parent=0 // loop_footer_branch
    %16 = sbr.rel target = $region3
  $region8: #{net_forward.1} parent=0 // loop_exit
    _

</llo_original>
